<compile_context>
chip_gen: v7x
topology: tpu7x:2x2x1
jax: 0.10.0
libtpu: 0.0.40
codegen_flags: <defaults>
</compile_context>

<pallas_src>
import functools

import numpy as np
import jax
import jax.numpy as jnp
from jax.experimental import pallas as pl
from jax.experimental.pallas import tpu as pltpu

HP = jax.lax.Precision.HIGHEST

# 3x3 taps in (dy, dx) raster order == (ky, kx) raster order of the weights.
_TAPS = tuple((dy, dx) for dy in (-1, 0, 1) for dx in (-1, 0, 1))


def _thead_kernel(x_ref, w_ref, b_ref, mask_ref, out_ref, *, N, C, H, W, BT):
    """One batch tile: N chained 3x3 conv + ReLU, all intermediates out.

    x_ref   : (C, L)       input activations, L = BT*H*W (batch on lane axis)
    w_ref   : (N, C, 9*C)  fused conv weights, K laid out as (ky, kx, ci)
    b_ref   : (N, C, 1)    biases
    mask_ref: (9, L)       per-tap validity mask (image border + batch seams)
    out_ref : (N, C, L)    all N intermediate activations
    """
    L = BT * H * W
    f32 = jnp.float32

    cur = x_ref[...].astype(f32)          # (C, L)
    masks = mask_ref[...]                 # (9, L), loaded once, reused N times

    for k in range(N):
        taps = []
        for t, (dy, dx) in enumerate(_TAPS):
            off = dy * W + dx             # flat shift: neighbour (h+dy, w+dx)
            if off == 0:
                taps.append(cur)          # centre tap is always in-bounds
            else:
                # shifted[:, p] = cur[:, p + off]; lanes whose neighbour
                # crosses a row boundary, an image border, or a batch seam in
                # the concatenated layout are exactly the invalid taps, which
                # the precomputed mask zeroes.
                sh = pltpu.roll(cur, shift=(-off) % L, axis=1)
                taps.append(sh * masks[t:t + 1, :])
        stacked = jnp.concatenate(taps, axis=0)            # (9*C, L)
        # Single fused matmul over all 9 taps (K = 9*C) on the MXU.
        y = jnp.dot(w_ref[k], stacked,
                    preferred_element_type=f32, precision=HP)
        y = jnp.maximum(y + b_ref[k], 0.0)                 # bias + ReLU
        out_ref[k] = y
        cur = y


def _build_tap_masks(H, W):
    """(9, HW) f32 mask: 1 where the (dy, dx) neighbour is inside the image."""
    idx = np.arange(H * W)
    hh, ww = idx // W, idx % W
    rows = []
    for dy, dx in _TAPS:
        valid = ((hh + dy >= 0) & (hh + dy < H) &
                 (ww + dx >= 0) & (ww + dx < W))
        rows.append(valid.astype(np.float32))
    return jnp.asarray(np.stack(rows, axis=0))


def _fuse_weights(w):
    """(N, C, C, 3, 3) -> (N, C, 9*C) with K ordered (ky, kx, ci) to match the
    tap-stacking order used inside the kernel."""
    N, Co, Ci, _, _ = w.shape
    return jnp.transpose(w, (0, 1, 3, 4, 2)).reshape(N, Co, 9 * Ci)


def _pick_batch_tile(B, C, N, HW, budget_bytes=8 << 20):
    """Largest divisor of B whose per-step working set fits the VMEM budget.

    Requires the block lane width (bt*HW) to be a multiple of 128 unless the
    tile covers the whole batch (full-array block is always legal)."""
    def fits(bt):
        l = bt * HW
        blocks = C * l + 9 * l + N * C * l        # x + masks + out (f32 words)
        resident = N * C * 9 * C + N * C          # weights + biases
        return 4 * (2 * blocks + resident) <= budget_bytes
    cands = [d for d in range(1, B + 1)
             if B % d == 0 and ((d * HW) % 128 == 0 or d == B)]
    ok = [d for d in cands if fits(d)]
    return max(ok) if ok else min(cands)


def thead_forward_single_level(x, w, b):
    """x: (B, C, H, W); w: (N, C, C, 3, 3); b: (N, C).
    Returns a list of N arrays of shape (B, C, H, W) (the intermediates)."""
    B, C, H, W = x.shape
    N = w.shape[0]
    HW = H * W

    bt = _pick_batch_tile(B, C, N, HW)
    L = bt * HW

    # Lane-dense layout: batch concatenated along the lane axis.
    x_l = jnp.transpose(x, (1, 0, 2, 3)).reshape(C, B * HW).astype(jnp.float32)
    w_f = _fuse_weights(w.astype(jnp.float32))             # (N, C, 9C)
    b_f = b.astype(jnp.float32).reshape(N, C, 1)
    masks = jnp.tile(_build_tap_masks(H, W), (1, bt))      # (9, L), batch-inv.

    kernel = functools.partial(_thead_kernel, N=N, C=C, H=H, W=W, BT=bt)

    out = pl.pallas_call(
        kernel,
        out_shape=jax.ShapeDtypeStruct((N, C, B * HW), jnp.float32),
        grid=(B // bt,),
        in_specs=[
            pl.BlockSpec((C, L), lambda i: (0, i)),            # batch tile
            pl.BlockSpec((N, C, 9 * C), lambda i: (0, 0, 0)),  # resident
            pl.BlockSpec((N, C, 1), lambda i: (0, 0, 0)),      # resident
            pl.BlockSpec((9, L), lambda i: (0, 0)),            # resident
        ],
        out_specs=pl.BlockSpec((N, C, L), lambda i: (0, 0, i)),
        compiler_params=pltpu.CompilerParams(
            dimension_semantics=("parallel",)),
    )(x_l, w_f, b_f, masks)

    out = out.reshape(N, C, B, H, W)
    out = jnp.transpose(out, (2, 0, 1, 3, 4))                  # (B, N, C, H, W)
    return [out[:, k] for k in range(N)]


def thead_forward(x, params_per_level, level_idx=None):
    """Mirrors THead.forward: list/tuple input -> one result per level,
    single tensor input requires level_idx."""
    if isinstance(x, (list, tuple)):
        return [thead_forward_single_level(f, params_per_level[i]["w"],
                                           params_per_level[i]["b"])
                for i, f in enumerate(x)]
    if level_idx is None:
        raise ValueError("level_idx must be provided for single tensor input")
    p = params_per_level[level_idx]
    return thead_forward_single_level(x, p["w"], p["b"])


def make_params(key, C=4, N=6, num_levels=1):
    """kaiming_normal_(fan_out, relu)-style weights; small random biases."""
    params = []
    std = float(np.sqrt(2.0 / (C * 9)))
    for li in range(num_levels):
        kw, kb = jax.random.split(jax.random.fold_in(key, li))
        w = std * jax.random.normal(kw, (N, C, C, 3, 3), dtype=jnp.float32)
        b = 0.01 * jax.random.normal(kb, (N, C), dtype=jnp.float32)
        params.append(dict(w=w, b=b))
    return params


def reference_forward_single_level(x, w, b):
    """Pure-JAX reference of THead.forward_single_level (stacked on axis 1)."""
    N = w.shape[0]
    outs = []
    cur = x
    for k in range(N):
        y = jax.lax.conv_general_dilated(
            cur, w[k], window_strides=(1, 1), padding=[(1, 1), (1, 1)],
            dimension_numbers=("NCHW", "OIHW", "NCHW"), precision=HP)
        y = jax.nn.relu(y + b[k][None, :, None, None])
        outs.append(y)
        cur = y
    return jnp.stack(outs, axis=1)        # (B, N, C, H, W)


if __name__ == "__main__":
    key = jax.random.PRNGKey(0)
    kp, kx = jax.random.split(key)

    B, C, N, H, W = 2, 4, 6, 16, 16
    params = make_params(kp, C=C, N=N, num_levels=1)
    x = jax.random.normal(kx, (B, C, H, W), dtype=jnp.float32)

    outs = thead_forward(x, params, level_idx=0)        # list of N (B,C,H,W)
    out = jax.block_until_ready(jnp.stack(outs, axis=1))

    ref = jax.block_until_ready(
        reference_forward_single_level(x, params[0]["w"], params[0]["b"]))

    np.testing.assert_allclose(np.asarray(out), np.asarray(ref),
                               rtol=1e-3, atol=1e-3)
    print("KERNEL_OK")
</pallas_src>

<mosaic_0001>
module attributes {stable_mosaic.version = 11 : i64} {
  func.func @_thead_kernel(%arg0: i32, %arg1: memref<4x512xf32, #tpu.memory_space<vmem>>, %arg2: memref<6x4x36xf32, #tpu.memory_space<vmem>>, %arg3: memref<6x4x1xf32, #tpu.memory_space<vmem>>, %arg4: memref<9x512xf32, #tpu.memory_space<vmem>>, %arg5: memref<6x4x512xf32, #tpu.memory_space<vmem>>) attributes {dimension_semantics = [#tpu.dimension_semantics<parallel>], iteration_bounds = array<i64: 1>, scalar_prefetch = 0 : i64, scratch_operands = 0 : i64, tpu.core_type = #tpu.core_type<tc>, window_params = [{transform_indices = @transform_0, window_bounds = array<i64: 4, 512>}, {pipeline_mode = #tpu.pipeline_mode<synchronous>, transform_indices = @transform_1, window_bounds = array<i64: 6, 4, 36>}, {pipeline_mode = #tpu.pipeline_mode<synchronous>, transform_indices = @transform_2, window_bounds = array<i64: 6, 4, 1>}, {pipeline_mode = #tpu.pipeline_mode<synchronous>, transform_indices = @transform_3, window_bounds = array<i64: 9, 512>}, {transform_indices = @transform_4, window_bounds = array<i64: 6, 4, 512>}]} {
    %c0 = arith.constant 0 : index
    %c0_0 = arith.constant 0 : index
    %0 = vector.load %arg1[%c0, %c0_0] : memref<4x512xf32, #tpu.memory_space<vmem>>, vector<4x512xf32>
    %c0_1 = arith.constant 0 : index
    %c0_2 = arith.constant 0 : index
    %1 = vector.load %arg4[%c0_1, %c0_2] : memref<9x512xf32, #tpu.memory_space<vmem>>, vector<9x512xf32>
    %c17_i32 = arith.constant 17 : i32
    %2 = tpu.dynamic_rotate %0 by %c17_i32 dim 1 : vector<4x512xf32>, i32 -> vector<4x512xf32>
    %3 = vector.extract_strided_slice %1 {offsets = [0, 0], sizes = [1, 512], strides = [1, 1]} : vector<9x512xf32> to vector<1x512xf32>
    %4 = vector.broadcast %3 : vector<1x512xf32> to vector<4x512xf32>
    %5 = arith.mulf %2, %4 : vector<4x512xf32>
    %c16_i32 = arith.constant 16 : i32
    %6 = tpu.dynamic_rotate %0 by %c16_i32 dim 1 : vector<4x512xf32>, i32 -> vector<4x512xf32>
    %7 = vector.extract_strided_slice %1 {offsets = [1, 0], sizes = [1, 512], strides = [1, 1]} : vector<9x512xf32> to vector<1x512xf32>
    %8 = vector.broadcast %7 : vector<1x512xf32> to vector<4x512xf32>
    %9 = arith.mulf %6, %8 : vector<4x512xf32>
    %c15_i32 = arith.constant 15 : i32
    %10 = tpu.dynamic_rotate %0 by %c15_i32 dim 1 : vector<4x512xf32>, i32 -> vector<4x512xf32>
    %11 = vector.extract_strided_slice %1 {offsets = [2, 0], sizes = [1, 512], strides = [1, 1]} : vector<9x512xf32> to vector<1x512xf32>
    %12 = vector.broadcast %11 : vector<1x512xf32> to vector<4x512xf32>
    %13 = arith.mulf %10, %12 : vector<4x512xf32>
    %c1_i32 = arith.constant 1 : i32
    %14 = tpu.dynamic_rotate %0 by %c1_i32 dim 1 : vector<4x512xf32>, i32 -> vector<4x512xf32>
    %15 = vector.extract_strided_slice %1 {offsets = [3, 0], sizes = [1, 512], strides = [1, 1]} : vector<9x512xf32> to vector<1x512xf32>
    %16 = vector.broadcast %15 : vector<1x512xf32> to vector<4x512xf32>
    %17 = arith.mulf %14, %16 : vector<4x512xf32>
    %c511_i32 = arith.constant 511 : i32
    %18 = tpu.dynamic_rotate %0 by %c511_i32 dim 1 : vector<4x512xf32>, i32 -> vector<4x512xf32>
    %19 = vector.extract_strided_slice %1 {offsets = [5, 0], sizes = [1, 512], strides = [1, 1]} : vector<9x512xf32> to vector<1x512xf32>
    %20 = vector.broadcast %19 : vector<1x512xf32> to vector<4x512xf32>
    %21 = arith.mulf %18, %20 : vector<4x512xf32>
    %c497_i32 = arith.constant 497 : i32
    %22 = tpu.dynamic_rotate %0 by %c497_i32 dim 1 : vector<4x512xf32>, i32 -> vector<4x512xf32>
    %23 = vector.extract_strided_slice %1 {offsets = [6, 0], sizes = [1, 512], strides = [1, 1]} : vector<9x512xf32> to vector<1x512xf32>
    %24 = vector.broadcast %23 : vector<1x512xf32> to vector<4x512xf32>
    %25 = arith.mulf %22, %24 : vector<4x512xf32>
    %c496_i32 = arith.constant 496 : i32
    %26 = tpu.dynamic_rotate %0 by %c496_i32 dim 1 : vector<4x512xf32>, i32 -> vector<4x512xf32>
    %27 = vector.extract_strided_slice %1 {offsets = [7, 0], sizes = [1, 512], strides = [1, 1]} : vector<9x512xf32> to vector<1x512xf32>
    %28 = vector.broadcast %27 : vector<1x512xf32> to vector<4x512xf32>
    %29 = arith.mulf %26, %28 : vector<4x512xf32>
    %c495_i32 = arith.constant 495 : i32
    %30 = tpu.dynamic_rotate %0 by %c495_i32 dim 1 : vector<4x512xf32>, i32 -> vector<4x512xf32>
    %31 = vector.extract_strided_slice %1 {offsets = [8, 0], sizes = [1, 512], strides = [1, 1]} : vector<9x512xf32> to vector<1x512xf32>
    %32 = vector.broadcast %31 : vector<1x512xf32> to vector<4x512xf32>
    %33 = arith.mulf %30, %32 : vector<4x512xf32>
    %34 = tpu.concatenate %5, %9, %13, %17, %0, %21, %25, %29, %33 in 0 : vector<4x512xf32>, vector<4x512xf32>, vector<4x512xf32>, vector<4x512xf32>, vector<4x512xf32>, vector<4x512xf32>, vector<4x512xf32>, vector<4x512xf32>, vector<4x512xf32> -> vector<36x512xf32>
    %c0_3 = arith.constant 0 : index
    %c0_4 = arith.constant 0 : index
    %c0_5 = arith.constant 0 : index
    %35 = vector.load %arg2[%c0_3, %c0_4, %c0_5] : memref<6x4x36xf32, #tpu.memory_space<vmem>>, vector<1x4x36xf32>
    %36 = vector.shape_cast %35 : vector<1x4x36xf32> to vector<4x36xf32>
    %cst = arith.constant dense<0.000000e+00> : vector<4x512xf32>
    %37 = tpu.matmul %36, %34, %cst {dimension_numbers = #tpu.dot_dimension_numbers<[1], [0], [0], [1], [0, 0, 1, 1], [], []>, precision = #tpu.contract_precision<fp32>} : vector<4x36xf32>, vector<36x512xf32>, vector<4x512xf32> -> vector<4x512xf32>
    %c0_6 = arith.constant 0 : index
    %c0_7 = arith.constant 0 : index
    %c0_8 = arith.constant 0 : index
    %38 = vector.load %arg3[%c0_6, %c0_7, %c0_8] : memref<6x4x1xf32, #tpu.memory_space<vmem>>, vector<1x4x1xf32>
    %39 = vector.shape_cast %38 : vector<1x4x1xf32> to vector<4x1xf32>
    %40 = vector.broadcast %39 : vector<4x1xf32> to vector<4x512xf32>
    %41 = arith.addf %37, %40 : vector<4x512xf32>
    %cst_9 = arith.constant 0.000000e+00 : f32
    %42 = vector.broadcast %cst_9 : f32 to vector<4x512xf32>
    %43 = arith.maximumf %41, %42 : vector<4x512xf32>
    %c0_10 = arith.constant 0 : index
    %c0_11 = arith.constant 0 : index
    %c0_12 = arith.constant 0 : index
    %44 = vector.load %arg5[%c0_10, %c0_11, %c0_12] : memref<6x4x512xf32, #tpu.memory_space<vmem>>, vector<1x4x512xf32>
    %45 = vector.shape_cast %44 : vector<1x4x512xf32> to vector<4x512xf32>
    %46 = vector.shape_cast %43 : vector<4x512xf32> to vector<1x4x512xf32>
    tpu.vector_store %arg5[%c0_10, %c0_11, %c0_12], %46 {strides = array<i32>} : memref<6x4x512xf32, #tpu.memory_space<vmem>>, vector<1x4x512xf32>,
    %c17_i32_13 = arith.constant 17 : i32
    %47 = tpu.dynamic_rotate %43 by %c17_i32_13 dim 1 : vector<4x512xf32>, i32 -> vector<4x512xf32>
    %48 = vector.extract_strided_slice %1 {offsets = [0, 0], sizes = [1, 512], strides = [1, 1]} : vector<9x512xf32> to vector<1x512xf32>
    %49 = vector.broadcast %48 : vector<1x512xf32> to vector<4x512xf32>
    %50 = arith.mulf %47, %49 : vector<4x512xf32>
    %c16_i32_14 = arith.constant 16 : i32
    %51 = tpu.dynamic_rotate %43 by %c16_i32_14 dim 1 : vector<4x512xf32>, i32 -> vector<4x512xf32>
    %52 = vector.extract_strided_slice %1 {offsets = [1, 0], sizes = [1, 512], strides = [1, 1]} : vector<9x512xf32> to vector<1x512xf32>
    %53 = vector.broadcast %52 : vector<1x512xf32> to vector<4x512xf32>
    %54 = arith.mulf %51, %53 : vector<4x512xf32>
    %c15_i32_15 = arith.constant 15 : i32
    %55 = tpu.dynamic_rotate %43 by %c15_i32_15 dim 1 : vector<4x512xf32>, i32 -> vector<4x512xf32>
    %56 = vector.extract_strided_slice %1 {offsets = [2, 0], sizes = [1, 512], strides = [1, 1]} : vector<9x512xf32> to vector<1x512xf32>
    %57 = vector.broadcast %56 : vector<1x512xf32> to vector<4x512xf32>
    %58 = arith.mulf %55, %57 : vector<4x512xf32>
    %c1_i32_16 = arith.constant 1 : i32
    %59 = tpu.dynamic_rotate %43 by %c1_i32_16 dim 1 : vector<4x512xf32>, i32 -> vector<4x512xf32>
    %60 = vector.extract_strided_slice %1 {offsets = [3, 0], sizes = [1, 512], strides = [1, 1]} : vector<9x512xf32> to vector<1x512xf32>
    %61 = vector.broadcast %60 : vector<1x512xf32> to vector<4x512xf32>
    %62 = arith.mulf %59, %61 : vector<4x512xf32>
    %c511_i32_17 = arith.constant 511 : i32
    %63 = tpu.dynamic_rotate %43 by %c511_i32_17 dim 1 : vector<4x512xf32>, i32 -> vector<4x512xf32>
    %64 = vector.extract_strided_slice %1 {offsets = [5, 0], sizes = [1, 512], strides = [1, 1]} : vector<9x512xf32> to vector<1x512xf32>
    %65 = vector.broadcast %64 : vector<1x512xf32> to vector<4x512xf32>
    %66 = arith.mulf %63, %65 : vector<4x512xf32>
    %c497_i32_18 = arith.constant 497 : i32
    %67 = tpu.dynamic_rotate %43 by %c497_i32_18 dim 1 : vector<4x512xf32>, i32 -> vector<4x512xf32>
    %68 = vector.extract_strided_slice %1 {offsets = [6, 0], sizes = [1, 512], strides = [1, 1]} : vector<9x512xf32> to vector<1x512xf32>
    %69 = vector.broadcast %68 : vector<1x512xf32> to vector<4x512xf32>
    %70 = arith.mulf %67, %69 : vector<4x512xf32>
    %c496_i32_19 = arith.constant 496 : i32
    %71 = tpu.dynamic_rotate %43 by %c496_i32_19 dim 1 : vector<4x512xf32>, i32 -> vector<4x512xf32>
    %72 = vector.extract_strided_slice %1 {offsets = [7, 0], sizes = [1, 512], strides = [1, 1]} : vector<9x512xf32> to vector<1x512xf32>
    %73 = vector.broadcast %72 : vector<1x512xf32> to vector<4x512xf32>
    %74 = arith.mulf %71, %73 : vector<4x512xf32>
    %c495_i32_20 = arith.constant 495 : i32
    %75 = tpu.dynamic_rotate %43 by %c495_i32_20 dim 1 : vector<4x512xf32>, i32 -> vector<4x512xf32>
    %76 = vector.extract_strided_slice %1 {offsets = [8, 0], sizes = [1, 512], strides = [1, 1]} : vector<9x512xf32> to vector<1x512xf32>
    %77 = vector.broadcast %76 : vector<1x512xf32> to vector<4x512xf32>
    %78 = arith.mulf %75, %77 : vector<4x512xf32>
    %79 = tpu.concatenate %50, %54, %58, %62, %43, %66, %70, %74, %78 in 0 : vector<4x512xf32>, vector<4x512xf32>, vector<4x512xf32>, vector<4x512xf32>, vector<4x512xf32>, vector<4x512xf32>, vector<4x512xf32>, vector<4x512xf32>, vector<4x512xf32> -> vector<36x512xf32>
    %c1 = arith.constant 1 : index
    %c0_21 = arith.constant 0 : index
    %c0_22 = arith.constant 0 : index
    %80 = vector.load %arg2[%c1, %c0_21, %c0_22] : memref<6x4x36xf32, #tpu.memory_space<vmem>>, vector<1x4x36xf32>
    %81 = vector.shape_cast %80 : vector<1x4x36xf32> to vector<4x36xf32>
    %cst_23 = arith.constant dense<0.000000e+00> : vector<4x512xf32>
    %82 = tpu.matmul %81, %79, %cst_23 {dimension_numbers = #tpu.dot_dimension_numbers<[1], [0], [0], [1], [0, 0, 1, 1], [], []>, precision = #tpu.contract_precision<fp32>} : vector<4x36xf32>, vector<36x512xf32>, vector<4x512xf32> -> vector<4x512xf32>
    %c1_24 = arith.constant 1 : index
    %c0_25 = arith.constant 0 : index
    %c0_26 = arith.constant 0 : index
    %83 = vector.load %arg3[%c1_24, %c0_25, %c0_26] : memref<6x4x1xf32, #tpu.memory_space<vmem>>, vector<1x4x1xf32>
    %84 = vector.shape_cast %83 : vector<1x4x1xf32> to vector<4x1xf32>
    %85 = vector.broadcast %84 : vector<4x1xf32> to vector<4x512xf32>
    %86 = arith.addf %82, %85 : vector<4x512xf32>
    %cst_27 = arith.constant 0.000000e+00 : f32
    %87 = vector.broadcast %cst_27 : f32 to vector<4x512xf32>
    %88 = arith.maximumf %86, %87 : vector<4x512xf32>
    %c1_28 = arith.constant 1 : index
    %c0_29 = arith.constant 0 : index
    %c0_30 = arith.constant 0 : index
    %89 = vector.load %arg5[%c1_28, %c0_29, %c0_30] : memref<6x4x512xf32, #tpu.memory_space<vmem>>, vector<1x4x512xf32>
    %90 = vector.shape_cast %89 : vector<1x4x512xf32> to vector<4x512xf32>
    %91 = vector.shape_cast %88 : vector<4x512xf32> to vector<1x4x512xf32>
    tpu.vector_store %arg5[%c1_28, %c0_29, %c0_30], %91 {strides = array<i32>} : memref<6x4x512xf32, #tpu.memory_space<vmem>>, vector<1x4x512xf32>,
    %c17_i32_31 = arith.constant 17 : i32
    %92 = tpu.dynamic_rotate %88 by %c17_i32_31 dim 1 : vector<4x512xf32>, i32 -> vector<4x512xf32>
    %93 = vector.extract_strided_slice %1 {offsets = [0, 0], sizes = [1, 512], strides = [1, 1]} : vector<9x512xf32> to vector<1x512xf32>
    %94 = vector.broadcast %93 : vector<1x512xf32> to vector<4x512xf32>
    %95 = arith.mulf %92, %94 : vector<4x512xf32>
    %c16_i32_32 = arith.constant 16 : i32
    %96 = tpu.dynamic_rotate %88 by %c16_i32_32 dim 1 : vector<4x512xf32>, i32 -> vector<4x512xf32>
    %97 = vector.extract_strided_slice %1 {offsets = [1, 0], sizes = [1, 512], strides = [1, 1]} : vector<9x512xf32> to vector<1x512xf32>
    %98 = vector.broadcast %97 : vector<1x512xf32> to vector<4x512xf32>
    %99 = arith.mulf %96, %98 : vector<4x512xf32>
    %c15_i32_33 = arith.constant 15 : i32
    %100 = tpu.dynamic_rotate %88 by %c15_i32_33 dim 1 : vector<4x512xf32>, i32 -> vector<4x512xf32>
    %101 = vector.extract_strided_slice %1 {offsets = [2, 0], sizes = [1, 512], strides = [1, 1]} : vector<9x512xf32> to vector<1x512xf32>
    %102 = vector.broadcast %101 : vector<1x512xf32> to vector<4x512xf32>
    %103 = arith.mulf %100, %102 : vector<4x512xf32>
    %c1_i32_34 = arith.constant 1 : i32
    %104 = tpu.dynamic_rotate %88 by %c1_i32_34 dim 1 : vector<4x512xf32>, i32 -> vector<4x512xf32>
    %105 = vector.extract_strided_slice %1 {offsets = [3, 0], sizes = [1, 512], strides = [1, 1]} : vector<9x512xf32> to vector<1x512xf32>
    %106 = vector.broadcast %105 : vector<1x512xf32> to vector<4x512xf32>
    %107 = arith.mulf %104, %106 : vector<4x512xf32>
    %c511_i32_35 = arith.constant 511 : i32
    %108 = tpu.dynamic_rotate %88 by %c511_i32_35 dim 1 : vector<4x512xf32>, i32 -> vector<4x512xf32>
    %109 = vector.extract_strided_slice %1 {offsets = [5, 0], sizes = [1, 512], strides = [1, 1]} : vector<9x512xf32> to vector<1x512xf32>
    %110 = vector.broadcast %109 : vector<1x512xf32> to vector<4x512xf32>
    %111 = arith.mulf %108, %110 : vector<4x512xf32>
    %c497_i32_36 = arith.constant 497 : i32
    %112 = tpu.dynamic_rotate %88 by %c497_i32_36 dim 1 : vector<4x512xf32>, i32 -> vector<4x512xf32>
    %113 = vector.extract_strided_slice %1 {offsets = [6, 0], sizes = [1, 512], strides = [1, 1]} : vector<9x512xf32> to vector<1x512xf32>
    %114 = vector.broadcast %113 : vector<1x512xf32> to vector<4x512xf32>
    %115 = arith.mulf %112, %114 : vector<4x512xf32>
    %c496_i32_37 = arith.constant 496 : i32
    %116 = tpu.dynamic_rotate %88 by %c496_i32_37 dim 1 : vector<4x512xf32>, i32 -> vector<4x512xf32>
    %117 = vector.extract_strided_slice %1 {offsets = [7, 0], sizes = [1, 512], strides = [1, 1]} : vector<9x512xf32> to vector<1x512xf32>
    %118 = vector.broadcast %117 : vector<1x512xf32> to vector<4x512xf32>
    %119 = arith.mulf %116, %118 : vector<4x512xf32>
    %c495_i32_38 = arith.constant 495 : i32
    %120 = tpu.dynamic_rotate %88 by %c495_i32_38 dim 1 : vector<4x512xf32>, i32 -> vector<4x512xf32>
    %121 = vector.extract_strided_slice %1 {offsets = [8, 0], sizes = [1, 512], strides = [1, 1]} : vector<9x512xf32> to vector<1x512xf32>
    %122 = vector.broadcast %121 : vector<1x512xf32> to vector<4x512xf32>
    %123 = arith.mulf %120, %122 : vector<4x512xf32>
    %124 = tpu.concatenate %95, %99, %103, %107, %88, %111, %115, %119, %123 in 0 : vector<4x512xf32>, vector<4x512xf32>, vector<4x512xf32>, vector<4x512xf32>, vector<4x512xf32>, vector<4x512xf32>, vector<4x512xf32>, vector<4x512xf32>, vector<4x512xf32> -> vector<36x512xf32>
    %c2 = arith.constant 2 : index
    %c0_39 = arith.constant 0 : index
    %c0_40 = arith.constant 0 : index
    %125 = vector.load %arg2[%c2, %c0_39, %c0_40] : memref<6x4x36xf32, #tpu.memory_space<vmem>>, vector<1x4x36xf32>
    %126 = vector.shape_cast %125 : vector<1x4x36xf32> to vector<4x36xf32>
    %cst_41 = arith.constant dense<0.000000e+00> : vector<4x512xf32>
    %127 = tpu.matmul %126, %124, %cst_41 {dimension_numbers = #tpu.dot_dimension_numbers<[1], [0], [0], [1], [0, 0, 1, 1], [], []>, precision = #tpu.contract_precision<fp32>} : vector<4x36xf32>, vector<36x512xf32>, vector<4x512xf32> -> vector<4x512xf32>
    %c2_42 = arith.constant 2 : index
    %c0_43 = arith.constant 0 : index
    %c0_44 = arith.constant 0 : index
    %128 = vector.load %arg3[%c2_42, %c0_43, %c0_44] : memref<6x4x1xf32, #tpu.memory_space<vmem>>, vector<1x4x1xf32>
    %129 = vector.shape_cast %128 : vector<1x4x1xf32> to vector<4x1xf32>
    %130 = vector.broadcast %129 : vector<4x1xf32> to vector<4x512xf32>
    %131 = arith.addf %127, %130 : vector<4x512xf32>
    %cst_45 = arith.constant 0.000000e+00 : f32
    %132 = vector.broadcast %cst_45 : f32 to vector<4x512xf32>
    %133 = arith.maximumf %131, %132 : vector<4x512xf32>
    %c2_46 = arith.constant 2 : index
    %c0_47 = arith.constant 0 : index
    %c0_48 = arith.constant 0 : index
    %134 = vector.load %arg5[%c2_46, %c0_47, %c0_48] : memref<6x4x512xf32, #tpu.memory_space<vmem>>, vector<1x4x512xf32>
    %135 = vector.shape_cast %134 : vector<1x4x512xf32> to vector<4x512xf32>
    %136 = vector.shape_cast %133 : vector<4x512xf32> to vector<1x4x512xf32>
    tpu.vector_store %arg5[%c2_46, %c0_47, %c0_48], %136 {strides = array<i32>} : memref<6x4x512xf32, #tpu.memory_space<vmem>>, vector<1x4x512xf32>,
    %c17_i32_49 = arith.constant 17 : i32
    %137 = tpu.dynamic_rotate %133 by %c17_i32_49 dim 1 : vector<4x512xf32>, i32 -> vector<4x512xf32>
    %138 = vector.extract_strided_slice %1 {offsets = [0, 0], sizes = [1, 512], strides = [1, 1]} : vector<9x512xf32> to vector<1x512xf32>
    %139 = vector.broadcast %138 : vector<1x512xf32> to vector<4x512xf32>
    %140 = arith.mulf %137, %139 : vector<4x512xf32>
    %c16_i32_50 = arith.constant 16 : i32
    %141 = tpu.dynamic_rotate %133 by %c16_i32_50 dim 1 : vector<4x512xf32>, i32 -> vector<4x512xf32>
    %142 = vector.extract_strided_slice %1 {offsets = [1, 0], sizes = [1, 512], strides = [1, 1]} : vector<9x512xf32> to vector<1x512xf32>
    %143 = vector.broadcast %142 : vector<1x512xf32> to vector<4x512xf32>
    %144 = arith.mulf %141, %143 : vector<4x512xf32>
    %c15_i32_51 = arith.constant 15 : i32
    %145 = tpu.dynamic_rotate %133 by %c15_i32_51 dim 1 : vector<4x512xf32>, i32 -> vector<4x512xf32>
    %146 = vector.extract_strided_slice %1 {offsets = [2, 0], sizes = [1, 512], strides = [1, 1]} : vector<9x512xf32> to vector<1x512xf32>
    %147 = vector.broadcast %146 : vector<1x512xf32> to vector<4x512xf32>
    %148 = arith.mulf %145, %147 : vector<4x512xf32>
    %c1_i32_52 = arith.constant 1 : i32
    %149 = tpu.dynamic_rotate %133 by %c1_i32_52 dim 1 : vector<4x512xf32>, i32 -> vector<4x512xf32>
    %150 = vector.extract_strided_slice %1 {offsets = [3, 0], sizes = [1, 512], strides = [1, 1]} : vector<9x512xf32> to vector<1x512xf32>
    %151 = vector.broadcast %150 : vector<1x512xf32> to vector<4x512xf32>
    %152 = arith.mulf %149, %151 : vector<4x512xf32>
    %c511_i32_53 = arith.constant 511 : i32
    %153 = tpu.dynamic_rotate %133 by %c511_i32_53 dim 1 : vector<4x512xf32>, i32 -> vector<4x512xf32>
    %154 = vector.extract_strided_slice %1 {offsets = [5, 0], sizes = [1, 512], strides = [1, 1]} : vector<9x512xf32> to vector<1x512xf32>
    %155 = vector.broadcast %154 : vector<1x512xf32> to vector<4x512xf32>
    %156 = arith.mulf %153, %155 : vector<4x512xf32>
    %c497_i32_54 = arith.constant 497 : i32
    %157 = tpu.dynamic_rotate %133 by %c497_i32_54 dim 1 : vector<4x512xf32>, i32 -> vector<4x512xf32>
    %158 = vector.extract_strided_slice %1 {offsets = [6, 0], sizes = [1, 512], strides = [1, 1]} : vector<9x512xf32> to vector<1x512xf32>
    %159 = vector.broadcast %158 : vector<1x512xf32> to vector<4x512xf32>
    %160 = arith.mulf %157, %159 : vector<4x512xf32>
    %c496_i32_55 = arith.constant 496 : i32
    %161 = tpu.dynamic_rotate %133 by %c496_i32_55 dim 1 : vector<4x512xf32>, i32 -> vector<4x512xf32>
    %162 = vector.extract_strided_slice %1 {offsets = [7, 0], sizes = [1, 512], strides = [1, 1]} : vector<9x512xf32> to vector<1x512xf32>
    %163 = vector.broadcast %162 : vector<1x512xf32> to vector<4x512xf32>
    %164 = arith.mulf %161, %163 : vector<4x512xf32>
    %c495_i32_56 = arith.constant 495 : i32
    %165 = tpu.dynamic_rotate %133 by %c495_i32_56 dim 1 : vector<4x512xf32>, i32 -> vector<4x512xf32>
    %166 = vector.extract_strided_slice %1 {offsets = [8, 0], sizes = [1, 512], strides = [1, 1]} : vector<9x512xf32> to vector<1x512xf32>
    %167 = vector.broadcast %166 : vector<1x512xf32> to vector<4x512xf32>
    %168 = arith.mulf %165, %167 : vector<4x512xf32>
    %169 = tpu.concatenate %140, %144, %148, %152, %133, %156, %160, %164, %168 in 0 : vector<4x512xf32>, vector<4x512xf32>, vector<4x512xf32>, vector<4x512xf32>, vector<4x512xf32>, vector<4x512xf32>, vector<4x512xf32>, vector<4x512xf32>, vector<4x512xf32> -> vector<36x512xf32>
    %c3 = arith.constant 3 : index
    %c0_57 = arith.constant 0 : index
    %c0_58 = arith.constant 0 : index
    %170 = vector.load %arg2[%c3, %c0_57, %c0_58] : memref<6x4x36xf32, #tpu.memory_space<vmem>>, vector<1x4x36xf32>
    %171 = vector.shape_cast %170 : vector<1x4x36xf32> to vector<4x36xf32>
    %cst_59 = arith.constant dense<0.000000e+00> : vector<4x512xf32>
    %172 = tpu.matmul %171, %169, %cst_59 {dimension_numbers = #tpu.dot_dimension_numbers<[1], [0], [0], [1], [0, 0, 1, 1], [], []>, precision = #tpu.contract_precision<fp32>} : vector<4x36xf32>, vector<36x512xf32>, vector<4x512xf32> -> vector<4x512xf32>
    %c3_60 = arith.constant 3 : index
    %c0_61 = arith.constant 0 : index
    %c0_62 = arith.constant 0 : index
    %173 = vector.load %arg3[%c3_60, %c0_61, %c0_62] : memref<6x4x1xf32, #tpu.memory_space<vmem>>, vector<1x4x1xf32>
    %174 = vector.shape_cast %173 : vector<1x4x1xf32> to vector<4x1xf32>
    %175 = vector.broadcast %174 : vector<4x1xf32> to vector<4x512xf32>
    %176 = arith.addf %172, %175 : vector<4x512xf32>
    %cst_63 = arith.constant 0.000000e+00 : f32
    %177 = vector.broadcast %cst_63 : f32 to vector<4x512xf32>
    %178 = arith.maximumf %176, %177 : vector<4x512xf32>
    %c3_64 = arith.constant 3 : index
    %c0_65 = arith.constant 0 : index
    %c0_66 = arith.constant 0 : index
    %179 = vector.load %arg5[%c3_64, %c0_65, %c0_66] : memref<6x4x512xf32, #tpu.memory_space<vmem>>, vector<1x4x512xf32>
    %180 = vector.shape_cast %179 : vector<1x4x512xf32> to vector<4x512xf32>
    %181 = vector.shape_cast %178 : vector<4x512xf32> to vector<1x4x512xf32>
    tpu.vector_store %arg5[%c3_64, %c0_65, %c0_66], %181 {strides = array<i32>} : memref<6x4x512xf32, #tpu.memory_space<vmem>>, vector<1x4x512xf32>,
    %c17_i32_67 = arith.constant 17 : i32
    %182 = tpu.dynamic_rotate %178 by %c17_i32_67 dim 1 : vector<4x512xf32>, i32 -> vector<4x512xf32>
    %183 = vector.extract_strided_slice %1 {offsets = [0, 0], sizes = [1, 512], strides = [1, 1]} : vector<9x512xf32> to vector<1x512xf32>
    %184 = vector.broadcast %183 : vector<1x512xf32> to vector<4x512xf32>
    %185 = arith.mulf %182, %184 : vector<4x512xf32>
    %c16_i32_68 = arith.constant 16 : i32
    %186 = tpu.dynamic_rotate %178 by %c16_i32_68 dim 1 : vector<4x512xf32>, i32 -> vector<4x512xf32>
    %187 = vector.extract_strided_slice %1 {offsets = [1, 0], sizes = [1, 512], strides = [1, 1]} : vector<9x512xf32> to vector<1x512xf32>
    %188 = vector.broadcast %187 : vector<1x512xf32> to vector<4x512xf32>
    %189 = arith.mulf %186, %188 : vector<4x512xf32>
    %c15_i32_69 = arith.constant 15 : i32
    %190 = tpu.dynamic_rotate %178 by %c15_i32_69 dim 1 : vector<4x512xf32>, i32 -> vector<4x512xf32>
    %191 = vector.extract_strided_slice %1 {offsets = [2, 0], sizes = [1, 512], strides = [1, 1]} : vector<9x512xf32> to vector<1x512xf32>
    %192 = vector.broadcast %191 : vector<1x512xf32> to vector<4x512xf32>
    %193 = arith.mulf %190, %192 : vector<4x512xf32>
    %c1_i32_70 = arith.constant 1 : i32
    %194 = tpu.dynamic_rotate %178 by %c1_i32_70 dim 1 : vector<4x512xf32>, i32 -> vector<4x512xf32>
    %195 = vector.extract_strided_slice %1 {offsets = [3, 0], sizes = [1, 512], strides = [1, 1]} : vector<9x512xf32> to vector<1x512xf32>
    %196 = vector.broadcast %195 : vector<1x512xf32> to vector<4x512xf32>
    %197 = arith.mulf %194, %196 : vector<4x512xf32>
    %c511_i32_71 = arith.constant 511 : i32
    %198 = tpu.dynamic_rotate %178 by %c511_i32_71 dim 1 : vector<4x512xf32>, i32 -> vector<4x512xf32>
    %199 = vector.extract_strided_slice %1 {offsets = [5, 0], sizes = [1, 512], strides = [1, 1]} : vector<9x512xf32> to vector<1x512xf32>
    %200 = vector.broadcast %199 : vector<1x512xf32> to vector<4x512xf32>
    %201 = arith.mulf %198, %200 : vector<4x512xf32>
    %c497_i32_72 = arith.constant 497 : i32
    %202 = tpu.dynamic_rotate %178 by %c497_i32_72 dim 1 : vector<4x512xf32>, i32 -> vector<4x512xf32>
    %203 = vector.extract_strided_slice %1 {offsets = [6, 0], sizes = [1, 512], strides = [1, 1]} : vector<9x512xf32> to vector<1x512xf32>
    %204 = vector.broadcast %203 : vector<1x512xf32> to vector<4x512xf32>
    %205 = arith.mulf %202, %204 : vector<4x512xf32>
    %c496_i32_73 = arith.constant 496 : i32
    %206 = tpu.dynamic_rotate %178 by %c496_i32_73 dim 1 : vector<4x512xf32>, i32 -> vector<4x512xf32>
    %207 = vector.extract_strided_slice %1 {offsets = [7, 0], sizes = [1, 512], strides = [1, 1]} : vector<9x512xf32> to vector<1x512xf32>
    %208 = vector.broadcast %207 : vector<1x512xf32> to vector<4x512xf32>
    %209 = arith.mulf %206, %208 : vector<4x512xf32>
    %c495_i32_74 = arith.constant 495 : i32
    %210 = tpu.dynamic_rotate %178 by %c495_i32_74 dim 1 : vector<4x512xf32>, i32 -> vector<4x512xf32>
    %211 = vector.extract_strided_slice %1 {offsets = [8, 0], sizes = [1, 512], strides = [1, 1]} : vector<9x512xf32> to vector<1x512xf32>
    %212 = vector.broadcast %211 : vector<1x512xf32> to vector<4x512xf32>
    %213 = arith.mulf %210, %212 : vector<4x512xf32>
    %214 = tpu.concatenate %185, %189, %193, %197, %178, %201, %205, %209, %213 in 0 : vector<4x512xf32>, vector<4x512xf32>, vector<4x512xf32>, vector<4x512xf32>, vector<4x512xf32>, vector<4x512xf32>, vector<4x512xf32>, vector<4x512xf32>, vector<4x512xf32> -> vector<36x512xf32>
    %c4 = arith.constant 4 : index
    %c0_75 = arith.constant 0 : index
    %c0_76 = arith.constant 0 : index
    %215 = vector.load %arg2[%c4, %c0_75, %c0_76] : memref<6x4x36xf32, #tpu.memory_space<vmem>>, vector<1x4x36xf32>
    %216 = vector.shape_cast %215 : vector<1x4x36xf32> to vector<4x36xf32>
    %cst_77 = arith.constant dense<0.000000e+00> : vector<4x512xf32>
    %217 = tpu.matmul %216, %214, %cst_77 {dimension_numbers = #tpu.dot_dimension_numbers<[1], [0], [0], [1], [0, 0, 1, 1], [], []>, precision = #tpu.contract_precision<fp32>} : vector<4x36xf32>, vector<36x512xf32>, vector<4x512xf32> -> vector<4x512xf32>
    %c4_78 = arith.constant 4 : index
    %c0_79 = arith.constant 0 : index
    %c0_80 = arith.constant 0 : index
    %218 = vector.load %arg3[%c4_78, %c0_79, %c0_80] : memref<6x4x1xf32, #tpu.memory_space<vmem>>, vector<1x4x1xf32>
    %219 = vector.shape_cast %218 : vector<1x4x1xf32> to vector<4x1xf32>
    %220 = vector.broadcast %219 : vector<4x1xf32> to vector<4x512xf32>
    %221 = arith.addf %217, %220 : vector<4x512xf32>
    %cst_81 = arith.constant 0.000000e+00 : f32
    %222 = vector.broadcast %cst_81 : f32 to vector<4x512xf32>
    %223 = arith.maximumf %221, %222 : vector<4x512xf32>
    %c4_82 = arith.constant 4 : index
    %c0_83 = arith.constant 0 : index
    %c0_84 = arith.constant 0 : index
    %224 = vector.load %arg5[%c4_82, %c0_83, %c0_84] : memref<6x4x512xf32, #tpu.memory_space<vmem>>, vector<1x4x512xf32>
    %225 = vector.shape_cast %224 : vector<1x4x512xf32> to vector<4x512xf32>
    %226 = vector.shape_cast %223 : vector<4x512xf32> to vector<1x4x512xf32>
    tpu.vector_store %arg5[%c4_82, %c0_83, %c0_84], %226 {strides = array<i32>} : memref<6x4x512xf32, #tpu.memory_space<vmem>>, vector<1x4x512xf32>,
    %c17_i32_85 = arith.constant 17 : i32
    %227 = tpu.dynamic_rotate %223 by %c17_i32_85 dim 1 : vector<4x512xf32>, i32 -> vector<4x512xf32>
    %228 = vector.extract_strided_slice %1 {offsets = [0, 0], sizes = [1, 512], strides = [1, 1]} : vector<9x512xf32> to vector<1x512xf32>
    %229 = vector.broadcast %228 : vector<1x512xf32> to vector<4x512xf32>
    %230 = arith.mulf %227, %229 : vector<4x512xf32>
    %c16_i32_86 = arith.constant 16 : i32
    %231 = tpu.dynamic_rotate %223 by %c16_i32_86 dim 1 : vector<4x512xf32>, i32 -> vector<4x512xf32>
    %232 = vector.extract_strided_slice %1 {offsets = [1, 0], sizes = [1, 512], strides = [1, 1]} : vector<9x512xf32> to vector<1x512xf32>
    %233 = vector.broadcast %232 : vector<1x512xf32> to vector<4x512xf32>
    %234 = arith.mulf %231, %233 : vector<4x512xf32>
    %c15_i32_87 = arith.constant 15 : i32
    %235 = tpu.dynamic_rotate %223 by %c15_i32_87 dim 1 : vector<4x512xf32>, i32 -> vector<4x512xf32>
    %236 = vector.extract_strided_slice %1 {offsets = [2, 0], sizes = [1, 512], strides = [1, 1]} : vector<9x512xf32> to vector<1x512xf32>
    %237 = vector.broadcast %236 : vector<1x512xf32> to vector<4x512xf32>
    %238 = arith.mulf %235, %237 : vector<4x512xf32>
    %c1_i32_88 = arith.constant 1 : i32
    %239 = tpu.dynamic_rotate %223 by %c1_i32_88 dim 1 : vector<4x512xf32>, i32 -> vector<4x512xf32>
    %240 = vector.extract_strided_slice %1 {offsets = [3, 0], sizes = [1, 512], strides = [1, 1]} : vector<9x512xf32> to vector<1x512xf32>
    %241 = vector.broadcast %240 : vector<1x512xf32> to vector<4x512xf32>
    %242 = arith.mulf %239, %241 : vector<4x512xf32>
    %c511_i32_89 = arith.constant 511 : i32
    %243 = tpu.dynamic_rotate %223 by %c511_i32_89 dim 1 : vector<4x512xf32>, i32 -> vector<4x512xf32>
    %244 = vector.extract_strided_slice %1 {offsets = [5, 0], sizes = [1, 512], strides = [1, 1]} : vector<9x512xf32> to vector<1x512xf32>
    %245 = vector.broadcast %244 : vector<1x512xf32> to vector<4x512xf32>
    %246 = arith.mulf %243, %245 : vector<4x512xf32>
    %c497_i32_90 = arith.constant 497 : i32
    %247 = tpu.dynamic_rotate %223 by %c497_i32_90 dim 1 : vector<4x512xf32>, i32 -> vector<4x512xf32>
    %248 = vector.extract_strided_slice %1 {offsets = [6, 0], sizes = [1, 512], strides = [1, 1]} : vector<9x512xf32> to vector<1x512xf32>
    %249 = vector.broadcast %248 : vector<1x512xf32> to vector<4x512xf32>
    %250 = arith.mulf %247, %249 : vector<4x512xf32>
    %c496_i32_91 = arith.constant 496 : i32
    %251 = tpu.dynamic_rotate %223 by %c496_i32_91 dim 1 : vector<4x512xf32>, i32 -> vector<4x512xf32>
    %252 = vector.extract_strided_slice %1 {offsets = [7, 0], sizes = [1, 512], strides = [1, 1]} : vector<9x512xf32> to vector<1x512xf32>
    %253 = vector.broadcast %252 : vector<1x512xf32> to vector<4x512xf32>
    %254 = arith.mulf %251, %253 : vector<4x512xf32>
    %c495_i32_92 = arith.constant 495 : i32
    %255 = tpu.dynamic_rotate %223 by %c495_i32_92 dim 1 : vector<4x512xf32>, i32 -> vector<4x512xf32>
    %256 = vector.extract_strided_slice %1 {offsets = [8, 0], sizes = [1, 512], strides = [1, 1]} : vector<9x512xf32> to vector<1x512xf32>
    %257 = vector.broadcast %256 : vector<1x512xf32> to vector<4x512xf32>
    %258 = arith.mulf %255, %257 : vector<4x512xf32>
    %259 = tpu.concatenate %230, %234, %238, %242, %223, %246, %250, %254, %258 in 0 : vector<4x512xf32>, vector<4x512xf32>, vector<4x512xf32>, vector<4x512xf32>, vector<4x512xf32>, vector<4x512xf32>, vector<4x512xf32>, vector<4x512xf32>, vector<4x512xf32> -> vector<36x512xf32>
    %c5 = arith.constant 5 : index
    %c0_93 = arith.constant 0 : index
    %c0_94 = arith.constant 0 : index
    %260 = vector.load %arg2[%c5, %c0_93, %c0_94] : memref<6x4x36xf32, #tpu.memory_space<vmem>>, vector<1x4x36xf32>
    %261 = vector.shape_cast %260 : vector<1x4x36xf32> to vector<4x36xf32>
    %cst_95 = arith.constant dense<0.000000e+00> : vector<4x512xf32>
    %262 = tpu.matmul %261, %259, %cst_95 {dimension_numbers = #tpu.dot_dimension_numbers<[1], [0], [0], [1], [0, 0, 1, 1], [], []>, precision = #tpu.contract_precision<fp32>} : vector<4x36xf32>, vector<36x512xf32>, vector<4x512xf32> -> vector<4x512xf32>
    %c5_96 = arith.constant 5 : index
    %c0_97 = arith.constant 0 : index
    %c0_98 = arith.constant 0 : index
    %263 = vector.load %arg3[%c5_96, %c0_97, %c0_98] : memref<6x4x1xf32, #tpu.memory_space<vmem>>, vector<1x4x1xf32>
    %264 = vector.shape_cast %263 : vector<1x4x1xf32> to vector<4x1xf32>
    %265 = vector.broadcast %264 : vector<4x1xf32> to vector<4x512xf32>
    %266 = arith.addf %262, %265 : vector<4x512xf32>
    %cst_99 = arith.constant 0.000000e+00 : f32
    %267 = vector.broadcast %cst_99 : f32 to vector<4x512xf32>
    %268 = arith.maximumf %266, %267 : vector<4x512xf32>
    %c5_100 = arith.constant 5 : index
    %c0_101 = arith.constant 0 : index
    %c0_102 = arith.constant 0 : index
    %269 = vector.load %arg5[%c5_100, %c0_101, %c0_102] : memref<6x4x512xf32, #tpu.memory_space<vmem>>, vector<1x4x512xf32>
    %270 = vector.shape_cast %269 : vector<1x4x512xf32> to vector<4x512xf32>
    %271 = vector.shape_cast %268 : vector<4x512xf32> to vector<1x4x512xf32>
    tpu.vector_store %arg5[%c5_100, %c0_101, %c0_102], %271 {strides = array<i32>} : memref<6x4x512xf32, #tpu.memory_space<vmem>>, vector<1x4x512xf32>,
    return
  }
  func.func @transform_0(%arg0: i32) -> (i32, i32) {
    %c0_i32 = arith.constant 0 : i32
    %c0_i32_0 = arith.constant 0 : i32
    return %c0_i32, %arg0 : i32, i32
  }
  func.func @transform_1(%arg0: i32) -> (i32, i32, i32) {
    %c0_i32 = arith.constant 0 : i32
    %c0_i32_0 = arith.constant 0 : i32
    %c0_i32_1 = arith.constant 0 : i32
    %c0_i32_2 = arith.constant 0 : i32
    return %c0_i32, %c0_i32_0, %c0_i32_1 : i32, i32, i32
  }
  func.func @transform_2(%arg0: i32) -> (i32, i32, i32) {
    %c0_i32 = arith.constant 0 : i32
    %c0_i32_0 = arith.constant 0 : i32
    %c0_i32_1 = arith.constant 0 : i32
    %c0_i32_2 = arith.constant 0 : i32
    return %c0_i32, %c0_i32_0, %c0_i32_1 : i32, i32, i32
  }
  func.func @transform_3(%arg0: i32) -> (i32, i32) {
    %c0_i32 = arith.constant 0 : i32
    %c0_i32_0 = arith.constant 0 : i32
    %c0_i32_1 = arith.constant 0 : i32
    return %c0_i32, %c0_i32_0 : i32, i32
  }
  func.func @transform_4(%arg0: i32) -> (i32, i32, i32) {
    %c0_i32 = arith.constant 0 : i32
    %c0_i32_0 = arith.constant 0 : i32
    %c0_i32_1 = arith.constant 0 : i32
    return %c0_i32, %c0_i32_0, %arg0 : i32, i32, i32
  }
}

</mosaic_0001>

<llo_original>
// kernel: tpu_custom_call.1
$region0: #{tpu_custom_call.1}
  #allocation0 [shape = 'u32[]', space=smem, size = 0x4, offset = 0x4, fixed_abs, tag = 'smem constant byte address 0x4 - core index']
  #allocation1 [shape = 'u32[144,128]{1,0:T(1,128)}', space=vmem, size = 0x12000, scoped, tag = 'internal scratch']
  %s0 = inlined_call_operand.hbm [shape: f32[4,512], index: 0, kind: input, shape index: {}]
  %s1 = inlined_call_operand.vmem [shape: f32[6,4,36], index: 1, kind: input, shape index: {}]
  %s2 = inlined_call_operand.vmem [shape: f32[6,4,1], index: 2, kind: input, shape index: {}]
  %s3 = inlined_call_operand.hbm [shape: f32[9,512], index: 3, kind: input, shape index: {}]
  %s4 = inlined_call_operand.hbm [shape: f32[6,4,512], index: 4, kind: output, shape index: {}]
  %s5 = sld [smem:[#allocation0]]
  $region34: #{tpu_custom_call.1} parent=0
    _
  %s7 = ssub.s32 1, %s5
  %s8 = scalar_select 0, %s7, %s5
  $region1: #{tpu_custom_call.1} parent=0
    #allocation2 [shape = 'u8[8192]{0}', space=vmem, size = 0x2000, scoped, tag = 'input window, operand 0, single buffered']
    #allocation3 [shape = 's32[1]{0}', space=sflag, size = 0x4, scoped, tag = 'scoped memory for tpu_custom_call.1']
    #allocation4 [shape = 's32[1]{0}', space=sflag, size = 0x4, scoped, tag = 'scoped memory for tpu_custom_call.1']
    #allocation5 [shape = 'u8[32768]{0}', space=vmem, size = 0x8000, scoped, tag = 'input window, operand 3, single buffered']
    #allocation6 [shape = 's32[1]{0}', space=sflag, size = 0x4, scoped, tag = 'scoped memory for tpu_custom_call.1']
    #allocation7 [shape = 'u8[49152]{0}', space=vmem, size = 0xc000, scoped, tag = 'output window, operand 0, single buffered']
    %9 = vsyncpa [#allocation3], 0
    %10 = vsyncpa [#allocation6], 0
    %11 = vsyncpa [#allocation4], 0
    // Predicated region
    $region2: #{tpu_custom_call.1} parent=1 // pred_check
      _
    $region3: #{tpu_custom_call.1} parent=1 // pred_check_branch
      %13 = sbr.rel (0) target = $region5
    $region4: #{tpu_custom_call.1} parent=1 // pred_region
      %s15 = ssub.s32 256, 256
      %16 = vsyncadd [#allocation3], %s15
      %s18 = sshll.u32 [#allocation2], 4
      %s19 = int_to_ptr.vmem [resolvable:$true] %s18
      %21 = dma.hbm_to_vmem [thread:$0]  %s0, 256, %s19, [#allocation3]
    $region5: #{tpu_custom_call.1} parent=1 // pred_fallthru
      _
    // Predicated region
    $region6: #{tpu_custom_call.1} parent=1 // pred_check
      _
    $region7: #{tpu_custom_call.1} parent=1 // pred_check_branch
      %23 = sbr.rel (0) target = $region9
    $region8: #{tpu_custom_call.1} parent=1 // pred_region
      _
    $region9: #{tpu_custom_call.1} parent=1 // pred_fallthru
      _
    // Predicated region
    $region10: #{tpu_custom_call.1} parent=1 // pred_check
      _
    $region11: #{tpu_custom_call.1} parent=1 // pred_check_branch
      %25 = sbr.rel (0) target = $region13
    $region12: #{tpu_custom_call.1} parent=1 // pred_region
      _
    $region13: #{tpu_custom_call.1} parent=1 // pred_fallthru
      _
    // Predicated region
    $region14: #{tpu_custom_call.1} parent=1 // pred_check
      _
    $region15: #{tpu_custom_call.1} parent=1 // pred_check_branch
      %27 = sbr.rel (0) target = $region17
    $region16: #{tpu_custom_call.1} parent=1 // pred_region
      %s29 = ssub.s32 1024, 1024
      %30 = vsyncadd [#allocation6], %s29
      %s31 = sshll.u32 [#allocation5], 4
      %s32 = int_to_ptr.vmem [resolvable:$true] %s31
      %37 = dma.hbm_to_vmem [thread:$0]  %s3, 1024, %s32, [#allocation6], 512, 512, 32
    $region17: #{tpu_custom_call.1} parent=1 // pred_fallthru
      _
    // Predicated region
    $region18: #{tpu_custom_call.1} parent=1 // pred_check
      _
    $region19: #{tpu_custom_call.1} parent=1 // pred_check_branch
      %39 = sbr.rel (0) target = $region21
    $region20: #{tpu_custom_call.1} parent=1 // pred_region
      %40 = dma.done [#allocation3], 256
    $region21: #{tpu_custom_call.1} parent=1 // pred_fallthru
      _
    // Predicated region
    $region22: #{tpu_custom_call.1} parent=1 // pred_check
      _
    $region23: #{tpu_custom_call.1} parent=1 // pred_check_branch
      %42 = sbr.rel (0) target = $region25
    $region24: #{tpu_custom_call.1} parent=1 // pred_region
      %43 = dma.done [#allocation6], 1024
    $region25: #{tpu_custom_call.1} parent=1 // pred_fallthru
      _
    %v44 = vld [vmem:[#allocation2] sm:$0xff]
    %v45 = vld [vmem:[#allocation2 + $0x8] sm:$0xff]
    %v46 = vld [vmem:[#allocation5] sm:$0xff]
    %v47 = vld [vmem:[#allocation5 + $0x8] sm:$0xff]
    %v48 = vld [vmem:[#allocation5 + $0x10] sm:$0xff]
    %v49 = vld [vmem:[#allocation5 + $0x18] sm:$0xff]
    %v50 = vld [vmem:[#allocation5 + $0x20] sm:$0x1]
    %v51 = vld [vmem:[#allocation5 + $0x28] sm:$0x1]
    %v52 = vld [vmem:[#allocation5 + $0x30] sm:$0x1]
    %v53 = vld [vmem:[#allocation5 + $0x38] sm:$0x1]
    %v56 = vcombine.high %v44, %v44
    %v57 = vcombine.high %v45, %v45
    %60 = vrot.lane.b32.xlu0 %v44, 17
    %v61 = vpop.permute.xlu0 %60
    %62 = vrot.lane.b32.xlu0 %v56, 17
    %v63 = vpop.permute.xlu0 %62
    %64 = vrot.lane.b32.xlu0 %v45, 17
    %v65 = vpop.permute.xlu0 %64
    %66 = vrot.lane.b32.xlu0 %v57, 17
    %v67 = vpop.permute.xlu0 %66
    %v68 = vlaneseq
    %v69 = vand.u32 %v68, 127
    %vm70 = vcmp.lt.s32.totalorder %v69, 17
    %v71 = vsel %vm70, %v65, %v67
    %v72 = vsel %vm70, %v63, %v65
    %v73 = vsel %vm70, %v61, %v63
    %v74 = vsel %vm70, %v67, %v61
    %v75 = vlaneseq
    %v76 = vshrl.u32 %v75, 7
    %v77 = vsub.s32 0, %v76
    %v78 = vrot.slane %v46, %v77
    %v79 = vlaneseq
    %v80 = vshrl.u32 %v79, 7
    %v81 = vsub.s32 0, %v80
    %v82 = vrot.slane %v47, %v81
    %v83 = vlaneseq
    %v84 = vshrl.u32 %v83, 7
    %v85 = vsub.s32 0, %v84
    %v86 = vrot.slane %v48, %v85
    %v87 = vlaneseq
    %v88 = vshrl.u32 %v87, 7
    %v89 = vsub.s32 0, %v88
    %v90 = vrot.slane %v49, %v89
    %v91 = vmul.f32 %v74, %v78
    %v92 = vmul.f32 %v73, %v82
    %v93 = vmul.f32 %v72, %v86
    %v94 = vmul.f32 %v71, %v90
    %95 = vrot.lane.b32.xlu0 %v44, 16
    %v96 = vpop.permute.xlu0 %95
    %97 = vrot.lane.b32.xlu0 %v56, 16
    %v98 = vpop.permute.xlu0 %97
    %99 = vrot.lane.b32.xlu0 %v45, 16
    %v100 = vpop.permute.xlu0 %99
    %101 = vrot.lane.b32.xlu0 %v57, 16
    %v102 = vpop.permute.xlu0 %101
    %vm103 = vcmp.lt.s32.totalorder %v69, 16
    %v104 = vsel %vm103, %v100, %v102
    %v105 = vsel %vm103, %v98, %v100
    %v106 = vsel %vm103, %v96, %v98
    %v107 = vsel %vm103, %v102, %v96
    %v108 = vlaneseq
    %v109 = vshrl.u32 %v108, 7
    %v110 = vsub.s32 1, %v109
    %v111 = vrot.slane %v46, %v110
    %v112 = vlaneseq
    %v113 = vshrl.u32 %v112, 7
    %v114 = vsub.s32 1, %v113
    %v115 = vrot.slane %v47, %v114
    %v116 = vlaneseq
    %v117 = vshrl.u32 %v116, 7
    %v118 = vsub.s32 1, %v117
    %v119 = vrot.slane %v48, %v118
    %v120 = vlaneseq
    %v121 = vshrl.u32 %v120, 7
    %v122 = vsub.s32 1, %v121
    %v123 = vrot.slane %v49, %v122
    %v124 = vmul.f32 %v107, %v111
    %v125 = vmul.f32 %v106, %v115
    %v126 = vmul.f32 %v105, %v119
    %v127 = vmul.f32 %v104, %v123
    %128 = vrot.lane.b32.xlu0 %v44, 15
    %v129 = vpop.permute.xlu0 %128
    %130 = vrot.lane.b32.xlu0 %v56, 15
    %v131 = vpop.permute.xlu0 %130
    %132 = vrot.lane.b32.xlu0 %v45, 15
    %v133 = vpop.permute.xlu0 %132
    %134 = vrot.lane.b32.xlu0 %v57, 15
    %v135 = vpop.permute.xlu0 %134
    %vm136 = vcmp.lt.s32.totalorder %v69, 15
    %v137 = vsel %vm136, %v133, %v135
    %v138 = vsel %vm136, %v131, %v133
    %v139 = vsel %vm136, %v129, %v131
    %v140 = vsel %vm136, %v135, %v129
    %v141 = vlaneseq
    %v142 = vshrl.u32 %v141, 7
    %v143 = vsub.s32 2, %v142
    %v144 = vrot.slane %v46, %v143
    %v145 = vlaneseq
    %v146 = vshrl.u32 %v145, 7
    %v147 = vsub.s32 2, %v146
    %v148 = vrot.slane %v47, %v147
    %v149 = vlaneseq
    %v150 = vshrl.u32 %v149, 7
    %v151 = vsub.s32 2, %v150
    %v152 = vrot.slane %v48, %v151
    %v153 = vlaneseq
    %v154 = vshrl.u32 %v153, 7
    %v155 = vsub.s32 2, %v154
    %v156 = vrot.slane %v49, %v155
    %v157 = vmul.f32 %v140, %v144
    %v158 = vmul.f32 %v139, %v148
    %v159 = vmul.f32 %v138, %v152
    %v160 = vmul.f32 %v137, %v156
    %161 = vrot.lane.b32.xlu0 %v44, 1
    %v162 = vpop.permute.xlu0 %161
    %163 = vrot.lane.b32.xlu0 %v56, 1
    %v164 = vpop.permute.xlu0 %163
    %165 = vrot.lane.b32.xlu0 %v45, 1
    %v166 = vpop.permute.xlu0 %165
    %167 = vrot.lane.b32.xlu0 %v57, 1
    %v168 = vpop.permute.xlu0 %167
    %vm169 = vcmp.lt.s32.totalorder %v69, 1
    %v170 = vsel %vm169, %v166, %v168
    %v171 = vsel %vm169, %v164, %v166
    %v172 = vsel %vm169, %v162, %v164
    %v173 = vsel %vm169, %v168, %v162
    %v174 = vlaneseq
    %v175 = vshrl.u32 %v174, 7
    %v176 = vsub.s32 3, %v175
    %v177 = vrot.slane %v46, %v176
    %v178 = vlaneseq
    %v179 = vshrl.u32 %v178, 7
    %v180 = vsub.s32 3, %v179
    %v181 = vrot.slane %v47, %v180
    %v182 = vlaneseq
    %v183 = vshrl.u32 %v182, 7
    %v184 = vsub.s32 3, %v183
    %v185 = vrot.slane %v48, %v184
    %v186 = vlaneseq
    %v187 = vshrl.u32 %v186, 7
    %v188 = vsub.s32 3, %v187
    %v189 = vrot.slane %v49, %v188
    %v190 = vmul.f32 %v173, %v177
    %v191 = vmul.f32 %v172, %v181
    %v192 = vmul.f32 %v171, %v185
    %v193 = vmul.f32 %v170, %v189
    %194 = vrot.lane.b32.xlu0 %v44, 127
    %v195 = vpop.permute.xlu0 %194
    %196 = vrot.lane.b32.xlu0 %v56, 127
    %v197 = vpop.permute.xlu0 %196
    %198 = vrot.lane.b32.xlu0 %v45, 127
    %v199 = vpop.permute.xlu0 %198
    %200 = vrot.lane.b32.xlu0 %v57, 127
    %v201 = vpop.permute.xlu0 %200
    %vm202 = vcmp.lt.s32.totalorder %v69, 127
    %v203 = vsel %vm202, %v199, %v201
    %v204 = vsel %vm202, %v197, %v199
    %v205 = vsel %vm202, %v195, %v197
    %v206 = vsel %vm202, %v201, %v195
    %v207 = vlaneseq
    %v208 = vshrl.u32 %v207, 7
    %v209 = vsub.s32 5, %v208
    %v210 = vrot.slane %v46, %v209
    %v211 = vlaneseq
    %v212 = vshrl.u32 %v211, 7
    %v213 = vsub.s32 5, %v212
    %v214 = vrot.slane %v47, %v213
    %v215 = vlaneseq
    %v216 = vshrl.u32 %v215, 7
    %v217 = vsub.s32 5, %v216
    %v218 = vrot.slane %v48, %v217
    %v219 = vlaneseq
    %v220 = vshrl.u32 %v219, 7
    %v221 = vsub.s32 5, %v220
    %v222 = vrot.slane %v49, %v221
    %v223 = vmul.f32 %v205, %v210
    %v224 = vmul.f32 %v204, %v214
    %v225 = vmul.f32 %v203, %v218
    %v226 = vmul.f32 %v206, %v222
    %227 = vrot.lane.b32.xlu0 %v44, 113
    %v228 = vpop.permute.xlu0 %227
    %229 = vrot.lane.b32.xlu0 %v56, 113
    %v230 = vpop.permute.xlu0 %229
    %231 = vrot.lane.b32.xlu0 %v45, 113
    %v232 = vpop.permute.xlu0 %231
    %233 = vrot.lane.b32.xlu0 %v57, 113
    %v234 = vpop.permute.xlu0 %233
    %vm235 = vcmp.lt.s32.totalorder %v69, 113
    %v236 = vsel %vm235, %v232, %v234
    %v237 = vsel %vm235, %v230, %v232
    %v238 = vsel %vm235, %v228, %v230
    %v239 = vsel %vm235, %v234, %v228
    %v240 = vlaneseq
    %v241 = vshrl.u32 %v240, 7
    %v242 = vsub.s32 6, %v241
    %v243 = vrot.slane %v46, %v242
    %v244 = vlaneseq
    %v245 = vshrl.u32 %v244, 7
    %v246 = vsub.s32 6, %v245
    %v247 = vrot.slane %v47, %v246
    %v248 = vlaneseq
    %v249 = vshrl.u32 %v248, 7
    %v250 = vsub.s32 6, %v249
    %v251 = vrot.slane %v48, %v250
    %v252 = vlaneseq
    %v253 = vshrl.u32 %v252, 7
    %v254 = vsub.s32 6, %v253
    %v255 = vrot.slane %v49, %v254
    %v256 = vmul.f32 %v238, %v243
    %v257 = vmul.f32 %v237, %v247
    %v258 = vmul.f32 %v236, %v251
    %v259 = vmul.f32 %v239, %v255
    %260 = vrot.lane.b32.xlu0 %v44, 112
    %v261 = vpop.permute.xlu0 %260
    %262 = vrot.lane.b32.xlu0 %v56, 112
    %v263 = vpop.permute.xlu0 %262
    %264 = vrot.lane.b32.xlu0 %v45, 112
    %v265 = vpop.permute.xlu0 %264
    %266 = vrot.lane.b32.xlu0 %v57, 112
    %v267 = vpop.permute.xlu0 %266
    %vm268 = vcmp.lt.s32.totalorder %v69, 112
    %v269 = vsel %vm268, %v265, %v267
    %v270 = vsel %vm268, %v263, %v265
    %v271 = vsel %vm268, %v261, %v263
    %v272 = vsel %vm268, %v267, %v261
    %v273 = vlaneseq
    %v274 = vshrl.u32 %v273, 7
    %v275 = vsub.s32 7, %v274
    %v276 = vrot.slane %v46, %v275
    %v277 = vlaneseq
    %v278 = vshrl.u32 %v277, 7
    %v279 = vsub.s32 7, %v278
    %v280 = vrot.slane %v47, %v279
    %v281 = vlaneseq
    %v282 = vshrl.u32 %v281, 7
    %v283 = vsub.s32 7, %v282
    %v284 = vrot.slane %v48, %v283
    %v285 = vlaneseq
    %v286 = vshrl.u32 %v285, 7
    %v287 = vsub.s32 7, %v286
    %v288 = vrot.slane %v49, %v287
    %v289 = vmul.f32 %v271, %v276
    %v290 = vmul.f32 %v270, %v280
    %v291 = vmul.f32 %v269, %v284
    %v292 = vmul.f32 %v272, %v288
    %293 = vrot.lane.b32.xlu0 %v44, 111
    %v294 = vpop.permute.xlu0 %293
    %295 = vrot.lane.b32.xlu0 %v56, 111
    %v296 = vpop.permute.xlu0 %295
    %297 = vrot.lane.b32.xlu0 %v45, 111
    %v298 = vpop.permute.xlu0 %297
    %299 = vrot.lane.b32.xlu0 %v57, 111
    %v300 = vpop.permute.xlu0 %299
    %vm301 = vcmp.lt.s32.totalorder %v69, 111
    %v302 = vsel %vm301, %v298, %v300
    %v303 = vsel %vm301, %v296, %v298
    %v304 = vsel %vm301, %v294, %v296
    %v305 = vsel %vm301, %v300, %v294
    %v306 = vlaneseq
    %v307 = vshrl.u32 %v306, 7
    %v308 = vsub.s32 0, %v307
    %v309 = vrot.slane %v50, %v308
    %v310 = vlaneseq
    %v311 = vshrl.u32 %v310, 7
    %v312 = vsub.s32 0, %v311
    %v313 = vrot.slane %v51, %v312
    %v314 = vlaneseq
    %v315 = vshrl.u32 %v314, 7
    %v316 = vsub.s32 0, %v315
    %v317 = vrot.slane %v52, %v316
    %v318 = vlaneseq
    %v319 = vshrl.u32 %v318, 7
    %v320 = vsub.s32 0, %v319
    %v321 = vrot.slane %v53, %v320
    %v322 = vmul.f32 %v304, %v309
    %v323 = vmul.f32 %v303, %v313
    %v324 = vmul.f32 %v302, %v317
    %v325 = vmul.f32 %v305, %v321
    %v330 = vrot.slane %v124, 4
    %v331 = vrot.slane %v125, 4
    %v332 = vrot.slane %v126, 4
    %v333 = vrot.slane %v127, 4
    %v342 = vrot.slane %v190, 4
    %v343 = vrot.slane %v191, 4
    %v344 = vrot.slane %v192, 4
    %v345 = vrot.slane %v193, 4
    %v354 = vrot.slane %v223, 4
    %v355 = vrot.slane %v224, 4
    %v356 = vrot.slane %v225, 4
    %v357 = vrot.slane %v226, 4
    %v366 = vrot.slane %v289, 4
    %v367 = vrot.slane %v290, 4
    %v368 = vrot.slane %v291, 4
    %v369 = vrot.slane %v292, 4
    %vm374 = vcmask 1043456
    %v375 = vsel %vm374, %v91, %v330
    %v376 = vsel %vm374, %v92, %v331
    %v377 = vsel %vm374, %v93, %v332
    %v378 = vsel %vm374, %v94, %v333
    %v379 = vsel %vm374, %v157, %v342
    %v380 = vsel %vm374, %v158, %v343
    %v381 = vsel %vm374, %v159, %v344
    %v382 = vsel %vm374, %v160, %v345
    %v383 = vsel %vm374, %v44, %v354
    %v384 = vsel %vm374, %v56, %v355
    %v385 = vsel %vm374, %v45, %v356
    %v386 = vsel %vm374, %v57, %v357
    %v387 = vsel %vm374, %v256, %v366
    %v388 = vsel %vm374, %v257, %v367
    %v389 = vsel %vm374, %v258, %v368
    %v390 = vsel %vm374, %v259, %v369
    %v391 = vld [vmem:[%s1] sm:$0xf]
    %v392 = vld [vmem:[%s2] sm:$0xf]
    %394 = vset.pattern.permute.xlu0 0
    %395 = vperm.xlu0 %394, %v392
    %v396 = vpop.permute.xlu0 %395
    %vm398 = vcmask 293888
    %v400 = vsel %vm398, %v391, 0
    %v403 = vsel %vm374, %v322, 0
    %v406 = vsel %vm374, %v323, 0
    %v409 = vsel %vm374, %v324, 0
    %v412 = vsel %vm374, %v325, 0
    %v414 = vand.u32 %v376, 4294901760
    %415 = vmatprep.subr.mxu0 %v414
    %v416 = vand.u32 %v375, 4294901760
    %417 = vmatpush1.msra.mxu0 %v416
    %v418 = vand.u32 %v380, 4294901760
    %419 = vmatprep.subr.mxu0 %v418
    %v420 = vand.u32 %v379, 4294901760
    %421 = vmatpush1.msra.mxu0 %v420
    %v422 = vand.u32 %v384, 4294901760
    %423 = vmatprep.subr.mxu0 %v422
    %v424 = vand.u32 %v383, 4294901760
    %425 = vmatpush1.msra.mxu0 %v424
    %v426 = vand.u32 %v388, 4294901760
    %427 = vmatprep.subr.mxu0 %v426
    %v428 = vand.u32 %v387, 4294901760
    %429 = vmatpush1.msra.mxu0 %v428
    %v430 = vand.u32 %v406, 4294901760
    %431 = vmatprep.subr.mxu0 %v430
    %v432 = vand.u32 %v403, 4294901760
    %433 = vmatpush1.msra.mxu0 %v432
    %434 = vmatprep.subr.mxu0 0.0
    %435 = vmatpush1.msra.mxu0 0.0
    %436 = vmatprep.subr.mxu0 0.0
    %437 = vmatpush1.msra.mxu0 0.0
    %438 = vmatprep.subr.mxu0 0.0
    %439 = vmatpush1.msra.mxu0 0.0
    %440 = vmatprep.subr.mxu0 0.0
    %441 = vmatpush1.msra.mxu0 0.0
    %442 = vmatprep.subr.mxu0 0.0
    %443 = vmatpush1.msra.mxu0 0.0
    %444 = vmatprep.subr.mxu0 0.0
    %445 = vmatpush1.msra.mxu0 0.0
    %446 = vmatprep.subr.mxu0 0.0
    %447 = vmatpush1.msra.mxu0 0.0
    %448 = vmatprep.subr.mxu0 0.0
    %449 = vmatpush1.msra.mxu0 0.0
    %450 = vmatprep.subr.mxu0 0.0
    %451 = vmatpush1.msra.mxu0 0.0
    %452 = vmatprep.subr.mxu0 0.0
    %453 = vmatpush1.msra.mxu0 0.0
    %454 = vmatprep.subr.mxu0 0.0
    %455 = vmatpush1.msra.mxu0 0.0
    %456 = vmatprep.subr.mxu0 0.0
    %457 = vmatpush1.msra.mxu0 0.0
    %458 = vmatprep.subr.mxu0 0.0
    %459 = vmatpush1.msra.mxu0 0.0
    %460 = vmatprep.subr.mxu0 0.0
    %461 = vmatpush1.msra.mxu0 0.0
    %462 = vmatprep.subr.mxu0 0.0
    %463 = vmatpush1.msra.mxu0 0.0
    %464 = vmatprep.subr.mxu0 0.0
    %465 = vmatpush1.msra.mxu0 0.0
    %466 = vmatprep.subr.mxu0 0.0
    %467 = vmatpush1.msra.mxu0 0.0
    %468 = vmatprep.subr.mxu0 0.0
    %469 = vmatpush1.msra.mxu0 0.0
    %470 = vmatprep.subr.mxu0 0.0
    %471 = vmatpush1.msra.mxu0 0.0
    %472 = vmatprep.subr.mxu0 0.0
    %473 = vmatpush1.msra.mxu0 0.0
    %474 = vmatprep.subr.mxu0 0.0
    %475 = vmatpush1.msra.mxu0 0.0
    %476 = vmatprep.subr.mxu0 0.0
    %477 = vmatpush1.msra.mxu0 0.0
    %478 = vmatprep.subr.mxu0 0.0
    %479 = vmatpush1.msra.mxu0 0.0
    %480 = vmatprep.subr.mxu0 0.0
    %481 = vmatpush1.msra.mxu0 0.0
    %482 = vmatprep.subr.mxu0 0.0
    %483 = vmatpush1.msra.mxu0 0.0
    %484 = vmatprep.subr.mxu0 0.0
    %485 = vmatpush1.msra.mxu0 0.0
    %486 = vmatprep.subr.mxu0 0.0
    %487 = vmatpush1.msra.mxu0 0.0
    %488 = vmatprep.mubr.f32.mxu0 0.0
    %v489 = vand.u32 %v400, 4294901760
    %v490 = vsub.f32 %v400, %v489
    %v491 = vand.u32 %v490, 4294901760
    %v492 = vsub.f32 %v490, %v491
    %v493 = vand.u32 %v492, 4294901760
    %494 = vmatmul.mubr.f32.gmra.mrb[0].mxu0 %v493
    %v495 = vpop.f32.mrb[0].mxu0
    %v496 = vadd.f32 %v396, %v495
    %v497 = vpop.f32.mrb[0].mxu0
    %v498 = vadd.f32 %v396, %v497
    %499 = vdwg.mxu0
    %v500 = vand.u32 %v376, 4294901760
    %v501 = vsub.f32 %v376, %v500
    %v502 = vand.u32 %v501, 4294901760
    %v503 = vsub.f32 %v501, %v502
    %v504 = vand.u32 %v503, 4294901760
    %505 = vmatprep.subr.mxu0 %v504
    %v506 = vand.u32 %v375, 4294901760
    %v507 = vsub.f32 %v375, %v506
    %v508 = vand.u32 %v507, 4294901760
    %v509 = vsub.f32 %v507, %v508
    %v510 = vand.u32 %v509, 4294901760
    %511 = vmatpush1.msra.mxu0 %v510
    %v512 = vand.u32 %v380, 4294901760
    %v513 = vsub.f32 %v380, %v512
    %v514 = vand.u32 %v513, 4294901760
    %v515 = vsub.f32 %v513, %v514
    %v516 = vand.u32 %v515, 4294901760
    %517 = vmatprep.subr.mxu0 %v516
    %v518 = vand.u32 %v379, 4294901760
    %v519 = vsub.f32 %v379, %v518
    %v520 = vand.u32 %v519, 4294901760
    %v521 = vsub.f32 %v519, %v520
    %v522 = vand.u32 %v521, 4294901760
    %523 = vmatpush1.msra.mxu0 %v522
    %v524 = vand.u32 %v384, 4294901760
    %v525 = vsub.f32 %v384, %v524
    %v526 = vand.u32 %v525, 4294901760
    %v527 = vsub.f32 %v525, %v526
    %v528 = vand.u32 %v527, 4294901760
    %529 = vmatprep.subr.mxu0 %v528
    %v530 = vand.u32 %v383, 4294901760
    %v531 = vsub.f32 %v383, %v530
    %v532 = vand.u32 %v531, 4294901760
    %v533 = vsub.f32 %v531, %v532
    %v534 = vand.u32 %v533, 4294901760
    %535 = vmatpush1.msra.mxu0 %v534
    %v536 = vand.u32 %v388, 4294901760
    %v537 = vsub.f32 %v388, %v536
    %v538 = vand.u32 %v537, 4294901760
    %v539 = vsub.f32 %v537, %v538
    %v540 = vand.u32 %v539, 4294901760
    %541 = vmatprep.subr.mxu0 %v540
    %v542 = vand.u32 %v387, 4294901760
    %v543 = vsub.f32 %v387, %v542
    %v544 = vand.u32 %v543, 4294901760
    %v545 = vsub.f32 %v543, %v544
    %v546 = vand.u32 %v545, 4294901760
    %547 = vmatpush1.msra.mxu0 %v546
    %v548 = vand.u32 %v406, 4294901760
    %v549 = vsub.f32 %v406, %v548
    %v550 = vand.u32 %v549, 4294901760
    %v551 = vsub.f32 %v549, %v550
    %v552 = vand.u32 %v551, 4294901760
    %553 = vmatprep.subr.mxu0 %v552
    %v554 = vand.u32 %v403, 4294901760
    %v555 = vsub.f32 %v403, %v554
    %v556 = vand.u32 %v555, 4294901760
    %v557 = vsub.f32 %v555, %v556
    %v558 = vand.u32 %v557, 4294901760
    %559 = vmatpush1.msra.mxu0 %v558
    %560 = vmatprep.subr.mxu0 0.0
    %561 = vmatpush1.msra.mxu0 0.0
    %562 = vmatprep.subr.mxu0 0.0
    %563 = vmatpush1.msra.mxu0 0.0
    %564 = vmatprep.subr.mxu0 0.0
    %565 = vmatpush1.msra.mxu0 0.0
    %566 = vmatprep.subr.mxu0 0.0
    %567 = vmatpush1.msra.mxu0 0.0
    %568 = vmatprep.subr.mxu0 0.0
    %569 = vmatpush1.msra.mxu0 0.0
    %570 = vmatprep.subr.mxu0 0.0
    %571 = vmatpush1.msra.mxu0 0.0
    %572 = vmatprep.subr.mxu0 0.0
    %573 = vmatpush1.msra.mxu0 0.0
    %574 = vmatprep.subr.mxu0 0.0
    %575 = vmatpush1.msra.mxu0 0.0
    %576 = vmatprep.subr.mxu0 0.0
    %577 = vmatpush1.msra.mxu0 0.0
    %578 = vmatprep.subr.mxu0 0.0
    %579 = vmatpush1.msra.mxu0 0.0
    %580 = vmatprep.subr.mxu0 0.0
    %581 = vmatpush1.msra.mxu0 0.0
    %582 = vmatprep.subr.mxu0 0.0
    %583 = vmatpush1.msra.mxu0 0.0
    %584 = vmatprep.subr.mxu0 0.0
    %585 = vmatpush1.msra.mxu0 0.0
    %586 = vmatprep.subr.mxu0 0.0
    %587 = vmatpush1.msra.mxu0 0.0
    %588 = vmatprep.subr.mxu0 0.0
    %589 = vmatpush1.msra.mxu0 0.0
    %590 = vmatprep.subr.mxu0 0.0
    %591 = vmatpush1.msra.mxu0 0.0
    %592 = vmatprep.subr.mxu0 0.0
    %593 = vmatpush1.msra.mxu0 0.0
    %594 = vmatprep.subr.mxu0 0.0
    %595 = vmatpush1.msra.mxu0 0.0
    %596 = vmatprep.subr.mxu0 0.0
    %597 = vmatpush1.msra.mxu0 0.0
    %598 = vmatprep.subr.mxu0 0.0
    %599 = vmatpush1.msra.mxu0 0.0
    %600 = vmatprep.subr.mxu0 0.0
    %601 = vmatpush1.msra.mxu0 0.0
    %602 = vmatprep.subr.mxu0 0.0
    %603 = vmatpush1.msra.mxu0 0.0
    %604 = vmatprep.subr.mxu0 0.0
    %605 = vmatpush1.msra.mxu0 0.0
    %606 = vmatprep.subr.mxu0 0.0
    %607 = vmatpush1.msra.mxu0 0.0
    %608 = vmatprep.subr.mxu0 0.0
    %609 = vmatpush1.msra.mxu0 0.0
    %610 = vmatprep.subr.mxu0 0.0
    %611 = vmatpush1.msra.mxu0 0.0
    %612 = vmatprep.subr.mxu0 0.0
    %613 = vmatpush1.msra.mxu0 0.0
    %614 = vmatprep.mubr.f32.mxu0 0.0
    %v615 = vand.u32 %v400, 4294901760
    %616 = vmatmul.mubr.f32.gmra.mrb[0].mxu0 %v615
    %v617 = vpop.f32.mrb[0].mxu0
    %v618 = vadd.f32 %v496, %v617
    %v619 = vpop.f32.mrb[0].mxu0
    %v620 = vadd.f32 %v498, %v619
    %621 = vdwg.mxu0
    %v622 = vand.u32 %v376, 4294901760
    %v623 = vsub.f32 %v376, %v622
    %624 = vmatprep.subr.mxu0 %v623
    %v625 = vand.u32 %v375, 4294901760
    %v626 = vsub.f32 %v375, %v625
    %627 = vmatpush1.msra.mxu0 %v626
    %v628 = vand.u32 %v380, 4294901760
    %v629 = vsub.f32 %v380, %v628
    %630 = vmatprep.subr.mxu0 %v629
    %v631 = vand.u32 %v379, 4294901760
    %v632 = vsub.f32 %v379, %v631
    %633 = vmatpush1.msra.mxu0 %v632
    %v634 = vand.u32 %v384, 4294901760
    %v635 = vsub.f32 %v384, %v634
    %636 = vmatprep.subr.mxu0 %v635
    %v637 = vand.u32 %v383, 4294901760
    %v638 = vsub.f32 %v383, %v637
    %639 = vmatpush1.msra.mxu0 %v638
    %v640 = vand.u32 %v388, 4294901760
    %v641 = vsub.f32 %v388, %v640
    %642 = vmatprep.subr.mxu0 %v641
    %v643 = vand.u32 %v387, 4294901760
    %v644 = vsub.f32 %v387, %v643
    %645 = vmatpush1.msra.mxu0 %v644
    %v646 = vand.u32 %v406, 4294901760
    %v647 = vsub.f32 %v406, %v646
    %648 = vmatprep.subr.mxu0 %v647
    %v649 = vand.u32 %v403, 4294901760
    %v650 = vsub.f32 %v403, %v649
    %651 = vmatpush1.msra.mxu0 %v650
    %652 = vmatprep.subr.mxu0 0.0
    %653 = vmatpush1.msra.mxu0 0.0
    %654 = vmatprep.subr.mxu0 0.0
    %655 = vmatpush1.msra.mxu0 0.0
    %656 = vmatprep.subr.mxu0 0.0
    %657 = vmatpush1.msra.mxu0 0.0
    %658 = vmatprep.subr.mxu0 0.0
    %659 = vmatpush1.msra.mxu0 0.0
    %660 = vmatprep.subr.mxu0 0.0
    %661 = vmatpush1.msra.mxu0 0.0
    %662 = vmatprep.subr.mxu0 0.0
    %663 = vmatpush1.msra.mxu0 0.0
    %664 = vmatprep.subr.mxu0 0.0
    %665 = vmatpush1.msra.mxu0 0.0
    %666 = vmatprep.subr.mxu0 0.0
    %667 = vmatpush1.msra.mxu0 0.0
    %668 = vmatprep.subr.mxu0 0.0
    %669 = vmatpush1.msra.mxu0 0.0
    %670 = vmatprep.subr.mxu0 0.0
    %671 = vmatpush1.msra.mxu0 0.0
    %672 = vmatprep.subr.mxu0 0.0
    %673 = vmatpush1.msra.mxu0 0.0
    %674 = vmatprep.subr.mxu0 0.0
    %675 = vmatpush1.msra.mxu0 0.0
    %676 = vmatprep.subr.mxu0 0.0
    %677 = vmatpush1.msra.mxu0 0.0
    %678 = vmatprep.subr.mxu0 0.0
    %679 = vmatpush1.msra.mxu0 0.0
    %680 = vmatprep.subr.mxu0 0.0
    %681 = vmatpush1.msra.mxu0 0.0
    %682 = vmatprep.subr.mxu0 0.0
    %683 = vmatpush1.msra.mxu0 0.0
    %684 = vmatprep.subr.mxu0 0.0
    %685 = vmatpush1.msra.mxu0 0.0
    %686 = vmatprep.subr.mxu0 0.0
    %687 = vmatpush1.msra.mxu0 0.0
    %688 = vmatprep.subr.mxu0 0.0
    %689 = vmatpush1.msra.mxu0 0.0
    %690 = vmatprep.subr.mxu0 0.0
    %691 = vmatpush1.msra.mxu0 0.0
    %692 = vmatprep.subr.mxu0 0.0
    %693 = vmatpush1.msra.mxu0 0.0
    %694 = vmatprep.subr.mxu0 0.0
    %695 = vmatpush1.msra.mxu0 0.0
    %696 = vmatprep.subr.mxu0 0.0
    %697 = vmatpush1.msra.mxu0 0.0
    %698 = vmatprep.subr.mxu0 0.0
    %699 = vmatpush1.msra.mxu0 0.0
    %700 = vmatprep.subr.mxu0 0.0
    %701 = vmatpush1.msra.mxu0 0.0
    %702 = vmatprep.subr.mxu0 0.0
    %703 = vmatpush1.msra.mxu0 0.0
    %704 = vmatprep.subr.mxu0 0.0
    %705 = vmatpush1.msra.mxu0 0.0
    %706 = vmatprep.mubr.f32.mxu0 0.0
    %v707 = vand.u32 %v400, 4294901760
    %v708 = vsub.f32 %v400, %v707
    %709 = vmatmul.mubr.f32.gmra.mrb[0].mxu0 %v708
    %v710 = vpop.f32.mrb[0].mxu0
    %v711 = vadd.f32 %v618, %v710
    %v712 = vpop.f32.mrb[0].mxu0
    %v713 = vadd.f32 %v620, %v712
    %714 = vdwg.mxu0
    %v715 = vand.u32 %v376, 4294901760
    %716 = vmatprep.subr.mxu0 %v715
    %v717 = vand.u32 %v375, 4294901760
    %718 = vmatpush1.msra.mxu0 %v717
    %v719 = vand.u32 %v380, 4294901760
    %720 = vmatprep.subr.mxu0 %v719
    %v721 = vand.u32 %v379, 4294901760
    %722 = vmatpush1.msra.mxu0 %v721
    %v723 = vand.u32 %v384, 4294901760
    %724 = vmatprep.subr.mxu0 %v723
    %v725 = vand.u32 %v383, 4294901760
    %726 = vmatpush1.msra.mxu0 %v725
    %v727 = vand.u32 %v388, 4294901760
    %728 = vmatprep.subr.mxu0 %v727
    %v729 = vand.u32 %v387, 4294901760
    %730 = vmatpush1.msra.mxu0 %v729
    %v731 = vand.u32 %v406, 4294901760
    %732 = vmatprep.subr.mxu0 %v731
    %v733 = vand.u32 %v403, 4294901760
    %734 = vmatpush1.msra.mxu0 %v733
    %735 = vmatprep.subr.mxu0 0.0
    %736 = vmatpush1.msra.mxu0 0.0
    %737 = vmatprep.subr.mxu0 0.0
    %738 = vmatpush1.msra.mxu0 0.0
    %739 = vmatprep.subr.mxu0 0.0
    %740 = vmatpush1.msra.mxu0 0.0
    %741 = vmatprep.subr.mxu0 0.0
    %742 = vmatpush1.msra.mxu0 0.0
    %743 = vmatprep.subr.mxu0 0.0
    %744 = vmatpush1.msra.mxu0 0.0
    %745 = vmatprep.subr.mxu0 0.0
    %746 = vmatpush1.msra.mxu0 0.0
    %747 = vmatprep.subr.mxu0 0.0
    %748 = vmatpush1.msra.mxu0 0.0
    %749 = vmatprep.subr.mxu0 0.0
    %750 = vmatpush1.msra.mxu0 0.0
    %751 = vmatprep.subr.mxu0 0.0
    %752 = vmatpush1.msra.mxu0 0.0
    %753 = vmatprep.subr.mxu0 0.0
    %754 = vmatpush1.msra.mxu0 0.0
    %755 = vmatprep.subr.mxu0 0.0
    %756 = vmatpush1.msra.mxu0 0.0
    %757 = vmatprep.subr.mxu0 0.0
    %758 = vmatpush1.msra.mxu0 0.0
    %759 = vmatprep.subr.mxu0 0.0
    %760 = vmatpush1.msra.mxu0 0.0
    %761 = vmatprep.subr.mxu0 0.0
    %762 = vmatpush1.msra.mxu0 0.0
    %763 = vmatprep.subr.mxu0 0.0
    %764 = vmatpush1.msra.mxu0 0.0
    %765 = vmatprep.subr.mxu0 0.0
    %766 = vmatpush1.msra.mxu0 0.0
    %767 = vmatprep.subr.mxu0 0.0
    %768 = vmatpush1.msra.mxu0 0.0
    %769 = vmatprep.subr.mxu0 0.0
    %770 = vmatpush1.msra.mxu0 0.0
    %771 = vmatprep.subr.mxu0 0.0
    %772 = vmatpush1.msra.mxu0 0.0
    %773 = vmatprep.subr.mxu0 0.0
    %774 = vmatpush1.msra.mxu0 0.0
    %775 = vmatprep.subr.mxu0 0.0
    %776 = vmatpush1.msra.mxu0 0.0
    %777 = vmatprep.subr.mxu0 0.0
    %778 = vmatpush1.msra.mxu0 0.0
    %779 = vmatprep.subr.mxu0 0.0
    %780 = vmatpush1.msra.mxu0 0.0
    %781 = vmatprep.subr.mxu0 0.0
    %782 = vmatpush1.msra.mxu0 0.0
    %783 = vmatprep.subr.mxu0 0.0
    %784 = vmatpush1.msra.mxu0 0.0
    %785 = vmatprep.subr.mxu0 0.0
    %786 = vmatpush1.msra.mxu0 0.0
    %787 = vmatprep.subr.mxu0 0.0
    %788 = vmatpush1.msra.mxu0 0.0
    %789 = vmatprep.mubr.f32.mxu0 0.0
    %v790 = vand.u32 %v400, 4294901760
    %v791 = vsub.f32 %v400, %v790
    %v792 = vand.u32 %v791, 4294901760
    %793 = vmatmul.mubr.f32.gmra.mrb[0].mxu0 %v792
    %v794 = vpop.f32.mrb[0].mxu0
    %v795 = vadd.f32 %v711, %v794
    %v796 = vpop.f32.mrb[0].mxu0
    %v797 = vadd.f32 %v713, %v796
    %798 = vdwg.mxu0
    %v799 = vand.u32 %v376, 4294901760
    %v800 = vsub.f32 %v376, %v799
    %v801 = vand.u32 %v800, 4294901760
    %802 = vmatprep.subr.mxu0 %v801
    %v803 = vand.u32 %v375, 4294901760
    %v804 = vsub.f32 %v375, %v803
    %v805 = vand.u32 %v804, 4294901760
    %806 = vmatpush1.msra.mxu0 %v805
    %v807 = vand.u32 %v380, 4294901760
    %v808 = vsub.f32 %v380, %v807
    %v809 = vand.u32 %v808, 4294901760
    %810 = vmatprep.subr.mxu0 %v809
    %v811 = vand.u32 %v379, 4294901760
    %v812 = vsub.f32 %v379, %v811
    %v813 = vand.u32 %v812, 4294901760
    %814 = vmatpush1.msra.mxu0 %v813
    %v815 = vand.u32 %v384, 4294901760
    %v816 = vsub.f32 %v384, %v815
    %v817 = vand.u32 %v816, 4294901760
    %818 = vmatprep.subr.mxu0 %v817
    %v819 = vand.u32 %v383, 4294901760
    %v820 = vsub.f32 %v383, %v819
    %v821 = vand.u32 %v820, 4294901760
    %822 = vmatpush1.msra.mxu0 %v821
    %v823 = vand.u32 %v388, 4294901760
    %v824 = vsub.f32 %v388, %v823
    %v825 = vand.u32 %v824, 4294901760
    %826 = vmatprep.subr.mxu0 %v825
    %v827 = vand.u32 %v387, 4294901760
    %v828 = vsub.f32 %v387, %v827
    %v829 = vand.u32 %v828, 4294901760
    %830 = vmatpush1.msra.mxu0 %v829
    %v831 = vand.u32 %v406, 4294901760
    %v832 = vsub.f32 %v406, %v831
    %v833 = vand.u32 %v832, 4294901760
    %834 = vmatprep.subr.mxu0 %v833
    %v835 = vand.u32 %v403, 4294901760
    %v836 = vsub.f32 %v403, %v835
    %v837 = vand.u32 %v836, 4294901760
    %838 = vmatpush1.msra.mxu0 %v837
    %839 = vmatprep.subr.mxu0 0.0
    %840 = vmatpush1.msra.mxu0 0.0
    %841 = vmatprep.subr.mxu0 0.0
    %842 = vmatpush1.msra.mxu0 0.0
    %843 = vmatprep.subr.mxu0 0.0
    %844 = vmatpush1.msra.mxu0 0.0
    %845 = vmatprep.subr.mxu0 0.0
    %846 = vmatpush1.msra.mxu0 0.0
    %847 = vmatprep.subr.mxu0 0.0
    %848 = vmatpush1.msra.mxu0 0.0
    %849 = vmatprep.subr.mxu0 0.0
    %850 = vmatpush1.msra.mxu0 0.0
    %851 = vmatprep.subr.mxu0 0.0
    %852 = vmatpush1.msra.mxu0 0.0
    %853 = vmatprep.subr.mxu0 0.0
    %854 = vmatpush1.msra.mxu0 0.0
    %855 = vmatprep.subr.mxu0 0.0
    %856 = vmatpush1.msra.mxu0 0.0
    %857 = vmatprep.subr.mxu0 0.0
    %858 = vmatpush1.msra.mxu0 0.0
    %859 = vmatprep.subr.mxu0 0.0
    %860 = vmatpush1.msra.mxu0 0.0
    %861 = vmatprep.subr.mxu0 0.0
    %862 = vmatpush1.msra.mxu0 0.0
    %863 = vmatprep.subr.mxu0 0.0
    %864 = vmatpush1.msra.mxu0 0.0
    %865 = vmatprep.subr.mxu0 0.0
    %866 = vmatpush1.msra.mxu0 0.0
    %867 = vmatprep.subr.mxu0 0.0
    %868 = vmatpush1.msra.mxu0 0.0
    %869 = vmatprep.subr.mxu0 0.0
    %870 = vmatpush1.msra.mxu0 0.0
    %871 = vmatprep.subr.mxu0 0.0
    %872 = vmatpush1.msra.mxu0 0.0
    %873 = vmatprep.subr.mxu0 0.0
    %874 = vmatpush1.msra.mxu0 0.0
    %875 = vmatprep.subr.mxu0 0.0
    %876 = vmatpush1.msra.mxu0 0.0
    %877 = vmatprep.subr.mxu0 0.0
    %878 = vmatpush1.msra.mxu0 0.0
    %879 = vmatprep.subr.mxu0 0.0
    %880 = vmatpush1.msra.mxu0 0.0
    %881 = vmatprep.subr.mxu0 0.0
    %882 = vmatpush1.msra.mxu0 0.0
    %883 = vmatprep.subr.mxu0 0.0
    %884 = vmatpush1.msra.mxu0 0.0
    %885 = vmatprep.subr.mxu0 0.0
    %886 = vmatpush1.msra.mxu0 0.0
    %887 = vmatprep.subr.mxu0 0.0
    %888 = vmatpush1.msra.mxu0 0.0
    %889 = vmatprep.subr.mxu0 0.0
    %890 = vmatpush1.msra.mxu0 0.0
    %891 = vmatprep.subr.mxu0 0.0
    %892 = vmatpush1.msra.mxu0 0.0
    %893 = vmatprep.mubr.f32.mxu0 0.0
    %v894 = vand.u32 %v400, 4294901760
    %895 = vmatmul.mubr.f32.gmra.mrb[0].mxu0 %v894
    %v896 = vpop.f32.mrb[0].mxu0
    %v897 = vadd.f32 %v795, %v896
    %v898 = vpop.f32.mrb[0].mxu0
    %v899 = vadd.f32 %v797, %v898
    %900 = vdwg.mxu0
    %v901 = vand.u32 %v376, 4294901760
    %902 = vmatprep.subr.mxu0 %v901
    %v903 = vand.u32 %v375, 4294901760
    %904 = vmatpush1.msra.mxu0 %v903
    %v905 = vand.u32 %v380, 4294901760
    %906 = vmatprep.subr.mxu0 %v905
    %v907 = vand.u32 %v379, 4294901760
    %908 = vmatpush1.msra.mxu0 %v907
    %v909 = vand.u32 %v384, 4294901760
    %910 = vmatprep.subr.mxu0 %v909
    %v911 = vand.u32 %v383, 4294901760
    %912 = vmatpush1.msra.mxu0 %v911
    %v913 = vand.u32 %v388, 4294901760
    %914 = vmatprep.subr.mxu0 %v913
    %v915 = vand.u32 %v387, 4294901760
    %916 = vmatpush1.msra.mxu0 %v915
    %v917 = vand.u32 %v406, 4294901760
    %918 = vmatprep.subr.mxu0 %v917
    %v919 = vand.u32 %v403, 4294901760
    %920 = vmatpush1.msra.mxu0 %v919
    %921 = vmatprep.subr.mxu0 0.0
    %922 = vmatpush1.msra.mxu0 0.0
    %923 = vmatprep.subr.mxu0 0.0
    %924 = vmatpush1.msra.mxu0 0.0
    %925 = vmatprep.subr.mxu0 0.0
    %926 = vmatpush1.msra.mxu0 0.0
    %927 = vmatprep.subr.mxu0 0.0
    %928 = vmatpush1.msra.mxu0 0.0
    %929 = vmatprep.subr.mxu0 0.0
    %930 = vmatpush1.msra.mxu0 0.0
    %931 = vmatprep.subr.mxu0 0.0
    %932 = vmatpush1.msra.mxu0 0.0
    %933 = vmatprep.subr.mxu0 0.0
    %934 = vmatpush1.msra.mxu0 0.0
    %935 = vmatprep.subr.mxu0 0.0
    %936 = vmatpush1.msra.mxu0 0.0
    %937 = vmatprep.subr.mxu0 0.0
    %938 = vmatpush1.msra.mxu0 0.0
    %939 = vmatprep.subr.mxu0 0.0
    %940 = vmatpush1.msra.mxu0 0.0
    %941 = vmatprep.subr.mxu0 0.0
    %942 = vmatpush1.msra.mxu0 0.0
    %943 = vmatprep.subr.mxu0 0.0
    %944 = vmatpush1.msra.mxu0 0.0
    %945 = vmatprep.subr.mxu0 0.0
    %946 = vmatpush1.msra.mxu0 0.0
    %947 = vmatprep.subr.mxu0 0.0
    %948 = vmatpush1.msra.mxu0 0.0
    %949 = vmatprep.subr.mxu0 0.0
    %950 = vmatpush1.msra.mxu0 0.0
    %951 = vmatprep.subr.mxu0 0.0
    %952 = vmatpush1.msra.mxu0 0.0
    %953 = vmatprep.subr.mxu0 0.0
    %954 = vmatpush1.msra.mxu0 0.0
    %955 = vmatprep.subr.mxu0 0.0
    %956 = vmatpush1.msra.mxu0 0.0
    %957 = vmatprep.subr.mxu0 0.0
    %958 = vmatpush1.msra.mxu0 0.0
    %959 = vmatprep.subr.mxu0 0.0
    %960 = vmatpush1.msra.mxu0 0.0
    %961 = vmatprep.subr.mxu0 0.0
    %962 = vmatpush1.msra.mxu0 0.0
    %963 = vmatprep.subr.mxu0 0.0
    %964 = vmatpush1.msra.mxu0 0.0
    %965 = vmatprep.subr.mxu0 0.0
    %966 = vmatpush1.msra.mxu0 0.0
    %967 = vmatprep.subr.mxu0 0.0
    %968 = vmatpush1.msra.mxu0 0.0
    %969 = vmatprep.subr.mxu0 0.0
    %970 = vmatpush1.msra.mxu0 0.0
    %971 = vmatprep.subr.mxu0 0.0
    %972 = vmatpush1.msra.mxu0 0.0
    %973 = vmatprep.subr.mxu0 0.0
    %974 = vmatpush1.msra.mxu0 0.0
    %975 = vmatprep.mubr.f32.mxu0 0.0
    %v976 = vand.u32 %v400, 4294901760
    %977 = vmatmul.mubr.f32.gmra.mrb[0].mxu0 %v976
    %v978 = vpop.f32.mrb[0].mxu0
    %v979 = vadd.f32 %v897, %v978
    %v980 = vpop.f32.mrb[0].mxu0
    %v981 = vadd.f32 %v899, %v980
    %982 = vdwg.mxu0
    %v983 = vand.u32 %v378, 4294901760
    %984 = vmatprep.subr.mxu0 %v983
    %v985 = vand.u32 %v377, 4294901760
    %986 = vmatpush1.msra.mxu0 %v985
    %v987 = vand.u32 %v382, 4294901760
    %988 = vmatprep.subr.mxu0 %v987
    %v989 = vand.u32 %v381, 4294901760
    %990 = vmatpush1.msra.mxu0 %v989
    %v991 = vand.u32 %v386, 4294901760
    %992 = vmatprep.subr.mxu0 %v991
    %v993 = vand.u32 %v385, 4294901760
    %994 = vmatpush1.msra.mxu0 %v993
    %v995 = vand.u32 %v390, 4294901760
    %996 = vmatprep.subr.mxu0 %v995
    %v997 = vand.u32 %v389, 4294901760
    %998 = vmatpush1.msra.mxu0 %v997
    %v999 = vand.u32 %v412, 4294901760
    %1000 = vmatprep.subr.mxu0 %v999
    %v1001 = vand.u32 %v409, 4294901760
    %1002 = vmatpush1.msra.mxu0 %v1001
    %1003 = vmatprep.subr.mxu0 0.0
    %1004 = vmatpush1.msra.mxu0 0.0
    %1005 = vmatprep.subr.mxu0 0.0
    %1006 = vmatpush1.msra.mxu0 0.0
    %1007 = vmatprep.subr.mxu0 0.0
    %1008 = vmatpush1.msra.mxu0 0.0
    %1009 = vmatprep.subr.mxu0 0.0
    %1010 = vmatpush1.msra.mxu0 0.0
    %1011 = vmatprep.subr.mxu0 0.0
    %1012 = vmatpush1.msra.mxu0 0.0
    %1013 = vmatprep.subr.mxu0 0.0
    %1014 = vmatpush1.msra.mxu0 0.0
    %1015 = vmatprep.subr.mxu0 0.0
    %1016 = vmatpush1.msra.mxu0 0.0
    %1017 = vmatprep.subr.mxu0 0.0
    %1018 = vmatpush1.msra.mxu0 0.0
    %1019 = vmatprep.subr.mxu0 0.0
    %1020 = vmatpush1.msra.mxu0 0.0
    %1021 = vmatprep.subr.mxu0 0.0
    %1022 = vmatpush1.msra.mxu0 0.0
    %1023 = vmatprep.subr.mxu0 0.0
    %1024 = vmatpush1.msra.mxu0 0.0
    %1025 = vmatprep.subr.mxu0 0.0
    %1026 = vmatpush1.msra.mxu0 0.0
    %1027 = vmatprep.subr.mxu0 0.0
    %1028 = vmatpush1.msra.mxu0 0.0
    %1029 = vmatprep.subr.mxu0 0.0
    %1030 = vmatpush1.msra.mxu0 0.0
    %1031 = vmatprep.subr.mxu0 0.0
    %1032 = vmatpush1.msra.mxu0 0.0
    %1033 = vmatprep.subr.mxu0 0.0
    %1034 = vmatpush1.msra.mxu0 0.0
    %1035 = vmatprep.subr.mxu0 0.0
    %1036 = vmatpush1.msra.mxu0 0.0
    %1037 = vmatprep.subr.mxu0 0.0
    %1038 = vmatpush1.msra.mxu0 0.0
    %1039 = vmatprep.subr.mxu0 0.0
    %1040 = vmatpush1.msra.mxu0 0.0
    %1041 = vmatprep.subr.mxu0 0.0
    %1042 = vmatpush1.msra.mxu0 0.0
    %1043 = vmatprep.subr.mxu0 0.0
    %1044 = vmatpush1.msra.mxu0 0.0
    %1045 = vmatprep.subr.mxu0 0.0
    %1046 = vmatpush1.msra.mxu0 0.0
    %1047 = vmatprep.subr.mxu0 0.0
    %1048 = vmatpush1.msra.mxu0 0.0
    %1049 = vmatprep.subr.mxu0 0.0
    %1050 = vmatpush1.msra.mxu0 0.0
    %1051 = vmatprep.subr.mxu0 0.0
    %1052 = vmatpush1.msra.mxu0 0.0
    %1053 = vmatprep.subr.mxu0 0.0
    %1054 = vmatpush1.msra.mxu0 0.0
    %1055 = vmatprep.subr.mxu0 0.0
    %1056 = vmatpush1.msra.mxu0 0.0
    %1057 = vmatprep.mubr.f32.mxu0 0.0
    %v1058 = vand.u32 %v400, 4294901760
    %v1059 = vsub.f32 %v400, %v1058
    %v1060 = vand.u32 %v1059, 4294901760
    %v1061 = vsub.f32 %v1059, %v1060
    %v1062 = vand.u32 %v1061, 4294901760
    %1063 = vmatmul.mubr.f32.gmra.mrb[0].mxu0 %v1062
    %v1064 = vpop.f32.mrb[0].mxu0
    %v1065 = vadd.f32 %v396, %v1064
    %v1066 = vpop.f32.mrb[0].mxu0
    %v1067 = vadd.f32 %v396, %v1066
    %1068 = vdwg.mxu0
    %v1069 = vand.u32 %v378, 4294901760
    %v1070 = vsub.f32 %v378, %v1069
    %v1071 = vand.u32 %v1070, 4294901760
    %v1072 = vsub.f32 %v1070, %v1071
    %v1073 = vand.u32 %v1072, 4294901760
    %1074 = vmatprep.subr.mxu0 %v1073
    %v1075 = vand.u32 %v377, 4294901760
    %v1076 = vsub.f32 %v377, %v1075
    %v1077 = vand.u32 %v1076, 4294901760
    %v1078 = vsub.f32 %v1076, %v1077
    %v1079 = vand.u32 %v1078, 4294901760
    %1080 = vmatpush1.msra.mxu0 %v1079
    %v1081 = vand.u32 %v382, 4294901760
    %v1082 = vsub.f32 %v382, %v1081
    %v1083 = vand.u32 %v1082, 4294901760
    %v1084 = vsub.f32 %v1082, %v1083
    %v1085 = vand.u32 %v1084, 4294901760
    %1086 = vmatprep.subr.mxu0 %v1085
    %v1087 = vand.u32 %v381, 4294901760
    %v1088 = vsub.f32 %v381, %v1087
    %v1089 = vand.u32 %v1088, 4294901760
    %v1090 = vsub.f32 %v1088, %v1089
    %v1091 = vand.u32 %v1090, 4294901760
    %1092 = vmatpush1.msra.mxu0 %v1091
    %v1093 = vand.u32 %v386, 4294901760
    %v1094 = vsub.f32 %v386, %v1093
    %v1095 = vand.u32 %v1094, 4294901760
    %v1096 = vsub.f32 %v1094, %v1095
    %v1097 = vand.u32 %v1096, 4294901760
    %1098 = vmatprep.subr.mxu0 %v1097
    %v1099 = vand.u32 %v385, 4294901760
    %v1100 = vsub.f32 %v385, %v1099
    %v1101 = vand.u32 %v1100, 4294901760
    %v1102 = vsub.f32 %v1100, %v1101
    %v1103 = vand.u32 %v1102, 4294901760
    %1104 = vmatpush1.msra.mxu0 %v1103
    %v1105 = vand.u32 %v390, 4294901760
    %v1106 = vsub.f32 %v390, %v1105
    %v1107 = vand.u32 %v1106, 4294901760
    %v1108 = vsub.f32 %v1106, %v1107
    %v1109 = vand.u32 %v1108, 4294901760
    %1110 = vmatprep.subr.mxu0 %v1109
    %v1111 = vand.u32 %v389, 4294901760
    %v1112 = vsub.f32 %v389, %v1111
    %v1113 = vand.u32 %v1112, 4294901760
    %v1114 = vsub.f32 %v1112, %v1113
    %v1115 = vand.u32 %v1114, 4294901760
    %1116 = vmatpush1.msra.mxu0 %v1115
    %v1117 = vand.u32 %v412, 4294901760
    %v1118 = vsub.f32 %v412, %v1117
    %v1119 = vand.u32 %v1118, 4294901760
    %v1120 = vsub.f32 %v1118, %v1119
    %v1121 = vand.u32 %v1120, 4294901760
    %1122 = vmatprep.subr.mxu0 %v1121
    %v1123 = vand.u32 %v409, 4294901760
    %v1124 = vsub.f32 %v409, %v1123
    %v1125 = vand.u32 %v1124, 4294901760
    %v1126 = vsub.f32 %v1124, %v1125
    %v1127 = vand.u32 %v1126, 4294901760
    %1128 = vmatpush1.msra.mxu0 %v1127
    %1129 = vmatprep.subr.mxu0 0.0
    %1130 = vmatpush1.msra.mxu0 0.0
    %1131 = vmatprep.subr.mxu0 0.0
    %1132 = vmatpush1.msra.mxu0 0.0
    %1133 = vmatprep.subr.mxu0 0.0
    %1134 = vmatpush1.msra.mxu0 0.0
    %1135 = vmatprep.subr.mxu0 0.0
    %1136 = vmatpush1.msra.mxu0 0.0
    %1137 = vmatprep.subr.mxu0 0.0
    %1138 = vmatpush1.msra.mxu0 0.0
    %1139 = vmatprep.subr.mxu0 0.0
    %1140 = vmatpush1.msra.mxu0 0.0
    %1141 = vmatprep.subr.mxu0 0.0
    %1142 = vmatpush1.msra.mxu0 0.0
    %1143 = vmatprep.subr.mxu0 0.0
    %1144 = vmatpush1.msra.mxu0 0.0
    %1145 = vmatprep.subr.mxu0 0.0
    %1146 = vmatpush1.msra.mxu0 0.0
    %1147 = vmatprep.subr.mxu0 0.0
    %1148 = vmatpush1.msra.mxu0 0.0
    %1149 = vmatprep.subr.mxu0 0.0
    %1150 = vmatpush1.msra.mxu0 0.0
    %1151 = vmatprep.subr.mxu0 0.0
    %1152 = vmatpush1.msra.mxu0 0.0
    %1153 = vmatprep.subr.mxu0 0.0
    %1154 = vmatpush1.msra.mxu0 0.0
    %1155 = vmatprep.subr.mxu0 0.0
    %1156 = vmatpush1.msra.mxu0 0.0
    %1157 = vmatprep.subr.mxu0 0.0
    %1158 = vmatpush1.msra.mxu0 0.0
    %1159 = vmatprep.subr.mxu0 0.0
    %1160 = vmatpush1.msra.mxu0 0.0
    %1161 = vmatprep.subr.mxu0 0.0
    %1162 = vmatpush1.msra.mxu0 0.0
    %1163 = vmatprep.subr.mxu0 0.0
    %1164 = vmatpush1.msra.mxu0 0.0
    %1165 = vmatprep.subr.mxu0 0.0
    %1166 = vmatpush1.msra.mxu0 0.0
    %1167 = vmatprep.subr.mxu0 0.0
    %1168 = vmatpush1.msra.mxu0 0.0
    %1169 = vmatprep.subr.mxu0 0.0
    %1170 = vmatpush1.msra.mxu0 0.0
    %1171 = vmatprep.subr.mxu0 0.0
    %1172 = vmatpush1.msra.mxu0 0.0
    %1173 = vmatprep.subr.mxu0 0.0
    %1174 = vmatpush1.msra.mxu0 0.0
    %1175 = vmatprep.subr.mxu0 0.0
    %1176 = vmatpush1.msra.mxu0 0.0
    %1177 = vmatprep.subr.mxu0 0.0
    %1178 = vmatpush1.msra.mxu0 0.0
    %1179 = vmatprep.subr.mxu0 0.0
    %1180 = vmatpush1.msra.mxu0 0.0
    %1181 = vmatprep.subr.mxu0 0.0
    %1182 = vmatpush1.msra.mxu0 0.0
    %1183 = vmatprep.mubr.f32.mxu0 0.0
    %v1184 = vand.u32 %v400, 4294901760
    %1185 = vmatmul.mubr.f32.gmra.mrb[0].mxu0 %v1184
    %v1186 = vpop.f32.mrb[0].mxu0
    %v1187 = vadd.f32 %v1065, %v1186
    %v1188 = vpop.f32.mrb[0].mxu0
    %v1189 = vadd.f32 %v1067, %v1188
    %1190 = vdwg.mxu0
    %v1191 = vand.u32 %v378, 4294901760
    %v1192 = vsub.f32 %v378, %v1191
    %1193 = vmatprep.subr.mxu0 %v1192
    %v1194 = vand.u32 %v377, 4294901760
    %v1195 = vsub.f32 %v377, %v1194
    %1196 = vmatpush1.msra.mxu0 %v1195
    %v1197 = vand.u32 %v382, 4294901760
    %v1198 = vsub.f32 %v382, %v1197
    %1199 = vmatprep.subr.mxu0 %v1198
    %v1200 = vand.u32 %v381, 4294901760
    %v1201 = vsub.f32 %v381, %v1200
    %1202 = vmatpush1.msra.mxu0 %v1201
    %v1203 = vand.u32 %v386, 4294901760
    %v1204 = vsub.f32 %v386, %v1203
    %1205 = vmatprep.subr.mxu0 %v1204
    %v1206 = vand.u32 %v385, 4294901760
    %v1207 = vsub.f32 %v385, %v1206
    %1208 = vmatpush1.msra.mxu0 %v1207
    %v1209 = vand.u32 %v390, 4294901760
    %v1210 = vsub.f32 %v390, %v1209
    %1211 = vmatprep.subr.mxu0 %v1210
    %v1212 = vand.u32 %v389, 4294901760
    %v1213 = vsub.f32 %v389, %v1212
    %1214 = vmatpush1.msra.mxu0 %v1213
    %v1215 = vand.u32 %v412, 4294901760
    %v1216 = vsub.f32 %v412, %v1215
    %1217 = vmatprep.subr.mxu0 %v1216
    %v1218 = vand.u32 %v409, 4294901760
    %v1219 = vsub.f32 %v409, %v1218
    %1220 = vmatpush1.msra.mxu0 %v1219
    %1221 = vmatprep.subr.mxu0 0.0
    %1222 = vmatpush1.msra.mxu0 0.0
    %1223 = vmatprep.subr.mxu0 0.0
    %1224 = vmatpush1.msra.mxu0 0.0
    %1225 = vmatprep.subr.mxu0 0.0
    %1226 = vmatpush1.msra.mxu0 0.0
    %1227 = vmatprep.subr.mxu0 0.0
    %1228 = vmatpush1.msra.mxu0 0.0
    %1229 = vmatprep.subr.mxu0 0.0
    %1230 = vmatpush1.msra.mxu0 0.0
    %1231 = vmatprep.subr.mxu0 0.0
    %1232 = vmatpush1.msra.mxu0 0.0
    %1233 = vmatprep.subr.mxu0 0.0
    %1234 = vmatpush1.msra.mxu0 0.0
    %1235 = vmatprep.subr.mxu0 0.0
    %1236 = vmatpush1.msra.mxu0 0.0
    %1237 = vmatprep.subr.mxu0 0.0
    %1238 = vmatpush1.msra.mxu0 0.0
    %1239 = vmatprep.subr.mxu0 0.0
    %1240 = vmatpush1.msra.mxu0 0.0
    %1241 = vmatprep.subr.mxu0 0.0
    %1242 = vmatpush1.msra.mxu0 0.0
    %1243 = vmatprep.subr.mxu0 0.0
    %1244 = vmatpush1.msra.mxu0 0.0
    %1245 = vmatprep.subr.mxu0 0.0
    %1246 = vmatpush1.msra.mxu0 0.0
    %1247 = vmatprep.subr.mxu0 0.0
    %1248 = vmatpush1.msra.mxu0 0.0
    %1249 = vmatprep.subr.mxu0 0.0
    %1250 = vmatpush1.msra.mxu0 0.0
    %1251 = vmatprep.subr.mxu0 0.0
    %1252 = vmatpush1.msra.mxu0 0.0
    %1253 = vmatprep.subr.mxu0 0.0
    %1254 = vmatpush1.msra.mxu0 0.0
    %1255 = vmatprep.subr.mxu0 0.0
    %1256 = vmatpush1.msra.mxu0 0.0
    %1257 = vmatprep.subr.mxu0 0.0
    %1258 = vmatpush1.msra.mxu0 0.0
    %1259 = vmatprep.subr.mxu0 0.0
    %1260 = vmatpush1.msra.mxu0 0.0
    %1261 = vmatprep.subr.mxu0 0.0
    %1262 = vmatpush1.msra.mxu0 0.0
    %1263 = vmatprep.subr.mxu0 0.0
    %1264 = vmatpush1.msra.mxu0 0.0
    %1265 = vmatprep.subr.mxu0 0.0
    %1266 = vmatpush1.msra.mxu0 0.0
    %1267 = vmatprep.subr.mxu0 0.0
    %1268 = vmatpush1.msra.mxu0 0.0
    %1269 = vmatprep.subr.mxu0 0.0
    %1270 = vmatpush1.msra.mxu0 0.0
    %1271 = vmatprep.subr.mxu0 0.0
    %1272 = vmatpush1.msra.mxu0 0.0
    %1273 = vmatprep.subr.mxu0 0.0
    %1274 = vmatpush1.msra.mxu0 0.0
    %1275 = vmatprep.mubr.f32.mxu0 0.0
    %v1276 = vand.u32 %v400, 4294901760
    %v1277 = vsub.f32 %v400, %v1276
    %1278 = vmatmul.mubr.f32.gmra.mrb[0].mxu0 %v1277
    %v1279 = vpop.f32.mrb[0].mxu0
    %v1280 = vadd.f32 %v1187, %v1279
    %v1281 = vpop.f32.mrb[0].mxu0
    %v1282 = vadd.f32 %v1189, %v1281
    %1283 = vdwg.mxu0
    %v1284 = vand.u32 %v378, 4294901760
    %1285 = vmatprep.subr.mxu0 %v1284
    %v1286 = vand.u32 %v377, 4294901760
    %1287 = vmatpush1.msra.mxu0 %v1286
    %v1288 = vand.u32 %v382, 4294901760
    %1289 = vmatprep.subr.mxu0 %v1288
    %v1290 = vand.u32 %v381, 4294901760
    %1291 = vmatpush1.msra.mxu0 %v1290
    %v1292 = vand.u32 %v386, 4294901760
    %1293 = vmatprep.subr.mxu0 %v1292
    %v1294 = vand.u32 %v385, 4294901760
    %1295 = vmatpush1.msra.mxu0 %v1294
    %v1296 = vand.u32 %v390, 4294901760
    %1297 = vmatprep.subr.mxu0 %v1296
    %v1298 = vand.u32 %v389, 4294901760
    %1299 = vmatpush1.msra.mxu0 %v1298
    %v1300 = vand.u32 %v412, 4294901760
    %1301 = vmatprep.subr.mxu0 %v1300
    %v1302 = vand.u32 %v409, 4294901760
    %1303 = vmatpush1.msra.mxu0 %v1302
    %1304 = vmatprep.subr.mxu0 0.0
    %1305 = vmatpush1.msra.mxu0 0.0
    %1306 = vmatprep.subr.mxu0 0.0
    %1307 = vmatpush1.msra.mxu0 0.0
    %1308 = vmatprep.subr.mxu0 0.0
    %1309 = vmatpush1.msra.mxu0 0.0
    %1310 = vmatprep.subr.mxu0 0.0
    %1311 = vmatpush1.msra.mxu0 0.0
    %1312 = vmatprep.subr.mxu0 0.0
    %1313 = vmatpush1.msra.mxu0 0.0
    %1314 = vmatprep.subr.mxu0 0.0
    %1315 = vmatpush1.msra.mxu0 0.0
    %1316 = vmatprep.subr.mxu0 0.0
    %1317 = vmatpush1.msra.mxu0 0.0
    %1318 = vmatprep.subr.mxu0 0.0
    %1319 = vmatpush1.msra.mxu0 0.0
    %1320 = vmatprep.subr.mxu0 0.0
    %1321 = vmatpush1.msra.mxu0 0.0
    %1322 = vmatprep.subr.mxu0 0.0
    %1323 = vmatpush1.msra.mxu0 0.0
    %1324 = vmatprep.subr.mxu0 0.0
    %1325 = vmatpush1.msra.mxu0 0.0
    %1326 = vmatprep.subr.mxu0 0.0
    %1327 = vmatpush1.msra.mxu0 0.0
    %1328 = vmatprep.subr.mxu0 0.0
    %1329 = vmatpush1.msra.mxu0 0.0
    %1330 = vmatprep.subr.mxu0 0.0
    %1331 = vmatpush1.msra.mxu0 0.0
    %1332 = vmatprep.subr.mxu0 0.0
    %1333 = vmatpush1.msra.mxu0 0.0
    %1334 = vmatprep.subr.mxu0 0.0
    %1335 = vmatpush1.msra.mxu0 0.0
    %1336 = vmatprep.subr.mxu0 0.0
    %1337 = vmatpush1.msra.mxu0 0.0
    %1338 = vmatprep.subr.mxu0 0.0
    %1339 = vmatpush1.msra.mxu0 0.0
    %1340 = vmatprep.subr.mxu0 0.0
    %1341 = vmatpush1.msra.mxu0 0.0
    %1342 = vmatprep.subr.mxu0 0.0
    %1343 = vmatpush1.msra.mxu0 0.0
    %1344 = vmatprep.subr.mxu0 0.0
    %1345 = vmatpush1.msra.mxu0 0.0
    %1346 = vmatprep.subr.mxu0 0.0
    %1347 = vmatpush1.msra.mxu0 0.0
    %1348 = vmatprep.subr.mxu0 0.0
    %1349 = vmatpush1.msra.mxu0 0.0
    %1350 = vmatprep.subr.mxu0 0.0
    %1351 = vmatpush1.msra.mxu0 0.0
    %1352 = vmatprep.subr.mxu0 0.0
    %1353 = vmatpush1.msra.mxu0 0.0
    %1354 = vmatprep.subr.mxu0 0.0
    %1355 = vmatpush1.msra.mxu0 0.0
    %1356 = vmatprep.subr.mxu0 0.0
    %1357 = vmatpush1.msra.mxu0 0.0
    %1358 = vmatprep.mubr.f32.mxu0 0.0
    %v1359 = vand.u32 %v400, 4294901760
    %v1360 = vsub.f32 %v400, %v1359
    %v1361 = vand.u32 %v1360, 4294901760
    %1362 = vmatmul.mubr.f32.gmra.mrb[0].mxu0 %v1361
    %v1363 = vpop.f32.mrb[0].mxu0
    %v1364 = vadd.f32 %v1280, %v1363
    %v1365 = vpop.f32.mrb[0].mxu0
    %v1366 = vadd.f32 %v1282, %v1365
    %1367 = vdwg.mxu0
    %v1368 = vand.u32 %v378, 4294901760
    %v1369 = vsub.f32 %v378, %v1368
    %v1370 = vand.u32 %v1369, 4294901760
    %1371 = vmatprep.subr.mxu0 %v1370
    %v1372 = vand.u32 %v377, 4294901760
    %v1373 = vsub.f32 %v377, %v1372
    %v1374 = vand.u32 %v1373, 4294901760
    %1375 = vmatpush1.msra.mxu0 %v1374
    %v1376 = vand.u32 %v382, 4294901760
    %v1377 = vsub.f32 %v382, %v1376
    %v1378 = vand.u32 %v1377, 4294901760
    %1379 = vmatprep.subr.mxu0 %v1378
    %v1380 = vand.u32 %v381, 4294901760
    %v1381 = vsub.f32 %v381, %v1380
    %v1382 = vand.u32 %v1381, 4294901760
    %1383 = vmatpush1.msra.mxu0 %v1382
    %v1384 = vand.u32 %v386, 4294901760
    %v1385 = vsub.f32 %v386, %v1384
    %v1386 = vand.u32 %v1385, 4294901760
    %1387 = vmatprep.subr.mxu0 %v1386
    %v1388 = vand.u32 %v385, 4294901760
    %v1389 = vsub.f32 %v385, %v1388
    %v1390 = vand.u32 %v1389, 4294901760
    %1391 = vmatpush1.msra.mxu0 %v1390
    %v1392 = vand.u32 %v390, 4294901760
    %v1393 = vsub.f32 %v390, %v1392
    %v1394 = vand.u32 %v1393, 4294901760
    %1395 = vmatprep.subr.mxu0 %v1394
    %v1396 = vand.u32 %v389, 4294901760
    %v1397 = vsub.f32 %v389, %v1396
    %v1398 = vand.u32 %v1397, 4294901760
    %1399 = vmatpush1.msra.mxu0 %v1398
    %v1400 = vand.u32 %v412, 4294901760
    %v1401 = vsub.f32 %v412, %v1400
    %v1402 = vand.u32 %v1401, 4294901760
    %1403 = vmatprep.subr.mxu0 %v1402
    %v1404 = vand.u32 %v409, 4294901760
    %v1405 = vsub.f32 %v409, %v1404
    %v1406 = vand.u32 %v1405, 4294901760
    %1407 = vmatpush1.msra.mxu0 %v1406
    %1408 = vmatprep.subr.mxu0 0.0
    %1409 = vmatpush1.msra.mxu0 0.0
    %1410 = vmatprep.subr.mxu0 0.0
    %1411 = vmatpush1.msra.mxu0 0.0
    %1412 = vmatprep.subr.mxu0 0.0
    %1413 = vmatpush1.msra.mxu0 0.0
    %1414 = vmatprep.subr.mxu0 0.0
    %1415 = vmatpush1.msra.mxu0 0.0
    %1416 = vmatprep.subr.mxu0 0.0
    %1417 = vmatpush1.msra.mxu0 0.0
    %1418 = vmatprep.subr.mxu0 0.0
    %1419 = vmatpush1.msra.mxu0 0.0
    %1420 = vmatprep.subr.mxu0 0.0
    %1421 = vmatpush1.msra.mxu0 0.0
    %1422 = vmatprep.subr.mxu0 0.0
    %1423 = vmatpush1.msra.mxu0 0.0
    %1424 = vmatprep.subr.mxu0 0.0
    %1425 = vmatpush1.msra.mxu0 0.0
    %1426 = vmatprep.subr.mxu0 0.0
    %1427 = vmatpush1.msra.mxu0 0.0
    %1428 = vmatprep.subr.mxu0 0.0
    %1429 = vmatpush1.msra.mxu0 0.0
    %1430 = vmatprep.subr.mxu0 0.0
    %1431 = vmatpush1.msra.mxu0 0.0
    %1432 = vmatprep.subr.mxu0 0.0
    %1433 = vmatpush1.msra.mxu0 0.0
    %1434 = vmatprep.subr.mxu0 0.0
    %1435 = vmatpush1.msra.mxu0 0.0
    %1436 = vmatprep.subr.mxu0 0.0
    %1437 = vmatpush1.msra.mxu0 0.0
    %1438 = vmatprep.subr.mxu0 0.0
    %1439 = vmatpush1.msra.mxu0 0.0
    %1440 = vmatprep.subr.mxu0 0.0
    %1441 = vmatpush1.msra.mxu0 0.0
    %1442 = vmatprep.subr.mxu0 0.0
    %1443 = vmatpush1.msra.mxu0 0.0
    %1444 = vmatprep.subr.mxu0 0.0
    %1445 = vmatpush1.msra.mxu0 0.0
    %1446 = vmatprep.subr.mxu0 0.0
    %1447 = vmatpush1.msra.mxu0 0.0
    %1448 = vmatprep.subr.mxu0 0.0
    %1449 = vmatpush1.msra.mxu0 0.0
    %1450 = vmatprep.subr.mxu0 0.0
    %1451 = vmatpush1.msra.mxu0 0.0
    %1452 = vmatprep.subr.mxu0 0.0
    %1453 = vmatpush1.msra.mxu0 0.0
    %1454 = vmatprep.subr.mxu0 0.0
    %1455 = vmatpush1.msra.mxu0 0.0
    %1456 = vmatprep.subr.mxu0 0.0
    %1457 = vmatpush1.msra.mxu0 0.0
    %1458 = vmatprep.subr.mxu0 0.0
    %1459 = vmatpush1.msra.mxu0 0.0
    %1460 = vmatprep.subr.mxu0 0.0
    %1461 = vmatpush1.msra.mxu0 0.0
    %1462 = vmatprep.mubr.f32.mxu0 0.0
    %v1463 = vand.u32 %v400, 4294901760
    %1464 = vmatmul.mubr.f32.gmra.mrb[0].mxu0 %v1463
    %v1465 = vpop.f32.mrb[0].mxu0
    %v1466 = vadd.f32 %v1364, %v1465
    %v1467 = vpop.f32.mrb[0].mxu0
    %v1468 = vadd.f32 %v1366, %v1467
    %1469 = vdwg.mxu0
    %v1470 = vand.u32 %v378, 4294901760
    %1471 = vmatprep.subr.mxu0 %v1470
    %v1472 = vand.u32 %v377, 4294901760
    %1473 = vmatpush1.msra.mxu0 %v1472
    %v1474 = vand.u32 %v382, 4294901760
    %1475 = vmatprep.subr.mxu0 %v1474
    %v1476 = vand.u32 %v381, 4294901760
    %1477 = vmatpush1.msra.mxu0 %v1476
    %v1478 = vand.u32 %v386, 4294901760
    %1479 = vmatprep.subr.mxu0 %v1478
    %v1480 = vand.u32 %v385, 4294901760
    %1481 = vmatpush1.msra.mxu0 %v1480
    %v1482 = vand.u32 %v390, 4294901760
    %1483 = vmatprep.subr.mxu0 %v1482
    %v1484 = vand.u32 %v389, 4294901760
    %1485 = vmatpush1.msra.mxu0 %v1484
    %v1486 = vand.u32 %v412, 4294901760
    %1487 = vmatprep.subr.mxu0 %v1486
    %v1488 = vand.u32 %v409, 4294901760
    %1489 = vmatpush1.msra.mxu0 %v1488
    %1490 = vmatprep.subr.mxu0 0.0
    %1491 = vmatpush1.msra.mxu0 0.0
    %1492 = vmatprep.subr.mxu0 0.0
    %1493 = vmatpush1.msra.mxu0 0.0
    %1494 = vmatprep.subr.mxu0 0.0
    %1495 = vmatpush1.msra.mxu0 0.0
    %1496 = vmatprep.subr.mxu0 0.0
    %1497 = vmatpush1.msra.mxu0 0.0
    %1498 = vmatprep.subr.mxu0 0.0
    %1499 = vmatpush1.msra.mxu0 0.0
    %1500 = vmatprep.subr.mxu0 0.0
    %1501 = vmatpush1.msra.mxu0 0.0
    %1502 = vmatprep.subr.mxu0 0.0
    %1503 = vmatpush1.msra.mxu0 0.0
    %1504 = vmatprep.subr.mxu0 0.0
    %1505 = vmatpush1.msra.mxu0 0.0
    %1506 = vmatprep.subr.mxu0 0.0
    %1507 = vmatpush1.msra.mxu0 0.0
    %1508 = vmatprep.subr.mxu0 0.0
    %1509 = vmatpush1.msra.mxu0 0.0
    %1510 = vmatprep.subr.mxu0 0.0
    %1511 = vmatpush1.msra.mxu0 0.0
    %1512 = vmatprep.subr.mxu0 0.0
    %1513 = vmatpush1.msra.mxu0 0.0
    %1514 = vmatprep.subr.mxu0 0.0
    %1515 = vmatpush1.msra.mxu0 0.0
    %1516 = vmatprep.subr.mxu0 0.0
    %1517 = vmatpush1.msra.mxu0 0.0
    %1518 = vmatprep.subr.mxu0 0.0
    %1519 = vmatpush1.msra.mxu0 0.0
    %1520 = vmatprep.subr.mxu0 0.0
    %1521 = vmatpush1.msra.mxu0 0.0
    %1522 = vmatprep.subr.mxu0 0.0
    %1523 = vmatpush1.msra.mxu0 0.0
    %1524 = vmatprep.subr.mxu0 0.0
    %1525 = vmatpush1.msra.mxu0 0.0
    %1526 = vmatprep.subr.mxu0 0.0
    %1527 = vmatpush1.msra.mxu0 0.0
    %1528 = vmatprep.subr.mxu0 0.0
    %1529 = vmatpush1.msra.mxu0 0.0
    %1530 = vmatprep.subr.mxu0 0.0
    %1531 = vmatpush1.msra.mxu0 0.0
    %1532 = vmatprep.subr.mxu0 0.0
    %1533 = vmatpush1.msra.mxu0 0.0
    %1534 = vmatprep.subr.mxu0 0.0
    %1535 = vmatpush1.msra.mxu0 0.0
    %1536 = vmatprep.subr.mxu0 0.0
    %1537 = vmatpush1.msra.mxu0 0.0
    %1538 = vmatprep.subr.mxu0 0.0
    %1539 = vmatpush1.msra.mxu0 0.0
    %1540 = vmatprep.subr.mxu0 0.0
    %1541 = vmatpush1.msra.mxu0 0.0
    %1542 = vmatprep.subr.mxu0 0.0
    %1543 = vmatpush1.msra.mxu0 0.0
    %1544 = vmatprep.mubr.f32.mxu0 0.0
    %v1545 = vand.u32 %v400, 4294901760
    %1546 = vmatmul.mubr.f32.gmra.mrb[0].mxu0 %v1545
    %v1547 = vpop.f32.mrb[0].mxu0
    %v1548 = vadd.f32 %v1466, %v1547
    %v1549 = vpop.f32.mrb[0].mxu0
    %v1550 = vadd.f32 %v1468, %v1549
    %1551 = vdwg.mxu0
    %v1552 = vmax.f32 %v979, 0.0
    %v1553 = vmax.f32 %v981, 0.0
    %v1554 = vmax.f32 %v1548, 0.0
    %v1555 = vmax.f32 %v1550, 0.0
    %v1560 = vcombine.low %v1552, %v1553
    %v1561 = vcombine.low %v1554, %v1555
    %1564 = vst [vmem:[#allocation7] sm:$0xff] %v1560
    %1565 = vst [vmem:[#allocation7 + $0x8] sm:$0xff] %v1561
    %1566 = vrot.lane.b32.xlu0 %v1552, 17
    %v1567 = vpop.permute.xlu0 %1566
    %1568 = vrot.lane.b32.xlu0 %v1553, 17
    %v1569 = vpop.permute.xlu0 %1568
    %1570 = vrot.lane.b32.xlu0 %v1554, 17
    %v1571 = vpop.permute.xlu0 %1570
    %1572 = vrot.lane.b32.xlu0 %v1555, 17
    %v1573 = vpop.permute.xlu0 %1572
    %v1574 = vsel %vm70, %v1571, %v1573
    %v1575 = vsel %vm70, %v1569, %v1571
    %v1576 = vsel %vm70, %v1567, %v1569
    %v1577 = vsel %vm70, %v1573, %v1567
    %v1578 = vmul.f32 %v1577, %v78
    %v1579 = vmul.f32 %v1576, %v82
    %v1580 = vmul.f32 %v1575, %v86
    %v1581 = vmul.f32 %v1574, %v90
    %1582 = vrot.lane.b32.xlu0 %v1552, 16
    %v1583 = vpop.permute.xlu0 %1582
    %1584 = vrot.lane.b32.xlu0 %v1553, 16
    %v1585 = vpop.permute.xlu0 %1584
    %1586 = vrot.lane.b32.xlu0 %v1554, 16
    %v1587 = vpop.permute.xlu0 %1586
    %1588 = vrot.lane.b32.xlu0 %v1555, 16
    %v1589 = vpop.permute.xlu0 %1588
    %v1590 = vsel %vm103, %v1587, %v1589
    %v1591 = vsel %vm103, %v1585, %v1587
    %v1592 = vsel %vm103, %v1583, %v1585
    %v1593 = vsel %vm103, %v1589, %v1583
    %v1594 = vmul.f32 %v1593, %v111
    %v1595 = vmul.f32 %v1592, %v115
    %v1596 = vmul.f32 %v1591, %v119
    %v1597 = vmul.f32 %v1590, %v123
    %1598 = vrot.lane.b32.xlu0 %v1552, 15
    %v1599 = vpop.permute.xlu0 %1598
    %1600 = vrot.lane.b32.xlu0 %v1553, 15
    %v1601 = vpop.permute.xlu0 %1600
    %1602 = vrot.lane.b32.xlu0 %v1554, 15
    %v1603 = vpop.permute.xlu0 %1602
    %1604 = vrot.lane.b32.xlu0 %v1555, 15
    %v1605 = vpop.permute.xlu0 %1604
    %v1606 = vsel %vm136, %v1603, %v1605
    %v1607 = vsel %vm136, %v1601, %v1603
    %v1608 = vsel %vm136, %v1599, %v1601
    %v1609 = vsel %vm136, %v1605, %v1599
    %v1610 = vmul.f32 %v1609, %v144
    %v1611 = vmul.f32 %v1608, %v148
    %v1612 = vmul.f32 %v1607, %v152
    %v1613 = vmul.f32 %v1606, %v156
    %1614 = vrot.lane.b32.xlu0 %v1552, 1
    %v1615 = vpop.permute.xlu0 %1614
    %1616 = vrot.lane.b32.xlu0 %v1553, 1
    %v1617 = vpop.permute.xlu0 %1616
    %1618 = vrot.lane.b32.xlu0 %v1554, 1
    %v1619 = vpop.permute.xlu0 %1618
    %1620 = vrot.lane.b32.xlu0 %v1555, 1
    %v1621 = vpop.permute.xlu0 %1620
    %v1622 = vsel %vm169, %v1619, %v1621
    %v1623 = vsel %vm169, %v1617, %v1619
    %v1624 = vsel %vm169, %v1615, %v1617
    %v1625 = vsel %vm169, %v1621, %v1615
    %v1626 = vmul.f32 %v1625, %v177
    %v1627 = vmul.f32 %v1624, %v181
    %v1628 = vmul.f32 %v1623, %v185
    %v1629 = vmul.f32 %v1622, %v189
    %1630 = vrot.lane.b32.xlu0 %v1552, 127
    %v1631 = vpop.permute.xlu0 %1630
    %1632 = vrot.lane.b32.xlu0 %v1553, 127
    %v1633 = vpop.permute.xlu0 %1632
    %1634 = vrot.lane.b32.xlu0 %v1554, 127
    %v1635 = vpop.permute.xlu0 %1634
    %1636 = vrot.lane.b32.xlu0 %v1555, 127
    %v1637 = vpop.permute.xlu0 %1636
    %v1638 = vsel %vm202, %v1635, %v1637
    %v1639 = vsel %vm202, %v1633, %v1635
    %v1640 = vsel %vm202, %v1631, %v1633
    %v1641 = vsel %vm202, %v1637, %v1631
    %v1642 = vmul.f32 %v1640, %v210
    %v1643 = vmul.f32 %v1639, %v214
    %v1644 = vmul.f32 %v1638, %v218
    %v1645 = vmul.f32 %v1641, %v222
    %1646 = vrot.lane.b32.xlu0 %v1552, 113
    %v1647 = vpop.permute.xlu0 %1646
    %1648 = vrot.lane.b32.xlu0 %v1553, 113
    %v1649 = vpop.permute.xlu0 %1648
    %1650 = vrot.lane.b32.xlu0 %v1554, 113
    %v1651 = vpop.permute.xlu0 %1650
    %1652 = vrot.lane.b32.xlu0 %v1555, 113
    %v1653 = vpop.permute.xlu0 %1652
    %v1654 = vsel %vm235, %v1651, %v1653
    %v1655 = vsel %vm235, %v1649, %v1651
    %v1656 = vsel %vm235, %v1647, %v1649
    %v1657 = vsel %vm235, %v1653, %v1647
    %v1658 = vmul.f32 %v1656, %v243
    %v1659 = vmul.f32 %v1655, %v247
    %v1660 = vmul.f32 %v1654, %v251
    %v1661 = vmul.f32 %v1657, %v255
    %1662 = vrot.lane.b32.xlu0 %v1552, 112
    %v1663 = vpop.permute.xlu0 %1662
    %1664 = vrot.lane.b32.xlu0 %v1553, 112
    %v1665 = vpop.permute.xlu0 %1664
    %1666 = vrot.lane.b32.xlu0 %v1554, 112
    %v1667 = vpop.permute.xlu0 %1666
    %1668 = vrot.lane.b32.xlu0 %v1555, 112
    %v1669 = vpop.permute.xlu0 %1668
    %v1670 = vsel %vm268, %v1667, %v1669
    %v1671 = vsel %vm268, %v1665, %v1667
    %v1672 = vsel %vm268, %v1663, %v1665
    %v1673 = vsel %vm268, %v1669, %v1663
    %v1674 = vmul.f32 %v1672, %v276
    %v1675 = vmul.f32 %v1671, %v280
    %v1676 = vmul.f32 %v1670, %v284
    %v1677 = vmul.f32 %v1673, %v288
    %1678 = vrot.lane.b32.xlu0 %v1552, 111
    %v1679 = vpop.permute.xlu0 %1678
    %1680 = vrot.lane.b32.xlu0 %v1553, 111
    %v1681 = vpop.permute.xlu0 %1680
    %1682 = vrot.lane.b32.xlu0 %v1554, 111
    %v1683 = vpop.permute.xlu0 %1682
    %1684 = vrot.lane.b32.xlu0 %v1555, 111
    %v1685 = vpop.permute.xlu0 %1684
    %v1686 = vsel %vm301, %v1683, %v1685
    %v1687 = vsel %vm301, %v1681, %v1683
    %v1688 = vsel %vm301, %v1679, %v1681
    %v1689 = vsel %vm301, %v1685, %v1679
    %v1690 = vmul.f32 %v1688, %v309
    %v1691 = vmul.f32 %v1687, %v313
    %v1692 = vmul.f32 %v1686, %v317
    %v1693 = vmul.f32 %v1689, %v321
    %v1698 = vrot.slane %v1594, 4
    %v1699 = vrot.slane %v1595, 4
    %v1700 = vrot.slane %v1596, 4
    %v1701 = vrot.slane %v1597, 4
    %v1710 = vrot.slane %v1626, 4
    %v1711 = vrot.slane %v1627, 4
    %v1712 = vrot.slane %v1628, 4
    %v1713 = vrot.slane %v1629, 4
    %v1722 = vrot.slane %v1642, 4
    %v1723 = vrot.slane %v1643, 4
    %v1724 = vrot.slane %v1644, 4
    %v1725 = vrot.slane %v1645, 4
    %v1734 = vrot.slane %v1674, 4
    %v1735 = vrot.slane %v1675, 4
    %v1736 = vrot.slane %v1676, 4
    %v1737 = vrot.slane %v1677, 4
    %v1742 = vsel %vm374, %v1578, %v1698
    %v1743 = vsel %vm374, %v1579, %v1699
    %v1744 = vsel %vm374, %v1580, %v1700
    %v1745 = vsel %vm374, %v1581, %v1701
    %v1746 = vsel %vm374, %v1610, %v1710
    %v1747 = vsel %vm374, %v1611, %v1711
    %v1748 = vsel %vm374, %v1612, %v1712
    %v1749 = vsel %vm374, %v1613, %v1713
    %v1750 = vsel %vm374, %v1552, %v1722
    %v1751 = vsel %vm374, %v1553, %v1723
    %v1752 = vsel %vm374, %v1554, %v1724
    %v1753 = vsel %vm374, %v1555, %v1725
    %v1754 = vsel %vm374, %v1658, %v1734
    %v1755 = vsel %vm374, %v1659, %v1735
    %v1756 = vsel %vm374, %v1660, %v1736
    %v1757 = vsel %vm374, %v1661, %v1737
    %s1758 = scalar_lea.vmem %s1, 4
    %v1759 = vld [vmem:[%s1758] sm:$0xf]
    %s1760 = scalar_lea.vmem %s2, 4
    %v1761 = vld [vmem:[%s1760] sm:$0xf]
    %1763 = vset.pattern.permute.xlu0 0
    %1764 = vperm.xlu0 %1763, %v1761
    %v1765 = vpop.permute.xlu0 %1764
    %v1768 = vsel %vm398, %v1759, 0
    %v1771 = vsel %vm374, %v1690, 0
    %v1774 = vsel %vm374, %v1691, 0
    %v1777 = vsel %vm374, %v1692, 0
    %v1780 = vsel %vm374, %v1693, 0
    %v1782 = vand.u32 %v1743, 4294901760
    %1783 = vmatprep.subr.mxu0 %v1782
    %v1784 = vand.u32 %v1742, 4294901760
    %1785 = vmatpush1.msra.mxu0 %v1784
    %v1786 = vand.u32 %v1747, 4294901760
    %1787 = vmatprep.subr.mxu0 %v1786
    %v1788 = vand.u32 %v1746, 4294901760
    %1789 = vmatpush1.msra.mxu0 %v1788
    %v1790 = vand.u32 %v1751, 4294901760
    %1791 = vmatprep.subr.mxu0 %v1790
    %v1792 = vand.u32 %v1750, 4294901760
    %1793 = vmatpush1.msra.mxu0 %v1792
    %v1794 = vand.u32 %v1755, 4294901760
    %1795 = vmatprep.subr.mxu0 %v1794
    %v1796 = vand.u32 %v1754, 4294901760
    %1797 = vmatpush1.msra.mxu0 %v1796
    %v1798 = vand.u32 %v1774, 4294901760
    %1799 = vmatprep.subr.mxu0 %v1798
    %v1800 = vand.u32 %v1771, 4294901760
    %1801 = vmatpush1.msra.mxu0 %v1800
    %1802 = vmatprep.subr.mxu0 0.0
    %1803 = vmatpush1.msra.mxu0 0.0
    %1804 = vmatprep.subr.mxu0 0.0
    %1805 = vmatpush1.msra.mxu0 0.0
    %1806 = vmatprep.subr.mxu0 0.0
    %1807 = vmatpush1.msra.mxu0 0.0
    %1808 = vmatprep.subr.mxu0 0.0
    %1809 = vmatpush1.msra.mxu0 0.0
    %1810 = vmatprep.subr.mxu0 0.0
    %1811 = vmatpush1.msra.mxu0 0.0
    %1812 = vmatprep.subr.mxu0 0.0
    %1813 = vmatpush1.msra.mxu0 0.0
    %1814 = vmatprep.subr.mxu0 0.0
    %1815 = vmatpush1.msra.mxu0 0.0
    %1816 = vmatprep.subr.mxu0 0.0
    %1817 = vmatpush1.msra.mxu0 0.0
    %1818 = vmatprep.subr.mxu0 0.0
    %1819 = vmatpush1.msra.mxu0 0.0
    %1820 = vmatprep.subr.mxu0 0.0
    %1821 = vmatpush1.msra.mxu0 0.0
    %1822 = vmatprep.subr.mxu0 0.0
    %1823 = vmatpush1.msra.mxu0 0.0
    %1824 = vmatprep.subr.mxu0 0.0
    %1825 = vmatpush1.msra.mxu0 0.0
    %1826 = vmatprep.subr.mxu0 0.0
    %1827 = vmatpush1.msra.mxu0 0.0
    %1828 = vmatprep.subr.mxu0 0.0
    %1829 = vmatpush1.msra.mxu0 0.0
    %1830 = vmatprep.subr.mxu0 0.0
    %1831 = vmatpush1.msra.mxu0 0.0
    %1832 = vmatprep.subr.mxu0 0.0
    %1833 = vmatpush1.msra.mxu0 0.0
    %1834 = vmatprep.subr.mxu0 0.0
    %1835 = vmatpush1.msra.mxu0 0.0
    %1836 = vmatprep.subr.mxu0 0.0
    %1837 = vmatpush1.msra.mxu0 0.0
    %1838 = vmatprep.subr.mxu0 0.0
    %1839 = vmatpush1.msra.mxu0 0.0
    %1840 = vmatprep.subr.mxu0 0.0
    %1841 = vmatpush1.msra.mxu0 0.0
    %1842 = vmatprep.subr.mxu0 0.0
    %1843 = vmatpush1.msra.mxu0 0.0
    %1844 = vmatprep.subr.mxu0 0.0
    %1845 = vmatpush1.msra.mxu0 0.0
    %1846 = vmatprep.subr.mxu0 0.0
    %1847 = vmatpush1.msra.mxu0 0.0
    %1848 = vmatprep.subr.mxu0 0.0
    %1849 = vmatpush1.msra.mxu0 0.0
    %1850 = vmatprep.subr.mxu0 0.0
    %1851 = vmatpush1.msra.mxu0 0.0
    %1852 = vmatprep.subr.mxu0 0.0
    %1853 = vmatpush1.msra.mxu0 0.0
    %1854 = vmatprep.subr.mxu0 0.0
    %1855 = vmatpush1.msra.mxu0 0.0
    %1856 = vmatprep.mubr.f32.mxu0 0.0
    %v1857 = vand.u32 %v1768, 4294901760
    %v1858 = vsub.f32 %v1768, %v1857
    %v1859 = vand.u32 %v1858, 4294901760
    %v1860 = vsub.f32 %v1858, %v1859
    %v1861 = vand.u32 %v1860, 4294901760
    %1862 = vmatmul.mubr.f32.gmra.mrb[0].mxu0 %v1861
    %v1863 = vpop.f32.mrb[0].mxu0
    %v1864 = vadd.f32 %v1765, %v1863
    %v1865 = vpop.f32.mrb[0].mxu0
    %v1866 = vadd.f32 %v1765, %v1865
    %1867 = vdwg.mxu0
    %v1868 = vand.u32 %v1743, 4294901760
    %v1869 = vsub.f32 %v1743, %v1868
    %v1870 = vand.u32 %v1869, 4294901760
    %v1871 = vsub.f32 %v1869, %v1870
    %v1872 = vand.u32 %v1871, 4294901760
    %1873 = vmatprep.subr.mxu0 %v1872
    %v1874 = vand.u32 %v1742, 4294901760
    %v1875 = vsub.f32 %v1742, %v1874
    %v1876 = vand.u32 %v1875, 4294901760
    %v1877 = vsub.f32 %v1875, %v1876
    %v1878 = vand.u32 %v1877, 4294901760
    %1879 = vmatpush1.msra.mxu0 %v1878
    %v1880 = vand.u32 %v1747, 4294901760
    %v1881 = vsub.f32 %v1747, %v1880
    %v1882 = vand.u32 %v1881, 4294901760
    %v1883 = vsub.f32 %v1881, %v1882
    %v1884 = vand.u32 %v1883, 4294901760
    %1885 = vmatprep.subr.mxu0 %v1884
    %v1886 = vand.u32 %v1746, 4294901760
    %v1887 = vsub.f32 %v1746, %v1886
    %v1888 = vand.u32 %v1887, 4294901760
    %v1889 = vsub.f32 %v1887, %v1888
    %v1890 = vand.u32 %v1889, 4294901760
    %1891 = vmatpush1.msra.mxu0 %v1890
    %v1892 = vand.u32 %v1751, 4294901760
    %v1893 = vsub.f32 %v1751, %v1892
    %v1894 = vand.u32 %v1893, 4294901760
    %v1895 = vsub.f32 %v1893, %v1894
    %v1896 = vand.u32 %v1895, 4294901760
    %1897 = vmatprep.subr.mxu0 %v1896
    %v1898 = vand.u32 %v1750, 4294901760
    %v1899 = vsub.f32 %v1750, %v1898
    %v1900 = vand.u32 %v1899, 4294901760
    %v1901 = vsub.f32 %v1899, %v1900
    %v1902 = vand.u32 %v1901, 4294901760
    %1903 = vmatpush1.msra.mxu0 %v1902
    %v1904 = vand.u32 %v1755, 4294901760
    %v1905 = vsub.f32 %v1755, %v1904
    %v1906 = vand.u32 %v1905, 4294901760
    %v1907 = vsub.f32 %v1905, %v1906
    %v1908 = vand.u32 %v1907, 4294901760
    %1909 = vmatprep.subr.mxu0 %v1908
    %v1910 = vand.u32 %v1754, 4294901760
    %v1911 = vsub.f32 %v1754, %v1910
    %v1912 = vand.u32 %v1911, 4294901760
    %v1913 = vsub.f32 %v1911, %v1912
    %v1914 = vand.u32 %v1913, 4294901760
    %1915 = vmatpush1.msra.mxu0 %v1914
    %v1916 = vand.u32 %v1774, 4294901760
    %v1917 = vsub.f32 %v1774, %v1916
    %v1918 = vand.u32 %v1917, 4294901760
    %v1919 = vsub.f32 %v1917, %v1918
    %v1920 = vand.u32 %v1919, 4294901760
    %1921 = vmatprep.subr.mxu0 %v1920
    %v1922 = vand.u32 %v1771, 4294901760
    %v1923 = vsub.f32 %v1771, %v1922
    %v1924 = vand.u32 %v1923, 4294901760
    %v1925 = vsub.f32 %v1923, %v1924
    %v1926 = vand.u32 %v1925, 4294901760
    %1927 = vmatpush1.msra.mxu0 %v1926
    %1928 = vmatprep.subr.mxu0 0.0
    %1929 = vmatpush1.msra.mxu0 0.0
    %1930 = vmatprep.subr.mxu0 0.0
    %1931 = vmatpush1.msra.mxu0 0.0
    %1932 = vmatprep.subr.mxu0 0.0
    %1933 = vmatpush1.msra.mxu0 0.0
    %1934 = vmatprep.subr.mxu0 0.0
    %1935 = vmatpush1.msra.mxu0 0.0
    %1936 = vmatprep.subr.mxu0 0.0
    %1937 = vmatpush1.msra.mxu0 0.0
    %1938 = vmatprep.subr.mxu0 0.0
    %1939 = vmatpush1.msra.mxu0 0.0
    %1940 = vmatprep.subr.mxu0 0.0
    %1941 = vmatpush1.msra.mxu0 0.0
    %1942 = vmatprep.subr.mxu0 0.0
    %1943 = vmatpush1.msra.mxu0 0.0
    %1944 = vmatprep.subr.mxu0 0.0
    %1945 = vmatpush1.msra.mxu0 0.0
    %1946 = vmatprep.subr.mxu0 0.0
    %1947 = vmatpush1.msra.mxu0 0.0
    %1948 = vmatprep.subr.mxu0 0.0
    %1949 = vmatpush1.msra.mxu0 0.0
    %1950 = vmatprep.subr.mxu0 0.0
    %1951 = vmatpush1.msra.mxu0 0.0
    %1952 = vmatprep.subr.mxu0 0.0
    %1953 = vmatpush1.msra.mxu0 0.0
    %1954 = vmatprep.subr.mxu0 0.0
    %1955 = vmatpush1.msra.mxu0 0.0
    %1956 = vmatprep.subr.mxu0 0.0
    %1957 = vmatpush1.msra.mxu0 0.0
    %1958 = vmatprep.subr.mxu0 0.0
    %1959 = vmatpush1.msra.mxu0 0.0
    %1960 = vmatprep.subr.mxu0 0.0
    %1961 = vmatpush1.msra.mxu0 0.0
    %1962 = vmatprep.subr.mxu0 0.0
    %1963 = vmatpush1.msra.mxu0 0.0
    %1964 = vmatprep.subr.mxu0 0.0
    %1965 = vmatpush1.msra.mxu0 0.0
    %1966 = vmatprep.subr.mxu0 0.0
    %1967 = vmatpush1.msra.mxu0 0.0
    %1968 = vmatprep.subr.mxu0 0.0
    %1969 = vmatpush1.msra.mxu0 0.0
    %1970 = vmatprep.subr.mxu0 0.0
    %1971 = vmatpush1.msra.mxu0 0.0
    %1972 = vmatprep.subr.mxu0 0.0
    %1973 = vmatpush1.msra.mxu0 0.0
    %1974 = vmatprep.subr.mxu0 0.0
    %1975 = vmatpush1.msra.mxu0 0.0
    %1976 = vmatprep.subr.mxu0 0.0
    %1977 = vmatpush1.msra.mxu0 0.0
    %1978 = vmatprep.subr.mxu0 0.0
    %1979 = vmatpush1.msra.mxu0 0.0
    %1980 = vmatprep.subr.mxu0 0.0
    %1981 = vmatpush1.msra.mxu0 0.0
    %1982 = vmatprep.mubr.f32.mxu0 0.0
    %v1983 = vand.u32 %v1768, 4294901760
    %1984 = vmatmul.mubr.f32.gmra.mrb[0].mxu0 %v1983
    %v1985 = vpop.f32.mrb[0].mxu0
    %v1986 = vadd.f32 %v1864, %v1985
    %v1987 = vpop.f32.mrb[0].mxu0
    %v1988 = vadd.f32 %v1866, %v1987
    %1989 = vdwg.mxu0
    %v1990 = vand.u32 %v1743, 4294901760
    %v1991 = vsub.f32 %v1743, %v1990
    %1992 = vmatprep.subr.mxu0 %v1991
    %v1993 = vand.u32 %v1742, 4294901760
    %v1994 = vsub.f32 %v1742, %v1993
    %1995 = vmatpush1.msra.mxu0 %v1994
    %v1996 = vand.u32 %v1747, 4294901760
    %v1997 = vsub.f32 %v1747, %v1996
    %1998 = vmatprep.subr.mxu0 %v1997
    %v1999 = vand.u32 %v1746, 4294901760
    %v2000 = vsub.f32 %v1746, %v1999
    %2001 = vmatpush1.msra.mxu0 %v2000
    %v2002 = vand.u32 %v1751, 4294901760
    %v2003 = vsub.f32 %v1751, %v2002
    %2004 = vmatprep.subr.mxu0 %v2003
    %v2005 = vand.u32 %v1750, 4294901760
    %v2006 = vsub.f32 %v1750, %v2005
    %2007 = vmatpush1.msra.mxu0 %v2006
    %v2008 = vand.u32 %v1755, 4294901760
    %v2009 = vsub.f32 %v1755, %v2008
    %2010 = vmatprep.subr.mxu0 %v2009
    %v2011 = vand.u32 %v1754, 4294901760
    %v2012 = vsub.f32 %v1754, %v2011
    %2013 = vmatpush1.msra.mxu0 %v2012
    %v2014 = vand.u32 %v1774, 4294901760
    %v2015 = vsub.f32 %v1774, %v2014
    %2016 = vmatprep.subr.mxu0 %v2015
    %v2017 = vand.u32 %v1771, 4294901760
    %v2018 = vsub.f32 %v1771, %v2017
    %2019 = vmatpush1.msra.mxu0 %v2018
    %2020 = vmatprep.subr.mxu0 0.0
    %2021 = vmatpush1.msra.mxu0 0.0
    %2022 = vmatprep.subr.mxu0 0.0
    %2023 = vmatpush1.msra.mxu0 0.0
    %2024 = vmatprep.subr.mxu0 0.0
    %2025 = vmatpush1.msra.mxu0 0.0
    %2026 = vmatprep.subr.mxu0 0.0
    %2027 = vmatpush1.msra.mxu0 0.0
    %2028 = vmatprep.subr.mxu0 0.0
    %2029 = vmatpush1.msra.mxu0 0.0
    %2030 = vmatprep.subr.mxu0 0.0
    %2031 = vmatpush1.msra.mxu0 0.0
    %2032 = vmatprep.subr.mxu0 0.0
    %2033 = vmatpush1.msra.mxu0 0.0
    %2034 = vmatprep.subr.mxu0 0.0
    %2035 = vmatpush1.msra.mxu0 0.0
    %2036 = vmatprep.subr.mxu0 0.0
    %2037 = vmatpush1.msra.mxu0 0.0
    %2038 = vmatprep.subr.mxu0 0.0
    %2039 = vmatpush1.msra.mxu0 0.0
    %2040 = vmatprep.subr.mxu0 0.0
    %2041 = vmatpush1.msra.mxu0 0.0
    %2042 = vmatprep.subr.mxu0 0.0
    %2043 = vmatpush1.msra.mxu0 0.0
    %2044 = vmatprep.subr.mxu0 0.0
    %2045 = vmatpush1.msra.mxu0 0.0
    %2046 = vmatprep.subr.mxu0 0.0
    %2047 = vmatpush1.msra.mxu0 0.0
    %2048 = vmatprep.subr.mxu0 0.0
    %2049 = vmatpush1.msra.mxu0 0.0
    %2050 = vmatprep.subr.mxu0 0.0
    %2051 = vmatpush1.msra.mxu0 0.0
    %2052 = vmatprep.subr.mxu0 0.0
    %2053 = vmatpush1.msra.mxu0 0.0
    %2054 = vmatprep.subr.mxu0 0.0
    %2055 = vmatpush1.msra.mxu0 0.0
    %2056 = vmatprep.subr.mxu0 0.0
    %2057 = vmatpush1.msra.mxu0 0.0
    %2058 = vmatprep.subr.mxu0 0.0
    %2059 = vmatpush1.msra.mxu0 0.0
    %2060 = vmatprep.subr.mxu0 0.0
    %2061 = vmatpush1.msra.mxu0 0.0
    %2062 = vmatprep.subr.mxu0 0.0
    %2063 = vmatpush1.msra.mxu0 0.0
    %2064 = vmatprep.subr.mxu0 0.0
    %2065 = vmatpush1.msra.mxu0 0.0
    %2066 = vmatprep.subr.mxu0 0.0
    %2067 = vmatpush1.msra.mxu0 0.0
    %2068 = vmatprep.subr.mxu0 0.0
    %2069 = vmatpush1.msra.mxu0 0.0
    %2070 = vmatprep.subr.mxu0 0.0
    %2071 = vmatpush1.msra.mxu0 0.0
    %2072 = vmatprep.subr.mxu0 0.0
    %2073 = vmatpush1.msra.mxu0 0.0
    %2074 = vmatprep.mubr.f32.mxu0 0.0
    %v2075 = vand.u32 %v1768, 4294901760
    %v2076 = vsub.f32 %v1768, %v2075
    %2077 = vmatmul.mubr.f32.gmra.mrb[0].mxu0 %v2076
    %v2078 = vpop.f32.mrb[0].mxu0
    %v2079 = vadd.f32 %v1986, %v2078
    %v2080 = vpop.f32.mrb[0].mxu0
    %v2081 = vadd.f32 %v1988, %v2080
    %2082 = vdwg.mxu0
    %v2083 = vand.u32 %v1743, 4294901760
    %2084 = vmatprep.subr.mxu0 %v2083
    %v2085 = vand.u32 %v1742, 4294901760
    %2086 = vmatpush1.msra.mxu0 %v2085
    %v2087 = vand.u32 %v1747, 4294901760
    %2088 = vmatprep.subr.mxu0 %v2087
    %v2089 = vand.u32 %v1746, 4294901760
    %2090 = vmatpush1.msra.mxu0 %v2089
    %v2091 = vand.u32 %v1751, 4294901760
    %2092 = vmatprep.subr.mxu0 %v2091
    %v2093 = vand.u32 %v1750, 4294901760
    %2094 = vmatpush1.msra.mxu0 %v2093
    %v2095 = vand.u32 %v1755, 4294901760
    %2096 = vmatprep.subr.mxu0 %v2095
    %v2097 = vand.u32 %v1754, 4294901760
    %2098 = vmatpush1.msra.mxu0 %v2097
    %v2099 = vand.u32 %v1774, 4294901760
    %2100 = vmatprep.subr.mxu0 %v2099
    %v2101 = vand.u32 %v1771, 4294901760
    %2102 = vmatpush1.msra.mxu0 %v2101
    %2103 = vmatprep.subr.mxu0 0.0
    %2104 = vmatpush1.msra.mxu0 0.0
    %2105 = vmatprep.subr.mxu0 0.0
    %2106 = vmatpush1.msra.mxu0 0.0
    %2107 = vmatprep.subr.mxu0 0.0
    %2108 = vmatpush1.msra.mxu0 0.0
    %2109 = vmatprep.subr.mxu0 0.0
    %2110 = vmatpush1.msra.mxu0 0.0
    %2111 = vmatprep.subr.mxu0 0.0
    %2112 = vmatpush1.msra.mxu0 0.0
    %2113 = vmatprep.subr.mxu0 0.0
    %2114 = vmatpush1.msra.mxu0 0.0
    %2115 = vmatprep.subr.mxu0 0.0
    %2116 = vmatpush1.msra.mxu0 0.0
    %2117 = vmatprep.subr.mxu0 0.0
    %2118 = vmatpush1.msra.mxu0 0.0
    %2119 = vmatprep.subr.mxu0 0.0
    %2120 = vmatpush1.msra.mxu0 0.0
    %2121 = vmatprep.subr.mxu0 0.0
    %2122 = vmatpush1.msra.mxu0 0.0
    %2123 = vmatprep.subr.mxu0 0.0
    %2124 = vmatpush1.msra.mxu0 0.0
    %2125 = vmatprep.subr.mxu0 0.0
    %2126 = vmatpush1.msra.mxu0 0.0
    %2127 = vmatprep.subr.mxu0 0.0
    %2128 = vmatpush1.msra.mxu0 0.0
    %2129 = vmatprep.subr.mxu0 0.0
    %2130 = vmatpush1.msra.mxu0 0.0
    %2131 = vmatprep.subr.mxu0 0.0
    %2132 = vmatpush1.msra.mxu0 0.0
    %2133 = vmatprep.subr.mxu0 0.0
    %2134 = vmatpush1.msra.mxu0 0.0
    %2135 = vmatprep.subr.mxu0 0.0
    %2136 = vmatpush1.msra.mxu0 0.0
    %2137 = vmatprep.subr.mxu0 0.0
    %2138 = vmatpush1.msra.mxu0 0.0
    %2139 = vmatprep.subr.mxu0 0.0
    %2140 = vmatpush1.msra.mxu0 0.0
    %2141 = vmatprep.subr.mxu0 0.0
    %2142 = vmatpush1.msra.mxu0 0.0
    %2143 = vmatprep.subr.mxu0 0.0
    %2144 = vmatpush1.msra.mxu0 0.0
    %2145 = vmatprep.subr.mxu0 0.0
    %2146 = vmatpush1.msra.mxu0 0.0
    %2147 = vmatprep.subr.mxu0 0.0
    %2148 = vmatpush1.msra.mxu0 0.0
    %2149 = vmatprep.subr.mxu0 0.0
    %2150 = vmatpush1.msra.mxu0 0.0
    %2151 = vmatprep.subr.mxu0 0.0
    %2152 = vmatpush1.msra.mxu0 0.0
    %2153 = vmatprep.subr.mxu0 0.0
    %2154 = vmatpush1.msra.mxu0 0.0
    %2155 = vmatprep.subr.mxu0 0.0
    %2156 = vmatpush1.msra.mxu0 0.0
    %2157 = vmatprep.mubr.f32.mxu0 0.0
    %v2158 = vand.u32 %v1768, 4294901760
    %v2159 = vsub.f32 %v1768, %v2158
    %v2160 = vand.u32 %v2159, 4294901760
    %2161 = vmatmul.mubr.f32.gmra.mrb[0].mxu0 %v2160
    %v2162 = vpop.f32.mrb[0].mxu0
    %v2163 = vadd.f32 %v2079, %v2162
    %v2164 = vpop.f32.mrb[0].mxu0
    %v2165 = vadd.f32 %v2081, %v2164
    %2166 = vdwg.mxu0
    %v2167 = vand.u32 %v1743, 4294901760
    %v2168 = vsub.f32 %v1743, %v2167
    %v2169 = vand.u32 %v2168, 4294901760
    %2170 = vmatprep.subr.mxu0 %v2169
    %v2171 = vand.u32 %v1742, 4294901760
    %v2172 = vsub.f32 %v1742, %v2171
    %v2173 = vand.u32 %v2172, 4294901760
    %2174 = vmatpush1.msra.mxu0 %v2173
    %v2175 = vand.u32 %v1747, 4294901760
    %v2176 = vsub.f32 %v1747, %v2175
    %v2177 = vand.u32 %v2176, 4294901760
    %2178 = vmatprep.subr.mxu0 %v2177
    %v2179 = vand.u32 %v1746, 4294901760
    %v2180 = vsub.f32 %v1746, %v2179
    %v2181 = vand.u32 %v2180, 4294901760
    %2182 = vmatpush1.msra.mxu0 %v2181
    %v2183 = vand.u32 %v1751, 4294901760
    %v2184 = vsub.f32 %v1751, %v2183
    %v2185 = vand.u32 %v2184, 4294901760
    %2186 = vmatprep.subr.mxu0 %v2185
    %v2187 = vand.u32 %v1750, 4294901760
    %v2188 = vsub.f32 %v1750, %v2187
    %v2189 = vand.u32 %v2188, 4294901760
    %2190 = vmatpush1.msra.mxu0 %v2189
    %v2191 = vand.u32 %v1755, 4294901760
    %v2192 = vsub.f32 %v1755, %v2191
    %v2193 = vand.u32 %v2192, 4294901760
    %2194 = vmatprep.subr.mxu0 %v2193
    %v2195 = vand.u32 %v1754, 4294901760
    %v2196 = vsub.f32 %v1754, %v2195
    %v2197 = vand.u32 %v2196, 4294901760
    %2198 = vmatpush1.msra.mxu0 %v2197
    %v2199 = vand.u32 %v1774, 4294901760
    %v2200 = vsub.f32 %v1774, %v2199
    %v2201 = vand.u32 %v2200, 4294901760
    %2202 = vmatprep.subr.mxu0 %v2201
    %v2203 = vand.u32 %v1771, 4294901760
    %v2204 = vsub.f32 %v1771, %v2203
    %v2205 = vand.u32 %v2204, 4294901760
    %2206 = vmatpush1.msra.mxu0 %v2205
    %2207 = vmatprep.subr.mxu0 0.0
    %2208 = vmatpush1.msra.mxu0 0.0
    %2209 = vmatprep.subr.mxu0 0.0
    %2210 = vmatpush1.msra.mxu0 0.0
    %2211 = vmatprep.subr.mxu0 0.0
    %2212 = vmatpush1.msra.mxu0 0.0
    %2213 = vmatprep.subr.mxu0 0.0
    %2214 = vmatpush1.msra.mxu0 0.0
    %2215 = vmatprep.subr.mxu0 0.0
    %2216 = vmatpush1.msra.mxu0 0.0
    %2217 = vmatprep.subr.mxu0 0.0
    %2218 = vmatpush1.msra.mxu0 0.0
    %2219 = vmatprep.subr.mxu0 0.0
    %2220 = vmatpush1.msra.mxu0 0.0
    %2221 = vmatprep.subr.mxu0 0.0
    %2222 = vmatpush1.msra.mxu0 0.0
    %2223 = vmatprep.subr.mxu0 0.0
    %2224 = vmatpush1.msra.mxu0 0.0
    %2225 = vmatprep.subr.mxu0 0.0
    %2226 = vmatpush1.msra.mxu0 0.0
    %2227 = vmatprep.subr.mxu0 0.0
    %2228 = vmatpush1.msra.mxu0 0.0
    %2229 = vmatprep.subr.mxu0 0.0
    %2230 = vmatpush1.msra.mxu0 0.0
    %2231 = vmatprep.subr.mxu0 0.0
    %2232 = vmatpush1.msra.mxu0 0.0
    %2233 = vmatprep.subr.mxu0 0.0
    %2234 = vmatpush1.msra.mxu0 0.0
    %2235 = vmatprep.subr.mxu0 0.0
    %2236 = vmatpush1.msra.mxu0 0.0
    %2237 = vmatprep.subr.mxu0 0.0
    %2238 = vmatpush1.msra.mxu0 0.0
    %2239 = vmatprep.subr.mxu0 0.0
    %2240 = vmatpush1.msra.mxu0 0.0
    %2241 = vmatprep.subr.mxu0 0.0
    %2242 = vmatpush1.msra.mxu0 0.0
    %2243 = vmatprep.subr.mxu0 0.0
    %2244 = vmatpush1.msra.mxu0 0.0
    %2245 = vmatprep.subr.mxu0 0.0
    %2246 = vmatpush1.msra.mxu0 0.0
    %2247 = vmatprep.subr.mxu0 0.0
    %2248 = vmatpush1.msra.mxu0 0.0
    %2249 = vmatprep.subr.mxu0 0.0
    %2250 = vmatpush1.msra.mxu0 0.0
    %2251 = vmatprep.subr.mxu0 0.0
    %2252 = vmatpush1.msra.mxu0 0.0
    %2253 = vmatprep.subr.mxu0 0.0
    %2254 = vmatpush1.msra.mxu0 0.0
    %2255 = vmatprep.subr.mxu0 0.0
    %2256 = vmatpush1.msra.mxu0 0.0
    %2257 = vmatprep.subr.mxu0 0.0
    %2258 = vmatpush1.msra.mxu0 0.0
    %2259 = vmatprep.subr.mxu0 0.0
    %2260 = vmatpush1.msra.mxu0 0.0
    %2261 = vmatprep.mubr.f32.mxu0 0.0
    %v2262 = vand.u32 %v1768, 4294901760
    %2263 = vmatmul.mubr.f32.gmra.mrb[0].mxu0 %v2262
    %v2264 = vpop.f32.mrb[0].mxu0
    %v2265 = vadd.f32 %v2163, %v2264
    %v2266 = vpop.f32.mrb[0].mxu0
    %v2267 = vadd.f32 %v2165, %v2266
    %2268 = vdwg.mxu0
    %v2269 = vand.u32 %v1743, 4294901760
    %2270 = vmatprep.subr.mxu0 %v2269
    %v2271 = vand.u32 %v1742, 4294901760
    %2272 = vmatpush1.msra.mxu0 %v2271
    %v2273 = vand.u32 %v1747, 4294901760
    %2274 = vmatprep.subr.mxu0 %v2273
    %v2275 = vand.u32 %v1746, 4294901760
    %2276 = vmatpush1.msra.mxu0 %v2275
    %v2277 = vand.u32 %v1751, 4294901760
    %2278 = vmatprep.subr.mxu0 %v2277
    %v2279 = vand.u32 %v1750, 4294901760
    %2280 = vmatpush1.msra.mxu0 %v2279
    %v2281 = vand.u32 %v1755, 4294901760
    %2282 = vmatprep.subr.mxu0 %v2281
    %v2283 = vand.u32 %v1754, 4294901760
    %2284 = vmatpush1.msra.mxu0 %v2283
    %v2285 = vand.u32 %v1774, 4294901760
    %2286 = vmatprep.subr.mxu0 %v2285
    %v2287 = vand.u32 %v1771, 4294901760
    %2288 = vmatpush1.msra.mxu0 %v2287
    %2289 = vmatprep.subr.mxu0 0.0
    %2290 = vmatpush1.msra.mxu0 0.0
    %2291 = vmatprep.subr.mxu0 0.0
    %2292 = vmatpush1.msra.mxu0 0.0
    %2293 = vmatprep.subr.mxu0 0.0
    %2294 = vmatpush1.msra.mxu0 0.0
    %2295 = vmatprep.subr.mxu0 0.0
    %2296 = vmatpush1.msra.mxu0 0.0
    %2297 = vmatprep.subr.mxu0 0.0
    %2298 = vmatpush1.msra.mxu0 0.0
    %2299 = vmatprep.subr.mxu0 0.0
    %2300 = vmatpush1.msra.mxu0 0.0
    %2301 = vmatprep.subr.mxu0 0.0
    %2302 = vmatpush1.msra.mxu0 0.0
    %2303 = vmatprep.subr.mxu0 0.0
    %2304 = vmatpush1.msra.mxu0 0.0
    %2305 = vmatprep.subr.mxu0 0.0
    %2306 = vmatpush1.msra.mxu0 0.0
    %2307 = vmatprep.subr.mxu0 0.0
    %2308 = vmatpush1.msra.mxu0 0.0
    %2309 = vmatprep.subr.mxu0 0.0
    %2310 = vmatpush1.msra.mxu0 0.0
    %2311 = vmatprep.subr.mxu0 0.0
    %2312 = vmatpush1.msra.mxu0 0.0
    %2313 = vmatprep.subr.mxu0 0.0
    %2314 = vmatpush1.msra.mxu0 0.0
    %2315 = vmatprep.subr.mxu0 0.0
    %2316 = vmatpush1.msra.mxu0 0.0
    %2317 = vmatprep.subr.mxu0 0.0
    %2318 = vmatpush1.msra.mxu0 0.0
    %2319 = vmatprep.subr.mxu0 0.0
    %2320 = vmatpush1.msra.mxu0 0.0
    %2321 = vmatprep.subr.mxu0 0.0
    %2322 = vmatpush1.msra.mxu0 0.0
    %2323 = vmatprep.subr.mxu0 0.0
    %2324 = vmatpush1.msra.mxu0 0.0
    %2325 = vmatprep.subr.mxu0 0.0
    %2326 = vmatpush1.msra.mxu0 0.0
    %2327 = vmatprep.subr.mxu0 0.0
    %2328 = vmatpush1.msra.mxu0 0.0
    %2329 = vmatprep.subr.mxu0 0.0
    %2330 = vmatpush1.msra.mxu0 0.0
    %2331 = vmatprep.subr.mxu0 0.0
    %2332 = vmatpush1.msra.mxu0 0.0
    %2333 = vmatprep.subr.mxu0 0.0
    %2334 = vmatpush1.msra.mxu0 0.0
    %2335 = vmatprep.subr.mxu0 0.0
    %2336 = vmatpush1.msra.mxu0 0.0
    %2337 = vmatprep.subr.mxu0 0.0
    %2338 = vmatpush1.msra.mxu0 0.0
    %2339 = vmatprep.subr.mxu0 0.0
    %2340 = vmatpush1.msra.mxu0 0.0
    %2341 = vmatprep.subr.mxu0 0.0
    %2342 = vmatpush1.msra.mxu0 0.0
    %2343 = vmatprep.mubr.f32.mxu0 0.0
    %v2344 = vand.u32 %v1768, 4294901760
    %2345 = vmatmul.mubr.f32.gmra.mrb[0].mxu0 %v2344
    %v2346 = vpop.f32.mrb[0].mxu0
    %v2347 = vadd.f32 %v2265, %v2346
    %v2348 = vpop.f32.mrb[0].mxu0
    %v2349 = vadd.f32 %v2267, %v2348
    %2350 = vdwg.mxu0
    %v2351 = vand.u32 %v1745, 4294901760
    %2352 = vmatprep.subr.mxu0 %v2351
    %v2353 = vand.u32 %v1744, 4294901760
    %2354 = vmatpush1.msra.mxu0 %v2353
    %v2355 = vand.u32 %v1749, 4294901760
    %2356 = vmatprep.subr.mxu0 %v2355
    %v2357 = vand.u32 %v1748, 4294901760
    %2358 = vmatpush1.msra.mxu0 %v2357
    %v2359 = vand.u32 %v1753, 4294901760
    %2360 = vmatprep.subr.mxu0 %v2359
    %v2361 = vand.u32 %v1752, 4294901760
    %2362 = vmatpush1.msra.mxu0 %v2361
    %v2363 = vand.u32 %v1757, 4294901760
    %2364 = vmatprep.subr.mxu0 %v2363
    %v2365 = vand.u32 %v1756, 4294901760
    %2366 = vmatpush1.msra.mxu0 %v2365
    %v2367 = vand.u32 %v1780, 4294901760
    %2368 = vmatprep.subr.mxu0 %v2367
    %v2369 = vand.u32 %v1777, 4294901760
    %2370 = vmatpush1.msra.mxu0 %v2369
    %2371 = vmatprep.subr.mxu0 0.0
    %2372 = vmatpush1.msra.mxu0 0.0
    %2373 = vmatprep.subr.mxu0 0.0
    %2374 = vmatpush1.msra.mxu0 0.0
    %2375 = vmatprep.subr.mxu0 0.0
    %2376 = vmatpush1.msra.mxu0 0.0
    %2377 = vmatprep.subr.mxu0 0.0
    %2378 = vmatpush1.msra.mxu0 0.0
    %2379 = vmatprep.subr.mxu0 0.0
    %2380 = vmatpush1.msra.mxu0 0.0
    %2381 = vmatprep.subr.mxu0 0.0
    %2382 = vmatpush1.msra.mxu0 0.0
    %2383 = vmatprep.subr.mxu0 0.0
    %2384 = vmatpush1.msra.mxu0 0.0
    %2385 = vmatprep.subr.mxu0 0.0
    %2386 = vmatpush1.msra.mxu0 0.0
    %2387 = vmatprep.subr.mxu0 0.0
    %2388 = vmatpush1.msra.mxu0 0.0
    %2389 = vmatprep.subr.mxu0 0.0
    %2390 = vmatpush1.msra.mxu0 0.0
    %2391 = vmatprep.subr.mxu0 0.0
    %2392 = vmatpush1.msra.mxu0 0.0
    %2393 = vmatprep.subr.mxu0 0.0
    %2394 = vmatpush1.msra.mxu0 0.0
    %2395 = vmatprep.subr.mxu0 0.0
    %2396 = vmatpush1.msra.mxu0 0.0
    %2397 = vmatprep.subr.mxu0 0.0
    %2398 = vmatpush1.msra.mxu0 0.0
    %2399 = vmatprep.subr.mxu0 0.0
    %2400 = vmatpush1.msra.mxu0 0.0
    %2401 = vmatprep.subr.mxu0 0.0
    %2402 = vmatpush1.msra.mxu0 0.0
    %2403 = vmatprep.subr.mxu0 0.0
    %2404 = vmatpush1.msra.mxu0 0.0
    %2405 = vmatprep.subr.mxu0 0.0
    %2406 = vmatpush1.msra.mxu0 0.0
    %2407 = vmatprep.subr.mxu0 0.0
    %2408 = vmatpush1.msra.mxu0 0.0
    %2409 = vmatprep.subr.mxu0 0.0
    %2410 = vmatpush1.msra.mxu0 0.0
    %2411 = vmatprep.subr.mxu0 0.0
    %2412 = vmatpush1.msra.mxu0 0.0
    %2413 = vmatprep.subr.mxu0 0.0
    %2414 = vmatpush1.msra.mxu0 0.0
    %2415 = vmatprep.subr.mxu0 0.0
    %2416 = vmatpush1.msra.mxu0 0.0
    %2417 = vmatprep.subr.mxu0 0.0
    %2418 = vmatpush1.msra.mxu0 0.0
    %2419 = vmatprep.subr.mxu0 0.0
    %2420 = vmatpush1.msra.mxu0 0.0
    %2421 = vmatprep.subr.mxu0 0.0
    %2422 = vmatpush1.msra.mxu0 0.0
    %2423 = vmatprep.subr.mxu0 0.0
    %2424 = vmatpush1.msra.mxu0 0.0
    %2425 = vmatprep.mubr.f32.mxu0 0.0
    %v2426 = vand.u32 %v1768, 4294901760
    %v2427 = vsub.f32 %v1768, %v2426
    %v2428 = vand.u32 %v2427, 4294901760
    %v2429 = vsub.f32 %v2427, %v2428
    %v2430 = vand.u32 %v2429, 4294901760
    %2431 = vmatmul.mubr.f32.gmra.mrb[0].mxu0 %v2430
    %v2432 = vpop.f32.mrb[0].mxu0
    %v2433 = vadd.f32 %v1765, %v2432
    %v2434 = vpop.f32.mrb[0].mxu0
    %v2435 = vadd.f32 %v1765, %v2434
    %2436 = vdwg.mxu0
    %v2437 = vand.u32 %v1745, 4294901760
    %v2438 = vsub.f32 %v1745, %v2437
    %v2439 = vand.u32 %v2438, 4294901760
    %v2440 = vsub.f32 %v2438, %v2439
    %v2441 = vand.u32 %v2440, 4294901760
    %2442 = vmatprep.subr.mxu0 %v2441
    %v2443 = vand.u32 %v1744, 4294901760
    %v2444 = vsub.f32 %v1744, %v2443
    %v2445 = vand.u32 %v2444, 4294901760
    %v2446 = vsub.f32 %v2444, %v2445
    %v2447 = vand.u32 %v2446, 4294901760
    %2448 = vmatpush1.msra.mxu0 %v2447
    %v2449 = vand.u32 %v1749, 4294901760
    %v2450 = vsub.f32 %v1749, %v2449
    %v2451 = vand.u32 %v2450, 4294901760
    %v2452 = vsub.f32 %v2450, %v2451
    %v2453 = vand.u32 %v2452, 4294901760
    %2454 = vmatprep.subr.mxu0 %v2453
    %v2455 = vand.u32 %v1748, 4294901760
    %v2456 = vsub.f32 %v1748, %v2455
    %v2457 = vand.u32 %v2456, 4294901760
    %v2458 = vsub.f32 %v2456, %v2457
    %v2459 = vand.u32 %v2458, 4294901760
    %2460 = vmatpush1.msra.mxu0 %v2459
    %v2461 = vand.u32 %v1753, 4294901760
    %v2462 = vsub.f32 %v1753, %v2461
    %v2463 = vand.u32 %v2462, 4294901760
    %v2464 = vsub.f32 %v2462, %v2463
    %v2465 = vand.u32 %v2464, 4294901760
    %2466 = vmatprep.subr.mxu0 %v2465
    %v2467 = vand.u32 %v1752, 4294901760
    %v2468 = vsub.f32 %v1752, %v2467
    %v2469 = vand.u32 %v2468, 4294901760
    %v2470 = vsub.f32 %v2468, %v2469
    %v2471 = vand.u32 %v2470, 4294901760
    %2472 = vmatpush1.msra.mxu0 %v2471
    %v2473 = vand.u32 %v1757, 4294901760
    %v2474 = vsub.f32 %v1757, %v2473
    %v2475 = vand.u32 %v2474, 4294901760
    %v2476 = vsub.f32 %v2474, %v2475
    %v2477 = vand.u32 %v2476, 4294901760
    %2478 = vmatprep.subr.mxu0 %v2477
    %v2479 = vand.u32 %v1756, 4294901760
    %v2480 = vsub.f32 %v1756, %v2479
    %v2481 = vand.u32 %v2480, 4294901760
    %v2482 = vsub.f32 %v2480, %v2481
    %v2483 = vand.u32 %v2482, 4294901760
    %2484 = vmatpush1.msra.mxu0 %v2483
    %v2485 = vand.u32 %v1780, 4294901760
    %v2486 = vsub.f32 %v1780, %v2485
    %v2487 = vand.u32 %v2486, 4294901760
    %v2488 = vsub.f32 %v2486, %v2487
    %v2489 = vand.u32 %v2488, 4294901760
    %2490 = vmatprep.subr.mxu0 %v2489
    %v2491 = vand.u32 %v1777, 4294901760
    %v2492 = vsub.f32 %v1777, %v2491
    %v2493 = vand.u32 %v2492, 4294901760
    %v2494 = vsub.f32 %v2492, %v2493
    %v2495 = vand.u32 %v2494, 4294901760
    %2496 = vmatpush1.msra.mxu0 %v2495
    %2497 = vmatprep.subr.mxu0 0.0
    %2498 = vmatpush1.msra.mxu0 0.0
    %2499 = vmatprep.subr.mxu0 0.0
    %2500 = vmatpush1.msra.mxu0 0.0
    %2501 = vmatprep.subr.mxu0 0.0
    %2502 = vmatpush1.msra.mxu0 0.0
    %2503 = vmatprep.subr.mxu0 0.0
    %2504 = vmatpush1.msra.mxu0 0.0
    %2505 = vmatprep.subr.mxu0 0.0
    %2506 = vmatpush1.msra.mxu0 0.0
    %2507 = vmatprep.subr.mxu0 0.0
    %2508 = vmatpush1.msra.mxu0 0.0
    %2509 = vmatprep.subr.mxu0 0.0
    %2510 = vmatpush1.msra.mxu0 0.0
    %2511 = vmatprep.subr.mxu0 0.0
    %2512 = vmatpush1.msra.mxu0 0.0
    %2513 = vmatprep.subr.mxu0 0.0
    %2514 = vmatpush1.msra.mxu0 0.0
    %2515 = vmatprep.subr.mxu0 0.0
    %2516 = vmatpush1.msra.mxu0 0.0
    %2517 = vmatprep.subr.mxu0 0.0
    %2518 = vmatpush1.msra.mxu0 0.0
    %2519 = vmatprep.subr.mxu0 0.0
    %2520 = vmatpush1.msra.mxu0 0.0
    %2521 = vmatprep.subr.mxu0 0.0
    %2522 = vmatpush1.msra.mxu0 0.0
    %2523 = vmatprep.subr.mxu0 0.0
    %2524 = vmatpush1.msra.mxu0 0.0
    %2525 = vmatprep.subr.mxu0 0.0
    %2526 = vmatpush1.msra.mxu0 0.0
    %2527 = vmatprep.subr.mxu0 0.0
    %2528 = vmatpush1.msra.mxu0 0.0
    %2529 = vmatprep.subr.mxu0 0.0
    %2530 = vmatpush1.msra.mxu0 0.0
    %2531 = vmatprep.subr.mxu0 0.0
    %2532 = vmatpush1.msra.mxu0 0.0
    %2533 = vmatprep.subr.mxu0 0.0
    %2534 = vmatpush1.msra.mxu0 0.0
    %2535 = vmatprep.subr.mxu0 0.0
    %2536 = vmatpush1.msra.mxu0 0.0
    %2537 = vmatprep.subr.mxu0 0.0
    %2538 = vmatpush1.msra.mxu0 0.0
    %2539 = vmatprep.subr.mxu0 0.0
    %2540 = vmatpush1.msra.mxu0 0.0
    %2541 = vmatprep.subr.mxu0 0.0
    %2542 = vmatpush1.msra.mxu0 0.0
    %2543 = vmatprep.subr.mxu0 0.0
    %2544 = vmatpush1.msra.mxu0 0.0
    %2545 = vmatprep.subr.mxu0 0.0
    %2546 = vmatpush1.msra.mxu0 0.0
    %2547 = vmatprep.subr.mxu0 0.0
    %2548 = vmatpush1.msra.mxu0 0.0
    %2549 = vmatprep.subr.mxu0 0.0
    %2550 = vmatpush1.msra.mxu0 0.0
    %2551 = vmatprep.mubr.f32.mxu0 0.0
    %v2552 = vand.u32 %v1768, 4294901760
    %2553 = vmatmul.mubr.f32.gmra.mrb[0].mxu0 %v2552
    %v2554 = vpop.f32.mrb[0].mxu0
    %v2555 = vadd.f32 %v2433, %v2554
    %v2556 = vpop.f32.mrb[0].mxu0
    %v2557 = vadd.f32 %v2435, %v2556
    %2558 = vdwg.mxu0
    %v2559 = vand.u32 %v1745, 4294901760
    %v2560 = vsub.f32 %v1745, %v2559
    %2561 = vmatprep.subr.mxu0 %v2560
    %v2562 = vand.u32 %v1744, 4294901760
    %v2563 = vsub.f32 %v1744, %v2562
    %2564 = vmatpush1.msra.mxu0 %v2563
    %v2565 = vand.u32 %v1749, 4294901760
    %v2566 = vsub.f32 %v1749, %v2565
    %2567 = vmatprep.subr.mxu0 %v2566
    %v2568 = vand.u32 %v1748, 4294901760
    %v2569 = vsub.f32 %v1748, %v2568
    %2570 = vmatpush1.msra.mxu0 %v2569
    %v2571 = vand.u32 %v1753, 4294901760
    %v2572 = vsub.f32 %v1753, %v2571
    %2573 = vmatprep.subr.mxu0 %v2572
    %v2574 = vand.u32 %v1752, 4294901760
    %v2575 = vsub.f32 %v1752, %v2574
    %2576 = vmatpush1.msra.mxu0 %v2575
    %v2577 = vand.u32 %v1757, 4294901760
    %v2578 = vsub.f32 %v1757, %v2577
    %2579 = vmatprep.subr.mxu0 %v2578
    %v2580 = vand.u32 %v1756, 4294901760
    %v2581 = vsub.f32 %v1756, %v2580
    %2582 = vmatpush1.msra.mxu0 %v2581
    %v2583 = vand.u32 %v1780, 4294901760
    %v2584 = vsub.f32 %v1780, %v2583
    %2585 = vmatprep.subr.mxu0 %v2584
    %v2586 = vand.u32 %v1777, 4294901760
    %v2587 = vsub.f32 %v1777, %v2586
    %2588 = vmatpush1.msra.mxu0 %v2587
    %2589 = vmatprep.subr.mxu0 0.0
    %2590 = vmatpush1.msra.mxu0 0.0
    %2591 = vmatprep.subr.mxu0 0.0
    %2592 = vmatpush1.msra.mxu0 0.0
    %2593 = vmatprep.subr.mxu0 0.0
    %2594 = vmatpush1.msra.mxu0 0.0
    %2595 = vmatprep.subr.mxu0 0.0
    %2596 = vmatpush1.msra.mxu0 0.0
    %2597 = vmatprep.subr.mxu0 0.0
    %2598 = vmatpush1.msra.mxu0 0.0
    %2599 = vmatprep.subr.mxu0 0.0
    %2600 = vmatpush1.msra.mxu0 0.0
    %2601 = vmatprep.subr.mxu0 0.0
    %2602 = vmatpush1.msra.mxu0 0.0
    %2603 = vmatprep.subr.mxu0 0.0
    %2604 = vmatpush1.msra.mxu0 0.0
    %2605 = vmatprep.subr.mxu0 0.0
    %2606 = vmatpush1.msra.mxu0 0.0
    %2607 = vmatprep.subr.mxu0 0.0
    %2608 = vmatpush1.msra.mxu0 0.0
    %2609 = vmatprep.subr.mxu0 0.0
    %2610 = vmatpush1.msra.mxu0 0.0
    %2611 = vmatprep.subr.mxu0 0.0
    %2612 = vmatpush1.msra.mxu0 0.0
    %2613 = vmatprep.subr.mxu0 0.0
    %2614 = vmatpush1.msra.mxu0 0.0
    %2615 = vmatprep.subr.mxu0 0.0
    %2616 = vmatpush1.msra.mxu0 0.0
    %2617 = vmatprep.subr.mxu0 0.0
    %2618 = vmatpush1.msra.mxu0 0.0
    %2619 = vmatprep.subr.mxu0 0.0
    %2620 = vmatpush1.msra.mxu0 0.0
    %2621 = vmatprep.subr.mxu0 0.0
    %2622 = vmatpush1.msra.mxu0 0.0
    %2623 = vmatprep.subr.mxu0 0.0
    %2624 = vmatpush1.msra.mxu0 0.0
    %2625 = vmatprep.subr.mxu0 0.0
    %2626 = vmatpush1.msra.mxu0 0.0
    %2627 = vmatprep.subr.mxu0 0.0
    %2628 = vmatpush1.msra.mxu0 0.0
    %2629 = vmatprep.subr.mxu0 0.0
    %2630 = vmatpush1.msra.mxu0 0.0
    %2631 = vmatprep.subr.mxu0 0.0
    %2632 = vmatpush1.msra.mxu0 0.0
    %2633 = vmatprep.subr.mxu0 0.0
    %2634 = vmatpush1.msra.mxu0 0.0
    %2635 = vmatprep.subr.mxu0 0.0
    %2636 = vmatpush1.msra.mxu0 0.0
    %2637 = vmatprep.subr.mxu0 0.0
    %2638 = vmatpush1.msra.mxu0 0.0
    %2639 = vmatprep.subr.mxu0 0.0
    %2640 = vmatpush1.msra.mxu0 0.0
    %2641 = vmatprep.subr.mxu0 0.0
    %2642 = vmatpush1.msra.mxu0 0.0
    %2643 = vmatprep.mubr.f32.mxu0 0.0
    %v2644 = vand.u32 %v1768, 4294901760
    %v2645 = vsub.f32 %v1768, %v2644
    %2646 = vmatmul.mubr.f32.gmra.mrb[0].mxu0 %v2645
    %v2647 = vpop.f32.mrb[0].mxu0
    %v2648 = vadd.f32 %v2555, %v2647
    %v2649 = vpop.f32.mrb[0].mxu0
    %v2650 = vadd.f32 %v2557, %v2649
    %2651 = vdwg.mxu0
    %v2652 = vand.u32 %v1745, 4294901760
    %2653 = vmatprep.subr.mxu0 %v2652
    %v2654 = vand.u32 %v1744, 4294901760
    %2655 = vmatpush1.msra.mxu0 %v2654
    %v2656 = vand.u32 %v1749, 4294901760
    %2657 = vmatprep.subr.mxu0 %v2656
    %v2658 = vand.u32 %v1748, 4294901760
    %2659 = vmatpush1.msra.mxu0 %v2658
    %v2660 = vand.u32 %v1753, 4294901760
    %2661 = vmatprep.subr.mxu0 %v2660
    %v2662 = vand.u32 %v1752, 4294901760
    %2663 = vmatpush1.msra.mxu0 %v2662
    %v2664 = vand.u32 %v1757, 4294901760
    %2665 = vmatprep.subr.mxu0 %v2664
    %v2666 = vand.u32 %v1756, 4294901760
    %2667 = vmatpush1.msra.mxu0 %v2666
    %v2668 = vand.u32 %v1780, 4294901760
    %2669 = vmatprep.subr.mxu0 %v2668
    %v2670 = vand.u32 %v1777, 4294901760
    %2671 = vmatpush1.msra.mxu0 %v2670
    %2672 = vmatprep.subr.mxu0 0.0
    %2673 = vmatpush1.msra.mxu0 0.0
    %2674 = vmatprep.subr.mxu0 0.0
    %2675 = vmatpush1.msra.mxu0 0.0
    %2676 = vmatprep.subr.mxu0 0.0
    %2677 = vmatpush1.msra.mxu0 0.0
    %2678 = vmatprep.subr.mxu0 0.0
    %2679 = vmatpush1.msra.mxu0 0.0
    %2680 = vmatprep.subr.mxu0 0.0
    %2681 = vmatpush1.msra.mxu0 0.0
    %2682 = vmatprep.subr.mxu0 0.0
    %2683 = vmatpush1.msra.mxu0 0.0
    %2684 = vmatprep.subr.mxu0 0.0
    %2685 = vmatpush1.msra.mxu0 0.0
    %2686 = vmatprep.subr.mxu0 0.0
    %2687 = vmatpush1.msra.mxu0 0.0
    %2688 = vmatprep.subr.mxu0 0.0
    %2689 = vmatpush1.msra.mxu0 0.0
    %2690 = vmatprep.subr.mxu0 0.0
    %2691 = vmatpush1.msra.mxu0 0.0
    %2692 = vmatprep.subr.mxu0 0.0
    %2693 = vmatpush1.msra.mxu0 0.0
    %2694 = vmatprep.subr.mxu0 0.0
    %2695 = vmatpush1.msra.mxu0 0.0
    %2696 = vmatprep.subr.mxu0 0.0
    %2697 = vmatpush1.msra.mxu0 0.0
    %2698 = vmatprep.subr.mxu0 0.0
    %2699 = vmatpush1.msra.mxu0 0.0
    %2700 = vmatprep.subr.mxu0 0.0
    %2701 = vmatpush1.msra.mxu0 0.0
    %2702 = vmatprep.subr.mxu0 0.0
    %2703 = vmatpush1.msra.mxu0 0.0
    %2704 = vmatprep.subr.mxu0 0.0
    %2705 = vmatpush1.msra.mxu0 0.0
    %2706 = vmatprep.subr.mxu0 0.0
    %2707 = vmatpush1.msra.mxu0 0.0
    %2708 = vmatprep.subr.mxu0 0.0
    %2709 = vmatpush1.msra.mxu0 0.0
    %2710 = vmatprep.subr.mxu0 0.0
    %2711 = vmatpush1.msra.mxu0 0.0
    %2712 = vmatprep.subr.mxu0 0.0
    %2713 = vmatpush1.msra.mxu0 0.0
    %2714 = vmatprep.subr.mxu0 0.0
    %2715 = vmatpush1.msra.mxu0 0.0
    %2716 = vmatprep.subr.mxu0 0.0
    %2717 = vmatpush1.msra.mxu0 0.0
    %2718 = vmatprep.subr.mxu0 0.0
    %2719 = vmatpush1.msra.mxu0 0.0
    %2720 = vmatprep.subr.mxu0 0.0
    %2721 = vmatpush1.msra.mxu0 0.0
    %2722 = vmatprep.subr.mxu0 0.0
    %2723 = vmatpush1.msra.mxu0 0.0
    %2724 = vmatprep.subr.mxu0 0.0
    %2725 = vmatpush1.msra.mxu0 0.0
    %2726 = vmatprep.mubr.f32.mxu0 0.0
    %v2727 = vand.u32 %v1768, 4294901760
    %v2728 = vsub.f32 %v1768, %v2727
    %v2729 = vand.u32 %v2728, 4294901760
    %2730 = vmatmul.mubr.f32.gmra.mrb[0].mxu0 %v2729
    %v2731 = vpop.f32.mrb[0].mxu0
    %v2732 = vadd.f32 %v2648, %v2731
    %v2733 = vpop.f32.mrb[0].mxu0
    %v2734 = vadd.f32 %v2650, %v2733
    %2735 = vdwg.mxu0
    %v2736 = vand.u32 %v1745, 4294901760
    %v2737 = vsub.f32 %v1745, %v2736
    %v2738 = vand.u32 %v2737, 4294901760
    %2739 = vmatprep.subr.mxu0 %v2738
    %v2740 = vand.u32 %v1744, 4294901760
    %v2741 = vsub.f32 %v1744, %v2740
    %v2742 = vand.u32 %v2741, 4294901760
    %2743 = vmatpush1.msra.mxu0 %v2742
    %v2744 = vand.u32 %v1749, 4294901760
    %v2745 = vsub.f32 %v1749, %v2744
    %v2746 = vand.u32 %v2745, 4294901760
    %2747 = vmatprep.subr.mxu0 %v2746
    %v2748 = vand.u32 %v1748, 4294901760
    %v2749 = vsub.f32 %v1748, %v2748
    %v2750 = vand.u32 %v2749, 4294901760
    %2751 = vmatpush1.msra.mxu0 %v2750
    %v2752 = vand.u32 %v1753, 4294901760
    %v2753 = vsub.f32 %v1753, %v2752
    %v2754 = vand.u32 %v2753, 4294901760
    %2755 = vmatprep.subr.mxu0 %v2754
    %v2756 = vand.u32 %v1752, 4294901760
    %v2757 = vsub.f32 %v1752, %v2756
    %v2758 = vand.u32 %v2757, 4294901760
    %2759 = vmatpush1.msra.mxu0 %v2758
    %v2760 = vand.u32 %v1757, 4294901760
    %v2761 = vsub.f32 %v1757, %v2760
    %v2762 = vand.u32 %v2761, 4294901760
    %2763 = vmatprep.subr.mxu0 %v2762
    %v2764 = vand.u32 %v1756, 4294901760
    %v2765 = vsub.f32 %v1756, %v2764
    %v2766 = vand.u32 %v2765, 4294901760
    %2767 = vmatpush1.msra.mxu0 %v2766
    %v2768 = vand.u32 %v1780, 4294901760
    %v2769 = vsub.f32 %v1780, %v2768
    %v2770 = vand.u32 %v2769, 4294901760
    %2771 = vmatprep.subr.mxu0 %v2770
    %v2772 = vand.u32 %v1777, 4294901760
    %v2773 = vsub.f32 %v1777, %v2772
    %v2774 = vand.u32 %v2773, 4294901760
    %2775 = vmatpush1.msra.mxu0 %v2774
    %2776 = vmatprep.subr.mxu0 0.0
    %2777 = vmatpush1.msra.mxu0 0.0
    %2778 = vmatprep.subr.mxu0 0.0
    %2779 = vmatpush1.msra.mxu0 0.0
    %2780 = vmatprep.subr.mxu0 0.0
    %2781 = vmatpush1.msra.mxu0 0.0
    %2782 = vmatprep.subr.mxu0 0.0
    %2783 = vmatpush1.msra.mxu0 0.0
    %2784 = vmatprep.subr.mxu0 0.0
    %2785 = vmatpush1.msra.mxu0 0.0
    %2786 = vmatprep.subr.mxu0 0.0
    %2787 = vmatpush1.msra.mxu0 0.0
    %2788 = vmatprep.subr.mxu0 0.0
    %2789 = vmatpush1.msra.mxu0 0.0
    %2790 = vmatprep.subr.mxu0 0.0
    %2791 = vmatpush1.msra.mxu0 0.0
    %2792 = vmatprep.subr.mxu0 0.0
    %2793 = vmatpush1.msra.mxu0 0.0
    %2794 = vmatprep.subr.mxu0 0.0
    %2795 = vmatpush1.msra.mxu0 0.0
    %2796 = vmatprep.subr.mxu0 0.0
    %2797 = vmatpush1.msra.mxu0 0.0
    %2798 = vmatprep.subr.mxu0 0.0
    %2799 = vmatpush1.msra.mxu0 0.0
    %2800 = vmatprep.subr.mxu0 0.0
    %2801 = vmatpush1.msra.mxu0 0.0
    %2802 = vmatprep.subr.mxu0 0.0
    %2803 = vmatpush1.msra.mxu0 0.0
    %2804 = vmatprep.subr.mxu0 0.0
    %2805 = vmatpush1.msra.mxu0 0.0
    %2806 = vmatprep.subr.mxu0 0.0
    %2807 = vmatpush1.msra.mxu0 0.0
    %2808 = vmatprep.subr.mxu0 0.0
    %2809 = vmatpush1.msra.mxu0 0.0
    %2810 = vmatprep.subr.mxu0 0.0
    %2811 = vmatpush1.msra.mxu0 0.0
    %2812 = vmatprep.subr.mxu0 0.0
    %2813 = vmatpush1.msra.mxu0 0.0
    %2814 = vmatprep.subr.mxu0 0.0
    %2815 = vmatpush1.msra.mxu0 0.0
    %2816 = vmatprep.subr.mxu0 0.0
    %2817 = vmatpush1.msra.mxu0 0.0
    %2818 = vmatprep.subr.mxu0 0.0
    %2819 = vmatpush1.msra.mxu0 0.0
    %2820 = vmatprep.subr.mxu0 0.0
    %2821 = vmatpush1.msra.mxu0 0.0
    %2822 = vmatprep.subr.mxu0 0.0
    %2823 = vmatpush1.msra.mxu0 0.0
    %2824 = vmatprep.subr.mxu0 0.0
    %2825 = vmatpush1.msra.mxu0 0.0
    %2826 = vmatprep.subr.mxu0 0.0
    %2827 = vmatpush1.msra.mxu0 0.0
    %2828 = vmatprep.subr.mxu0 0.0
    %2829 = vmatpush1.msra.mxu0 0.0
    %2830 = vmatprep.mubr.f32.mxu0 0.0
    %v2831 = vand.u32 %v1768, 4294901760
    %2832 = vmatmul.mubr.f32.gmra.mrb[0].mxu0 %v2831
    %v2833 = vpop.f32.mrb[0].mxu0
    %v2834 = vadd.f32 %v2732, %v2833
    %v2835 = vpop.f32.mrb[0].mxu0
    %v2836 = vadd.f32 %v2734, %v2835
    %2837 = vdwg.mxu0
    %v2838 = vand.u32 %v1745, 4294901760
    %2839 = vmatprep.subr.mxu0 %v2838
    %v2840 = vand.u32 %v1744, 4294901760
    %2841 = vmatpush1.msra.mxu0 %v2840
    %v2842 = vand.u32 %v1749, 4294901760
    %2843 = vmatprep.subr.mxu0 %v2842
    %v2844 = vand.u32 %v1748, 4294901760
    %2845 = vmatpush1.msra.mxu0 %v2844
    %v2846 = vand.u32 %v1753, 4294901760
    %2847 = vmatprep.subr.mxu0 %v2846
    %v2848 = vand.u32 %v1752, 4294901760
    %2849 = vmatpush1.msra.mxu0 %v2848
    %v2850 = vand.u32 %v1757, 4294901760
    %2851 = vmatprep.subr.mxu0 %v2850
    %v2852 = vand.u32 %v1756, 4294901760
    %2853 = vmatpush1.msra.mxu0 %v2852
    %v2854 = vand.u32 %v1780, 4294901760
    %2855 = vmatprep.subr.mxu0 %v2854
    %v2856 = vand.u32 %v1777, 4294901760
    %2857 = vmatpush1.msra.mxu0 %v2856
    %2858 = vmatprep.subr.mxu0 0.0
    %2859 = vmatpush1.msra.mxu0 0.0
    %2860 = vmatprep.subr.mxu0 0.0
    %2861 = vmatpush1.msra.mxu0 0.0
    %2862 = vmatprep.subr.mxu0 0.0
    %2863 = vmatpush1.msra.mxu0 0.0
    %2864 = vmatprep.subr.mxu0 0.0
    %2865 = vmatpush1.msra.mxu0 0.0
    %2866 = vmatprep.subr.mxu0 0.0
    %2867 = vmatpush1.msra.mxu0 0.0
    %2868 = vmatprep.subr.mxu0 0.0
    %2869 = vmatpush1.msra.mxu0 0.0
    %2870 = vmatprep.subr.mxu0 0.0
    %2871 = vmatpush1.msra.mxu0 0.0
    %2872 = vmatprep.subr.mxu0 0.0
    %2873 = vmatpush1.msra.mxu0 0.0
    %2874 = vmatprep.subr.mxu0 0.0
    %2875 = vmatpush1.msra.mxu0 0.0
    %2876 = vmatprep.subr.mxu0 0.0
    %2877 = vmatpush1.msra.mxu0 0.0
    %2878 = vmatprep.subr.mxu0 0.0
    %2879 = vmatpush1.msra.mxu0 0.0
    %2880 = vmatprep.subr.mxu0 0.0
    %2881 = vmatpush1.msra.mxu0 0.0
    %2882 = vmatprep.subr.mxu0 0.0
    %2883 = vmatpush1.msra.mxu0 0.0
    %2884 = vmatprep.subr.mxu0 0.0
    %2885 = vmatpush1.msra.mxu0 0.0
    %2886 = vmatprep.subr.mxu0 0.0
    %2887 = vmatpush1.msra.mxu0 0.0
    %2888 = vmatprep.subr.mxu0 0.0
    %2889 = vmatpush1.msra.mxu0 0.0
    %2890 = vmatprep.subr.mxu0 0.0
    %2891 = vmatpush1.msra.mxu0 0.0
    %2892 = vmatprep.subr.mxu0 0.0
    %2893 = vmatpush1.msra.mxu0 0.0
    %2894 = vmatprep.subr.mxu0 0.0
    %2895 = vmatpush1.msra.mxu0 0.0
    %2896 = vmatprep.subr.mxu0 0.0
    %2897 = vmatpush1.msra.mxu0 0.0
    %2898 = vmatprep.subr.mxu0 0.0
    %2899 = vmatpush1.msra.mxu0 0.0
    %2900 = vmatprep.subr.mxu0 0.0
    %2901 = vmatpush1.msra.mxu0 0.0
    %2902 = vmatprep.subr.mxu0 0.0
    %2903 = vmatpush1.msra.mxu0 0.0
    %2904 = vmatprep.subr.mxu0 0.0
    %2905 = vmatpush1.msra.mxu0 0.0
    %2906 = vmatprep.subr.mxu0 0.0
    %2907 = vmatpush1.msra.mxu0 0.0
    %2908 = vmatprep.subr.mxu0 0.0
    %2909 = vmatpush1.msra.mxu0 0.0
    %2910 = vmatprep.subr.mxu0 0.0
    %2911 = vmatpush1.msra.mxu0 0.0
    %2912 = vmatprep.mubr.f32.mxu0 0.0
    %v2913 = vand.u32 %v1768, 4294901760
    %2914 = vmatmul.mubr.f32.gmra.mrb[0].mxu0 %v2913
    %v2915 = vpop.f32.mrb[0].mxu0
    %v2916 = vadd.f32 %v2834, %v2915
    %v2917 = vpop.f32.mrb[0].mxu0
    %v2918 = vadd.f32 %v2836, %v2917
    %2919 = vdwg.mxu0
    %v2920 = vmax.f32 %v2347, 0.0
    %v2921 = vmax.f32 %v2349, 0.0
    %v2922 = vmax.f32 %v2916, 0.0
    %v2923 = vmax.f32 %v2918, 0.0
    %v2928 = vcombine.low %v2920, %v2921
    %v2929 = vcombine.low %v2922, %v2923
    %s2932 = scalar_lea.vmem [#allocation7], 16
    %2933 = vst [vmem:[%s2932] sm:$0xff] %v2928
    %2934 = vst [vmem:[%s2932 + $0x8] sm:$0xff] %v2929
    %2935 = vrot.lane.b32.xlu0 %v2920, 17
    %v2936 = vpop.permute.xlu0 %2935
    %2937 = vrot.lane.b32.xlu0 %v2921, 17
    %v2938 = vpop.permute.xlu0 %2937
    %2939 = vrot.lane.b32.xlu0 %v2922, 17
    %v2940 = vpop.permute.xlu0 %2939
    %2941 = vrot.lane.b32.xlu0 %v2923, 17
    %v2942 = vpop.permute.xlu0 %2941
    %v2943 = vsel %vm70, %v2940, %v2942
    %v2944 = vsel %vm70, %v2938, %v2940
    %v2945 = vsel %vm70, %v2936, %v2938
    %v2946 = vsel %vm70, %v2942, %v2936
    %v2947 = vmul.f32 %v2946, %v78
    %v2948 = vmul.f32 %v2945, %v82
    %v2949 = vmul.f32 %v2944, %v86
    %v2950 = vmul.f32 %v2943, %v90
    %2951 = vrot.lane.b32.xlu0 %v2920, 16
    %v2952 = vpop.permute.xlu0 %2951
    %2953 = vrot.lane.b32.xlu0 %v2921, 16
    %v2954 = vpop.permute.xlu0 %2953
    %2955 = vrot.lane.b32.xlu0 %v2922, 16
    %v2956 = vpop.permute.xlu0 %2955
    %2957 = vrot.lane.b32.xlu0 %v2923, 16
    %v2958 = vpop.permute.xlu0 %2957
    %v2959 = vsel %vm103, %v2956, %v2958
    %v2960 = vsel %vm103, %v2954, %v2956
    %v2961 = vsel %vm103, %v2952, %v2954
    %v2962 = vsel %vm103, %v2958, %v2952
    %v2963 = vmul.f32 %v2962, %v111
    %v2964 = vmul.f32 %v2961, %v115
    %v2965 = vmul.f32 %v2960, %v119
    %v2966 = vmul.f32 %v2959, %v123
    %2967 = vrot.lane.b32.xlu0 %v2920, 15
    %v2968 = vpop.permute.xlu0 %2967
    %2969 = vrot.lane.b32.xlu0 %v2921, 15
    %v2970 = vpop.permute.xlu0 %2969
    %2971 = vrot.lane.b32.xlu0 %v2922, 15
    %v2972 = vpop.permute.xlu0 %2971
    %2973 = vrot.lane.b32.xlu0 %v2923, 15
    %v2974 = vpop.permute.xlu0 %2973
    %v2975 = vsel %vm136, %v2972, %v2974
    %v2976 = vsel %vm136, %v2970, %v2972
    %v2977 = vsel %vm136, %v2968, %v2970
    %v2978 = vsel %vm136, %v2974, %v2968
    %v2979 = vmul.f32 %v2978, %v144
    %v2980 = vmul.f32 %v2977, %v148
    %v2981 = vmul.f32 %v2976, %v152
    %v2982 = vmul.f32 %v2975, %v156
    %2983 = vrot.lane.b32.xlu0 %v2920, 1
    %v2984 = vpop.permute.xlu0 %2983
    %2985 = vrot.lane.b32.xlu0 %v2921, 1
    %v2986 = vpop.permute.xlu0 %2985
    %2987 = vrot.lane.b32.xlu0 %v2922, 1
    %v2988 = vpop.permute.xlu0 %2987
    %2989 = vrot.lane.b32.xlu0 %v2923, 1
    %v2990 = vpop.permute.xlu0 %2989
    %v2991 = vsel %vm169, %v2988, %v2990
    %v2992 = vsel %vm169, %v2986, %v2988
    %v2993 = vsel %vm169, %v2984, %v2986
    %v2994 = vsel %vm169, %v2990, %v2984
    %v2995 = vmul.f32 %v2994, %v177
    %v2996 = vmul.f32 %v2993, %v181
    %v2997 = vmul.f32 %v2992, %v185
    %v2998 = vmul.f32 %v2991, %v189
    %2999 = vrot.lane.b32.xlu0 %v2920, 127
    %v3000 = vpop.permute.xlu0 %2999
    %3001 = vrot.lane.b32.xlu0 %v2921, 127
    %v3002 = vpop.permute.xlu0 %3001
    %3003 = vrot.lane.b32.xlu0 %v2922, 127
    %v3004 = vpop.permute.xlu0 %3003
    %3005 = vrot.lane.b32.xlu0 %v2923, 127
    %v3006 = vpop.permute.xlu0 %3005
    %v3007 = vsel %vm202, %v3004, %v3006
    %v3008 = vsel %vm202, %v3002, %v3004
    %v3009 = vsel %vm202, %v3000, %v3002
    %v3010 = vsel %vm202, %v3006, %v3000
    %v3011 = vmul.f32 %v3009, %v210
    %v3012 = vmul.f32 %v3008, %v214
    %v3013 = vmul.f32 %v3007, %v218
    %v3014 = vmul.f32 %v3010, %v222
    %3015 = vrot.lane.b32.xlu0 %v2920, 113
    %v3016 = vpop.permute.xlu0 %3015
    %3017 = vrot.lane.b32.xlu0 %v2921, 113
    %v3018 = vpop.permute.xlu0 %3017
    %3019 = vrot.lane.b32.xlu0 %v2922, 113
    %v3020 = vpop.permute.xlu0 %3019
    %3021 = vrot.lane.b32.xlu0 %v2923, 113
    %v3022 = vpop.permute.xlu0 %3021
    %v3023 = vsel %vm235, %v3020, %v3022
    %v3024 = vsel %vm235, %v3018, %v3020
    %v3025 = vsel %vm235, %v3016, %v3018
    %v3026 = vsel %vm235, %v3022, %v3016
    %v3027 = vmul.f32 %v3025, %v243
    %v3028 = vmul.f32 %v3024, %v247
    %v3029 = vmul.f32 %v3023, %v251
    %v3030 = vmul.f32 %v3026, %v255
    %3031 = vrot.lane.b32.xlu0 %v2920, 112
    %v3032 = vpop.permute.xlu0 %3031
    %3033 = vrot.lane.b32.xlu0 %v2921, 112
    %v3034 = vpop.permute.xlu0 %3033
    %3035 = vrot.lane.b32.xlu0 %v2922, 112
    %v3036 = vpop.permute.xlu0 %3035
    %3037 = vrot.lane.b32.xlu0 %v2923, 112
    %v3038 = vpop.permute.xlu0 %3037
    %v3039 = vsel %vm268, %v3036, %v3038
    %v3040 = vsel %vm268, %v3034, %v3036
    %v3041 = vsel %vm268, %v3032, %v3034
    %v3042 = vsel %vm268, %v3038, %v3032
    %v3043 = vmul.f32 %v3041, %v276
    %v3044 = vmul.f32 %v3040, %v280
    %v3045 = vmul.f32 %v3039, %v284
    %v3046 = vmul.f32 %v3042, %v288
    %3047 = vrot.lane.b32.xlu0 %v2920, 111
    %v3048 = vpop.permute.xlu0 %3047
    %3049 = vrot.lane.b32.xlu0 %v2921, 111
    %v3050 = vpop.permute.xlu0 %3049
    %3051 = vrot.lane.b32.xlu0 %v2922, 111
    %v3052 = vpop.permute.xlu0 %3051
    %3053 = vrot.lane.b32.xlu0 %v2923, 111
    %v3054 = vpop.permute.xlu0 %3053
    %v3055 = vsel %vm301, %v3052, %v3054
    %v3056 = vsel %vm301, %v3050, %v3052
    %v3057 = vsel %vm301, %v3048, %v3050
    %v3058 = vsel %vm301, %v3054, %v3048
    %v3059 = vmul.f32 %v3057, %v309
    %v3060 = vmul.f32 %v3056, %v313
    %v3061 = vmul.f32 %v3055, %v317
    %v3062 = vmul.f32 %v3058, %v321
    %v3067 = vrot.slane %v2963, 4
    %v3068 = vrot.slane %v2964, 4
    %v3069 = vrot.slane %v2965, 4
    %v3070 = vrot.slane %v2966, 4
    %v3079 = vrot.slane %v2995, 4
    %v3080 = vrot.slane %v2996, 4
    %v3081 = vrot.slane %v2997, 4
    %v3082 = vrot.slane %v2998, 4
    %v3091 = vrot.slane %v3011, 4
    %v3092 = vrot.slane %v3012, 4
    %v3093 = vrot.slane %v3013, 4
    %v3094 = vrot.slane %v3014, 4
    %v3103 = vrot.slane %v3043, 4
    %v3104 = vrot.slane %v3044, 4
    %v3105 = vrot.slane %v3045, 4
    %v3106 = vrot.slane %v3046, 4
    %v3111 = vsel %vm374, %v2947, %v3067
    %v3112 = vsel %vm374, %v2948, %v3068
    %v3113 = vsel %vm374, %v2949, %v3069
    %v3114 = vsel %vm374, %v2950, %v3070
    %v3115 = vsel %vm374, %v2979, %v3079
    %v3116 = vsel %vm374, %v2980, %v3080
    %v3117 = vsel %vm374, %v2981, %v3081
    %v3118 = vsel %vm374, %v2982, %v3082
    %v3119 = vsel %vm374, %v2920, %v3091
    %v3120 = vsel %vm374, %v2921, %v3092
    %v3121 = vsel %vm374, %v2922, %v3093
    %v3122 = vsel %vm374, %v2923, %v3094
    %v3123 = vsel %vm374, %v3027, %v3103
    %v3124 = vsel %vm374, %v3028, %v3104
    %v3125 = vsel %vm374, %v3029, %v3105
    %v3126 = vsel %vm374, %v3030, %v3106
    %s3127 = scalar_lea.vmem %s1, 8
    %v3128 = vld [vmem:[%s3127] sm:$0xf]
    %s3129 = scalar_lea.vmem %s2, 8
    %v3130 = vld [vmem:[%s3129] sm:$0xf]
    %3132 = vset.pattern.permute.xlu0 0
    %3133 = vperm.xlu0 %3132, %v3130
    %v3134 = vpop.permute.xlu0 %3133
    %v3137 = vsel %vm398, %v3128, 0
    %v3140 = vsel %vm374, %v3059, 0
    %v3143 = vsel %vm374, %v3060, 0
    %v3146 = vsel %vm374, %v3061, 0
    %v3149 = vsel %vm374, %v3062, 0
    %v3151 = vand.u32 %v3112, 4294901760
    %3152 = vmatprep.subr.mxu0 %v3151
    %v3153 = vand.u32 %v3111, 4294901760
    %3154 = vmatpush1.msra.mxu0 %v3153
    %v3155 = vand.u32 %v3116, 4294901760
    %3156 = vmatprep.subr.mxu0 %v3155
    %v3157 = vand.u32 %v3115, 4294901760
    %3158 = vmatpush1.msra.mxu0 %v3157
    %v3159 = vand.u32 %v3120, 4294901760
    %3160 = vmatprep.subr.mxu0 %v3159
    %v3161 = vand.u32 %v3119, 4294901760
    %3162 = vmatpush1.msra.mxu0 %v3161
    %v3163 = vand.u32 %v3124, 4294901760
    %3164 = vmatprep.subr.mxu0 %v3163
    %v3165 = vand.u32 %v3123, 4294901760
    %3166 = vmatpush1.msra.mxu0 %v3165
    %v3167 = vand.u32 %v3143, 4294901760
    %3168 = vmatprep.subr.mxu0 %v3167
    %v3169 = vand.u32 %v3140, 4294901760
    %3170 = vmatpush1.msra.mxu0 %v3169
    %3171 = vmatprep.subr.mxu0 0.0
    %3172 = vmatpush1.msra.mxu0 0.0
    %3173 = vmatprep.subr.mxu0 0.0
    %3174 = vmatpush1.msra.mxu0 0.0
    %3175 = vmatprep.subr.mxu0 0.0
    %3176 = vmatpush1.msra.mxu0 0.0
    %3177 = vmatprep.subr.mxu0 0.0
    %3178 = vmatpush1.msra.mxu0 0.0
    %3179 = vmatprep.subr.mxu0 0.0
    %3180 = vmatpush1.msra.mxu0 0.0
    %3181 = vmatprep.subr.mxu0 0.0
    %3182 = vmatpush1.msra.mxu0 0.0
    %3183 = vmatprep.subr.mxu0 0.0
    %3184 = vmatpush1.msra.mxu0 0.0
    %3185 = vmatprep.subr.mxu0 0.0
    %3186 = vmatpush1.msra.mxu0 0.0
    %3187 = vmatprep.subr.mxu0 0.0
    %3188 = vmatpush1.msra.mxu0 0.0
    %3189 = vmatprep.subr.mxu0 0.0
    %3190 = vmatpush1.msra.mxu0 0.0
    %3191 = vmatprep.subr.mxu0 0.0
    %3192 = vmatpush1.msra.mxu0 0.0
    %3193 = vmatprep.subr.mxu0 0.0
    %3194 = vmatpush1.msra.mxu0 0.0
    %3195 = vmatprep.subr.mxu0 0.0
    %3196 = vmatpush1.msra.mxu0 0.0
    %3197 = vmatprep.subr.mxu0 0.0
    %3198 = vmatpush1.msra.mxu0 0.0
    %3199 = vmatprep.subr.mxu0 0.0
    %3200 = vmatpush1.msra.mxu0 0.0
    %3201 = vmatprep.subr.mxu0 0.0
    %3202 = vmatpush1.msra.mxu0 0.0
    %3203 = vmatprep.subr.mxu0 0.0
    %3204 = vmatpush1.msra.mxu0 0.0
    %3205 = vmatprep.subr.mxu0 0.0
    %3206 = vmatpush1.msra.mxu0 0.0
    %3207 = vmatprep.subr.mxu0 0.0
    %3208 = vmatpush1.msra.mxu0 0.0
    %3209 = vmatprep.subr.mxu0 0.0
    %3210 = vmatpush1.msra.mxu0 0.0
    %3211 = vmatprep.subr.mxu0 0.0
    %3212 = vmatpush1.msra.mxu0 0.0
    %3213 = vmatprep.subr.mxu0 0.0
    %3214 = vmatpush1.msra.mxu0 0.0
    %3215 = vmatprep.subr.mxu0 0.0
    %3216 = vmatpush1.msra.mxu0 0.0
    %3217 = vmatprep.subr.mxu0 0.0
    %3218 = vmatpush1.msra.mxu0 0.0
    %3219 = vmatprep.subr.mxu0 0.0
    %3220 = vmatpush1.msra.mxu0 0.0
    %3221 = vmatprep.subr.mxu0 0.0
    %3222 = vmatpush1.msra.mxu0 0.0
    %3223 = vmatprep.subr.mxu0 0.0
    %3224 = vmatpush1.msra.mxu0 0.0
    %3225 = vmatprep.mubr.f32.mxu0 0.0
    %v3226 = vand.u32 %v3137, 4294901760
    %v3227 = vsub.f32 %v3137, %v3226
    %v3228 = vand.u32 %v3227, 4294901760
    %v3229 = vsub.f32 %v3227, %v3228
    %v3230 = vand.u32 %v3229, 4294901760
    %3231 = vmatmul.mubr.f32.gmra.mrb[0].mxu0 %v3230
    %v3232 = vpop.f32.mrb[0].mxu0
    %v3233 = vadd.f32 %v3134, %v3232
    %v3234 = vpop.f32.mrb[0].mxu0
    %v3235 = vadd.f32 %v3134, %v3234
    %3236 = vdwg.mxu0
    %v3237 = vand.u32 %v3112, 4294901760
    %v3238 = vsub.f32 %v3112, %v3237
    %v3239 = vand.u32 %v3238, 4294901760
    %v3240 = vsub.f32 %v3238, %v3239
    %v3241 = vand.u32 %v3240, 4294901760
    %3242 = vmatprep.subr.mxu0 %v3241
    %v3243 = vand.u32 %v3111, 4294901760
    %v3244 = vsub.f32 %v3111, %v3243
    %v3245 = vand.u32 %v3244, 4294901760
    %v3246 = vsub.f32 %v3244, %v3245
    %v3247 = vand.u32 %v3246, 4294901760
    %3248 = vmatpush1.msra.mxu0 %v3247
    %v3249 = vand.u32 %v3116, 4294901760
    %v3250 = vsub.f32 %v3116, %v3249
    %v3251 = vand.u32 %v3250, 4294901760
    %v3252 = vsub.f32 %v3250, %v3251
    %v3253 = vand.u32 %v3252, 4294901760
    %3254 = vmatprep.subr.mxu0 %v3253
    %v3255 = vand.u32 %v3115, 4294901760
    %v3256 = vsub.f32 %v3115, %v3255
    %v3257 = vand.u32 %v3256, 4294901760
    %v3258 = vsub.f32 %v3256, %v3257
    %v3259 = vand.u32 %v3258, 4294901760
    %3260 = vmatpush1.msra.mxu0 %v3259
    %v3261 = vand.u32 %v3120, 4294901760
    %v3262 = vsub.f32 %v3120, %v3261
    %v3263 = vand.u32 %v3262, 4294901760
    %v3264 = vsub.f32 %v3262, %v3263
    %v3265 = vand.u32 %v3264, 4294901760
    %3266 = vmatprep.subr.mxu0 %v3265
    %v3267 = vand.u32 %v3119, 4294901760
    %v3268 = vsub.f32 %v3119, %v3267
    %v3269 = vand.u32 %v3268, 4294901760
    %v3270 = vsub.f32 %v3268, %v3269
    %v3271 = vand.u32 %v3270, 4294901760
    %3272 = vmatpush1.msra.mxu0 %v3271
    %v3273 = vand.u32 %v3124, 4294901760
    %v3274 = vsub.f32 %v3124, %v3273
    %v3275 = vand.u32 %v3274, 4294901760
    %v3276 = vsub.f32 %v3274, %v3275
    %v3277 = vand.u32 %v3276, 4294901760
    %3278 = vmatprep.subr.mxu0 %v3277
    %v3279 = vand.u32 %v3123, 4294901760
    %v3280 = vsub.f32 %v3123, %v3279
    %v3281 = vand.u32 %v3280, 4294901760
    %v3282 = vsub.f32 %v3280, %v3281
    %v3283 = vand.u32 %v3282, 4294901760
    %3284 = vmatpush1.msra.mxu0 %v3283
    %v3285 = vand.u32 %v3143, 4294901760
    %v3286 = vsub.f32 %v3143, %v3285
    %v3287 = vand.u32 %v3286, 4294901760
    %v3288 = vsub.f32 %v3286, %v3287
    %v3289 = vand.u32 %v3288, 4294901760
    %3290 = vmatprep.subr.mxu0 %v3289
    %v3291 = vand.u32 %v3140, 4294901760
    %v3292 = vsub.f32 %v3140, %v3291
    %v3293 = vand.u32 %v3292, 4294901760
    %v3294 = vsub.f32 %v3292, %v3293
    %v3295 = vand.u32 %v3294, 4294901760
    %3296 = vmatpush1.msra.mxu0 %v3295
    %3297 = vmatprep.subr.mxu0 0.0
    %3298 = vmatpush1.msra.mxu0 0.0
    %3299 = vmatprep.subr.mxu0 0.0
    %3300 = vmatpush1.msra.mxu0 0.0
    %3301 = vmatprep.subr.mxu0 0.0
    %3302 = vmatpush1.msra.mxu0 0.0
    %3303 = vmatprep.subr.mxu0 0.0
    %3304 = vmatpush1.msra.mxu0 0.0
    %3305 = vmatprep.subr.mxu0 0.0
    %3306 = vmatpush1.msra.mxu0 0.0
    %3307 = vmatprep.subr.mxu0 0.0
    %3308 = vmatpush1.msra.mxu0 0.0
    %3309 = vmatprep.subr.mxu0 0.0
    %3310 = vmatpush1.msra.mxu0 0.0
    %3311 = vmatprep.subr.mxu0 0.0
    %3312 = vmatpush1.msra.mxu0 0.0
    %3313 = vmatprep.subr.mxu0 0.0
    %3314 = vmatpush1.msra.mxu0 0.0
    %3315 = vmatprep.subr.mxu0 0.0
    %3316 = vmatpush1.msra.mxu0 0.0
    %3317 = vmatprep.subr.mxu0 0.0
    %3318 = vmatpush1.msra.mxu0 0.0
    %3319 = vmatprep.subr.mxu0 0.0
    %3320 = vmatpush1.msra.mxu0 0.0
    %3321 = vmatprep.subr.mxu0 0.0
    %3322 = vmatpush1.msra.mxu0 0.0
    %3323 = vmatprep.subr.mxu0 0.0
    %3324 = vmatpush1.msra.mxu0 0.0
    %3325 = vmatprep.subr.mxu0 0.0
    %3326 = vmatpush1.msra.mxu0 0.0
    %3327 = vmatprep.subr.mxu0 0.0
    %3328 = vmatpush1.msra.mxu0 0.0
    %3329 = vmatprep.subr.mxu0 0.0
    %3330 = vmatpush1.msra.mxu0 0.0
    %3331 = vmatprep.subr.mxu0 0.0
    %3332 = vmatpush1.msra.mxu0 0.0
    %3333 = vmatprep.subr.mxu0 0.0
    %3334 = vmatpush1.msra.mxu0 0.0
    %3335 = vmatprep.subr.mxu0 0.0
    %3336 = vmatpush1.msra.mxu0 0.0
    %3337 = vmatprep.subr.mxu0 0.0
    %3338 = vmatpush1.msra.mxu0 0.0
    %3339 = vmatprep.subr.mxu0 0.0
    %3340 = vmatpush1.msra.mxu0 0.0
    %3341 = vmatprep.subr.mxu0 0.0
    %3342 = vmatpush1.msra.mxu0 0.0
    %3343 = vmatprep.subr.mxu0 0.0
    %3344 = vmatpush1.msra.mxu0 0.0
    %3345 = vmatprep.subr.mxu0 0.0
    %3346 = vmatpush1.msra.mxu0 0.0
    %3347 = vmatprep.subr.mxu0 0.0
    %3348 = vmatpush1.msra.mxu0 0.0
    %3349 = vmatprep.subr.mxu0 0.0
    %3350 = vmatpush1.msra.mxu0 0.0
    %3351 = vmatprep.mubr.f32.mxu0 0.0
    %v3352 = vand.u32 %v3137, 4294901760
    %3353 = vmatmul.mubr.f32.gmra.mrb[0].mxu0 %v3352
    %v3354 = vpop.f32.mrb[0].mxu0
    %v3355 = vadd.f32 %v3233, %v3354
    %v3356 = vpop.f32.mrb[0].mxu0
    %v3357 = vadd.f32 %v3235, %v3356
    %3358 = vdwg.mxu0
    %v3359 = vand.u32 %v3112, 4294901760
    %v3360 = vsub.f32 %v3112, %v3359
    %3361 = vmatprep.subr.mxu0 %v3360
    %v3362 = vand.u32 %v3111, 4294901760
    %v3363 = vsub.f32 %v3111, %v3362
    %3364 = vmatpush1.msra.mxu0 %v3363
    %v3365 = vand.u32 %v3116, 4294901760
    %v3366 = vsub.f32 %v3116, %v3365
    %3367 = vmatprep.subr.mxu0 %v3366
    %v3368 = vand.u32 %v3115, 4294901760
    %v3369 = vsub.f32 %v3115, %v3368
    %3370 = vmatpush1.msra.mxu0 %v3369
    %v3371 = vand.u32 %v3120, 4294901760
    %v3372 = vsub.f32 %v3120, %v3371
    %3373 = vmatprep.subr.mxu0 %v3372
    %v3374 = vand.u32 %v3119, 4294901760
    %v3375 = vsub.f32 %v3119, %v3374
    %3376 = vmatpush1.msra.mxu0 %v3375
    %v3377 = vand.u32 %v3124, 4294901760
    %v3378 = vsub.f32 %v3124, %v3377
    %3379 = vmatprep.subr.mxu0 %v3378
    %v3380 = vand.u32 %v3123, 4294901760
    %v3381 = vsub.f32 %v3123, %v3380
    %3382 = vmatpush1.msra.mxu0 %v3381
    %v3383 = vand.u32 %v3143, 4294901760
    %v3384 = vsub.f32 %v3143, %v3383
    %3385 = vmatprep.subr.mxu0 %v3384
    %v3386 = vand.u32 %v3140, 4294901760
    %v3387 = vsub.f32 %v3140, %v3386
    %3388 = vmatpush1.msra.mxu0 %v3387
    %3389 = vmatprep.subr.mxu0 0.0
    %3390 = vmatpush1.msra.mxu0 0.0
    %3391 = vmatprep.subr.mxu0 0.0
    %3392 = vmatpush1.msra.mxu0 0.0
    %3393 = vmatprep.subr.mxu0 0.0
    %3394 = vmatpush1.msra.mxu0 0.0
    %3395 = vmatprep.subr.mxu0 0.0
    %3396 = vmatpush1.msra.mxu0 0.0
    %3397 = vmatprep.subr.mxu0 0.0
    %3398 = vmatpush1.msra.mxu0 0.0
    %3399 = vmatprep.subr.mxu0 0.0
    %3400 = vmatpush1.msra.mxu0 0.0
    %3401 = vmatprep.subr.mxu0 0.0
    %3402 = vmatpush1.msra.mxu0 0.0
    %3403 = vmatprep.subr.mxu0 0.0
    %3404 = vmatpush1.msra.mxu0 0.0
    %3405 = vmatprep.subr.mxu0 0.0
    %3406 = vmatpush1.msra.mxu0 0.0
    %3407 = vmatprep.subr.mxu0 0.0
    %3408 = vmatpush1.msra.mxu0 0.0
    %3409 = vmatprep.subr.mxu0 0.0
    %3410 = vmatpush1.msra.mxu0 0.0
    %3411 = vmatprep.subr.mxu0 0.0
    %3412 = vmatpush1.msra.mxu0 0.0
    %3413 = vmatprep.subr.mxu0 0.0
    %3414 = vmatpush1.msra.mxu0 0.0
    %3415 = vmatprep.subr.mxu0 0.0
    %3416 = vmatpush1.msra.mxu0 0.0
    %3417 = vmatprep.subr.mxu0 0.0
    %3418 = vmatpush1.msra.mxu0 0.0
    %3419 = vmatprep.subr.mxu0 0.0
    %3420 = vmatpush1.msra.mxu0 0.0
    %3421 = vmatprep.subr.mxu0 0.0
    %3422 = vmatpush1.msra.mxu0 0.0
    %3423 = vmatprep.subr.mxu0 0.0
    %3424 = vmatpush1.msra.mxu0 0.0
    %3425 = vmatprep.subr.mxu0 0.0
    %3426 = vmatpush1.msra.mxu0 0.0
    %3427 = vmatprep.subr.mxu0 0.0
    %3428 = vmatpush1.msra.mxu0 0.0
    %3429 = vmatprep.subr.mxu0 0.0
    %3430 = vmatpush1.msra.mxu0 0.0
    %3431 = vmatprep.subr.mxu0 0.0
    %3432 = vmatpush1.msra.mxu0 0.0
    %3433 = vmatprep.subr.mxu0 0.0
    %3434 = vmatpush1.msra.mxu0 0.0
    %3435 = vmatprep.subr.mxu0 0.0
    %3436 = vmatpush1.msra.mxu0 0.0
    %3437 = vmatprep.subr.mxu0 0.0
    %3438 = vmatpush1.msra.mxu0 0.0
    %3439 = vmatprep.subr.mxu0 0.0
    %3440 = vmatpush1.msra.mxu0 0.0
    %3441 = vmatprep.subr.mxu0 0.0
    %3442 = vmatpush1.msra.mxu0 0.0
    %3443 = vmatprep.mubr.f32.mxu0 0.0
    %v3444 = vand.u32 %v3137, 4294901760
    %v3445 = vsub.f32 %v3137, %v3444
    %3446 = vmatmul.mubr.f32.gmra.mrb[0].mxu0 %v3445
    %v3447 = vpop.f32.mrb[0].mxu0
    %v3448 = vadd.f32 %v3355, %v3447
    %v3449 = vpop.f32.mrb[0].mxu0
    %v3450 = vadd.f32 %v3357, %v3449
    %3451 = vdwg.mxu0
    %v3452 = vand.u32 %v3112, 4294901760
    %3453 = vmatprep.subr.mxu0 %v3452
    %v3454 = vand.u32 %v3111, 4294901760
    %3455 = vmatpush1.msra.mxu0 %v3454
    %v3456 = vand.u32 %v3116, 4294901760
    %3457 = vmatprep.subr.mxu0 %v3456
    %v3458 = vand.u32 %v3115, 4294901760
    %3459 = vmatpush1.msra.mxu0 %v3458
    %v3460 = vand.u32 %v3120, 4294901760
    %3461 = vmatprep.subr.mxu0 %v3460
    %v3462 = vand.u32 %v3119, 4294901760
    %3463 = vmatpush1.msra.mxu0 %v3462
    %v3464 = vand.u32 %v3124, 4294901760
    %3465 = vmatprep.subr.mxu0 %v3464
    %v3466 = vand.u32 %v3123, 4294901760
    %3467 = vmatpush1.msra.mxu0 %v3466
    %v3468 = vand.u32 %v3143, 4294901760
    %3469 = vmatprep.subr.mxu0 %v3468
    %v3470 = vand.u32 %v3140, 4294901760
    %3471 = vmatpush1.msra.mxu0 %v3470
    %3472 = vmatprep.subr.mxu0 0.0
    %3473 = vmatpush1.msra.mxu0 0.0
    %3474 = vmatprep.subr.mxu0 0.0
    %3475 = vmatpush1.msra.mxu0 0.0
    %3476 = vmatprep.subr.mxu0 0.0
    %3477 = vmatpush1.msra.mxu0 0.0
    %3478 = vmatprep.subr.mxu0 0.0
    %3479 = vmatpush1.msra.mxu0 0.0
    %3480 = vmatprep.subr.mxu0 0.0
    %3481 = vmatpush1.msra.mxu0 0.0
    %3482 = vmatprep.subr.mxu0 0.0
    %3483 = vmatpush1.msra.mxu0 0.0
    %3484 = vmatprep.subr.mxu0 0.0
    %3485 = vmatpush1.msra.mxu0 0.0
    %3486 = vmatprep.subr.mxu0 0.0
    %3487 = vmatpush1.msra.mxu0 0.0
    %3488 = vmatprep.subr.mxu0 0.0
    %3489 = vmatpush1.msra.mxu0 0.0
    %3490 = vmatprep.subr.mxu0 0.0
    %3491 = vmatpush1.msra.mxu0 0.0
    %3492 = vmatprep.subr.mxu0 0.0
    %3493 = vmatpush1.msra.mxu0 0.0
    %3494 = vmatprep.subr.mxu0 0.0
    %3495 = vmatpush1.msra.mxu0 0.0
    %3496 = vmatprep.subr.mxu0 0.0
    %3497 = vmatpush1.msra.mxu0 0.0
    %3498 = vmatprep.subr.mxu0 0.0
    %3499 = vmatpush1.msra.mxu0 0.0
    %3500 = vmatprep.subr.mxu0 0.0
    %3501 = vmatpush1.msra.mxu0 0.0
    %3502 = vmatprep.subr.mxu0 0.0
    %3503 = vmatpush1.msra.mxu0 0.0
    %3504 = vmatprep.subr.mxu0 0.0
    %3505 = vmatpush1.msra.mxu0 0.0
    %3506 = vmatprep.subr.mxu0 0.0
    %3507 = vmatpush1.msra.mxu0 0.0
    %3508 = vmatprep.subr.mxu0 0.0
    %3509 = vmatpush1.msra.mxu0 0.0
    %3510 = vmatprep.subr.mxu0 0.0
    %3511 = vmatpush1.msra.mxu0 0.0
    %3512 = vmatprep.subr.mxu0 0.0
    %3513 = vmatpush1.msra.mxu0 0.0
    %3514 = vmatprep.subr.mxu0 0.0
    %3515 = vmatpush1.msra.mxu0 0.0
    %3516 = vmatprep.subr.mxu0 0.0
    %3517 = vmatpush1.msra.mxu0 0.0
    %3518 = vmatprep.subr.mxu0 0.0
    %3519 = vmatpush1.msra.mxu0 0.0
    %3520 = vmatprep.subr.mxu0 0.0
    %3521 = vmatpush1.msra.mxu0 0.0
    %3522 = vmatprep.subr.mxu0 0.0
    %3523 = vmatpush1.msra.mxu0 0.0
    %3524 = vmatprep.subr.mxu0 0.0
    %3525 = vmatpush1.msra.mxu0 0.0
    %3526 = vmatprep.mubr.f32.mxu0 0.0
    %v3527 = vand.u32 %v3137, 4294901760
    %v3528 = vsub.f32 %v3137, %v3527
    %v3529 = vand.u32 %v3528, 4294901760
    %3530 = vmatmul.mubr.f32.gmra.mrb[0].mxu0 %v3529
    %v3531 = vpop.f32.mrb[0].mxu0
    %v3532 = vadd.f32 %v3448, %v3531
    %v3533 = vpop.f32.mrb[0].mxu0
    %v3534 = vadd.f32 %v3450, %v3533
    %3535 = vdwg.mxu0
    %v3536 = vand.u32 %v3112, 4294901760
    %v3537 = vsub.f32 %v3112, %v3536
    %v3538 = vand.u32 %v3537, 4294901760
    %3539 = vmatprep.subr.mxu0 %v3538
    %v3540 = vand.u32 %v3111, 4294901760
    %v3541 = vsub.f32 %v3111, %v3540
    %v3542 = vand.u32 %v3541, 4294901760
    %3543 = vmatpush1.msra.mxu0 %v3542
    %v3544 = vand.u32 %v3116, 4294901760
    %v3545 = vsub.f32 %v3116, %v3544
    %v3546 = vand.u32 %v3545, 4294901760
    %3547 = vmatprep.subr.mxu0 %v3546
    %v3548 = vand.u32 %v3115, 4294901760
    %v3549 = vsub.f32 %v3115, %v3548
    %v3550 = vand.u32 %v3549, 4294901760
    %3551 = vmatpush1.msra.mxu0 %v3550
    %v3552 = vand.u32 %v3120, 4294901760
    %v3553 = vsub.f32 %v3120, %v3552
    %v3554 = vand.u32 %v3553, 4294901760
    %3555 = vmatprep.subr.mxu0 %v3554
    %v3556 = vand.u32 %v3119, 4294901760
    %v3557 = vsub.f32 %v3119, %v3556
    %v3558 = vand.u32 %v3557, 4294901760
    %3559 = vmatpush1.msra.mxu0 %v3558
    %v3560 = vand.u32 %v3124, 4294901760
    %v3561 = vsub.f32 %v3124, %v3560
    %v3562 = vand.u32 %v3561, 4294901760
    %3563 = vmatprep.subr.mxu0 %v3562
    %v3564 = vand.u32 %v3123, 4294901760
    %v3565 = vsub.f32 %v3123, %v3564
    %v3566 = vand.u32 %v3565, 4294901760
    %3567 = vmatpush1.msra.mxu0 %v3566
    %v3568 = vand.u32 %v3143, 4294901760
    %v3569 = vsub.f32 %v3143, %v3568
    %v3570 = vand.u32 %v3569, 4294901760
    %3571 = vmatprep.subr.mxu0 %v3570
    %v3572 = vand.u32 %v3140, 4294901760
    %v3573 = vsub.f32 %v3140, %v3572
    %v3574 = vand.u32 %v3573, 4294901760
    %3575 = vmatpush1.msra.mxu0 %v3574
    %3576 = vmatprep.subr.mxu0 0.0
    %3577 = vmatpush1.msra.mxu0 0.0
    %3578 = vmatprep.subr.mxu0 0.0
    %3579 = vmatpush1.msra.mxu0 0.0
    %3580 = vmatprep.subr.mxu0 0.0
    %3581 = vmatpush1.msra.mxu0 0.0
    %3582 = vmatprep.subr.mxu0 0.0
    %3583 = vmatpush1.msra.mxu0 0.0
    %3584 = vmatprep.subr.mxu0 0.0
    %3585 = vmatpush1.msra.mxu0 0.0
    %3586 = vmatprep.subr.mxu0 0.0
    %3587 = vmatpush1.msra.mxu0 0.0
    %3588 = vmatprep.subr.mxu0 0.0
    %3589 = vmatpush1.msra.mxu0 0.0
    %3590 = vmatprep.subr.mxu0 0.0
    %3591 = vmatpush1.msra.mxu0 0.0
    %3592 = vmatprep.subr.mxu0 0.0
    %3593 = vmatpush1.msra.mxu0 0.0
    %3594 = vmatprep.subr.mxu0 0.0
    %3595 = vmatpush1.msra.mxu0 0.0
    %3596 = vmatprep.subr.mxu0 0.0
    %3597 = vmatpush1.msra.mxu0 0.0
    %3598 = vmatprep.subr.mxu0 0.0
    %3599 = vmatpush1.msra.mxu0 0.0
    %3600 = vmatprep.subr.mxu0 0.0
    %3601 = vmatpush1.msra.mxu0 0.0
    %3602 = vmatprep.subr.mxu0 0.0
    %3603 = vmatpush1.msra.mxu0 0.0
    %3604 = vmatprep.subr.mxu0 0.0
    %3605 = vmatpush1.msra.mxu0 0.0
    %3606 = vmatprep.subr.mxu0 0.0
    %3607 = vmatpush1.msra.mxu0 0.0
    %3608 = vmatprep.subr.mxu0 0.0
    %3609 = vmatpush1.msra.mxu0 0.0
    %3610 = vmatprep.subr.mxu0 0.0
    %3611 = vmatpush1.msra.mxu0 0.0
    %3612 = vmatprep.subr.mxu0 0.0
    %3613 = vmatpush1.msra.mxu0 0.0
    %3614 = vmatprep.subr.mxu0 0.0
    %3615 = vmatpush1.msra.mxu0 0.0
    %3616 = vmatprep.subr.mxu0 0.0
    %3617 = vmatpush1.msra.mxu0 0.0
    %3618 = vmatprep.subr.mxu0 0.0
    %3619 = vmatpush1.msra.mxu0 0.0
    %3620 = vmatprep.subr.mxu0 0.0
    %3621 = vmatpush1.msra.mxu0 0.0
    %3622 = vmatprep.subr.mxu0 0.0
    %3623 = vmatpush1.msra.mxu0 0.0
    %3624 = vmatprep.subr.mxu0 0.0
    %3625 = vmatpush1.msra.mxu0 0.0
    %3626 = vmatprep.subr.mxu0 0.0
    %3627 = vmatpush1.msra.mxu0 0.0
    %3628 = vmatprep.subr.mxu0 0.0
    %3629 = vmatpush1.msra.mxu0 0.0
    %3630 = vmatprep.mubr.f32.mxu0 0.0
    %v3631 = vand.u32 %v3137, 4294901760
    %3632 = vmatmul.mubr.f32.gmra.mrb[0].mxu0 %v3631
    %v3633 = vpop.f32.mrb[0].mxu0
    %v3634 = vadd.f32 %v3532, %v3633
    %v3635 = vpop.f32.mrb[0].mxu0
    %v3636 = vadd.f32 %v3534, %v3635
    %3637 = vdwg.mxu0
    %v3638 = vand.u32 %v3112, 4294901760
    %3639 = vmatprep.subr.mxu0 %v3638
    %v3640 = vand.u32 %v3111, 4294901760
    %3641 = vmatpush1.msra.mxu0 %v3640
    %v3642 = vand.u32 %v3116, 4294901760
    %3643 = vmatprep.subr.mxu0 %v3642
    %v3644 = vand.u32 %v3115, 4294901760
    %3645 = vmatpush1.msra.mxu0 %v3644
    %v3646 = vand.u32 %v3120, 4294901760
    %3647 = vmatprep.subr.mxu0 %v3646
    %v3648 = vand.u32 %v3119, 4294901760
    %3649 = vmatpush1.msra.mxu0 %v3648
    %v3650 = vand.u32 %v3124, 4294901760
    %3651 = vmatprep.subr.mxu0 %v3650
    %v3652 = vand.u32 %v3123, 4294901760
    %3653 = vmatpush1.msra.mxu0 %v3652
    %v3654 = vand.u32 %v3143, 4294901760
    %3655 = vmatprep.subr.mxu0 %v3654
    %v3656 = vand.u32 %v3140, 4294901760
    %3657 = vmatpush1.msra.mxu0 %v3656
    %3658 = vmatprep.subr.mxu0 0.0
    %3659 = vmatpush1.msra.mxu0 0.0
    %3660 = vmatprep.subr.mxu0 0.0
    %3661 = vmatpush1.msra.mxu0 0.0
    %3662 = vmatprep.subr.mxu0 0.0
    %3663 = vmatpush1.msra.mxu0 0.0
    %3664 = vmatprep.subr.mxu0 0.0
    %3665 = vmatpush1.msra.mxu0 0.0
    %3666 = vmatprep.subr.mxu0 0.0
    %3667 = vmatpush1.msra.mxu0 0.0
    %3668 = vmatprep.subr.mxu0 0.0
    %3669 = vmatpush1.msra.mxu0 0.0
    %3670 = vmatprep.subr.mxu0 0.0
    %3671 = vmatpush1.msra.mxu0 0.0
    %3672 = vmatprep.subr.mxu0 0.0
    %3673 = vmatpush1.msra.mxu0 0.0
    %3674 = vmatprep.subr.mxu0 0.0
    %3675 = vmatpush1.msra.mxu0 0.0
    %3676 = vmatprep.subr.mxu0 0.0
    %3677 = vmatpush1.msra.mxu0 0.0
    %3678 = vmatprep.subr.mxu0 0.0
    %3679 = vmatpush1.msra.mxu0 0.0
    %3680 = vmatprep.subr.mxu0 0.0
    %3681 = vmatpush1.msra.mxu0 0.0
    %3682 = vmatprep.subr.mxu0 0.0
    %3683 = vmatpush1.msra.mxu0 0.0
    %3684 = vmatprep.subr.mxu0 0.0
    %3685 = vmatpush1.msra.mxu0 0.0
    %3686 = vmatprep.subr.mxu0 0.0
    %3687 = vmatpush1.msra.mxu0 0.0
    %3688 = vmatprep.subr.mxu0 0.0
    %3689 = vmatpush1.msra.mxu0 0.0
    %3690 = vmatprep.subr.mxu0 0.0
    %3691 = vmatpush1.msra.mxu0 0.0
    %3692 = vmatprep.subr.mxu0 0.0
    %3693 = vmatpush1.msra.mxu0 0.0
    %3694 = vmatprep.subr.mxu0 0.0
    %3695 = vmatpush1.msra.mxu0 0.0
    %3696 = vmatprep.subr.mxu0 0.0
    %3697 = vmatpush1.msra.mxu0 0.0
    %3698 = vmatprep.subr.mxu0 0.0
    %3699 = vmatpush1.msra.mxu0 0.0
    %3700 = vmatprep.subr.mxu0 0.0
    %3701 = vmatpush1.msra.mxu0 0.0
    %3702 = vmatprep.subr.mxu0 0.0
    %3703 = vmatpush1.msra.mxu0 0.0
    %3704 = vmatprep.subr.mxu0 0.0
    %3705 = vmatpush1.msra.mxu0 0.0
    %3706 = vmatprep.subr.mxu0 0.0
    %3707 = vmatpush1.msra.mxu0 0.0
    %3708 = vmatprep.subr.mxu0 0.0
    %3709 = vmatpush1.msra.mxu0 0.0
    %3710 = vmatprep.subr.mxu0 0.0
    %3711 = vmatpush1.msra.mxu0 0.0
    %3712 = vmatprep.mubr.f32.mxu0 0.0
    %v3713 = vand.u32 %v3137, 4294901760
    %3714 = vmatmul.mubr.f32.gmra.mrb[0].mxu0 %v3713
    %v3715 = vpop.f32.mrb[0].mxu0
    %v3716 = vadd.f32 %v3634, %v3715
    %v3717 = vpop.f32.mrb[0].mxu0
    %v3718 = vadd.f32 %v3636, %v3717
    %3719 = vdwg.mxu0
    %v3720 = vand.u32 %v3114, 4294901760
    %3721 = vmatprep.subr.mxu0 %v3720
    %v3722 = vand.u32 %v3113, 4294901760
    %3723 = vmatpush1.msra.mxu0 %v3722
    %v3724 = vand.u32 %v3118, 4294901760
    %3725 = vmatprep.subr.mxu0 %v3724
    %v3726 = vand.u32 %v3117, 4294901760
    %3727 = vmatpush1.msra.mxu0 %v3726
    %v3728 = vand.u32 %v3122, 4294901760
    %3729 = vmatprep.subr.mxu0 %v3728
    %v3730 = vand.u32 %v3121, 4294901760
    %3731 = vmatpush1.msra.mxu0 %v3730
    %v3732 = vand.u32 %v3126, 4294901760
    %3733 = vmatprep.subr.mxu0 %v3732
    %v3734 = vand.u32 %v3125, 4294901760
    %3735 = vmatpush1.msra.mxu0 %v3734
    %v3736 = vand.u32 %v3149, 4294901760
    %3737 = vmatprep.subr.mxu0 %v3736
    %v3738 = vand.u32 %v3146, 4294901760
    %3739 = vmatpush1.msra.mxu0 %v3738
    %3740 = vmatprep.subr.mxu0 0.0
    %3741 = vmatpush1.msra.mxu0 0.0
    %3742 = vmatprep.subr.mxu0 0.0
    %3743 = vmatpush1.msra.mxu0 0.0
    %3744 = vmatprep.subr.mxu0 0.0
    %3745 = vmatpush1.msra.mxu0 0.0
    %3746 = vmatprep.subr.mxu0 0.0
    %3747 = vmatpush1.msra.mxu0 0.0
    %3748 = vmatprep.subr.mxu0 0.0
    %3749 = vmatpush1.msra.mxu0 0.0
    %3750 = vmatprep.subr.mxu0 0.0
    %3751 = vmatpush1.msra.mxu0 0.0
    %3752 = vmatprep.subr.mxu0 0.0
    %3753 = vmatpush1.msra.mxu0 0.0
    %3754 = vmatprep.subr.mxu0 0.0
    %3755 = vmatpush1.msra.mxu0 0.0
    %3756 = vmatprep.subr.mxu0 0.0
    %3757 = vmatpush1.msra.mxu0 0.0
    %3758 = vmatprep.subr.mxu0 0.0
    %3759 = vmatpush1.msra.mxu0 0.0
    %3760 = vmatprep.subr.mxu0 0.0
    %3761 = vmatpush1.msra.mxu0 0.0
    %3762 = vmatprep.subr.mxu0 0.0
    %3763 = vmatpush1.msra.mxu0 0.0
    %3764 = vmatprep.subr.mxu0 0.0
    %3765 = vmatpush1.msra.mxu0 0.0
    %3766 = vmatprep.subr.mxu0 0.0
    %3767 = vmatpush1.msra.mxu0 0.0
    %3768 = vmatprep.subr.mxu0 0.0
    %3769 = vmatpush1.msra.mxu0 0.0
    %3770 = vmatprep.subr.mxu0 0.0
    %3771 = vmatpush1.msra.mxu0 0.0
    %3772 = vmatprep.subr.mxu0 0.0
    %3773 = vmatpush1.msra.mxu0 0.0
    %3774 = vmatprep.subr.mxu0 0.0
    %3775 = vmatpush1.msra.mxu0 0.0
    %3776 = vmatprep.subr.mxu0 0.0
    %3777 = vmatpush1.msra.mxu0 0.0
    %3778 = vmatprep.subr.mxu0 0.0
    %3779 = vmatpush1.msra.mxu0 0.0
    %3780 = vmatprep.subr.mxu0 0.0
    %3781 = vmatpush1.msra.mxu0 0.0
    %3782 = vmatprep.subr.mxu0 0.0
    %3783 = vmatpush1.msra.mxu0 0.0
    %3784 = vmatprep.subr.mxu0 0.0
    %3785 = vmatpush1.msra.mxu0 0.0
    %3786 = vmatprep.subr.mxu0 0.0
    %3787 = vmatpush1.msra.mxu0 0.0
    %3788 = vmatprep.subr.mxu0 0.0
    %3789 = vmatpush1.msra.mxu0 0.0
    %3790 = vmatprep.subr.mxu0 0.0
    %3791 = vmatpush1.msra.mxu0 0.0
    %3792 = vmatprep.subr.mxu0 0.0
    %3793 = vmatpush1.msra.mxu0 0.0
    %3794 = vmatprep.mubr.f32.mxu0 0.0
    %v3795 = vand.u32 %v3137, 4294901760
    %v3796 = vsub.f32 %v3137, %v3795
    %v3797 = vand.u32 %v3796, 4294901760
    %v3798 = vsub.f32 %v3796, %v3797
    %v3799 = vand.u32 %v3798, 4294901760
    %3800 = vmatmul.mubr.f32.gmra.mrb[0].mxu0 %v3799
    %v3801 = vpop.f32.mrb[0].mxu0
    %v3802 = vadd.f32 %v3134, %v3801
    %v3803 = vpop.f32.mrb[0].mxu0
    %v3804 = vadd.f32 %v3134, %v3803
    %3805 = vdwg.mxu0
    %v3806 = vand.u32 %v3114, 4294901760
    %v3807 = vsub.f32 %v3114, %v3806
    %v3808 = vand.u32 %v3807, 4294901760
    %v3809 = vsub.f32 %v3807, %v3808
    %v3810 = vand.u32 %v3809, 4294901760
    %3811 = vmatprep.subr.mxu0 %v3810
    %v3812 = vand.u32 %v3113, 4294901760
    %v3813 = vsub.f32 %v3113, %v3812
    %v3814 = vand.u32 %v3813, 4294901760
    %v3815 = vsub.f32 %v3813, %v3814
    %v3816 = vand.u32 %v3815, 4294901760
    %3817 = vmatpush1.msra.mxu0 %v3816
    %v3818 = vand.u32 %v3118, 4294901760
    %v3819 = vsub.f32 %v3118, %v3818
    %v3820 = vand.u32 %v3819, 4294901760
    %v3821 = vsub.f32 %v3819, %v3820
    %v3822 = vand.u32 %v3821, 4294901760
    %3823 = vmatprep.subr.mxu0 %v3822
    %v3824 = vand.u32 %v3117, 4294901760
    %v3825 = vsub.f32 %v3117, %v3824
    %v3826 = vand.u32 %v3825, 4294901760
    %v3827 = vsub.f32 %v3825, %v3826
    %v3828 = vand.u32 %v3827, 4294901760
    %3829 = vmatpush1.msra.mxu0 %v3828
    %v3830 = vand.u32 %v3122, 4294901760
    %v3831 = vsub.f32 %v3122, %v3830
    %v3832 = vand.u32 %v3831, 4294901760
    %v3833 = vsub.f32 %v3831, %v3832
    %v3834 = vand.u32 %v3833, 4294901760
    %3835 = vmatprep.subr.mxu0 %v3834
    %v3836 = vand.u32 %v3121, 4294901760
    %v3837 = vsub.f32 %v3121, %v3836
    %v3838 = vand.u32 %v3837, 4294901760
    %v3839 = vsub.f32 %v3837, %v3838
    %v3840 = vand.u32 %v3839, 4294901760
    %3841 = vmatpush1.msra.mxu0 %v3840
    %v3842 = vand.u32 %v3126, 4294901760
    %v3843 = vsub.f32 %v3126, %v3842
    %v3844 = vand.u32 %v3843, 4294901760
    %v3845 = vsub.f32 %v3843, %v3844
    %v3846 = vand.u32 %v3845, 4294901760
    %3847 = vmatprep.subr.mxu0 %v3846
    %v3848 = vand.u32 %v3125, 4294901760
    %v3849 = vsub.f32 %v3125, %v3848
    %v3850 = vand.u32 %v3849, 4294901760
    %v3851 = vsub.f32 %v3849, %v3850
    %v3852 = vand.u32 %v3851, 4294901760
    %3853 = vmatpush1.msra.mxu0 %v3852
    %v3854 = vand.u32 %v3149, 4294901760
    %v3855 = vsub.f32 %v3149, %v3854
    %v3856 = vand.u32 %v3855, 4294901760
    %v3857 = vsub.f32 %v3855, %v3856
    %v3858 = vand.u32 %v3857, 4294901760
    %3859 = vmatprep.subr.mxu0 %v3858
    %v3860 = vand.u32 %v3146, 4294901760
    %v3861 = vsub.f32 %v3146, %v3860
    %v3862 = vand.u32 %v3861, 4294901760
    %v3863 = vsub.f32 %v3861, %v3862
    %v3864 = vand.u32 %v3863, 4294901760
    %3865 = vmatpush1.msra.mxu0 %v3864
    %3866 = vmatprep.subr.mxu0 0.0
    %3867 = vmatpush1.msra.mxu0 0.0
    %3868 = vmatprep.subr.mxu0 0.0
    %3869 = vmatpush1.msra.mxu0 0.0
    %3870 = vmatprep.subr.mxu0 0.0
    %3871 = vmatpush1.msra.mxu0 0.0
    %3872 = vmatprep.subr.mxu0 0.0
    %3873 = vmatpush1.msra.mxu0 0.0
    %3874 = vmatprep.subr.mxu0 0.0
    %3875 = vmatpush1.msra.mxu0 0.0
    %3876 = vmatprep.subr.mxu0 0.0
    %3877 = vmatpush1.msra.mxu0 0.0
    %3878 = vmatprep.subr.mxu0 0.0
    %3879 = vmatpush1.msra.mxu0 0.0
    %3880 = vmatprep.subr.mxu0 0.0
    %3881 = vmatpush1.msra.mxu0 0.0
    %3882 = vmatprep.subr.mxu0 0.0
    %3883 = vmatpush1.msra.mxu0 0.0
    %3884 = vmatprep.subr.mxu0 0.0
    %3885 = vmatpush1.msra.mxu0 0.0
    %3886 = vmatprep.subr.mxu0 0.0
    %3887 = vmatpush1.msra.mxu0 0.0
    %3888 = vmatprep.subr.mxu0 0.0
    %3889 = vmatpush1.msra.mxu0 0.0
    %3890 = vmatprep.subr.mxu0 0.0
    %3891 = vmatpush1.msra.mxu0 0.0
    %3892 = vmatprep.subr.mxu0 0.0
    %3893 = vmatpush1.msra.mxu0 0.0
    %3894 = vmatprep.subr.mxu0 0.0
    %3895 = vmatpush1.msra.mxu0 0.0
    %3896 = vmatprep.subr.mxu0 0.0
    %3897 = vmatpush1.msra.mxu0 0.0
    %3898 = vmatprep.subr.mxu0 0.0
    %3899 = vmatpush1.msra.mxu0 0.0
    %3900 = vmatprep.subr.mxu0 0.0
    %3901 = vmatpush1.msra.mxu0 0.0
    %3902 = vmatprep.subr.mxu0 0.0
    %3903 = vmatpush1.msra.mxu0 0.0
    %3904 = vmatprep.subr.mxu0 0.0
    %3905 = vmatpush1.msra.mxu0 0.0
    %3906 = vmatprep.subr.mxu0 0.0
    %3907 = vmatpush1.msra.mxu0 0.0
    %3908 = vmatprep.subr.mxu0 0.0
    %3909 = vmatpush1.msra.mxu0 0.0
    %3910 = vmatprep.subr.mxu0 0.0
    %3911 = vmatpush1.msra.mxu0 0.0
    %3912 = vmatprep.subr.mxu0 0.0
    %3913 = vmatpush1.msra.mxu0 0.0
    %3914 = vmatprep.subr.mxu0 0.0
    %3915 = vmatpush1.msra.mxu0 0.0
    %3916 = vmatprep.subr.mxu0 0.0
    %3917 = vmatpush1.msra.mxu0 0.0
    %3918 = vmatprep.subr.mxu0 0.0
    %3919 = vmatpush1.msra.mxu0 0.0
    %3920 = vmatprep.mubr.f32.mxu0 0.0
    %v3921 = vand.u32 %v3137, 4294901760
    %3922 = vmatmul.mubr.f32.gmra.mrb[0].mxu0 %v3921
    %v3923 = vpop.f32.mrb[0].mxu0
    %v3924 = vadd.f32 %v3802, %v3923
    %v3925 = vpop.f32.mrb[0].mxu0
    %v3926 = vadd.f32 %v3804, %v3925
    %3927 = vdwg.mxu0
    %v3928 = vand.u32 %v3114, 4294901760
    %v3929 = vsub.f32 %v3114, %v3928
    %3930 = vmatprep.subr.mxu0 %v3929
    %v3931 = vand.u32 %v3113, 4294901760
    %v3932 = vsub.f32 %v3113, %v3931
    %3933 = vmatpush1.msra.mxu0 %v3932
    %v3934 = vand.u32 %v3118, 4294901760
    %v3935 = vsub.f32 %v3118, %v3934
    %3936 = vmatprep.subr.mxu0 %v3935
    %v3937 = vand.u32 %v3117, 4294901760
    %v3938 = vsub.f32 %v3117, %v3937
    %3939 = vmatpush1.msra.mxu0 %v3938
    %v3940 = vand.u32 %v3122, 4294901760
    %v3941 = vsub.f32 %v3122, %v3940
    %3942 = vmatprep.subr.mxu0 %v3941
    %v3943 = vand.u32 %v3121, 4294901760
    %v3944 = vsub.f32 %v3121, %v3943
    %3945 = vmatpush1.msra.mxu0 %v3944
    %v3946 = vand.u32 %v3126, 4294901760
    %v3947 = vsub.f32 %v3126, %v3946
    %3948 = vmatprep.subr.mxu0 %v3947
    %v3949 = vand.u32 %v3125, 4294901760
    %v3950 = vsub.f32 %v3125, %v3949
    %3951 = vmatpush1.msra.mxu0 %v3950
    %v3952 = vand.u32 %v3149, 4294901760
    %v3953 = vsub.f32 %v3149, %v3952
    %3954 = vmatprep.subr.mxu0 %v3953
    %v3955 = vand.u32 %v3146, 4294901760
    %v3956 = vsub.f32 %v3146, %v3955
    %3957 = vmatpush1.msra.mxu0 %v3956
    %3958 = vmatprep.subr.mxu0 0.0
    %3959 = vmatpush1.msra.mxu0 0.0
    %3960 = vmatprep.subr.mxu0 0.0
    %3961 = vmatpush1.msra.mxu0 0.0
    %3962 = vmatprep.subr.mxu0 0.0
    %3963 = vmatpush1.msra.mxu0 0.0
    %3964 = vmatprep.subr.mxu0 0.0
    %3965 = vmatpush1.msra.mxu0 0.0
    %3966 = vmatprep.subr.mxu0 0.0
    %3967 = vmatpush1.msra.mxu0 0.0
    %3968 = vmatprep.subr.mxu0 0.0
    %3969 = vmatpush1.msra.mxu0 0.0
    %3970 = vmatprep.subr.mxu0 0.0
    %3971 = vmatpush1.msra.mxu0 0.0
    %3972 = vmatprep.subr.mxu0 0.0
    %3973 = vmatpush1.msra.mxu0 0.0
    %3974 = vmatprep.subr.mxu0 0.0
    %3975 = vmatpush1.msra.mxu0 0.0
    %3976 = vmatprep.subr.mxu0 0.0
    %3977 = vmatpush1.msra.mxu0 0.0
    %3978 = vmatprep.subr.mxu0 0.0
    %3979 = vmatpush1.msra.mxu0 0.0
    %3980 = vmatprep.subr.mxu0 0.0
    %3981 = vmatpush1.msra.mxu0 0.0
    %3982 = vmatprep.subr.mxu0 0.0
    %3983 = vmatpush1.msra.mxu0 0.0
    %3984 = vmatprep.subr.mxu0 0.0
    %3985 = vmatpush1.msra.mxu0 0.0
    %3986 = vmatprep.subr.mxu0 0.0
    %3987 = vmatpush1.msra.mxu0 0.0
    %3988 = vmatprep.subr.mxu0 0.0
    %3989 = vmatpush1.msra.mxu0 0.0
    %3990 = vmatprep.subr.mxu0 0.0
    %3991 = vmatpush1.msra.mxu0 0.0
    %3992 = vmatprep.subr.mxu0 0.0
    %3993 = vmatpush1.msra.mxu0 0.0
    %3994 = vmatprep.subr.mxu0 0.0
    %3995 = vmatpush1.msra.mxu0 0.0
    %3996 = vmatprep.subr.mxu0 0.0
    %3997 = vmatpush1.msra.mxu0 0.0
    %3998 = vmatprep.subr.mxu0 0.0
    %3999 = vmatpush1.msra.mxu0 0.0
    %4000 = vmatprep.subr.mxu0 0.0
    %4001 = vmatpush1.msra.mxu0 0.0
    %4002 = vmatprep.subr.mxu0 0.0
    %4003 = vmatpush1.msra.mxu0 0.0
    %4004 = vmatprep.subr.mxu0 0.0
    %4005 = vmatpush1.msra.mxu0 0.0
    %4006 = vmatprep.subr.mxu0 0.0
    %4007 = vmatpush1.msra.mxu0 0.0
    %4008 = vmatprep.subr.mxu0 0.0
    %4009 = vmatpush1.msra.mxu0 0.0
    %4010 = vmatprep.subr.mxu0 0.0
    %4011 = vmatpush1.msra.mxu0 0.0
    %4012 = vmatprep.mubr.f32.mxu0 0.0
    %v4013 = vand.u32 %v3137, 4294901760
    %v4014 = vsub.f32 %v3137, %v4013
    %4015 = vmatmul.mubr.f32.gmra.mrb[0].mxu0 %v4014
    %v4016 = vpop.f32.mrb[0].mxu0
    %v4017 = vadd.f32 %v3924, %v4016
    %v4018 = vpop.f32.mrb[0].mxu0
    %v4019 = vadd.f32 %v3926, %v4018
    %4020 = vdwg.mxu0
    %v4021 = vand.u32 %v3114, 4294901760
    %4022 = vmatprep.subr.mxu0 %v4021
    %v4023 = vand.u32 %v3113, 4294901760
    %4024 = vmatpush1.msra.mxu0 %v4023
    %v4025 = vand.u32 %v3118, 4294901760
    %4026 = vmatprep.subr.mxu0 %v4025
    %v4027 = vand.u32 %v3117, 4294901760
    %4028 = vmatpush1.msra.mxu0 %v4027
    %v4029 = vand.u32 %v3122, 4294901760
    %4030 = vmatprep.subr.mxu0 %v4029
    %v4031 = vand.u32 %v3121, 4294901760
    %4032 = vmatpush1.msra.mxu0 %v4031
    %v4033 = vand.u32 %v3126, 4294901760
    %4034 = vmatprep.subr.mxu0 %v4033
    %v4035 = vand.u32 %v3125, 4294901760
    %4036 = vmatpush1.msra.mxu0 %v4035
    %v4037 = vand.u32 %v3149, 4294901760
    %4038 = vmatprep.subr.mxu0 %v4037
    %v4039 = vand.u32 %v3146, 4294901760
    %4040 = vmatpush1.msra.mxu0 %v4039
    %4041 = vmatprep.subr.mxu0 0.0
    %4042 = vmatpush1.msra.mxu0 0.0
    %4043 = vmatprep.subr.mxu0 0.0
    %4044 = vmatpush1.msra.mxu0 0.0
    %4045 = vmatprep.subr.mxu0 0.0
    %4046 = vmatpush1.msra.mxu0 0.0
    %4047 = vmatprep.subr.mxu0 0.0
    %4048 = vmatpush1.msra.mxu0 0.0
    %4049 = vmatprep.subr.mxu0 0.0
    %4050 = vmatpush1.msra.mxu0 0.0
    %4051 = vmatprep.subr.mxu0 0.0
    %4052 = vmatpush1.msra.mxu0 0.0
    %4053 = vmatprep.subr.mxu0 0.0
    %4054 = vmatpush1.msra.mxu0 0.0
    %4055 = vmatprep.subr.mxu0 0.0
    %4056 = vmatpush1.msra.mxu0 0.0
    %4057 = vmatprep.subr.mxu0 0.0
    %4058 = vmatpush1.msra.mxu0 0.0
    %4059 = vmatprep.subr.mxu0 0.0
    %4060 = vmatpush1.msra.mxu0 0.0
    %4061 = vmatprep.subr.mxu0 0.0
    %4062 = vmatpush1.msra.mxu0 0.0
    %4063 = vmatprep.subr.mxu0 0.0
    %4064 = vmatpush1.msra.mxu0 0.0
    %4065 = vmatprep.subr.mxu0 0.0
    %4066 = vmatpush1.msra.mxu0 0.0
    %4067 = vmatprep.subr.mxu0 0.0
    %4068 = vmatpush1.msra.mxu0 0.0
    %4069 = vmatprep.subr.mxu0 0.0
    %4070 = vmatpush1.msra.mxu0 0.0
    %4071 = vmatprep.subr.mxu0 0.0
    %4072 = vmatpush1.msra.mxu0 0.0
    %4073 = vmatprep.subr.mxu0 0.0
    %4074 = vmatpush1.msra.mxu0 0.0
    %4075 = vmatprep.subr.mxu0 0.0
    %4076 = vmatpush1.msra.mxu0 0.0
    %4077 = vmatprep.subr.mxu0 0.0
    %4078 = vmatpush1.msra.mxu0 0.0
    %4079 = vmatprep.subr.mxu0 0.0
    %4080 = vmatpush1.msra.mxu0 0.0
    %4081 = vmatprep.subr.mxu0 0.0
    %4082 = vmatpush1.msra.mxu0 0.0
    %4083 = vmatprep.subr.mxu0 0.0
    %4084 = vmatpush1.msra.mxu0 0.0
    %4085 = vmatprep.subr.mxu0 0.0
    %4086 = vmatpush1.msra.mxu0 0.0
    %4087 = vmatprep.subr.mxu0 0.0
    %4088 = vmatpush1.msra.mxu0 0.0
    %4089 = vmatprep.subr.mxu0 0.0
    %4090 = vmatpush1.msra.mxu0 0.0
    %4091 = vmatprep.subr.mxu0 0.0
    %4092 = vmatpush1.msra.mxu0 0.0
    %4093 = vmatprep.subr.mxu0 0.0
    %4094 = vmatpush1.msra.mxu0 0.0
    %4095 = vmatprep.mubr.f32.mxu0 0.0
    %v4096 = vand.u32 %v3137, 4294901760
    %v4097 = vsub.f32 %v3137, %v4096
    %v4098 = vand.u32 %v4097, 4294901760
    %4099 = vmatmul.mubr.f32.gmra.mrb[0].mxu0 %v4098
    %v4100 = vpop.f32.mrb[0].mxu0
    %v4101 = vadd.f32 %v4017, %v4100
    %v4102 = vpop.f32.mrb[0].mxu0
    %v4103 = vadd.f32 %v4019, %v4102
    %4104 = vdwg.mxu0
    %v4105 = vand.u32 %v3114, 4294901760
    %v4106 = vsub.f32 %v3114, %v4105
    %v4107 = vand.u32 %v4106, 4294901760
    %4108 = vmatprep.subr.mxu0 %v4107
    %v4109 = vand.u32 %v3113, 4294901760
    %v4110 = vsub.f32 %v3113, %v4109
    %v4111 = vand.u32 %v4110, 4294901760
    %4112 = vmatpush1.msra.mxu0 %v4111
    %v4113 = vand.u32 %v3118, 4294901760
    %v4114 = vsub.f32 %v3118, %v4113
    %v4115 = vand.u32 %v4114, 4294901760
    %4116 = vmatprep.subr.mxu0 %v4115
    %v4117 = vand.u32 %v3117, 4294901760
    %v4118 = vsub.f32 %v3117, %v4117
    %v4119 = vand.u32 %v4118, 4294901760
    %4120 = vmatpush1.msra.mxu0 %v4119
    %v4121 = vand.u32 %v3122, 4294901760
    %v4122 = vsub.f32 %v3122, %v4121
    %v4123 = vand.u32 %v4122, 4294901760
    %4124 = vmatprep.subr.mxu0 %v4123
    %v4125 = vand.u32 %v3121, 4294901760
    %v4126 = vsub.f32 %v3121, %v4125
    %v4127 = vand.u32 %v4126, 4294901760
    %4128 = vmatpush1.msra.mxu0 %v4127
    %v4129 = vand.u32 %v3126, 4294901760
    %v4130 = vsub.f32 %v3126, %v4129
    %v4131 = vand.u32 %v4130, 4294901760
    %4132 = vmatprep.subr.mxu0 %v4131
    %v4133 = vand.u32 %v3125, 4294901760
    %v4134 = vsub.f32 %v3125, %v4133
    %v4135 = vand.u32 %v4134, 4294901760
    %4136 = vmatpush1.msra.mxu0 %v4135
    %v4137 = vand.u32 %v3149, 4294901760
    %v4138 = vsub.f32 %v3149, %v4137
    %v4139 = vand.u32 %v4138, 4294901760
    %4140 = vmatprep.subr.mxu0 %v4139
    %v4141 = vand.u32 %v3146, 4294901760
    %v4142 = vsub.f32 %v3146, %v4141
    %v4143 = vand.u32 %v4142, 4294901760
    %4144 = vmatpush1.msra.mxu0 %v4143
    %4145 = vmatprep.subr.mxu0 0.0
    %4146 = vmatpush1.msra.mxu0 0.0
    %4147 = vmatprep.subr.mxu0 0.0
    %4148 = vmatpush1.msra.mxu0 0.0
    %4149 = vmatprep.subr.mxu0 0.0
    %4150 = vmatpush1.msra.mxu0 0.0
    %4151 = vmatprep.subr.mxu0 0.0
    %4152 = vmatpush1.msra.mxu0 0.0
    %4153 = vmatprep.subr.mxu0 0.0
    %4154 = vmatpush1.msra.mxu0 0.0
    %4155 = vmatprep.subr.mxu0 0.0
    %4156 = vmatpush1.msra.mxu0 0.0
    %4157 = vmatprep.subr.mxu0 0.0
    %4158 = vmatpush1.msra.mxu0 0.0
    %4159 = vmatprep.subr.mxu0 0.0
    %4160 = vmatpush1.msra.mxu0 0.0
    %4161 = vmatprep.subr.mxu0 0.0
    %4162 = vmatpush1.msra.mxu0 0.0
    %4163 = vmatprep.subr.mxu0 0.0
    %4164 = vmatpush1.msra.mxu0 0.0
    %4165 = vmatprep.subr.mxu0 0.0
    %4166 = vmatpush1.msra.mxu0 0.0
    %4167 = vmatprep.subr.mxu0 0.0
    %4168 = vmatpush1.msra.mxu0 0.0
    %4169 = vmatprep.subr.mxu0 0.0
    %4170 = vmatpush1.msra.mxu0 0.0
    %4171 = vmatprep.subr.mxu0 0.0
    %4172 = vmatpush1.msra.mxu0 0.0
    %4173 = vmatprep.subr.mxu0 0.0
    %4174 = vmatpush1.msra.mxu0 0.0
    %4175 = vmatprep.subr.mxu0 0.0
    %4176 = vmatpush1.msra.mxu0 0.0
    %4177 = vmatprep.subr.mxu0 0.0
    %4178 = vmatpush1.msra.mxu0 0.0
    %4179 = vmatprep.subr.mxu0 0.0
    %4180 = vmatpush1.msra.mxu0 0.0
    %4181 = vmatprep.subr.mxu0 0.0
    %4182 = vmatpush1.msra.mxu0 0.0
    %4183 = vmatprep.subr.mxu0 0.0
    %4184 = vmatpush1.msra.mxu0 0.0
    %4185 = vmatprep.subr.mxu0 0.0
    %4186 = vmatpush1.msra.mxu0 0.0
    %4187 = vmatprep.subr.mxu0 0.0
    %4188 = vmatpush1.msra.mxu0 0.0
    %4189 = vmatprep.subr.mxu0 0.0
    %4190 = vmatpush1.msra.mxu0 0.0
    %4191 = vmatprep.subr.mxu0 0.0
    %4192 = vmatpush1.msra.mxu0 0.0
    %4193 = vmatprep.subr.mxu0 0.0
    %4194 = vmatpush1.msra.mxu0 0.0
    %4195 = vmatprep.subr.mxu0 0.0
    %4196 = vmatpush1.msra.mxu0 0.0
    %4197 = vmatprep.subr.mxu0 0.0
    %4198 = vmatpush1.msra.mxu0 0.0
    %4199 = vmatprep.mubr.f32.mxu0 0.0
    %v4200 = vand.u32 %v3137, 4294901760
    %4201 = vmatmul.mubr.f32.gmra.mrb[0].mxu0 %v4200
    %v4202 = vpop.f32.mrb[0].mxu0
    %v4203 = vadd.f32 %v4101, %v4202
    %v4204 = vpop.f32.mrb[0].mxu0
    %v4205 = vadd.f32 %v4103, %v4204
    %4206 = vdwg.mxu0
    %v4207 = vand.u32 %v3114, 4294901760
    %4208 = vmatprep.subr.mxu0 %v4207
    %v4209 = vand.u32 %v3113, 4294901760
    %4210 = vmatpush1.msra.mxu0 %v4209
    %v4211 = vand.u32 %v3118, 4294901760
    %4212 = vmatprep.subr.mxu0 %v4211
    %v4213 = vand.u32 %v3117, 4294901760
    %4214 = vmatpush1.msra.mxu0 %v4213
    %v4215 = vand.u32 %v3122, 4294901760
    %4216 = vmatprep.subr.mxu0 %v4215
    %v4217 = vand.u32 %v3121, 4294901760
    %4218 = vmatpush1.msra.mxu0 %v4217
    %v4219 = vand.u32 %v3126, 4294901760
    %4220 = vmatprep.subr.mxu0 %v4219
    %v4221 = vand.u32 %v3125, 4294901760
    %4222 = vmatpush1.msra.mxu0 %v4221
    %v4223 = vand.u32 %v3149, 4294901760
    %4224 = vmatprep.subr.mxu0 %v4223
    %v4225 = vand.u32 %v3146, 4294901760
    %4226 = vmatpush1.msra.mxu0 %v4225
    %4227 = vmatprep.subr.mxu0 0.0
    %4228 = vmatpush1.msra.mxu0 0.0
    %4229 = vmatprep.subr.mxu0 0.0
    %4230 = vmatpush1.msra.mxu0 0.0
    %4231 = vmatprep.subr.mxu0 0.0
    %4232 = vmatpush1.msra.mxu0 0.0
    %4233 = vmatprep.subr.mxu0 0.0
    %4234 = vmatpush1.msra.mxu0 0.0
    %4235 = vmatprep.subr.mxu0 0.0
    %4236 = vmatpush1.msra.mxu0 0.0
    %4237 = vmatprep.subr.mxu0 0.0
    %4238 = vmatpush1.msra.mxu0 0.0
    %4239 = vmatprep.subr.mxu0 0.0
    %4240 = vmatpush1.msra.mxu0 0.0
    %4241 = vmatprep.subr.mxu0 0.0
    %4242 = vmatpush1.msra.mxu0 0.0
    %4243 = vmatprep.subr.mxu0 0.0
    %4244 = vmatpush1.msra.mxu0 0.0
    %4245 = vmatprep.subr.mxu0 0.0
    %4246 = vmatpush1.msra.mxu0 0.0
    %4247 = vmatprep.subr.mxu0 0.0
    %4248 = vmatpush1.msra.mxu0 0.0
    %4249 = vmatprep.subr.mxu0 0.0
    %4250 = vmatpush1.msra.mxu0 0.0
    %4251 = vmatprep.subr.mxu0 0.0
    %4252 = vmatpush1.msra.mxu0 0.0
    %4253 = vmatprep.subr.mxu0 0.0
    %4254 = vmatpush1.msra.mxu0 0.0
    %4255 = vmatprep.subr.mxu0 0.0
    %4256 = vmatpush1.msra.mxu0 0.0
    %4257 = vmatprep.subr.mxu0 0.0
    %4258 = vmatpush1.msra.mxu0 0.0
    %4259 = vmatprep.subr.mxu0 0.0
    %4260 = vmatpush1.msra.mxu0 0.0
    %4261 = vmatprep.subr.mxu0 0.0
    %4262 = vmatpush1.msra.mxu0 0.0
    %4263 = vmatprep.subr.mxu0 0.0
    %4264 = vmatpush1.msra.mxu0 0.0
    %4265 = vmatprep.subr.mxu0 0.0
    %4266 = vmatpush1.msra.mxu0 0.0
    %4267 = vmatprep.subr.mxu0 0.0
    %4268 = vmatpush1.msra.mxu0 0.0
    %4269 = vmatprep.subr.mxu0 0.0
    %4270 = vmatpush1.msra.mxu0 0.0
    %4271 = vmatprep.subr.mxu0 0.0
    %4272 = vmatpush1.msra.mxu0 0.0
    %4273 = vmatprep.subr.mxu0 0.0
    %4274 = vmatpush1.msra.mxu0 0.0
    %4275 = vmatprep.subr.mxu0 0.0
    %4276 = vmatpush1.msra.mxu0 0.0
    %4277 = vmatprep.subr.mxu0 0.0
    %4278 = vmatpush1.msra.mxu0 0.0
    %4279 = vmatprep.subr.mxu0 0.0
    %4280 = vmatpush1.msra.mxu0 0.0
    %4281 = vmatprep.mubr.f32.mxu0 0.0
    %v4282 = vand.u32 %v3137, 4294901760
    %4283 = vmatmul.mubr.f32.gmra.mrb[0].mxu0 %v4282
    %v4284 = vpop.f32.mrb[0].mxu0
    %v4285 = vadd.f32 %v4203, %v4284
    %v4286 = vpop.f32.mrb[0].mxu0
    %v4287 = vadd.f32 %v4205, %v4286
    %4288 = vdwg.mxu0
    %v4289 = vmax.f32 %v3716, 0.0
    %v4290 = vmax.f32 %v3718, 0.0
    %v4291 = vmax.f32 %v4285, 0.0
    %v4292 = vmax.f32 %v4287, 0.0
    %v4297 = vcombine.low %v4289, %v4290
    %v4298 = vcombine.low %v4291, %v4292
    %s4301 = scalar_lea.vmem [#allocation7], 32
    %4302 = vst [vmem:[%s4301] sm:$0xff] %v4297
    %4303 = vst [vmem:[%s4301 + $0x8] sm:$0xff] %v4298
    %4304 = vrot.lane.b32.xlu0 %v4289, 17
    %v4305 = vpop.permute.xlu0 %4304
    %4306 = vrot.lane.b32.xlu0 %v4290, 17
    %v4307 = vpop.permute.xlu0 %4306
    %4308 = vrot.lane.b32.xlu0 %v4291, 17
    %v4309 = vpop.permute.xlu0 %4308
    %4310 = vrot.lane.b32.xlu0 %v4292, 17
    %v4311 = vpop.permute.xlu0 %4310
    %v4312 = vsel %vm70, %v4309, %v4311
    %v4313 = vsel %vm70, %v4307, %v4309
    %v4314 = vsel %vm70, %v4305, %v4307
    %v4315 = vsel %vm70, %v4311, %v4305
    %v4316 = vmul.f32 %v4315, %v78
    %v4317 = vmul.f32 %v4314, %v82
    %v4318 = vmul.f32 %v4313, %v86
    %v4319 = vmul.f32 %v4312, %v90
    %4320 = vrot.lane.b32.xlu0 %v4289, 16
    %v4321 = vpop.permute.xlu0 %4320
    %4322 = vrot.lane.b32.xlu0 %v4290, 16
    %v4323 = vpop.permute.xlu0 %4322
    %4324 = vrot.lane.b32.xlu0 %v4291, 16
    %v4325 = vpop.permute.xlu0 %4324
    %4326 = vrot.lane.b32.xlu0 %v4292, 16
    %v4327 = vpop.permute.xlu0 %4326
    %v4328 = vsel %vm103, %v4325, %v4327
    %v4329 = vsel %vm103, %v4323, %v4325
    %v4330 = vsel %vm103, %v4321, %v4323
    %v4331 = vsel %vm103, %v4327, %v4321
    %v4332 = vmul.f32 %v4331, %v111
    %v4333 = vmul.f32 %v4330, %v115
    %v4334 = vmul.f32 %v4329, %v119
    %v4335 = vmul.f32 %v4328, %v123
    %4336 = vrot.lane.b32.xlu0 %v4289, 15
    %v4337 = vpop.permute.xlu0 %4336
    %4338 = vrot.lane.b32.xlu0 %v4290, 15
    %v4339 = vpop.permute.xlu0 %4338
    %4340 = vrot.lane.b32.xlu0 %v4291, 15
    %v4341 = vpop.permute.xlu0 %4340
    %4342 = vrot.lane.b32.xlu0 %v4292, 15
    %v4343 = vpop.permute.xlu0 %4342
    %v4344 = vsel %vm136, %v4341, %v4343
    %v4345 = vsel %vm136, %v4339, %v4341
    %v4346 = vsel %vm136, %v4337, %v4339
    %v4347 = vsel %vm136, %v4343, %v4337
    %v4348 = vmul.f32 %v4347, %v144
    %v4349 = vmul.f32 %v4346, %v148
    %v4350 = vmul.f32 %v4345, %v152
    %v4351 = vmul.f32 %v4344, %v156
    %4352 = vrot.lane.b32.xlu0 %v4289, 1
    %v4353 = vpop.permute.xlu0 %4352
    %4354 = vrot.lane.b32.xlu0 %v4290, 1
    %v4355 = vpop.permute.xlu0 %4354
    %4356 = vrot.lane.b32.xlu0 %v4291, 1
    %v4357 = vpop.permute.xlu0 %4356
    %4358 = vrot.lane.b32.xlu0 %v4292, 1
    %v4359 = vpop.permute.xlu0 %4358
    %v4360 = vsel %vm169, %v4357, %v4359
    %v4361 = vsel %vm169, %v4355, %v4357
    %v4362 = vsel %vm169, %v4353, %v4355
    %v4363 = vsel %vm169, %v4359, %v4353
    %v4364 = vmul.f32 %v4363, %v177
    %v4365 = vmul.f32 %v4362, %v181
    %v4366 = vmul.f32 %v4361, %v185
    %v4367 = vmul.f32 %v4360, %v189
    %4368 = vrot.lane.b32.xlu0 %v4289, 127
    %v4369 = vpop.permute.xlu0 %4368
    %4370 = vrot.lane.b32.xlu0 %v4290, 127
    %v4371 = vpop.permute.xlu0 %4370
    %4372 = vrot.lane.b32.xlu0 %v4291, 127
    %v4373 = vpop.permute.xlu0 %4372
    %4374 = vrot.lane.b32.xlu0 %v4292, 127
    %v4375 = vpop.permute.xlu0 %4374
    %v4376 = vsel %vm202, %v4373, %v4375
    %v4377 = vsel %vm202, %v4371, %v4373
    %v4378 = vsel %vm202, %v4369, %v4371
    %v4379 = vsel %vm202, %v4375, %v4369
    %v4380 = vmul.f32 %v4378, %v210
    %v4381 = vmul.f32 %v4377, %v214
    %v4382 = vmul.f32 %v4376, %v218
    %v4383 = vmul.f32 %v4379, %v222
    %4384 = vrot.lane.b32.xlu0 %v4289, 113
    %v4385 = vpop.permute.xlu0 %4384
    %4386 = vrot.lane.b32.xlu0 %v4290, 113
    %v4387 = vpop.permute.xlu0 %4386
    %4388 = vrot.lane.b32.xlu0 %v4291, 113
    %v4389 = vpop.permute.xlu0 %4388
    %4390 = vrot.lane.b32.xlu0 %v4292, 113
    %v4391 = vpop.permute.xlu0 %4390
    %v4392 = vsel %vm235, %v4389, %v4391
    %v4393 = vsel %vm235, %v4387, %v4389
    %v4394 = vsel %vm235, %v4385, %v4387
    %v4395 = vsel %vm235, %v4391, %v4385
    %v4396 = vmul.f32 %v4394, %v243
    %v4397 = vmul.f32 %v4393, %v247
    %v4398 = vmul.f32 %v4392, %v251
    %v4399 = vmul.f32 %v4395, %v255
    %4400 = vrot.lane.b32.xlu0 %v4289, 112
    %v4401 = vpop.permute.xlu0 %4400
    %4402 = vrot.lane.b32.xlu0 %v4290, 112
    %v4403 = vpop.permute.xlu0 %4402
    %4404 = vrot.lane.b32.xlu0 %v4291, 112
    %v4405 = vpop.permute.xlu0 %4404
    %4406 = vrot.lane.b32.xlu0 %v4292, 112
    %v4407 = vpop.permute.xlu0 %4406
    %v4408 = vsel %vm268, %v4405, %v4407
    %v4409 = vsel %vm268, %v4403, %v4405
    %v4410 = vsel %vm268, %v4401, %v4403
    %v4411 = vsel %vm268, %v4407, %v4401
    %v4412 = vmul.f32 %v4410, %v276
    %v4413 = vmul.f32 %v4409, %v280
    %v4414 = vmul.f32 %v4408, %v284
    %v4415 = vmul.f32 %v4411, %v288
    %4416 = vrot.lane.b32.xlu0 %v4289, 111
    %v4417 = vpop.permute.xlu0 %4416
    %4418 = vrot.lane.b32.xlu0 %v4290, 111
    %v4419 = vpop.permute.xlu0 %4418
    %4420 = vrot.lane.b32.xlu0 %v4291, 111
    %v4421 = vpop.permute.xlu0 %4420
    %4422 = vrot.lane.b32.xlu0 %v4292, 111
    %v4423 = vpop.permute.xlu0 %4422
    %v4424 = vsel %vm301, %v4421, %v4423
    %v4425 = vsel %vm301, %v4419, %v4421
    %v4426 = vsel %vm301, %v4417, %v4419
    %v4427 = vsel %vm301, %v4423, %v4417
    %v4428 = vmul.f32 %v4426, %v309
    %v4429 = vmul.f32 %v4425, %v313
    %v4430 = vmul.f32 %v4424, %v317
    %v4431 = vmul.f32 %v4427, %v321
    %v4436 = vrot.slane %v4332, 4
    %v4437 = vrot.slane %v4333, 4
    %v4438 = vrot.slane %v4334, 4
    %v4439 = vrot.slane %v4335, 4
    %v4448 = vrot.slane %v4364, 4
    %v4449 = vrot.slane %v4365, 4
    %v4450 = vrot.slane %v4366, 4
    %v4451 = vrot.slane %v4367, 4
    %v4460 = vrot.slane %v4380, 4
    %v4461 = vrot.slane %v4381, 4
    %v4462 = vrot.slane %v4382, 4
    %v4463 = vrot.slane %v4383, 4
    %v4472 = vrot.slane %v4412, 4
    %v4473 = vrot.slane %v4413, 4
    %v4474 = vrot.slane %v4414, 4
    %v4475 = vrot.slane %v4415, 4
    %v4480 = vsel %vm374, %v4316, %v4436
    %v4481 = vsel %vm374, %v4317, %v4437
    %v4482 = vsel %vm374, %v4318, %v4438
    %v4483 = vsel %vm374, %v4319, %v4439
    %v4484 = vsel %vm374, %v4348, %v4448
    %v4485 = vsel %vm374, %v4349, %v4449
    %v4486 = vsel %vm374, %v4350, %v4450
    %v4487 = vsel %vm374, %v4351, %v4451
    %v4488 = vsel %vm374, %v4289, %v4460
    %v4489 = vsel %vm374, %v4290, %v4461
    %v4490 = vsel %vm374, %v4291, %v4462
    %v4491 = vsel %vm374, %v4292, %v4463
    %v4492 = vsel %vm374, %v4396, %v4472
    %v4493 = vsel %vm374, %v4397, %v4473
    %v4494 = vsel %vm374, %v4398, %v4474
    %v4495 = vsel %vm374, %v4399, %v4475
    %s4496 = scalar_lea.vmem %s1, 12
    %v4497 = vld [vmem:[%s4496] sm:$0xf]
    %s4498 = scalar_lea.vmem %s2, 12
    %v4499 = vld [vmem:[%s4498] sm:$0xf]
    %4501 = vset.pattern.permute.xlu0 0
    %4502 = vperm.xlu0 %4501, %v4499
    %v4503 = vpop.permute.xlu0 %4502
    %v4506 = vsel %vm398, %v4497, 0
    %v4509 = vsel %vm374, %v4428, 0
    %v4512 = vsel %vm374, %v4429, 0
    %v4515 = vsel %vm374, %v4430, 0
    %v4518 = vsel %vm374, %v4431, 0
    %v4520 = vand.u32 %v4481, 4294901760
    %4521 = vmatprep.subr.mxu0 %v4520
    %v4522 = vand.u32 %v4480, 4294901760
    %4523 = vmatpush1.msra.mxu0 %v4522
    %v4524 = vand.u32 %v4485, 4294901760
    %4525 = vmatprep.subr.mxu0 %v4524
    %v4526 = vand.u32 %v4484, 4294901760
    %4527 = vmatpush1.msra.mxu0 %v4526
    %v4528 = vand.u32 %v4489, 4294901760
    %4529 = vmatprep.subr.mxu0 %v4528
    %v4530 = vand.u32 %v4488, 4294901760
    %4531 = vmatpush1.msra.mxu0 %v4530
    %v4532 = vand.u32 %v4493, 4294901760
    %4533 = vmatprep.subr.mxu0 %v4532
    %v4534 = vand.u32 %v4492, 4294901760
    %4535 = vmatpush1.msra.mxu0 %v4534
    %v4536 = vand.u32 %v4512, 4294901760
    %4537 = vmatprep.subr.mxu0 %v4536
    %v4538 = vand.u32 %v4509, 4294901760
    %4539 = vmatpush1.msra.mxu0 %v4538
    %4540 = vmatprep.subr.mxu0 0.0
    %4541 = vmatpush1.msra.mxu0 0.0
    %4542 = vmatprep.subr.mxu0 0.0
    %4543 = vmatpush1.msra.mxu0 0.0
    %4544 = vmatprep.subr.mxu0 0.0
    %4545 = vmatpush1.msra.mxu0 0.0
    %4546 = vmatprep.subr.mxu0 0.0
    %4547 = vmatpush1.msra.mxu0 0.0
    %4548 = vmatprep.subr.mxu0 0.0
    %4549 = vmatpush1.msra.mxu0 0.0
    %4550 = vmatprep.subr.mxu0 0.0
    %4551 = vmatpush1.msra.mxu0 0.0
    %4552 = vmatprep.subr.mxu0 0.0
    %4553 = vmatpush1.msra.mxu0 0.0
    %4554 = vmatprep.subr.mxu0 0.0
    %4555 = vmatpush1.msra.mxu0 0.0
    %4556 = vmatprep.subr.mxu0 0.0
    %4557 = vmatpush1.msra.mxu0 0.0
    %4558 = vmatprep.subr.mxu0 0.0
    %4559 = vmatpush1.msra.mxu0 0.0
    %4560 = vmatprep.subr.mxu0 0.0
    %4561 = vmatpush1.msra.mxu0 0.0
    %4562 = vmatprep.subr.mxu0 0.0
    %4563 = vmatpush1.msra.mxu0 0.0
    %4564 = vmatprep.subr.mxu0 0.0
    %4565 = vmatpush1.msra.mxu0 0.0
    %4566 = vmatprep.subr.mxu0 0.0
    %4567 = vmatpush1.msra.mxu0 0.0
    %4568 = vmatprep.subr.mxu0 0.0
    %4569 = vmatpush1.msra.mxu0 0.0
    %4570 = vmatprep.subr.mxu0 0.0
    %4571 = vmatpush1.msra.mxu0 0.0
    %4572 = vmatprep.subr.mxu0 0.0
    %4573 = vmatpush1.msra.mxu0 0.0
    %4574 = vmatprep.subr.mxu0 0.0
    %4575 = vmatpush1.msra.mxu0 0.0
    %4576 = vmatprep.subr.mxu0 0.0
    %4577 = vmatpush1.msra.mxu0 0.0
    %4578 = vmatprep.subr.mxu0 0.0
    %4579 = vmatpush1.msra.mxu0 0.0
    %4580 = vmatprep.subr.mxu0 0.0
    %4581 = vmatpush1.msra.mxu0 0.0
    %4582 = vmatprep.subr.mxu0 0.0
    %4583 = vmatpush1.msra.mxu0 0.0
    %4584 = vmatprep.subr.mxu0 0.0
    %4585 = vmatpush1.msra.mxu0 0.0
    %4586 = vmatprep.subr.mxu0 0.0
    %4587 = vmatpush1.msra.mxu0 0.0
    %4588 = vmatprep.subr.mxu0 0.0
    %4589 = vmatpush1.msra.mxu0 0.0
    %4590 = vmatprep.subr.mxu0 0.0
    %4591 = vmatpush1.msra.mxu0 0.0
    %4592 = vmatprep.subr.mxu0 0.0
    %4593 = vmatpush1.msra.mxu0 0.0
    %4594 = vmatprep.mubr.f32.mxu0 0.0
    %v4595 = vand.u32 %v4506, 4294901760
    %v4596 = vsub.f32 %v4506, %v4595
    %v4597 = vand.u32 %v4596, 4294901760
    %v4598 = vsub.f32 %v4596, %v4597
    %v4599 = vand.u32 %v4598, 4294901760
    %4600 = vmatmul.mubr.f32.gmra.mrb[0].mxu0 %v4599
    %v4601 = vpop.f32.mrb[0].mxu0
    %v4602 = vadd.f32 %v4503, %v4601
    %v4603 = vpop.f32.mrb[0].mxu0
    %v4604 = vadd.f32 %v4503, %v4603
    %4605 = vdwg.mxu0
    %v4606 = vand.u32 %v4481, 4294901760
    %v4607 = vsub.f32 %v4481, %v4606
    %v4608 = vand.u32 %v4607, 4294901760
    %v4609 = vsub.f32 %v4607, %v4608
    %v4610 = vand.u32 %v4609, 4294901760
    %4611 = vmatprep.subr.mxu0 %v4610
    %v4612 = vand.u32 %v4480, 4294901760
    %v4613 = vsub.f32 %v4480, %v4612
    %v4614 = vand.u32 %v4613, 4294901760
    %v4615 = vsub.f32 %v4613, %v4614
    %v4616 = vand.u32 %v4615, 4294901760
    %4617 = vmatpush1.msra.mxu0 %v4616
    %v4618 = vand.u32 %v4485, 4294901760
    %v4619 = vsub.f32 %v4485, %v4618
    %v4620 = vand.u32 %v4619, 4294901760
    %v4621 = vsub.f32 %v4619, %v4620
    %v4622 = vand.u32 %v4621, 4294901760
    %4623 = vmatprep.subr.mxu0 %v4622
    %v4624 = vand.u32 %v4484, 4294901760
    %v4625 = vsub.f32 %v4484, %v4624
    %v4626 = vand.u32 %v4625, 4294901760
    %v4627 = vsub.f32 %v4625, %v4626
    %v4628 = vand.u32 %v4627, 4294901760
    %4629 = vmatpush1.msra.mxu0 %v4628
    %v4630 = vand.u32 %v4489, 4294901760
    %v4631 = vsub.f32 %v4489, %v4630
    %v4632 = vand.u32 %v4631, 4294901760
    %v4633 = vsub.f32 %v4631, %v4632
    %v4634 = vand.u32 %v4633, 4294901760
    %4635 = vmatprep.subr.mxu0 %v4634
    %v4636 = vand.u32 %v4488, 4294901760
    %v4637 = vsub.f32 %v4488, %v4636
    %v4638 = vand.u32 %v4637, 4294901760
    %v4639 = vsub.f32 %v4637, %v4638
    %v4640 = vand.u32 %v4639, 4294901760
    %4641 = vmatpush1.msra.mxu0 %v4640
    %v4642 = vand.u32 %v4493, 4294901760
    %v4643 = vsub.f32 %v4493, %v4642
    %v4644 = vand.u32 %v4643, 4294901760
    %v4645 = vsub.f32 %v4643, %v4644
    %v4646 = vand.u32 %v4645, 4294901760
    %4647 = vmatprep.subr.mxu0 %v4646
    %v4648 = vand.u32 %v4492, 4294901760
    %v4649 = vsub.f32 %v4492, %v4648
    %v4650 = vand.u32 %v4649, 4294901760
    %v4651 = vsub.f32 %v4649, %v4650
    %v4652 = vand.u32 %v4651, 4294901760
    %4653 = vmatpush1.msra.mxu0 %v4652
    %v4654 = vand.u32 %v4512, 4294901760
    %v4655 = vsub.f32 %v4512, %v4654
    %v4656 = vand.u32 %v4655, 4294901760
    %v4657 = vsub.f32 %v4655, %v4656
    %v4658 = vand.u32 %v4657, 4294901760
    %4659 = vmatprep.subr.mxu0 %v4658
    %v4660 = vand.u32 %v4509, 4294901760
    %v4661 = vsub.f32 %v4509, %v4660
    %v4662 = vand.u32 %v4661, 4294901760
    %v4663 = vsub.f32 %v4661, %v4662
    %v4664 = vand.u32 %v4663, 4294901760
    %4665 = vmatpush1.msra.mxu0 %v4664
    %4666 = vmatprep.subr.mxu0 0.0
    %4667 = vmatpush1.msra.mxu0 0.0
    %4668 = vmatprep.subr.mxu0 0.0
    %4669 = vmatpush1.msra.mxu0 0.0
    %4670 = vmatprep.subr.mxu0 0.0
    %4671 = vmatpush1.msra.mxu0 0.0
    %4672 = vmatprep.subr.mxu0 0.0
    %4673 = vmatpush1.msra.mxu0 0.0
    %4674 = vmatprep.subr.mxu0 0.0
    %4675 = vmatpush1.msra.mxu0 0.0
    %4676 = vmatprep.subr.mxu0 0.0
    %4677 = vmatpush1.msra.mxu0 0.0
    %4678 = vmatprep.subr.mxu0 0.0
    %4679 = vmatpush1.msra.mxu0 0.0
    %4680 = vmatprep.subr.mxu0 0.0
    %4681 = vmatpush1.msra.mxu0 0.0
    %4682 = vmatprep.subr.mxu0 0.0
    %4683 = vmatpush1.msra.mxu0 0.0
    %4684 = vmatprep.subr.mxu0 0.0
    %4685 = vmatpush1.msra.mxu0 0.0
    %4686 = vmatprep.subr.mxu0 0.0
    %4687 = vmatpush1.msra.mxu0 0.0
    %4688 = vmatprep.subr.mxu0 0.0
    %4689 = vmatpush1.msra.mxu0 0.0
    %4690 = vmatprep.subr.mxu0 0.0
    %4691 = vmatpush1.msra.mxu0 0.0
    %4692 = vmatprep.subr.mxu0 0.0
    %4693 = vmatpush1.msra.mxu0 0.0
    %4694 = vmatprep.subr.mxu0 0.0
    %4695 = vmatpush1.msra.mxu0 0.0
    %4696 = vmatprep.subr.mxu0 0.0
    %4697 = vmatpush1.msra.mxu0 0.0
    %4698 = vmatprep.subr.mxu0 0.0
    %4699 = vmatpush1.msra.mxu0 0.0
    %4700 = vmatprep.subr.mxu0 0.0
    %4701 = vmatpush1.msra.mxu0 0.0
    %4702 = vmatprep.subr.mxu0 0.0
    %4703 = vmatpush1.msra.mxu0 0.0
    %4704 = vmatprep.subr.mxu0 0.0
    %4705 = vmatpush1.msra.mxu0 0.0
    %4706 = vmatprep.subr.mxu0 0.0
    %4707 = vmatpush1.msra.mxu0 0.0
    %4708 = vmatprep.subr.mxu0 0.0
    %4709 = vmatpush1.msra.mxu0 0.0
    %4710 = vmatprep.subr.mxu0 0.0
    %4711 = vmatpush1.msra.mxu0 0.0
    %4712 = vmatprep.subr.mxu0 0.0
    %4713 = vmatpush1.msra.mxu0 0.0
    %4714 = vmatprep.subr.mxu0 0.0
    %4715 = vmatpush1.msra.mxu0 0.0
    %4716 = vmatprep.subr.mxu0 0.0
    %4717 = vmatpush1.msra.mxu0 0.0
    %4718 = vmatprep.subr.mxu0 0.0
    %4719 = vmatpush1.msra.mxu0 0.0
    %4720 = vmatprep.mubr.f32.mxu0 0.0
    %v4721 = vand.u32 %v4506, 4294901760
    %4722 = vmatmul.mubr.f32.gmra.mrb[0].mxu0 %v4721
    %v4723 = vpop.f32.mrb[0].mxu0
    %v4724 = vadd.f32 %v4602, %v4723
    %v4725 = vpop.f32.mrb[0].mxu0
    %v4726 = vadd.f32 %v4604, %v4725
    %4727 = vdwg.mxu0
    %v4728 = vand.u32 %v4481, 4294901760
    %v4729 = vsub.f32 %v4481, %v4728
    %4730 = vmatprep.subr.mxu0 %v4729
    %v4731 = vand.u32 %v4480, 4294901760
    %v4732 = vsub.f32 %v4480, %v4731
    %4733 = vmatpush1.msra.mxu0 %v4732
    %v4734 = vand.u32 %v4485, 4294901760
    %v4735 = vsub.f32 %v4485, %v4734
    %4736 = vmatprep.subr.mxu0 %v4735
    %v4737 = vand.u32 %v4484, 4294901760
    %v4738 = vsub.f32 %v4484, %v4737
    %4739 = vmatpush1.msra.mxu0 %v4738
    %v4740 = vand.u32 %v4489, 4294901760
    %v4741 = vsub.f32 %v4489, %v4740
    %4742 = vmatprep.subr.mxu0 %v4741
    %v4743 = vand.u32 %v4488, 4294901760
    %v4744 = vsub.f32 %v4488, %v4743
    %4745 = vmatpush1.msra.mxu0 %v4744
    %v4746 = vand.u32 %v4493, 4294901760
    %v4747 = vsub.f32 %v4493, %v4746
    %4748 = vmatprep.subr.mxu0 %v4747
    %v4749 = vand.u32 %v4492, 4294901760
    %v4750 = vsub.f32 %v4492, %v4749
    %4751 = vmatpush1.msra.mxu0 %v4750
    %v4752 = vand.u32 %v4512, 4294901760
    %v4753 = vsub.f32 %v4512, %v4752
    %4754 = vmatprep.subr.mxu0 %v4753
    %v4755 = vand.u32 %v4509, 4294901760
    %v4756 = vsub.f32 %v4509, %v4755
    %4757 = vmatpush1.msra.mxu0 %v4756
    %4758 = vmatprep.subr.mxu0 0.0
    %4759 = vmatpush1.msra.mxu0 0.0
    %4760 = vmatprep.subr.mxu0 0.0
    %4761 = vmatpush1.msra.mxu0 0.0
    %4762 = vmatprep.subr.mxu0 0.0
    %4763 = vmatpush1.msra.mxu0 0.0
    %4764 = vmatprep.subr.mxu0 0.0
    %4765 = vmatpush1.msra.mxu0 0.0
    %4766 = vmatprep.subr.mxu0 0.0
    %4767 = vmatpush1.msra.mxu0 0.0
    %4768 = vmatprep.subr.mxu0 0.0
    %4769 = vmatpush1.msra.mxu0 0.0
    %4770 = vmatprep.subr.mxu0 0.0
    %4771 = vmatpush1.msra.mxu0 0.0
    %4772 = vmatprep.subr.mxu0 0.0
    %4773 = vmatpush1.msra.mxu0 0.0
    %4774 = vmatprep.subr.mxu0 0.0
    %4775 = vmatpush1.msra.mxu0 0.0
    %4776 = vmatprep.subr.mxu0 0.0
    %4777 = vmatpush1.msra.mxu0 0.0
    %4778 = vmatprep.subr.mxu0 0.0
    %4779 = vmatpush1.msra.mxu0 0.0
    %4780 = vmatprep.subr.mxu0 0.0
    %4781 = vmatpush1.msra.mxu0 0.0
    %4782 = vmatprep.subr.mxu0 0.0
    %4783 = vmatpush1.msra.mxu0 0.0
    %4784 = vmatprep.subr.mxu0 0.0
    %4785 = vmatpush1.msra.mxu0 0.0
    %4786 = vmatprep.subr.mxu0 0.0
    %4787 = vmatpush1.msra.mxu0 0.0
    %4788 = vmatprep.subr.mxu0 0.0
    %4789 = vmatpush1.msra.mxu0 0.0
    %4790 = vmatprep.subr.mxu0 0.0
    %4791 = vmatpush1.msra.mxu0 0.0
    %4792 = vmatprep.subr.mxu0 0.0
    %4793 = vmatpush1.msra.mxu0 0.0
    %4794 = vmatprep.subr.mxu0 0.0
    %4795 = vmatpush1.msra.mxu0 0.0
    %4796 = vmatprep.subr.mxu0 0.0
    %4797 = vmatpush1.msra.mxu0 0.0
    %4798 = vmatprep.subr.mxu0 0.0
    %4799 = vmatpush1.msra.mxu0 0.0
    %4800 = vmatprep.subr.mxu0 0.0
    %4801 = vmatpush1.msra.mxu0 0.0
    %4802 = vmatprep.subr.mxu0 0.0
    %4803 = vmatpush1.msra.mxu0 0.0
    %4804 = vmatprep.subr.mxu0 0.0
    %4805 = vmatpush1.msra.mxu0 0.0
    %4806 = vmatprep.subr.mxu0 0.0
    %4807 = vmatpush1.msra.mxu0 0.0
    %4808 = vmatprep.subr.mxu0 0.0
    %4809 = vmatpush1.msra.mxu0 0.0
    %4810 = vmatprep.subr.mxu0 0.0
    %4811 = vmatpush1.msra.mxu0 0.0
    %4812 = vmatprep.mubr.f32.mxu0 0.0
    %v4813 = vand.u32 %v4506, 4294901760
    %v4814 = vsub.f32 %v4506, %v4813
    %4815 = vmatmul.mubr.f32.gmra.mrb[0].mxu0 %v4814
    %v4816 = vpop.f32.mrb[0].mxu0
    %v4817 = vadd.f32 %v4724, %v4816
    %v4818 = vpop.f32.mrb[0].mxu0
    %v4819 = vadd.f32 %v4726, %v4818
    %4820 = vdwg.mxu0
    %v4821 = vand.u32 %v4481, 4294901760
    %4822 = vmatprep.subr.mxu0 %v4821
    %v4823 = vand.u32 %v4480, 4294901760
    %4824 = vmatpush1.msra.mxu0 %v4823
    %v4825 = vand.u32 %v4485, 4294901760
    %4826 = vmatprep.subr.mxu0 %v4825
    %v4827 = vand.u32 %v4484, 4294901760
    %4828 = vmatpush1.msra.mxu0 %v4827
    %v4829 = vand.u32 %v4489, 4294901760
    %4830 = vmatprep.subr.mxu0 %v4829
    %v4831 = vand.u32 %v4488, 4294901760
    %4832 = vmatpush1.msra.mxu0 %v4831
    %v4833 = vand.u32 %v4493, 4294901760
    %4834 = vmatprep.subr.mxu0 %v4833
    %v4835 = vand.u32 %v4492, 4294901760
    %4836 = vmatpush1.msra.mxu0 %v4835
    %v4837 = vand.u32 %v4512, 4294901760
    %4838 = vmatprep.subr.mxu0 %v4837
    %v4839 = vand.u32 %v4509, 4294901760
    %4840 = vmatpush1.msra.mxu0 %v4839
    %4841 = vmatprep.subr.mxu0 0.0
    %4842 = vmatpush1.msra.mxu0 0.0
    %4843 = vmatprep.subr.mxu0 0.0
    %4844 = vmatpush1.msra.mxu0 0.0
    %4845 = vmatprep.subr.mxu0 0.0
    %4846 = vmatpush1.msra.mxu0 0.0
    %4847 = vmatprep.subr.mxu0 0.0
    %4848 = vmatpush1.msra.mxu0 0.0
    %4849 = vmatprep.subr.mxu0 0.0
    %4850 = vmatpush1.msra.mxu0 0.0
    %4851 = vmatprep.subr.mxu0 0.0
    %4852 = vmatpush1.msra.mxu0 0.0
    %4853 = vmatprep.subr.mxu0 0.0
    %4854 = vmatpush1.msra.mxu0 0.0
    %4855 = vmatprep.subr.mxu0 0.0
    %4856 = vmatpush1.msra.mxu0 0.0
    %4857 = vmatprep.subr.mxu0 0.0
    %4858 = vmatpush1.msra.mxu0 0.0
    %4859 = vmatprep.subr.mxu0 0.0
    %4860 = vmatpush1.msra.mxu0 0.0
    %4861 = vmatprep.subr.mxu0 0.0
    %4862 = vmatpush1.msra.mxu0 0.0
    %4863 = vmatprep.subr.mxu0 0.0
    %4864 = vmatpush1.msra.mxu0 0.0
    %4865 = vmatprep.subr.mxu0 0.0
    %4866 = vmatpush1.msra.mxu0 0.0
    %4867 = vmatprep.subr.mxu0 0.0
    %4868 = vmatpush1.msra.mxu0 0.0
    %4869 = vmatprep.subr.mxu0 0.0
    %4870 = vmatpush1.msra.mxu0 0.0
    %4871 = vmatprep.subr.mxu0 0.0
    %4872 = vmatpush1.msra.mxu0 0.0
    %4873 = vmatprep.subr.mxu0 0.0
    %4874 = vmatpush1.msra.mxu0 0.0
    %4875 = vmatprep.subr.mxu0 0.0
    %4876 = vmatpush1.msra.mxu0 0.0
    %4877 = vmatprep.subr.mxu0 0.0
    %4878 = vmatpush1.msra.mxu0 0.0
    %4879 = vmatprep.subr.mxu0 0.0
    %4880 = vmatpush1.msra.mxu0 0.0
    %4881 = vmatprep.subr.mxu0 0.0
    %4882 = vmatpush1.msra.mxu0 0.0
    %4883 = vmatprep.subr.mxu0 0.0
    %4884 = vmatpush1.msra.mxu0 0.0
    %4885 = vmatprep.subr.mxu0 0.0
    %4886 = vmatpush1.msra.mxu0 0.0
    %4887 = vmatprep.subr.mxu0 0.0
    %4888 = vmatpush1.msra.mxu0 0.0
    %4889 = vmatprep.subr.mxu0 0.0
    %4890 = vmatpush1.msra.mxu0 0.0
    %4891 = vmatprep.subr.mxu0 0.0
    %4892 = vmatpush1.msra.mxu0 0.0
    %4893 = vmatprep.subr.mxu0 0.0
    %4894 = vmatpush1.msra.mxu0 0.0
    %4895 = vmatprep.mubr.f32.mxu0 0.0
    %v4896 = vand.u32 %v4506, 4294901760
    %v4897 = vsub.f32 %v4506, %v4896
    %v4898 = vand.u32 %v4897, 4294901760
    %4899 = vmatmul.mubr.f32.gmra.mrb[0].mxu0 %v4898
    %v4900 = vpop.f32.mrb[0].mxu0
    %v4901 = vadd.f32 %v4817, %v4900
    %v4902 = vpop.f32.mrb[0].mxu0
    %v4903 = vadd.f32 %v4819, %v4902
    %4904 = vdwg.mxu0
    %v4905 = vand.u32 %v4481, 4294901760
    %v4906 = vsub.f32 %v4481, %v4905
    %v4907 = vand.u32 %v4906, 4294901760
    %4908 = vmatprep.subr.mxu0 %v4907
    %v4909 = vand.u32 %v4480, 4294901760
    %v4910 = vsub.f32 %v4480, %v4909
    %v4911 = vand.u32 %v4910, 4294901760
    %4912 = vmatpush1.msra.mxu0 %v4911
    %v4913 = vand.u32 %v4485, 4294901760
    %v4914 = vsub.f32 %v4485, %v4913
    %v4915 = vand.u32 %v4914, 4294901760
    %4916 = vmatprep.subr.mxu0 %v4915
    %v4917 = vand.u32 %v4484, 4294901760
    %v4918 = vsub.f32 %v4484, %v4917
    %v4919 = vand.u32 %v4918, 4294901760
    %4920 = vmatpush1.msra.mxu0 %v4919
    %v4921 = vand.u32 %v4489, 4294901760
    %v4922 = vsub.f32 %v4489, %v4921
    %v4923 = vand.u32 %v4922, 4294901760
    %4924 = vmatprep.subr.mxu0 %v4923
    %v4925 = vand.u32 %v4488, 4294901760
    %v4926 = vsub.f32 %v4488, %v4925
    %v4927 = vand.u32 %v4926, 4294901760
    %4928 = vmatpush1.msra.mxu0 %v4927
    %v4929 = vand.u32 %v4493, 4294901760
    %v4930 = vsub.f32 %v4493, %v4929
    %v4931 = vand.u32 %v4930, 4294901760
    %4932 = vmatprep.subr.mxu0 %v4931
    %v4933 = vand.u32 %v4492, 4294901760
    %v4934 = vsub.f32 %v4492, %v4933
    %v4935 = vand.u32 %v4934, 4294901760
    %4936 = vmatpush1.msra.mxu0 %v4935
    %v4937 = vand.u32 %v4512, 4294901760
    %v4938 = vsub.f32 %v4512, %v4937
    %v4939 = vand.u32 %v4938, 4294901760
    %4940 = vmatprep.subr.mxu0 %v4939
    %v4941 = vand.u32 %v4509, 4294901760
    %v4942 = vsub.f32 %v4509, %v4941
    %v4943 = vand.u32 %v4942, 4294901760
    %4944 = vmatpush1.msra.mxu0 %v4943
    %4945 = vmatprep.subr.mxu0 0.0
    %4946 = vmatpush1.msra.mxu0 0.0
    %4947 = vmatprep.subr.mxu0 0.0
    %4948 = vmatpush1.msra.mxu0 0.0
    %4949 = vmatprep.subr.mxu0 0.0
    %4950 = vmatpush1.msra.mxu0 0.0
    %4951 = vmatprep.subr.mxu0 0.0
    %4952 = vmatpush1.msra.mxu0 0.0
    %4953 = vmatprep.subr.mxu0 0.0
    %4954 = vmatpush1.msra.mxu0 0.0
    %4955 = vmatprep.subr.mxu0 0.0
    %4956 = vmatpush1.msra.mxu0 0.0
    %4957 = vmatprep.subr.mxu0 0.0
    %4958 = vmatpush1.msra.mxu0 0.0
    %4959 = vmatprep.subr.mxu0 0.0
    %4960 = vmatpush1.msra.mxu0 0.0
    %4961 = vmatprep.subr.mxu0 0.0
    %4962 = vmatpush1.msra.mxu0 0.0
    %4963 = vmatprep.subr.mxu0 0.0
    %4964 = vmatpush1.msra.mxu0 0.0
    %4965 = vmatprep.subr.mxu0 0.0
    %4966 = vmatpush1.msra.mxu0 0.0
    %4967 = vmatprep.subr.mxu0 0.0
    %4968 = vmatpush1.msra.mxu0 0.0
    %4969 = vmatprep.subr.mxu0 0.0
    %4970 = vmatpush1.msra.mxu0 0.0
    %4971 = vmatprep.subr.mxu0 0.0
    %4972 = vmatpush1.msra.mxu0 0.0
    %4973 = vmatprep.subr.mxu0 0.0
    %4974 = vmatpush1.msra.mxu0 0.0
    %4975 = vmatprep.subr.mxu0 0.0
    %4976 = vmatpush1.msra.mxu0 0.0
    %4977 = vmatprep.subr.mxu0 0.0
    %4978 = vmatpush1.msra.mxu0 0.0
    %4979 = vmatprep.subr.mxu0 0.0
    %4980 = vmatpush1.msra.mxu0 0.0
    %4981 = vmatprep.subr.mxu0 0.0
    %4982 = vmatpush1.msra.mxu0 0.0
    %4983 = vmatprep.subr.mxu0 0.0
    %4984 = vmatpush1.msra.mxu0 0.0
    %4985 = vmatprep.subr.mxu0 0.0
    %4986 = vmatpush1.msra.mxu0 0.0
    %4987 = vmatprep.subr.mxu0 0.0
    %4988 = vmatpush1.msra.mxu0 0.0
    %4989 = vmatprep.subr.mxu0 0.0
    %4990 = vmatpush1.msra.mxu0 0.0
    %4991 = vmatprep.subr.mxu0 0.0
    %4992 = vmatpush1.msra.mxu0 0.0
    %4993 = vmatprep.subr.mxu0 0.0
    %4994 = vmatpush1.msra.mxu0 0.0
    %4995 = vmatprep.subr.mxu0 0.0
    %4996 = vmatpush1.msra.mxu0 0.0
    %4997 = vmatprep.subr.mxu0 0.0
    %4998 = vmatpush1.msra.mxu0 0.0
    %4999 = vmatprep.mubr.f32.mxu0 0.0
    %v5000 = vand.u32 %v4506, 4294901760
    %5001 = vmatmul.mubr.f32.gmra.mrb[0].mxu0 %v5000
    %v5002 = vpop.f32.mrb[0].mxu0
    %v5003 = vadd.f32 %v4901, %v5002
    %v5004 = vpop.f32.mrb[0].mxu0
    %v5005 = vadd.f32 %v4903, %v5004
    %5006 = vdwg.mxu0
    %v5007 = vand.u32 %v4481, 4294901760
    %5008 = vmatprep.subr.mxu0 %v5007
    %v5009 = vand.u32 %v4480, 4294901760
    %5010 = vmatpush1.msra.mxu0 %v5009
    %v5011 = vand.u32 %v4485, 4294901760
    %5012 = vmatprep.subr.mxu0 %v5011
    %v5013 = vand.u32 %v4484, 4294901760
    %5014 = vmatpush1.msra.mxu0 %v5013
    %v5015 = vand.u32 %v4489, 4294901760
    %5016 = vmatprep.subr.mxu0 %v5015
    %v5017 = vand.u32 %v4488, 4294901760
    %5018 = vmatpush1.msra.mxu0 %v5017
    %v5019 = vand.u32 %v4493, 4294901760
    %5020 = vmatprep.subr.mxu0 %v5019
    %v5021 = vand.u32 %v4492, 4294901760
    %5022 = vmatpush1.msra.mxu0 %v5021
    %v5023 = vand.u32 %v4512, 4294901760
    %5024 = vmatprep.subr.mxu0 %v5023
    %v5025 = vand.u32 %v4509, 4294901760
    %5026 = vmatpush1.msra.mxu0 %v5025
    %5027 = vmatprep.subr.mxu0 0.0
    %5028 = vmatpush1.msra.mxu0 0.0
    %5029 = vmatprep.subr.mxu0 0.0
    %5030 = vmatpush1.msra.mxu0 0.0
    %5031 = vmatprep.subr.mxu0 0.0
    %5032 = vmatpush1.msra.mxu0 0.0
    %5033 = vmatprep.subr.mxu0 0.0
    %5034 = vmatpush1.msra.mxu0 0.0
    %5035 = vmatprep.subr.mxu0 0.0
    %5036 = vmatpush1.msra.mxu0 0.0
    %5037 = vmatprep.subr.mxu0 0.0
    %5038 = vmatpush1.msra.mxu0 0.0
    %5039 = vmatprep.subr.mxu0 0.0
    %5040 = vmatpush1.msra.mxu0 0.0
    %5041 = vmatprep.subr.mxu0 0.0
    %5042 = vmatpush1.msra.mxu0 0.0
    %5043 = vmatprep.subr.mxu0 0.0
    %5044 = vmatpush1.msra.mxu0 0.0
    %5045 = vmatprep.subr.mxu0 0.0
    %5046 = vmatpush1.msra.mxu0 0.0
    %5047 = vmatprep.subr.mxu0 0.0
    %5048 = vmatpush1.msra.mxu0 0.0
    %5049 = vmatprep.subr.mxu0 0.0
    %5050 = vmatpush1.msra.mxu0 0.0
    %5051 = vmatprep.subr.mxu0 0.0
    %5052 = vmatpush1.msra.mxu0 0.0
    %5053 = vmatprep.subr.mxu0 0.0
    %5054 = vmatpush1.msra.mxu0 0.0
    %5055 = vmatprep.subr.mxu0 0.0
    %5056 = vmatpush1.msra.mxu0 0.0
    %5057 = vmatprep.subr.mxu0 0.0
    %5058 = vmatpush1.msra.mxu0 0.0
    %5059 = vmatprep.subr.mxu0 0.0
    %5060 = vmatpush1.msra.mxu0 0.0
    %5061 = vmatprep.subr.mxu0 0.0
    %5062 = vmatpush1.msra.mxu0 0.0
    %5063 = vmatprep.subr.mxu0 0.0
    %5064 = vmatpush1.msra.mxu0 0.0
    %5065 = vmatprep.subr.mxu0 0.0
    %5066 = vmatpush1.msra.mxu0 0.0
    %5067 = vmatprep.subr.mxu0 0.0
    %5068 = vmatpush1.msra.mxu0 0.0
    %5069 = vmatprep.subr.mxu0 0.0
    %5070 = vmatpush1.msra.mxu0 0.0
    %5071 = vmatprep.subr.mxu0 0.0
    %5072 = vmatpush1.msra.mxu0 0.0
    %5073 = vmatprep.subr.mxu0 0.0
    %5074 = vmatpush1.msra.mxu0 0.0
    %5075 = vmatprep.subr.mxu0 0.0
    %5076 = vmatpush1.msra.mxu0 0.0
    %5077 = vmatprep.subr.mxu0 0.0
    %5078 = vmatpush1.msra.mxu0 0.0
    %5079 = vmatprep.subr.mxu0 0.0
    %5080 = vmatpush1.msra.mxu0 0.0
    %5081 = vmatprep.mubr.f32.mxu0 0.0
    %v5082 = vand.u32 %v4506, 4294901760
    %5083 = vmatmul.mubr.f32.gmra.mrb[0].mxu0 %v5082
    %v5084 = vpop.f32.mrb[0].mxu0
    %v5085 = vadd.f32 %v5003, %v5084
    %v5086 = vpop.f32.mrb[0].mxu0
    %v5087 = vadd.f32 %v5005, %v5086
    %5088 = vdwg.mxu0
    %v5089 = vand.u32 %v4483, 4294901760
    %5090 = vmatprep.subr.mxu0 %v5089
    %v5091 = vand.u32 %v4482, 4294901760
    %5092 = vmatpush1.msra.mxu0 %v5091
    %v5093 = vand.u32 %v4487, 4294901760
    %5094 = vmatprep.subr.mxu0 %v5093
    %v5095 = vand.u32 %v4486, 4294901760
    %5096 = vmatpush1.msra.mxu0 %v5095
    %v5097 = vand.u32 %v4491, 4294901760
    %5098 = vmatprep.subr.mxu0 %v5097
    %v5099 = vand.u32 %v4490, 4294901760
    %5100 = vmatpush1.msra.mxu0 %v5099
    %v5101 = vand.u32 %v4495, 4294901760
    %5102 = vmatprep.subr.mxu0 %v5101
    %v5103 = vand.u32 %v4494, 4294901760
    %5104 = vmatpush1.msra.mxu0 %v5103
    %v5105 = vand.u32 %v4518, 4294901760
    %5106 = vmatprep.subr.mxu0 %v5105
    %v5107 = vand.u32 %v4515, 4294901760
    %5108 = vmatpush1.msra.mxu0 %v5107
    %5109 = vmatprep.subr.mxu0 0.0
    %5110 = vmatpush1.msra.mxu0 0.0
    %5111 = vmatprep.subr.mxu0 0.0
    %5112 = vmatpush1.msra.mxu0 0.0
    %5113 = vmatprep.subr.mxu0 0.0
    %5114 = vmatpush1.msra.mxu0 0.0
    %5115 = vmatprep.subr.mxu0 0.0
    %5116 = vmatpush1.msra.mxu0 0.0
    %5117 = vmatprep.subr.mxu0 0.0
    %5118 = vmatpush1.msra.mxu0 0.0
    %5119 = vmatprep.subr.mxu0 0.0
    %5120 = vmatpush1.msra.mxu0 0.0
    %5121 = vmatprep.subr.mxu0 0.0
    %5122 = vmatpush1.msra.mxu0 0.0
    %5123 = vmatprep.subr.mxu0 0.0
    %5124 = vmatpush1.msra.mxu0 0.0
    %5125 = vmatprep.subr.mxu0 0.0
    %5126 = vmatpush1.msra.mxu0 0.0
    %5127 = vmatprep.subr.mxu0 0.0
    %5128 = vmatpush1.msra.mxu0 0.0
    %5129 = vmatprep.subr.mxu0 0.0
    %5130 = vmatpush1.msra.mxu0 0.0
    %5131 = vmatprep.subr.mxu0 0.0
    %5132 = vmatpush1.msra.mxu0 0.0
    %5133 = vmatprep.subr.mxu0 0.0
    %5134 = vmatpush1.msra.mxu0 0.0
    %5135 = vmatprep.subr.mxu0 0.0
    %5136 = vmatpush1.msra.mxu0 0.0
    %5137 = vmatprep.subr.mxu0 0.0
    %5138 = vmatpush1.msra.mxu0 0.0
    %5139 = vmatprep.subr.mxu0 0.0
    %5140 = vmatpush1.msra.mxu0 0.0
    %5141 = vmatprep.subr.mxu0 0.0
    %5142 = vmatpush1.msra.mxu0 0.0
    %5143 = vmatprep.subr.mxu0 0.0
    %5144 = vmatpush1.msra.mxu0 0.0
    %5145 = vmatprep.subr.mxu0 0.0
    %5146 = vmatpush1.msra.mxu0 0.0
    %5147 = vmatprep.subr.mxu0 0.0
    %5148 = vmatpush1.msra.mxu0 0.0
    %5149 = vmatprep.subr.mxu0 0.0
    %5150 = vmatpush1.msra.mxu0 0.0
    %5151 = vmatprep.subr.mxu0 0.0
    %5152 = vmatpush1.msra.mxu0 0.0
    %5153 = vmatprep.subr.mxu0 0.0
    %5154 = vmatpush1.msra.mxu0 0.0
    %5155 = vmatprep.subr.mxu0 0.0
    %5156 = vmatpush1.msra.mxu0 0.0
    %5157 = vmatprep.subr.mxu0 0.0
    %5158 = vmatpush1.msra.mxu0 0.0
    %5159 = vmatprep.subr.mxu0 0.0
    %5160 = vmatpush1.msra.mxu0 0.0
    %5161 = vmatprep.subr.mxu0 0.0
    %5162 = vmatpush1.msra.mxu0 0.0
    %5163 = vmatprep.mubr.f32.mxu0 0.0
    %v5164 = vand.u32 %v4506, 4294901760
    %v5165 = vsub.f32 %v4506, %v5164
    %v5166 = vand.u32 %v5165, 4294901760
    %v5167 = vsub.f32 %v5165, %v5166
    %v5168 = vand.u32 %v5167, 4294901760
    %5169 = vmatmul.mubr.f32.gmra.mrb[0].mxu0 %v5168
    %v5170 = vpop.f32.mrb[0].mxu0
    %v5171 = vadd.f32 %v4503, %v5170
    %v5172 = vpop.f32.mrb[0].mxu0
    %v5173 = vadd.f32 %v4503, %v5172
    %5174 = vdwg.mxu0
    %v5175 = vand.u32 %v4483, 4294901760
    %v5176 = vsub.f32 %v4483, %v5175
    %v5177 = vand.u32 %v5176, 4294901760
    %v5178 = vsub.f32 %v5176, %v5177
    %v5179 = vand.u32 %v5178, 4294901760
    %5180 = vmatprep.subr.mxu0 %v5179
    %v5181 = vand.u32 %v4482, 4294901760
    %v5182 = vsub.f32 %v4482, %v5181
    %v5183 = vand.u32 %v5182, 4294901760
    %v5184 = vsub.f32 %v5182, %v5183
    %v5185 = vand.u32 %v5184, 4294901760
    %5186 = vmatpush1.msra.mxu0 %v5185
    %v5187 = vand.u32 %v4487, 4294901760
    %v5188 = vsub.f32 %v4487, %v5187
    %v5189 = vand.u32 %v5188, 4294901760
    %v5190 = vsub.f32 %v5188, %v5189
    %v5191 = vand.u32 %v5190, 4294901760
    %5192 = vmatprep.subr.mxu0 %v5191
    %v5193 = vand.u32 %v4486, 4294901760
    %v5194 = vsub.f32 %v4486, %v5193
    %v5195 = vand.u32 %v5194, 4294901760
    %v5196 = vsub.f32 %v5194, %v5195
    %v5197 = vand.u32 %v5196, 4294901760
    %5198 = vmatpush1.msra.mxu0 %v5197
    %v5199 = vand.u32 %v4491, 4294901760
    %v5200 = vsub.f32 %v4491, %v5199
    %v5201 = vand.u32 %v5200, 4294901760
    %v5202 = vsub.f32 %v5200, %v5201
    %v5203 = vand.u32 %v5202, 4294901760
    %5204 = vmatprep.subr.mxu0 %v5203
    %v5205 = vand.u32 %v4490, 4294901760
    %v5206 = vsub.f32 %v4490, %v5205
    %v5207 = vand.u32 %v5206, 4294901760
    %v5208 = vsub.f32 %v5206, %v5207
    %v5209 = vand.u32 %v5208, 4294901760
    %5210 = vmatpush1.msra.mxu0 %v5209
    %v5211 = vand.u32 %v4495, 4294901760
    %v5212 = vsub.f32 %v4495, %v5211
    %v5213 = vand.u32 %v5212, 4294901760
    %v5214 = vsub.f32 %v5212, %v5213
    %v5215 = vand.u32 %v5214, 4294901760
    %5216 = vmatprep.subr.mxu0 %v5215
    %v5217 = vand.u32 %v4494, 4294901760
    %v5218 = vsub.f32 %v4494, %v5217
    %v5219 = vand.u32 %v5218, 4294901760
    %v5220 = vsub.f32 %v5218, %v5219
    %v5221 = vand.u32 %v5220, 4294901760
    %5222 = vmatpush1.msra.mxu0 %v5221
    %v5223 = vand.u32 %v4518, 4294901760
    %v5224 = vsub.f32 %v4518, %v5223
    %v5225 = vand.u32 %v5224, 4294901760
    %v5226 = vsub.f32 %v5224, %v5225
    %v5227 = vand.u32 %v5226, 4294901760
    %5228 = vmatprep.subr.mxu0 %v5227
    %v5229 = vand.u32 %v4515, 4294901760
    %v5230 = vsub.f32 %v4515, %v5229
    %v5231 = vand.u32 %v5230, 4294901760
    %v5232 = vsub.f32 %v5230, %v5231
    %v5233 = vand.u32 %v5232, 4294901760
    %5234 = vmatpush1.msra.mxu0 %v5233
    %5235 = vmatprep.subr.mxu0 0.0
    %5236 = vmatpush1.msra.mxu0 0.0
    %5237 = vmatprep.subr.mxu0 0.0
    %5238 = vmatpush1.msra.mxu0 0.0
    %5239 = vmatprep.subr.mxu0 0.0
    %5240 = vmatpush1.msra.mxu0 0.0
    %5241 = vmatprep.subr.mxu0 0.0
    %5242 = vmatpush1.msra.mxu0 0.0
    %5243 = vmatprep.subr.mxu0 0.0
    %5244 = vmatpush1.msra.mxu0 0.0
    %5245 = vmatprep.subr.mxu0 0.0
    %5246 = vmatpush1.msra.mxu0 0.0
    %5247 = vmatprep.subr.mxu0 0.0
    %5248 = vmatpush1.msra.mxu0 0.0
    %5249 = vmatprep.subr.mxu0 0.0
    %5250 = vmatpush1.msra.mxu0 0.0
    %5251 = vmatprep.subr.mxu0 0.0
    %5252 = vmatpush1.msra.mxu0 0.0
    %5253 = vmatprep.subr.mxu0 0.0
    %5254 = vmatpush1.msra.mxu0 0.0
    %5255 = vmatprep.subr.mxu0 0.0
    %5256 = vmatpush1.msra.mxu0 0.0
    %5257 = vmatprep.subr.mxu0 0.0
    %5258 = vmatpush1.msra.mxu0 0.0
    %5259 = vmatprep.subr.mxu0 0.0
    %5260 = vmatpush1.msra.mxu0 0.0
    %5261 = vmatprep.subr.mxu0 0.0
    %5262 = vmatpush1.msra.mxu0 0.0
    %5263 = vmatprep.subr.mxu0 0.0
    %5264 = vmatpush1.msra.mxu0 0.0
    %5265 = vmatprep.subr.mxu0 0.0
    %5266 = vmatpush1.msra.mxu0 0.0
    %5267 = vmatprep.subr.mxu0 0.0
    %5268 = vmatpush1.msra.mxu0 0.0
    %5269 = vmatprep.subr.mxu0 0.0
    %5270 = vmatpush1.msra.mxu0 0.0
    %5271 = vmatprep.subr.mxu0 0.0
    %5272 = vmatpush1.msra.mxu0 0.0
    %5273 = vmatprep.subr.mxu0 0.0
    %5274 = vmatpush1.msra.mxu0 0.0
    %5275 = vmatprep.subr.mxu0 0.0
    %5276 = vmatpush1.msra.mxu0 0.0
    %5277 = vmatprep.subr.mxu0 0.0
    %5278 = vmatpush1.msra.mxu0 0.0
    %5279 = vmatprep.subr.mxu0 0.0
    %5280 = vmatpush1.msra.mxu0 0.0
    %5281 = vmatprep.subr.mxu0 0.0
    %5282 = vmatpush1.msra.mxu0 0.0
    %5283 = vmatprep.subr.mxu0 0.0
    %5284 = vmatpush1.msra.mxu0 0.0
    %5285 = vmatprep.subr.mxu0 0.0
    %5286 = vmatpush1.msra.mxu0 0.0
    %5287 = vmatprep.subr.mxu0 0.0
    %5288 = vmatpush1.msra.mxu0 0.0
    %5289 = vmatprep.mubr.f32.mxu0 0.0
    %v5290 = vand.u32 %v4506, 4294901760
    %5291 = vmatmul.mubr.f32.gmra.mrb[0].mxu0 %v5290
    %v5292 = vpop.f32.mrb[0].mxu0
    %v5293 = vadd.f32 %v5171, %v5292
    %v5294 = vpop.f32.mrb[0].mxu0
    %v5295 = vadd.f32 %v5173, %v5294
    %5296 = vdwg.mxu0
    %v5297 = vand.u32 %v4483, 4294901760
    %v5298 = vsub.f32 %v4483, %v5297
    %5299 = vmatprep.subr.mxu0 %v5298
    %v5300 = vand.u32 %v4482, 4294901760
    %v5301 = vsub.f32 %v4482, %v5300
    %5302 = vmatpush1.msra.mxu0 %v5301
    %v5303 = vand.u32 %v4487, 4294901760
    %v5304 = vsub.f32 %v4487, %v5303
    %5305 = vmatprep.subr.mxu0 %v5304
    %v5306 = vand.u32 %v4486, 4294901760
    %v5307 = vsub.f32 %v4486, %v5306
    %5308 = vmatpush1.msra.mxu0 %v5307
    %v5309 = vand.u32 %v4491, 4294901760
    %v5310 = vsub.f32 %v4491, %v5309
    %5311 = vmatprep.subr.mxu0 %v5310
    %v5312 = vand.u32 %v4490, 4294901760
    %v5313 = vsub.f32 %v4490, %v5312
    %5314 = vmatpush1.msra.mxu0 %v5313
    %v5315 = vand.u32 %v4495, 4294901760
    %v5316 = vsub.f32 %v4495, %v5315
    %5317 = vmatprep.subr.mxu0 %v5316
    %v5318 = vand.u32 %v4494, 4294901760
    %v5319 = vsub.f32 %v4494, %v5318
    %5320 = vmatpush1.msra.mxu0 %v5319
    %v5321 = vand.u32 %v4518, 4294901760
    %v5322 = vsub.f32 %v4518, %v5321
    %5323 = vmatprep.subr.mxu0 %v5322
    %v5324 = vand.u32 %v4515, 4294901760
    %v5325 = vsub.f32 %v4515, %v5324
    %5326 = vmatpush1.msra.mxu0 %v5325
    %5327 = vmatprep.subr.mxu0 0.0
    %5328 = vmatpush1.msra.mxu0 0.0
    %5329 = vmatprep.subr.mxu0 0.0
    %5330 = vmatpush1.msra.mxu0 0.0
    %5331 = vmatprep.subr.mxu0 0.0
    %5332 = vmatpush1.msra.mxu0 0.0
    %5333 = vmatprep.subr.mxu0 0.0
    %5334 = vmatpush1.msra.mxu0 0.0
    %5335 = vmatprep.subr.mxu0 0.0
    %5336 = vmatpush1.msra.mxu0 0.0
    %5337 = vmatprep.subr.mxu0 0.0
    %5338 = vmatpush1.msra.mxu0 0.0
    %5339 = vmatprep.subr.mxu0 0.0
    %5340 = vmatpush1.msra.mxu0 0.0
    %5341 = vmatprep.subr.mxu0 0.0
    %5342 = vmatpush1.msra.mxu0 0.0
    %5343 = vmatprep.subr.mxu0 0.0
    %5344 = vmatpush1.msra.mxu0 0.0
    %5345 = vmatprep.subr.mxu0 0.0
    %5346 = vmatpush1.msra.mxu0 0.0
    %5347 = vmatprep.subr.mxu0 0.0
    %5348 = vmatpush1.msra.mxu0 0.0
    %5349 = vmatprep.subr.mxu0 0.0
    %5350 = vmatpush1.msra.mxu0 0.0
    %5351 = vmatprep.subr.mxu0 0.0
    %5352 = vmatpush1.msra.mxu0 0.0
    %5353 = vmatprep.subr.mxu0 0.0
    %5354 = vmatpush1.msra.mxu0 0.0
    %5355 = vmatprep.subr.mxu0 0.0
    %5356 = vmatpush1.msra.mxu0 0.0
    %5357 = vmatprep.subr.mxu0 0.0
    %5358 = vmatpush1.msra.mxu0 0.0
    %5359 = vmatprep.subr.mxu0 0.0
    %5360 = vmatpush1.msra.mxu0 0.0
    %5361 = vmatprep.subr.mxu0 0.0
    %5362 = vmatpush1.msra.mxu0 0.0
    %5363 = vmatprep.subr.mxu0 0.0
    %5364 = vmatpush1.msra.mxu0 0.0
    %5365 = vmatprep.subr.mxu0 0.0
    %5366 = vmatpush1.msra.mxu0 0.0
    %5367 = vmatprep.subr.mxu0 0.0
    %5368 = vmatpush1.msra.mxu0 0.0
    %5369 = vmatprep.subr.mxu0 0.0
    %5370 = vmatpush1.msra.mxu0 0.0
    %5371 = vmatprep.subr.mxu0 0.0
    %5372 = vmatpush1.msra.mxu0 0.0
    %5373 = vmatprep.subr.mxu0 0.0
    %5374 = vmatpush1.msra.mxu0 0.0
    %5375 = vmatprep.subr.mxu0 0.0
    %5376 = vmatpush1.msra.mxu0 0.0
    %5377 = vmatprep.subr.mxu0 0.0
    %5378 = vmatpush1.msra.mxu0 0.0
    %5379 = vmatprep.subr.mxu0 0.0
    %5380 = vmatpush1.msra.mxu0 0.0
    %5381 = vmatprep.mubr.f32.mxu0 0.0
    %v5382 = vand.u32 %v4506, 4294901760
    %v5383 = vsub.f32 %v4506, %v5382
    %5384 = vmatmul.mubr.f32.gmra.mrb[0].mxu0 %v5383
    %v5385 = vpop.f32.mrb[0].mxu0
    %v5386 = vadd.f32 %v5293, %v5385
    %v5387 = vpop.f32.mrb[0].mxu0
    %v5388 = vadd.f32 %v5295, %v5387
    %5389 = vdwg.mxu0
    %v5390 = vand.u32 %v4483, 4294901760
    %5391 = vmatprep.subr.mxu0 %v5390
    %v5392 = vand.u32 %v4482, 4294901760
    %5393 = vmatpush1.msra.mxu0 %v5392
    %v5394 = vand.u32 %v4487, 4294901760
    %5395 = vmatprep.subr.mxu0 %v5394
    %v5396 = vand.u32 %v4486, 4294901760
    %5397 = vmatpush1.msra.mxu0 %v5396
    %v5398 = vand.u32 %v4491, 4294901760
    %5399 = vmatprep.subr.mxu0 %v5398
    %v5400 = vand.u32 %v4490, 4294901760
    %5401 = vmatpush1.msra.mxu0 %v5400
    %v5402 = vand.u32 %v4495, 4294901760
    %5403 = vmatprep.subr.mxu0 %v5402
    %v5404 = vand.u32 %v4494, 4294901760
    %5405 = vmatpush1.msra.mxu0 %v5404
    %v5406 = vand.u32 %v4518, 4294901760
    %5407 = vmatprep.subr.mxu0 %v5406
    %v5408 = vand.u32 %v4515, 4294901760
    %5409 = vmatpush1.msra.mxu0 %v5408
    %5410 = vmatprep.subr.mxu0 0.0
    %5411 = vmatpush1.msra.mxu0 0.0
    %5412 = vmatprep.subr.mxu0 0.0
    %5413 = vmatpush1.msra.mxu0 0.0
    %5414 = vmatprep.subr.mxu0 0.0
    %5415 = vmatpush1.msra.mxu0 0.0
    %5416 = vmatprep.subr.mxu0 0.0
    %5417 = vmatpush1.msra.mxu0 0.0
    %5418 = vmatprep.subr.mxu0 0.0
    %5419 = vmatpush1.msra.mxu0 0.0
    %5420 = vmatprep.subr.mxu0 0.0
    %5421 = vmatpush1.msra.mxu0 0.0
    %5422 = vmatprep.subr.mxu0 0.0
    %5423 = vmatpush1.msra.mxu0 0.0
    %5424 = vmatprep.subr.mxu0 0.0
    %5425 = vmatpush1.msra.mxu0 0.0
    %5426 = vmatprep.subr.mxu0 0.0
    %5427 = vmatpush1.msra.mxu0 0.0
    %5428 = vmatprep.subr.mxu0 0.0
    %5429 = vmatpush1.msra.mxu0 0.0
    %5430 = vmatprep.subr.mxu0 0.0
    %5431 = vmatpush1.msra.mxu0 0.0
    %5432 = vmatprep.subr.mxu0 0.0
    %5433 = vmatpush1.msra.mxu0 0.0
    %5434 = vmatprep.subr.mxu0 0.0
    %5435 = vmatpush1.msra.mxu0 0.0
    %5436 = vmatprep.subr.mxu0 0.0
    %5437 = vmatpush1.msra.mxu0 0.0
    %5438 = vmatprep.subr.mxu0 0.0
    %5439 = vmatpush1.msra.mxu0 0.0
    %5440 = vmatprep.subr.mxu0 0.0
    %5441 = vmatpush1.msra.mxu0 0.0
    %5442 = vmatprep.subr.mxu0 0.0
    %5443 = vmatpush1.msra.mxu0 0.0
    %5444 = vmatprep.subr.mxu0 0.0
    %5445 = vmatpush1.msra.mxu0 0.0
    %5446 = vmatprep.subr.mxu0 0.0
    %5447 = vmatpush1.msra.mxu0 0.0
    %5448 = vmatprep.subr.mxu0 0.0
    %5449 = vmatpush1.msra.mxu0 0.0
    %5450 = vmatprep.subr.mxu0 0.0
    %5451 = vmatpush1.msra.mxu0 0.0
    %5452 = vmatprep.subr.mxu0 0.0
    %5453 = vmatpush1.msra.mxu0 0.0
    %5454 = vmatprep.subr.mxu0 0.0
    %5455 = vmatpush1.msra.mxu0 0.0
    %5456 = vmatprep.subr.mxu0 0.0
    %5457 = vmatpush1.msra.mxu0 0.0
    %5458 = vmatprep.subr.mxu0 0.0
    %5459 = vmatpush1.msra.mxu0 0.0
    %5460 = vmatprep.subr.mxu0 0.0
    %5461 = vmatpush1.msra.mxu0 0.0
    %5462 = vmatprep.subr.mxu0 0.0
    %5463 = vmatpush1.msra.mxu0 0.0
    %5464 = vmatprep.mubr.f32.mxu0 0.0
    %v5465 = vand.u32 %v4506, 4294901760
    %v5466 = vsub.f32 %v4506, %v5465
    %v5467 = vand.u32 %v5466, 4294901760
    %5468 = vmatmul.mubr.f32.gmra.mrb[0].mxu0 %v5467
    %v5469 = vpop.f32.mrb[0].mxu0
    %v5470 = vadd.f32 %v5386, %v5469
    %v5471 = vpop.f32.mrb[0].mxu0
    %v5472 = vadd.f32 %v5388, %v5471
    %5473 = vdwg.mxu0
    %v5474 = vand.u32 %v4483, 4294901760
    %v5475 = vsub.f32 %v4483, %v5474
    %v5476 = vand.u32 %v5475, 4294901760
    %5477 = vmatprep.subr.mxu0 %v5476
    %v5478 = vand.u32 %v4482, 4294901760
    %v5479 = vsub.f32 %v4482, %v5478
    %v5480 = vand.u32 %v5479, 4294901760
    %5481 = vmatpush1.msra.mxu0 %v5480
    %v5482 = vand.u32 %v4487, 4294901760
    %v5483 = vsub.f32 %v4487, %v5482
    %v5484 = vand.u32 %v5483, 4294901760
    %5485 = vmatprep.subr.mxu0 %v5484
    %v5486 = vand.u32 %v4486, 4294901760
    %v5487 = vsub.f32 %v4486, %v5486
    %v5488 = vand.u32 %v5487, 4294901760
    %5489 = vmatpush1.msra.mxu0 %v5488
    %v5490 = vand.u32 %v4491, 4294901760
    %v5491 = vsub.f32 %v4491, %v5490
    %v5492 = vand.u32 %v5491, 4294901760
    %5493 = vmatprep.subr.mxu0 %v5492
    %v5494 = vand.u32 %v4490, 4294901760
    %v5495 = vsub.f32 %v4490, %v5494
    %v5496 = vand.u32 %v5495, 4294901760
    %5497 = vmatpush1.msra.mxu0 %v5496
    %v5498 = vand.u32 %v4495, 4294901760
    %v5499 = vsub.f32 %v4495, %v5498
    %v5500 = vand.u32 %v5499, 4294901760
    %5501 = vmatprep.subr.mxu0 %v5500
    %v5502 = vand.u32 %v4494, 4294901760
    %v5503 = vsub.f32 %v4494, %v5502
    %v5504 = vand.u32 %v5503, 4294901760
    %5505 = vmatpush1.msra.mxu0 %v5504
    %v5506 = vand.u32 %v4518, 4294901760
    %v5507 = vsub.f32 %v4518, %v5506
    %v5508 = vand.u32 %v5507, 4294901760
    %5509 = vmatprep.subr.mxu0 %v5508
    %v5510 = vand.u32 %v4515, 4294901760
    %v5511 = vsub.f32 %v4515, %v5510
    %v5512 = vand.u32 %v5511, 4294901760
    %5513 = vmatpush1.msra.mxu0 %v5512
    %5514 = vmatprep.subr.mxu0 0.0
    %5515 = vmatpush1.msra.mxu0 0.0
    %5516 = vmatprep.subr.mxu0 0.0
    %5517 = vmatpush1.msra.mxu0 0.0
    %5518 = vmatprep.subr.mxu0 0.0
    %5519 = vmatpush1.msra.mxu0 0.0
    %5520 = vmatprep.subr.mxu0 0.0
    %5521 = vmatpush1.msra.mxu0 0.0
    %5522 = vmatprep.subr.mxu0 0.0
    %5523 = vmatpush1.msra.mxu0 0.0
    %5524 = vmatprep.subr.mxu0 0.0
    %5525 = vmatpush1.msra.mxu0 0.0
    %5526 = vmatprep.subr.mxu0 0.0
    %5527 = vmatpush1.msra.mxu0 0.0
    %5528 = vmatprep.subr.mxu0 0.0
    %5529 = vmatpush1.msra.mxu0 0.0
    %5530 = vmatprep.subr.mxu0 0.0
    %5531 = vmatpush1.msra.mxu0 0.0
    %5532 = vmatprep.subr.mxu0 0.0
    %5533 = vmatpush1.msra.mxu0 0.0
    %5534 = vmatprep.subr.mxu0 0.0
    %5535 = vmatpush1.msra.mxu0 0.0
    %5536 = vmatprep.subr.mxu0 0.0
    %5537 = vmatpush1.msra.mxu0 0.0
    %5538 = vmatprep.subr.mxu0 0.0
    %5539 = vmatpush1.msra.mxu0 0.0
    %5540 = vmatprep.subr.mxu0 0.0
    %5541 = vmatpush1.msra.mxu0 0.0
    %5542 = vmatprep.subr.mxu0 0.0
    %5543 = vmatpush1.msra.mxu0 0.0
    %5544 = vmatprep.subr.mxu0 0.0
    %5545 = vmatpush1.msra.mxu0 0.0
    %5546 = vmatprep.subr.mxu0 0.0
    %5547 = vmatpush1.msra.mxu0 0.0
    %5548 = vmatprep.subr.mxu0 0.0
    %5549 = vmatpush1.msra.mxu0 0.0
    %5550 = vmatprep.subr.mxu0 0.0
    %5551 = vmatpush1.msra.mxu0 0.0
    %5552 = vmatprep.subr.mxu0 0.0
    %5553 = vmatpush1.msra.mxu0 0.0
    %5554 = vmatprep.subr.mxu0 0.0
    %5555 = vmatpush1.msra.mxu0 0.0
    %5556 = vmatprep.subr.mxu0 0.0
    %5557 = vmatpush1.msra.mxu0 0.0
    %5558 = vmatprep.subr.mxu0 0.0
    %5559 = vmatpush1.msra.mxu0 0.0
    %5560 = vmatprep.subr.mxu0 0.0
    %5561 = vmatpush1.msra.mxu0 0.0
    %5562 = vmatprep.subr.mxu0 0.0
    %5563 = vmatpush1.msra.mxu0 0.0
    %5564 = vmatprep.subr.mxu0 0.0
    %5565 = vmatpush1.msra.mxu0 0.0
    %5566 = vmatprep.subr.mxu0 0.0
    %5567 = vmatpush1.msra.mxu0 0.0
    %5568 = vmatprep.mubr.f32.mxu0 0.0
    %v5569 = vand.u32 %v4506, 4294901760
    %5570 = vmatmul.mubr.f32.gmra.mrb[0].mxu0 %v5569
    %v5571 = vpop.f32.mrb[0].mxu0
    %v5572 = vadd.f32 %v5470, %v5571
    %v5573 = vpop.f32.mrb[0].mxu0
    %v5574 = vadd.f32 %v5472, %v5573
    %5575 = vdwg.mxu0
    %v5576 = vand.u32 %v4483, 4294901760
    %5577 = vmatprep.subr.mxu0 %v5576
    %v5578 = vand.u32 %v4482, 4294901760
    %5579 = vmatpush1.msra.mxu0 %v5578
    %v5580 = vand.u32 %v4487, 4294901760
    %5581 = vmatprep.subr.mxu0 %v5580
    %v5582 = vand.u32 %v4486, 4294901760
    %5583 = vmatpush1.msra.mxu0 %v5582
    %v5584 = vand.u32 %v4491, 4294901760
    %5585 = vmatprep.subr.mxu0 %v5584
    %v5586 = vand.u32 %v4490, 4294901760
    %5587 = vmatpush1.msra.mxu0 %v5586
    %v5588 = vand.u32 %v4495, 4294901760
    %5589 = vmatprep.subr.mxu0 %v5588
    %v5590 = vand.u32 %v4494, 4294901760
    %5591 = vmatpush1.msra.mxu0 %v5590
    %v5592 = vand.u32 %v4518, 4294901760
    %5593 = vmatprep.subr.mxu0 %v5592
    %v5594 = vand.u32 %v4515, 4294901760
    %5595 = vmatpush1.msra.mxu0 %v5594
    %5596 = vmatprep.subr.mxu0 0.0
    %5597 = vmatpush1.msra.mxu0 0.0
    %5598 = vmatprep.subr.mxu0 0.0
    %5599 = vmatpush1.msra.mxu0 0.0
    %5600 = vmatprep.subr.mxu0 0.0
    %5601 = vmatpush1.msra.mxu0 0.0
    %5602 = vmatprep.subr.mxu0 0.0
    %5603 = vmatpush1.msra.mxu0 0.0
    %5604 = vmatprep.subr.mxu0 0.0
    %5605 = vmatpush1.msra.mxu0 0.0
    %5606 = vmatprep.subr.mxu0 0.0
    %5607 = vmatpush1.msra.mxu0 0.0
    %5608 = vmatprep.subr.mxu0 0.0
    %5609 = vmatpush1.msra.mxu0 0.0
    %5610 = vmatprep.subr.mxu0 0.0
    %5611 = vmatpush1.msra.mxu0 0.0
    %5612 = vmatprep.subr.mxu0 0.0
    %5613 = vmatpush1.msra.mxu0 0.0
    %5614 = vmatprep.subr.mxu0 0.0
    %5615 = vmatpush1.msra.mxu0 0.0
    %5616 = vmatprep.subr.mxu0 0.0
    %5617 = vmatpush1.msra.mxu0 0.0
    %5618 = vmatprep.subr.mxu0 0.0
    %5619 = vmatpush1.msra.mxu0 0.0
    %5620 = vmatprep.subr.mxu0 0.0
    %5621 = vmatpush1.msra.mxu0 0.0
    %5622 = vmatprep.subr.mxu0 0.0
    %5623 = vmatpush1.msra.mxu0 0.0
    %5624 = vmatprep.subr.mxu0 0.0
    %5625 = vmatpush1.msra.mxu0 0.0
    %5626 = vmatprep.subr.mxu0 0.0
    %5627 = vmatpush1.msra.mxu0 0.0
    %5628 = vmatprep.subr.mxu0 0.0
    %5629 = vmatpush1.msra.mxu0 0.0
    %5630 = vmatprep.subr.mxu0 0.0
    %5631 = vmatpush1.msra.mxu0 0.0
    %5632 = vmatprep.subr.mxu0 0.0
    %5633 = vmatpush1.msra.mxu0 0.0
    %5634 = vmatprep.subr.mxu0 0.0
    %5635 = vmatpush1.msra.mxu0 0.0
    %5636 = vmatprep.subr.mxu0 0.0
    %5637 = vmatpush1.msra.mxu0 0.0
    %5638 = vmatprep.subr.mxu0 0.0
    %5639 = vmatpush1.msra.mxu0 0.0
    %5640 = vmatprep.subr.mxu0 0.0
    %5641 = vmatpush1.msra.mxu0 0.0
    %5642 = vmatprep.subr.mxu0 0.0
    %5643 = vmatpush1.msra.mxu0 0.0
    %5644 = vmatprep.subr.mxu0 0.0
    %5645 = vmatpush1.msra.mxu0 0.0
    %5646 = vmatprep.subr.mxu0 0.0
    %5647 = vmatpush1.msra.mxu0 0.0
    %5648 = vmatprep.subr.mxu0 0.0
    %5649 = vmatpush1.msra.mxu0 0.0
    %5650 = vmatprep.mubr.f32.mxu0 0.0
    %v5651 = vand.u32 %v4506, 4294901760
    %5652 = vmatmul.mubr.f32.gmra.mrb[0].mxu0 %v5651
    %v5653 = vpop.f32.mrb[0].mxu0
    %v5654 = vadd.f32 %v5572, %v5653
    %v5655 = vpop.f32.mrb[0].mxu0
    %v5656 = vadd.f32 %v5574, %v5655
    %5657 = vdwg.mxu0
    %v5658 = vmax.f32 %v5085, 0.0
    %v5659 = vmax.f32 %v5087, 0.0
    %v5660 = vmax.f32 %v5654, 0.0
    %v5661 = vmax.f32 %v5656, 0.0
    %v5666 = vcombine.low %v5658, %v5659
    %v5667 = vcombine.low %v5660, %v5661
    %s5670 = scalar_lea.vmem [#allocation7], 48
    %5671 = vst [vmem:[%s5670] sm:$0xff] %v5666
    %5672 = vst [vmem:[%s5670 + $0x8] sm:$0xff] %v5667
    %5673 = vrot.lane.b32.xlu0 %v5658, 17
    %v5674 = vpop.permute.xlu0 %5673
    %5675 = vrot.lane.b32.xlu0 %v5659, 17
    %v5676 = vpop.permute.xlu0 %5675
    %5677 = vrot.lane.b32.xlu0 %v5660, 17
    %v5678 = vpop.permute.xlu0 %5677
    %5679 = vrot.lane.b32.xlu0 %v5661, 17
    %v5680 = vpop.permute.xlu0 %5679
    %v5681 = vsel %vm70, %v5678, %v5680
    %v5682 = vsel %vm70, %v5676, %v5678
    %v5683 = vsel %vm70, %v5674, %v5676
    %v5684 = vsel %vm70, %v5680, %v5674
    %v5685 = vmul.f32 %v5684, %v78
    %v5686 = vmul.f32 %v5683, %v82
    %v5687 = vmul.f32 %v5682, %v86
    %v5688 = vmul.f32 %v5681, %v90
    %5689 = vrot.lane.b32.xlu0 %v5658, 16
    %v5690 = vpop.permute.xlu0 %5689
    %5691 = vrot.lane.b32.xlu0 %v5659, 16
    %v5692 = vpop.permute.xlu0 %5691
    %5693 = vrot.lane.b32.xlu0 %v5660, 16
    %v5694 = vpop.permute.xlu0 %5693
    %5695 = vrot.lane.b32.xlu0 %v5661, 16
    %v5696 = vpop.permute.xlu0 %5695
    %v5697 = vsel %vm103, %v5694, %v5696
    %v5698 = vsel %vm103, %v5692, %v5694
    %v5699 = vsel %vm103, %v5690, %v5692
    %v5700 = vsel %vm103, %v5696, %v5690
    %v5701 = vmul.f32 %v5700, %v111
    %v5702 = vmul.f32 %v5699, %v115
    %v5703 = vmul.f32 %v5698, %v119
    %v5704 = vmul.f32 %v5697, %v123
    %5705 = vrot.lane.b32.xlu0 %v5658, 15
    %v5706 = vpop.permute.xlu0 %5705
    %5707 = vrot.lane.b32.xlu0 %v5659, 15
    %v5708 = vpop.permute.xlu0 %5707
    %5709 = vrot.lane.b32.xlu0 %v5660, 15
    %v5710 = vpop.permute.xlu0 %5709
    %5711 = vrot.lane.b32.xlu0 %v5661, 15
    %v5712 = vpop.permute.xlu0 %5711
    %v5713 = vsel %vm136, %v5710, %v5712
    %v5714 = vsel %vm136, %v5708, %v5710
    %v5715 = vsel %vm136, %v5706, %v5708
    %v5716 = vsel %vm136, %v5712, %v5706
    %v5717 = vmul.f32 %v5716, %v144
    %v5718 = vmul.f32 %v5715, %v148
    %v5719 = vmul.f32 %v5714, %v152
    %v5720 = vmul.f32 %v5713, %v156
    %5721 = vrot.lane.b32.xlu0 %v5658, 1
    %v5722 = vpop.permute.xlu0 %5721
    %5723 = vrot.lane.b32.xlu0 %v5659, 1
    %v5724 = vpop.permute.xlu0 %5723
    %5725 = vrot.lane.b32.xlu0 %v5660, 1
    %v5726 = vpop.permute.xlu0 %5725
    %5727 = vrot.lane.b32.xlu0 %v5661, 1
    %v5728 = vpop.permute.xlu0 %5727
    %v5729 = vsel %vm169, %v5726, %v5728
    %v5730 = vsel %vm169, %v5724, %v5726
    %v5731 = vsel %vm169, %v5722, %v5724
    %v5732 = vsel %vm169, %v5728, %v5722
    %v5733 = vmul.f32 %v5732, %v177
    %v5734 = vmul.f32 %v5731, %v181
    %v5735 = vmul.f32 %v5730, %v185
    %v5736 = vmul.f32 %v5729, %v189
    %5737 = vrot.lane.b32.xlu0 %v5658, 127
    %v5738 = vpop.permute.xlu0 %5737
    %5739 = vrot.lane.b32.xlu0 %v5659, 127
    %v5740 = vpop.permute.xlu0 %5739
    %5741 = vrot.lane.b32.xlu0 %v5660, 127
    %v5742 = vpop.permute.xlu0 %5741
    %5743 = vrot.lane.b32.xlu0 %v5661, 127
    %v5744 = vpop.permute.xlu0 %5743
    %v5745 = vsel %vm202, %v5742, %v5744
    %v5746 = vsel %vm202, %v5740, %v5742
    %v5747 = vsel %vm202, %v5738, %v5740
    %v5748 = vsel %vm202, %v5744, %v5738
    %v5749 = vmul.f32 %v5747, %v210
    %v5750 = vmul.f32 %v5746, %v214
    %v5751 = vmul.f32 %v5745, %v218
    %v5752 = vmul.f32 %v5748, %v222
    %5753 = vrot.lane.b32.xlu0 %v5658, 113
    %v5754 = vpop.permute.xlu0 %5753
    %5755 = vrot.lane.b32.xlu0 %v5659, 113
    %v5756 = vpop.permute.xlu0 %5755
    %5757 = vrot.lane.b32.xlu0 %v5660, 113
    %v5758 = vpop.permute.xlu0 %5757
    %5759 = vrot.lane.b32.xlu0 %v5661, 113
    %v5760 = vpop.permute.xlu0 %5759
    %v5761 = vsel %vm235, %v5758, %v5760
    %v5762 = vsel %vm235, %v5756, %v5758
    %v5763 = vsel %vm235, %v5754, %v5756
    %v5764 = vsel %vm235, %v5760, %v5754
    %v5765 = vmul.f32 %v5763, %v243
    %v5766 = vmul.f32 %v5762, %v247
    %v5767 = vmul.f32 %v5761, %v251
    %v5768 = vmul.f32 %v5764, %v255
    %5769 = vrot.lane.b32.xlu0 %v5658, 112
    %v5770 = vpop.permute.xlu0 %5769
    %5771 = vrot.lane.b32.xlu0 %v5659, 112
    %v5772 = vpop.permute.xlu0 %5771
    %5773 = vrot.lane.b32.xlu0 %v5660, 112
    %v5774 = vpop.permute.xlu0 %5773
    %5775 = vrot.lane.b32.xlu0 %v5661, 112
    %v5776 = vpop.permute.xlu0 %5775
    %v5777 = vsel %vm268, %v5774, %v5776
    %v5778 = vsel %vm268, %v5772, %v5774
    %v5779 = vsel %vm268, %v5770, %v5772
    %v5780 = vsel %vm268, %v5776, %v5770
    %v5781 = vmul.f32 %v5779, %v276
    %v5782 = vmul.f32 %v5778, %v280
    %v5783 = vmul.f32 %v5777, %v284
    %v5784 = vmul.f32 %v5780, %v288
    %5785 = vrot.lane.b32.xlu0 %v5658, 111
    %v5786 = vpop.permute.xlu0 %5785
    %5787 = vrot.lane.b32.xlu0 %v5659, 111
    %v5788 = vpop.permute.xlu0 %5787
    %5789 = vrot.lane.b32.xlu0 %v5660, 111
    %v5790 = vpop.permute.xlu0 %5789
    %5791 = vrot.lane.b32.xlu0 %v5661, 111
    %v5792 = vpop.permute.xlu0 %5791
    %v5793 = vsel %vm301, %v5790, %v5792
    %v5794 = vsel %vm301, %v5788, %v5790
    %v5795 = vsel %vm301, %v5786, %v5788
    %v5796 = vsel %vm301, %v5792, %v5786
    %v5797 = vmul.f32 %v5795, %v309
    %v5798 = vmul.f32 %v5794, %v313
    %v5799 = vmul.f32 %v5793, %v317
    %v5800 = vmul.f32 %v5796, %v321
    %v5805 = vrot.slane %v5701, 4
    %v5806 = vrot.slane %v5702, 4
    %v5807 = vrot.slane %v5703, 4
    %v5808 = vrot.slane %v5704, 4
    %v5817 = vrot.slane %v5733, 4
    %v5818 = vrot.slane %v5734, 4
    %v5819 = vrot.slane %v5735, 4
    %v5820 = vrot.slane %v5736, 4
    %v5829 = vrot.slane %v5749, 4
    %v5830 = vrot.slane %v5750, 4
    %v5831 = vrot.slane %v5751, 4
    %v5832 = vrot.slane %v5752, 4
    %v5841 = vrot.slane %v5781, 4
    %v5842 = vrot.slane %v5782, 4
    %v5843 = vrot.slane %v5783, 4
    %v5844 = vrot.slane %v5784, 4
    %v5849 = vsel %vm374, %v5685, %v5805
    %v5850 = vsel %vm374, %v5686, %v5806
    %v5851 = vsel %vm374, %v5687, %v5807
    %v5852 = vsel %vm374, %v5688, %v5808
    %v5853 = vsel %vm374, %v5717, %v5817
    %v5854 = vsel %vm374, %v5718, %v5818
    %v5855 = vsel %vm374, %v5719, %v5819
    %v5856 = vsel %vm374, %v5720, %v5820
    %v5857 = vsel %vm374, %v5658, %v5829
    %v5858 = vsel %vm374, %v5659, %v5830
    %v5859 = vsel %vm374, %v5660, %v5831
    %v5860 = vsel %vm374, %v5661, %v5832
    %v5861 = vsel %vm374, %v5765, %v5841
    %v5862 = vsel %vm374, %v5766, %v5842
    %v5863 = vsel %vm374, %v5767, %v5843
    %v5864 = vsel %vm374, %v5768, %v5844
    %s5865 = scalar_lea.vmem %s1, 16
    %v5866 = vld [vmem:[%s5865] sm:$0xf]
    %s5867 = scalar_lea.vmem %s2, 16
    %v5868 = vld [vmem:[%s5867] sm:$0xf]
    %5870 = vset.pattern.permute.xlu0 0
    %5871 = vperm.xlu0 %5870, %v5868
    %v5872 = vpop.permute.xlu0 %5871
    %v5875 = vsel %vm398, %v5866, 0
    %v5878 = vsel %vm374, %v5797, 0
    %v5881 = vsel %vm374, %v5798, 0
    %v5884 = vsel %vm374, %v5799, 0
    %v5887 = vsel %vm374, %v5800, 0
    %v5889 = vand.u32 %v5850, 4294901760
    %5890 = vmatprep.subr.mxu0 %v5889
    %v5891 = vand.u32 %v5849, 4294901760
    %5892 = vmatpush1.msra.mxu0 %v5891
    %v5893 = vand.u32 %v5854, 4294901760
    %5894 = vmatprep.subr.mxu0 %v5893
    %v5895 = vand.u32 %v5853, 4294901760
    %5896 = vmatpush1.msra.mxu0 %v5895
    %v5897 = vand.u32 %v5858, 4294901760
    %5898 = vmatprep.subr.mxu0 %v5897
    %v5899 = vand.u32 %v5857, 4294901760
    %5900 = vmatpush1.msra.mxu0 %v5899
    %v5901 = vand.u32 %v5862, 4294901760
    %5902 = vmatprep.subr.mxu0 %v5901
    %v5903 = vand.u32 %v5861, 4294901760
    %5904 = vmatpush1.msra.mxu0 %v5903
    %v5905 = vand.u32 %v5881, 4294901760
    %5906 = vmatprep.subr.mxu0 %v5905
    %v5907 = vand.u32 %v5878, 4294901760
    %5908 = vmatpush1.msra.mxu0 %v5907
    %5909 = vmatprep.subr.mxu0 0.0
    %5910 = vmatpush1.msra.mxu0 0.0
    %5911 = vmatprep.subr.mxu0 0.0
    %5912 = vmatpush1.msra.mxu0 0.0
    %5913 = vmatprep.subr.mxu0 0.0
    %5914 = vmatpush1.msra.mxu0 0.0
    %5915 = vmatprep.subr.mxu0 0.0
    %5916 = vmatpush1.msra.mxu0 0.0
    %5917 = vmatprep.subr.mxu0 0.0
    %5918 = vmatpush1.msra.mxu0 0.0
    %5919 = vmatprep.subr.mxu0 0.0
    %5920 = vmatpush1.msra.mxu0 0.0
    %5921 = vmatprep.subr.mxu0 0.0
    %5922 = vmatpush1.msra.mxu0 0.0
    %5923 = vmatprep.subr.mxu0 0.0
    %5924 = vmatpush1.msra.mxu0 0.0
    %5925 = vmatprep.subr.mxu0 0.0
    %5926 = vmatpush1.msra.mxu0 0.0
    %5927 = vmatprep.subr.mxu0 0.0
    %5928 = vmatpush1.msra.mxu0 0.0
    %5929 = vmatprep.subr.mxu0 0.0
    %5930 = vmatpush1.msra.mxu0 0.0
    %5931 = vmatprep.subr.mxu0 0.0
    %5932 = vmatpush1.msra.mxu0 0.0
    %5933 = vmatprep.subr.mxu0 0.0
    %5934 = vmatpush1.msra.mxu0 0.0
    %5935 = vmatprep.subr.mxu0 0.0
    %5936 = vmatpush1.msra.mxu0 0.0
    %5937 = vmatprep.subr.mxu0 0.0
    %5938 = vmatpush1.msra.mxu0 0.0
    %5939 = vmatprep.subr.mxu0 0.0
    %5940 = vmatpush1.msra.mxu0 0.0
    %5941 = vmatprep.subr.mxu0 0.0
    %5942 = vmatpush1.msra.mxu0 0.0
    %5943 = vmatprep.subr.mxu0 0.0
    %5944 = vmatpush1.msra.mxu0 0.0
    %5945 = vmatprep.subr.mxu0 0.0
    %5946 = vmatpush1.msra.mxu0 0.0
    %5947 = vmatprep.subr.mxu0 0.0
    %5948 = vmatpush1.msra.mxu0 0.0
    %5949 = vmatprep.subr.mxu0 0.0
    %5950 = vmatpush1.msra.mxu0 0.0
    %5951 = vmatprep.subr.mxu0 0.0
    %5952 = vmatpush1.msra.mxu0 0.0
    %5953 = vmatprep.subr.mxu0 0.0
    %5954 = vmatpush1.msra.mxu0 0.0
    %5955 = vmatprep.subr.mxu0 0.0
    %5956 = vmatpush1.msra.mxu0 0.0
    %5957 = vmatprep.subr.mxu0 0.0
    %5958 = vmatpush1.msra.mxu0 0.0
    %5959 = vmatprep.subr.mxu0 0.0
    %5960 = vmatpush1.msra.mxu0 0.0
    %5961 = vmatprep.subr.mxu0 0.0
    %5962 = vmatpush1.msra.mxu0 0.0
    %5963 = vmatprep.mubr.f32.mxu0 0.0
    %v5964 = vand.u32 %v5875, 4294901760
    %v5965 = vsub.f32 %v5875, %v5964
    %v5966 = vand.u32 %v5965, 4294901760
    %v5967 = vsub.f32 %v5965, %v5966
    %v5968 = vand.u32 %v5967, 4294901760
    %5969 = vmatmul.mubr.f32.gmra.mrb[0].mxu0 %v5968
    %v5970 = vpop.f32.mrb[0].mxu0
    %v5971 = vadd.f32 %v5872, %v5970
    %v5972 = vpop.f32.mrb[0].mxu0
    %v5973 = vadd.f32 %v5872, %v5972
    %5974 = vdwg.mxu0
    %v5975 = vand.u32 %v5850, 4294901760
    %v5976 = vsub.f32 %v5850, %v5975
    %v5977 = vand.u32 %v5976, 4294901760
    %v5978 = vsub.f32 %v5976, %v5977
    %v5979 = vand.u32 %v5978, 4294901760
    %5980 = vmatprep.subr.mxu0 %v5979
    %v5981 = vand.u32 %v5849, 4294901760
    %v5982 = vsub.f32 %v5849, %v5981
    %v5983 = vand.u32 %v5982, 4294901760
    %v5984 = vsub.f32 %v5982, %v5983
    %v5985 = vand.u32 %v5984, 4294901760
    %5986 = vmatpush1.msra.mxu0 %v5985
    %v5987 = vand.u32 %v5854, 4294901760
    %v5988 = vsub.f32 %v5854, %v5987
    %v5989 = vand.u32 %v5988, 4294901760
    %v5990 = vsub.f32 %v5988, %v5989
    %v5991 = vand.u32 %v5990, 4294901760
    %5992 = vmatprep.subr.mxu0 %v5991
    %v5993 = vand.u32 %v5853, 4294901760
    %v5994 = vsub.f32 %v5853, %v5993
    %v5995 = vand.u32 %v5994, 4294901760
    %v5996 = vsub.f32 %v5994, %v5995
    %v5997 = vand.u32 %v5996, 4294901760
    %5998 = vmatpush1.msra.mxu0 %v5997
    %v5999 = vand.u32 %v5858, 4294901760
    %v6000 = vsub.f32 %v5858, %v5999
    %v6001 = vand.u32 %v6000, 4294901760
    %v6002 = vsub.f32 %v6000, %v6001
    %v6003 = vand.u32 %v6002, 4294901760
    %6004 = vmatprep.subr.mxu0 %v6003
    %v6005 = vand.u32 %v5857, 4294901760
    %v6006 = vsub.f32 %v5857, %v6005
    %v6007 = vand.u32 %v6006, 4294901760
    %v6008 = vsub.f32 %v6006, %v6007
    %v6009 = vand.u32 %v6008, 4294901760
    %6010 = vmatpush1.msra.mxu0 %v6009
    %v6011 = vand.u32 %v5862, 4294901760
    %v6012 = vsub.f32 %v5862, %v6011
    %v6013 = vand.u32 %v6012, 4294901760
    %v6014 = vsub.f32 %v6012, %v6013
    %v6015 = vand.u32 %v6014, 4294901760
    %6016 = vmatprep.subr.mxu0 %v6015
    %v6017 = vand.u32 %v5861, 4294901760
    %v6018 = vsub.f32 %v5861, %v6017
    %v6019 = vand.u32 %v6018, 4294901760
    %v6020 = vsub.f32 %v6018, %v6019
    %v6021 = vand.u32 %v6020, 4294901760
    %6022 = vmatpush1.msra.mxu0 %v6021
    %v6023 = vand.u32 %v5881, 4294901760
    %v6024 = vsub.f32 %v5881, %v6023
    %v6025 = vand.u32 %v6024, 4294901760
    %v6026 = vsub.f32 %v6024, %v6025
    %v6027 = vand.u32 %v6026, 4294901760
    %6028 = vmatprep.subr.mxu0 %v6027
    %v6029 = vand.u32 %v5878, 4294901760
    %v6030 = vsub.f32 %v5878, %v6029
    %v6031 = vand.u32 %v6030, 4294901760
    %v6032 = vsub.f32 %v6030, %v6031
    %v6033 = vand.u32 %v6032, 4294901760
    %6034 = vmatpush1.msra.mxu0 %v6033
    %6035 = vmatprep.subr.mxu0 0.0
    %6036 = vmatpush1.msra.mxu0 0.0
    %6037 = vmatprep.subr.mxu0 0.0
    %6038 = vmatpush1.msra.mxu0 0.0
    %6039 = vmatprep.subr.mxu0 0.0
    %6040 = vmatpush1.msra.mxu0 0.0
    %6041 = vmatprep.subr.mxu0 0.0
    %6042 = vmatpush1.msra.mxu0 0.0
    %6043 = vmatprep.subr.mxu0 0.0
    %6044 = vmatpush1.msra.mxu0 0.0
    %6045 = vmatprep.subr.mxu0 0.0
    %6046 = vmatpush1.msra.mxu0 0.0
    %6047 = vmatprep.subr.mxu0 0.0
    %6048 = vmatpush1.msra.mxu0 0.0
    %6049 = vmatprep.subr.mxu0 0.0
    %6050 = vmatpush1.msra.mxu0 0.0
    %6051 = vmatprep.subr.mxu0 0.0
    %6052 = vmatpush1.msra.mxu0 0.0
    %6053 = vmatprep.subr.mxu0 0.0
    %6054 = vmatpush1.msra.mxu0 0.0
    %6055 = vmatprep.subr.mxu0 0.0
    %6056 = vmatpush1.msra.mxu0 0.0
    %6057 = vmatprep.subr.mxu0 0.0
    %6058 = vmatpush1.msra.mxu0 0.0
    %6059 = vmatprep.subr.mxu0 0.0
    %6060 = vmatpush1.msra.mxu0 0.0
    %6061 = vmatprep.subr.mxu0 0.0
    %6062 = vmatpush1.msra.mxu0 0.0
    %6063 = vmatprep.subr.mxu0 0.0
    %6064 = vmatpush1.msra.mxu0 0.0
    %6065 = vmatprep.subr.mxu0 0.0
    %6066 = vmatpush1.msra.mxu0 0.0
    %6067 = vmatprep.subr.mxu0 0.0
    %6068 = vmatpush1.msra.mxu0 0.0
    %6069 = vmatprep.subr.mxu0 0.0
    %6070 = vmatpush1.msra.mxu0 0.0
    %6071 = vmatprep.subr.mxu0 0.0
    %6072 = vmatpush1.msra.mxu0 0.0
    %6073 = vmatprep.subr.mxu0 0.0
    %6074 = vmatpush1.msra.mxu0 0.0
    %6075 = vmatprep.subr.mxu0 0.0
    %6076 = vmatpush1.msra.mxu0 0.0
    %6077 = vmatprep.subr.mxu0 0.0
    %6078 = vmatpush1.msra.mxu0 0.0
    %6079 = vmatprep.subr.mxu0 0.0
    %6080 = vmatpush1.msra.mxu0 0.0
    %6081 = vmatprep.subr.mxu0 0.0
    %6082 = vmatpush1.msra.mxu0 0.0
    %6083 = vmatprep.subr.mxu0 0.0
    %6084 = vmatpush1.msra.mxu0 0.0
    %6085 = vmatprep.subr.mxu0 0.0
    %6086 = vmatpush1.msra.mxu0 0.0
    %6087 = vmatprep.subr.mxu0 0.0
    %6088 = vmatpush1.msra.mxu0 0.0
    %6089 = vmatprep.mubr.f32.mxu0 0.0
    %v6090 = vand.u32 %v5875, 4294901760
    %6091 = vmatmul.mubr.f32.gmra.mrb[0].mxu0 %v6090
    %v6092 = vpop.f32.mrb[0].mxu0
    %v6093 = vadd.f32 %v5971, %v6092
    %v6094 = vpop.f32.mrb[0].mxu0
    %v6095 = vadd.f32 %v5973, %v6094
    %6096 = vdwg.mxu0
    %v6097 = vand.u32 %v5850, 4294901760
    %v6098 = vsub.f32 %v5850, %v6097
    %6099 = vmatprep.subr.mxu0 %v6098
    %v6100 = vand.u32 %v5849, 4294901760
    %v6101 = vsub.f32 %v5849, %v6100
    %6102 = vmatpush1.msra.mxu0 %v6101
    %v6103 = vand.u32 %v5854, 4294901760
    %v6104 = vsub.f32 %v5854, %v6103
    %6105 = vmatprep.subr.mxu0 %v6104
    %v6106 = vand.u32 %v5853, 4294901760
    %v6107 = vsub.f32 %v5853, %v6106
    %6108 = vmatpush1.msra.mxu0 %v6107
    %v6109 = vand.u32 %v5858, 4294901760
    %v6110 = vsub.f32 %v5858, %v6109
    %6111 = vmatprep.subr.mxu0 %v6110
    %v6112 = vand.u32 %v5857, 4294901760
    %v6113 = vsub.f32 %v5857, %v6112
    %6114 = vmatpush1.msra.mxu0 %v6113
    %v6115 = vand.u32 %v5862, 4294901760
    %v6116 = vsub.f32 %v5862, %v6115
    %6117 = vmatprep.subr.mxu0 %v6116
    %v6118 = vand.u32 %v5861, 4294901760
    %v6119 = vsub.f32 %v5861, %v6118
    %6120 = vmatpush1.msra.mxu0 %v6119
    %v6121 = vand.u32 %v5881, 4294901760
    %v6122 = vsub.f32 %v5881, %v6121
    %6123 = vmatprep.subr.mxu0 %v6122
    %v6124 = vand.u32 %v5878, 4294901760
    %v6125 = vsub.f32 %v5878, %v6124
    %6126 = vmatpush1.msra.mxu0 %v6125
    %6127 = vmatprep.subr.mxu0 0.0
    %6128 = vmatpush1.msra.mxu0 0.0
    %6129 = vmatprep.subr.mxu0 0.0
    %6130 = vmatpush1.msra.mxu0 0.0
    %6131 = vmatprep.subr.mxu0 0.0
    %6132 = vmatpush1.msra.mxu0 0.0
    %6133 = vmatprep.subr.mxu0 0.0
    %6134 = vmatpush1.msra.mxu0 0.0
    %6135 = vmatprep.subr.mxu0 0.0
    %6136 = vmatpush1.msra.mxu0 0.0
    %6137 = vmatprep.subr.mxu0 0.0
    %6138 = vmatpush1.msra.mxu0 0.0
    %6139 = vmatprep.subr.mxu0 0.0
    %6140 = vmatpush1.msra.mxu0 0.0
    %6141 = vmatprep.subr.mxu0 0.0
    %6142 = vmatpush1.msra.mxu0 0.0
    %6143 = vmatprep.subr.mxu0 0.0
    %6144 = vmatpush1.msra.mxu0 0.0
    %6145 = vmatprep.subr.mxu0 0.0
    %6146 = vmatpush1.msra.mxu0 0.0
    %6147 = vmatprep.subr.mxu0 0.0
    %6148 = vmatpush1.msra.mxu0 0.0
    %6149 = vmatprep.subr.mxu0 0.0
    %6150 = vmatpush1.msra.mxu0 0.0
    %6151 = vmatprep.subr.mxu0 0.0
    %6152 = vmatpush1.msra.mxu0 0.0
    %6153 = vmatprep.subr.mxu0 0.0
    %6154 = vmatpush1.msra.mxu0 0.0
    %6155 = vmatprep.subr.mxu0 0.0
    %6156 = vmatpush1.msra.mxu0 0.0
    %6157 = vmatprep.subr.mxu0 0.0
    %6158 = vmatpush1.msra.mxu0 0.0
    %6159 = vmatprep.subr.mxu0 0.0
    %6160 = vmatpush1.msra.mxu0 0.0
    %6161 = vmatprep.subr.mxu0 0.0
    %6162 = vmatpush1.msra.mxu0 0.0
    %6163 = vmatprep.subr.mxu0 0.0
    %6164 = vmatpush1.msra.mxu0 0.0
    %6165 = vmatprep.subr.mxu0 0.0
    %6166 = vmatpush1.msra.mxu0 0.0
    %6167 = vmatprep.subr.mxu0 0.0
    %6168 = vmatpush1.msra.mxu0 0.0
    %6169 = vmatprep.subr.mxu0 0.0
    %6170 = vmatpush1.msra.mxu0 0.0
    %6171 = vmatprep.subr.mxu0 0.0
    %6172 = vmatpush1.msra.mxu0 0.0
    %6173 = vmatprep.subr.mxu0 0.0
    %6174 = vmatpush1.msra.mxu0 0.0
    %6175 = vmatprep.subr.mxu0 0.0
    %6176 = vmatpush1.msra.mxu0 0.0
    %6177 = vmatprep.subr.mxu0 0.0
    %6178 = vmatpush1.msra.mxu0 0.0
    %6179 = vmatprep.subr.mxu0 0.0
    %6180 = vmatpush1.msra.mxu0 0.0
    %6181 = vmatprep.mubr.f32.mxu0 0.0
    %v6182 = vand.u32 %v5875, 4294901760
    %v6183 = vsub.f32 %v5875, %v6182
    %6184 = vmatmul.mubr.f32.gmra.mrb[0].mxu0 %v6183
    %v6185 = vpop.f32.mrb[0].mxu0
    %v6186 = vadd.f32 %v6093, %v6185
    %v6187 = vpop.f32.mrb[0].mxu0
    %v6188 = vadd.f32 %v6095, %v6187
    %6189 = vdwg.mxu0
    %v6190 = vand.u32 %v5850, 4294901760
    %6191 = vmatprep.subr.mxu0 %v6190
    %v6192 = vand.u32 %v5849, 4294901760
    %6193 = vmatpush1.msra.mxu0 %v6192
    %v6194 = vand.u32 %v5854, 4294901760
    %6195 = vmatprep.subr.mxu0 %v6194
    %v6196 = vand.u32 %v5853, 4294901760
    %6197 = vmatpush1.msra.mxu0 %v6196
    %v6198 = vand.u32 %v5858, 4294901760
    %6199 = vmatprep.subr.mxu0 %v6198
    %v6200 = vand.u32 %v5857, 4294901760
    %6201 = vmatpush1.msra.mxu0 %v6200
    %v6202 = vand.u32 %v5862, 4294901760
    %6203 = vmatprep.subr.mxu0 %v6202
    %v6204 = vand.u32 %v5861, 4294901760
    %6205 = vmatpush1.msra.mxu0 %v6204
    %v6206 = vand.u32 %v5881, 4294901760
    %6207 = vmatprep.subr.mxu0 %v6206
    %v6208 = vand.u32 %v5878, 4294901760
    %6209 = vmatpush1.msra.mxu0 %v6208
    %6210 = vmatprep.subr.mxu0 0.0
    %6211 = vmatpush1.msra.mxu0 0.0
    %6212 = vmatprep.subr.mxu0 0.0
    %6213 = vmatpush1.msra.mxu0 0.0
    %6214 = vmatprep.subr.mxu0 0.0
    %6215 = vmatpush1.msra.mxu0 0.0
    %6216 = vmatprep.subr.mxu0 0.0
    %6217 = vmatpush1.msra.mxu0 0.0
    %6218 = vmatprep.subr.mxu0 0.0
    %6219 = vmatpush1.msra.mxu0 0.0
    %6220 = vmatprep.subr.mxu0 0.0
    %6221 = vmatpush1.msra.mxu0 0.0
    %6222 = vmatprep.subr.mxu0 0.0
    %6223 = vmatpush1.msra.mxu0 0.0
    %6224 = vmatprep.subr.mxu0 0.0
    %6225 = vmatpush1.msra.mxu0 0.0
    %6226 = vmatprep.subr.mxu0 0.0
    %6227 = vmatpush1.msra.mxu0 0.0
    %6228 = vmatprep.subr.mxu0 0.0
    %6229 = vmatpush1.msra.mxu0 0.0
    %6230 = vmatprep.subr.mxu0 0.0
    %6231 = vmatpush1.msra.mxu0 0.0
    %6232 = vmatprep.subr.mxu0 0.0
    %6233 = vmatpush1.msra.mxu0 0.0
    %6234 = vmatprep.subr.mxu0 0.0
    %6235 = vmatpush1.msra.mxu0 0.0
    %6236 = vmatprep.subr.mxu0 0.0
    %6237 = vmatpush1.msra.mxu0 0.0
    %6238 = vmatprep.subr.mxu0 0.0
    %6239 = vmatpush1.msra.mxu0 0.0
    %6240 = vmatprep.subr.mxu0 0.0
    %6241 = vmatpush1.msra.mxu0 0.0
    %6242 = vmatprep.subr.mxu0 0.0
    %6243 = vmatpush1.msra.mxu0 0.0
    %6244 = vmatprep.subr.mxu0 0.0
    %6245 = vmatpush1.msra.mxu0 0.0
    %6246 = vmatprep.subr.mxu0 0.0
    %6247 = vmatpush1.msra.mxu0 0.0
    %6248 = vmatprep.subr.mxu0 0.0
    %6249 = vmatpush1.msra.mxu0 0.0
    %6250 = vmatprep.subr.mxu0 0.0
    %6251 = vmatpush1.msra.mxu0 0.0
    %6252 = vmatprep.subr.mxu0 0.0
    %6253 = vmatpush1.msra.mxu0 0.0
    %6254 = vmatprep.subr.mxu0 0.0
    %6255 = vmatpush1.msra.mxu0 0.0
    %6256 = vmatprep.subr.mxu0 0.0
    %6257 = vmatpush1.msra.mxu0 0.0
    %6258 = vmatprep.subr.mxu0 0.0
    %6259 = vmatpush1.msra.mxu0 0.0
    %6260 = vmatprep.subr.mxu0 0.0
    %6261 = vmatpush1.msra.mxu0 0.0
    %6262 = vmatprep.subr.mxu0 0.0
    %6263 = vmatpush1.msra.mxu0 0.0
    %6264 = vmatprep.mubr.f32.mxu0 0.0
    %v6265 = vand.u32 %v5875, 4294901760
    %v6266 = vsub.f32 %v5875, %v6265
    %v6267 = vand.u32 %v6266, 4294901760
    %6268 = vmatmul.mubr.f32.gmra.mrb[0].mxu0 %v6267
    %v6269 = vpop.f32.mrb[0].mxu0
    %v6270 = vadd.f32 %v6186, %v6269
    %v6271 = vpop.f32.mrb[0].mxu0
    %v6272 = vadd.f32 %v6188, %v6271
    %6273 = vdwg.mxu0
    %v6274 = vand.u32 %v5850, 4294901760
    %v6275 = vsub.f32 %v5850, %v6274
    %v6276 = vand.u32 %v6275, 4294901760
    %6277 = vmatprep.subr.mxu0 %v6276
    %v6278 = vand.u32 %v5849, 4294901760
    %v6279 = vsub.f32 %v5849, %v6278
    %v6280 = vand.u32 %v6279, 4294901760
    %6281 = vmatpush1.msra.mxu0 %v6280
    %v6282 = vand.u32 %v5854, 4294901760
    %v6283 = vsub.f32 %v5854, %v6282
    %v6284 = vand.u32 %v6283, 4294901760
    %6285 = vmatprep.subr.mxu0 %v6284
    %v6286 = vand.u32 %v5853, 4294901760
    %v6287 = vsub.f32 %v5853, %v6286
    %v6288 = vand.u32 %v6287, 4294901760
    %6289 = vmatpush1.msra.mxu0 %v6288
    %v6290 = vand.u32 %v5858, 4294901760
    %v6291 = vsub.f32 %v5858, %v6290
    %v6292 = vand.u32 %v6291, 4294901760
    %6293 = vmatprep.subr.mxu0 %v6292
    %v6294 = vand.u32 %v5857, 4294901760
    %v6295 = vsub.f32 %v5857, %v6294
    %v6296 = vand.u32 %v6295, 4294901760
    %6297 = vmatpush1.msra.mxu0 %v6296
    %v6298 = vand.u32 %v5862, 4294901760
    %v6299 = vsub.f32 %v5862, %v6298
    %v6300 = vand.u32 %v6299, 4294901760
    %6301 = vmatprep.subr.mxu0 %v6300
    %v6302 = vand.u32 %v5861, 4294901760
    %v6303 = vsub.f32 %v5861, %v6302
    %v6304 = vand.u32 %v6303, 4294901760
    %6305 = vmatpush1.msra.mxu0 %v6304
    %v6306 = vand.u32 %v5881, 4294901760
    %v6307 = vsub.f32 %v5881, %v6306
    %v6308 = vand.u32 %v6307, 4294901760
    %6309 = vmatprep.subr.mxu0 %v6308
    %v6310 = vand.u32 %v5878, 4294901760
    %v6311 = vsub.f32 %v5878, %v6310
    %v6312 = vand.u32 %v6311, 4294901760
    %6313 = vmatpush1.msra.mxu0 %v6312
    %6314 = vmatprep.subr.mxu0 0.0
    %6315 = vmatpush1.msra.mxu0 0.0
    %6316 = vmatprep.subr.mxu0 0.0
    %6317 = vmatpush1.msra.mxu0 0.0
    %6318 = vmatprep.subr.mxu0 0.0
    %6319 = vmatpush1.msra.mxu0 0.0
    %6320 = vmatprep.subr.mxu0 0.0
    %6321 = vmatpush1.msra.mxu0 0.0
    %6322 = vmatprep.subr.mxu0 0.0
    %6323 = vmatpush1.msra.mxu0 0.0
    %6324 = vmatprep.subr.mxu0 0.0
    %6325 = vmatpush1.msra.mxu0 0.0
    %6326 = vmatprep.subr.mxu0 0.0
    %6327 = vmatpush1.msra.mxu0 0.0
    %6328 = vmatprep.subr.mxu0 0.0
    %6329 = vmatpush1.msra.mxu0 0.0
    %6330 = vmatprep.subr.mxu0 0.0
    %6331 = vmatpush1.msra.mxu0 0.0
    %6332 = vmatprep.subr.mxu0 0.0
    %6333 = vmatpush1.msra.mxu0 0.0
    %6334 = vmatprep.subr.mxu0 0.0
    %6335 = vmatpush1.msra.mxu0 0.0
    %6336 = vmatprep.subr.mxu0 0.0
    %6337 = vmatpush1.msra.mxu0 0.0
    %6338 = vmatprep.subr.mxu0 0.0
    %6339 = vmatpush1.msra.mxu0 0.0
    %6340 = vmatprep.subr.mxu0 0.0
    %6341 = vmatpush1.msra.mxu0 0.0
    %6342 = vmatprep.subr.mxu0 0.0
    %6343 = vmatpush1.msra.mxu0 0.0
    %6344 = vmatprep.subr.mxu0 0.0
    %6345 = vmatpush1.msra.mxu0 0.0
    %6346 = vmatprep.subr.mxu0 0.0
    %6347 = vmatpush1.msra.mxu0 0.0
    %6348 = vmatprep.subr.mxu0 0.0
    %6349 = vmatpush1.msra.mxu0 0.0
    %6350 = vmatprep.subr.mxu0 0.0
    %6351 = vmatpush1.msra.mxu0 0.0
    %6352 = vmatprep.subr.mxu0 0.0
    %6353 = vmatpush1.msra.mxu0 0.0
    %6354 = vmatprep.subr.mxu0 0.0
    %6355 = vmatpush1.msra.mxu0 0.0
    %6356 = vmatprep.subr.mxu0 0.0
    %6357 = vmatpush1.msra.mxu0 0.0
    %6358 = vmatprep.subr.mxu0 0.0
    %6359 = vmatpush1.msra.mxu0 0.0
    %6360 = vmatprep.subr.mxu0 0.0
    %6361 = vmatpush1.msra.mxu0 0.0
    %6362 = vmatprep.subr.mxu0 0.0
    %6363 = vmatpush1.msra.mxu0 0.0
    %6364 = vmatprep.subr.mxu0 0.0
    %6365 = vmatpush1.msra.mxu0 0.0
    %6366 = vmatprep.subr.mxu0 0.0
    %6367 = vmatpush1.msra.mxu0 0.0
    %6368 = vmatprep.mubr.f32.mxu0 0.0
    %v6369 = vand.u32 %v5875, 4294901760
    %6370 = vmatmul.mubr.f32.gmra.mrb[0].mxu0 %v6369
    %v6371 = vpop.f32.mrb[0].mxu0
    %v6372 = vadd.f32 %v6270, %v6371
    %v6373 = vpop.f32.mrb[0].mxu0
    %v6374 = vadd.f32 %v6272, %v6373
    %6375 = vdwg.mxu0
    %v6376 = vand.u32 %v5850, 4294901760
    %6377 = vmatprep.subr.mxu0 %v6376
    %v6378 = vand.u32 %v5849, 4294901760
    %6379 = vmatpush1.msra.mxu0 %v6378
    %v6380 = vand.u32 %v5854, 4294901760
    %6381 = vmatprep.subr.mxu0 %v6380
    %v6382 = vand.u32 %v5853, 4294901760
    %6383 = vmatpush1.msra.mxu0 %v6382
    %v6384 = vand.u32 %v5858, 4294901760
    %6385 = vmatprep.subr.mxu0 %v6384
    %v6386 = vand.u32 %v5857, 4294901760
    %6387 = vmatpush1.msra.mxu0 %v6386
    %v6388 = vand.u32 %v5862, 4294901760
    %6389 = vmatprep.subr.mxu0 %v6388
    %v6390 = vand.u32 %v5861, 4294901760
    %6391 = vmatpush1.msra.mxu0 %v6390
    %v6392 = vand.u32 %v5881, 4294901760
    %6393 = vmatprep.subr.mxu0 %v6392
    %v6394 = vand.u32 %v5878, 4294901760
    %6395 = vmatpush1.msra.mxu0 %v6394
    %6396 = vmatprep.subr.mxu0 0.0
    %6397 = vmatpush1.msra.mxu0 0.0
    %6398 = vmatprep.subr.mxu0 0.0
    %6399 = vmatpush1.msra.mxu0 0.0
    %6400 = vmatprep.subr.mxu0 0.0
    %6401 = vmatpush1.msra.mxu0 0.0
    %6402 = vmatprep.subr.mxu0 0.0
    %6403 = vmatpush1.msra.mxu0 0.0
    %6404 = vmatprep.subr.mxu0 0.0
    %6405 = vmatpush1.msra.mxu0 0.0
    %6406 = vmatprep.subr.mxu0 0.0
    %6407 = vmatpush1.msra.mxu0 0.0
    %6408 = vmatprep.subr.mxu0 0.0
    %6409 = vmatpush1.msra.mxu0 0.0
    %6410 = vmatprep.subr.mxu0 0.0
    %6411 = vmatpush1.msra.mxu0 0.0
    %6412 = vmatprep.subr.mxu0 0.0
    %6413 = vmatpush1.msra.mxu0 0.0
    %6414 = vmatprep.subr.mxu0 0.0
    %6415 = vmatpush1.msra.mxu0 0.0
    %6416 = vmatprep.subr.mxu0 0.0
    %6417 = vmatpush1.msra.mxu0 0.0
    %6418 = vmatprep.subr.mxu0 0.0
    %6419 = vmatpush1.msra.mxu0 0.0
    %6420 = vmatprep.subr.mxu0 0.0
    %6421 = vmatpush1.msra.mxu0 0.0
    %6422 = vmatprep.subr.mxu0 0.0
    %6423 = vmatpush1.msra.mxu0 0.0
    %6424 = vmatprep.subr.mxu0 0.0
    %6425 = vmatpush1.msra.mxu0 0.0
    %6426 = vmatprep.subr.mxu0 0.0
    %6427 = vmatpush1.msra.mxu0 0.0
    %6428 = vmatprep.subr.mxu0 0.0
    %6429 = vmatpush1.msra.mxu0 0.0
    %6430 = vmatprep.subr.mxu0 0.0
    %6431 = vmatpush1.msra.mxu0 0.0
    %6432 = vmatprep.subr.mxu0 0.0
    %6433 = vmatpush1.msra.mxu0 0.0
    %6434 = vmatprep.subr.mxu0 0.0
    %6435 = vmatpush1.msra.mxu0 0.0
    %6436 = vmatprep.subr.mxu0 0.0
    %6437 = vmatpush1.msra.mxu0 0.0
    %6438 = vmatprep.subr.mxu0 0.0
    %6439 = vmatpush1.msra.mxu0 0.0
    %6440 = vmatprep.subr.mxu0 0.0
    %6441 = vmatpush1.msra.mxu0 0.0
    %6442 = vmatprep.subr.mxu0 0.0
    %6443 = vmatpush1.msra.mxu0 0.0
    %6444 = vmatprep.subr.mxu0 0.0
    %6445 = vmatpush1.msra.mxu0 0.0
    %6446 = vmatprep.subr.mxu0 0.0
    %6447 = vmatpush1.msra.mxu0 0.0
    %6448 = vmatprep.subr.mxu0 0.0
    %6449 = vmatpush1.msra.mxu0 0.0
    %6450 = vmatprep.mubr.f32.mxu0 0.0
    %v6451 = vand.u32 %v5875, 4294901760
    %6452 = vmatmul.mubr.f32.gmra.mrb[0].mxu0 %v6451
    %v6453 = vpop.f32.mrb[0].mxu0
    %v6454 = vadd.f32 %v6372, %v6453
    %v6455 = vpop.f32.mrb[0].mxu0
    %v6456 = vadd.f32 %v6374, %v6455
    %6457 = vdwg.mxu0
    %v6458 = vand.u32 %v5852, 4294901760
    %6459 = vmatprep.subr.mxu0 %v6458
    %v6460 = vand.u32 %v5851, 4294901760
    %6461 = vmatpush1.msra.mxu0 %v6460
    %v6462 = vand.u32 %v5856, 4294901760
    %6463 = vmatprep.subr.mxu0 %v6462
    %v6464 = vand.u32 %v5855, 4294901760
    %6465 = vmatpush1.msra.mxu0 %v6464
    %v6466 = vand.u32 %v5860, 4294901760
    %6467 = vmatprep.subr.mxu0 %v6466
    %v6468 = vand.u32 %v5859, 4294901760
    %6469 = vmatpush1.msra.mxu0 %v6468
    %v6470 = vand.u32 %v5864, 4294901760
    %6471 = vmatprep.subr.mxu0 %v6470
    %v6472 = vand.u32 %v5863, 4294901760
    %6473 = vmatpush1.msra.mxu0 %v6472
    %v6474 = vand.u32 %v5887, 4294901760
    %6475 = vmatprep.subr.mxu0 %v6474
    %v6476 = vand.u32 %v5884, 4294901760
    %6477 = vmatpush1.msra.mxu0 %v6476
    %6478 = vmatprep.subr.mxu0 0.0
    %6479 = vmatpush1.msra.mxu0 0.0
    %6480 = vmatprep.subr.mxu0 0.0
    %6481 = vmatpush1.msra.mxu0 0.0
    %6482 = vmatprep.subr.mxu0 0.0
    %6483 = vmatpush1.msra.mxu0 0.0
    %6484 = vmatprep.subr.mxu0 0.0
    %6485 = vmatpush1.msra.mxu0 0.0
    %6486 = vmatprep.subr.mxu0 0.0
    %6487 = vmatpush1.msra.mxu0 0.0
    %6488 = vmatprep.subr.mxu0 0.0
    %6489 = vmatpush1.msra.mxu0 0.0
    %6490 = vmatprep.subr.mxu0 0.0
    %6491 = vmatpush1.msra.mxu0 0.0
    %6492 = vmatprep.subr.mxu0 0.0
    %6493 = vmatpush1.msra.mxu0 0.0
    %6494 = vmatprep.subr.mxu0 0.0
    %6495 = vmatpush1.msra.mxu0 0.0
    %6496 = vmatprep.subr.mxu0 0.0
    %6497 = vmatpush1.msra.mxu0 0.0
    %6498 = vmatprep.subr.mxu0 0.0
    %6499 = vmatpush1.msra.mxu0 0.0
    %6500 = vmatprep.subr.mxu0 0.0
    %6501 = vmatpush1.msra.mxu0 0.0
    %6502 = vmatprep.subr.mxu0 0.0
    %6503 = vmatpush1.msra.mxu0 0.0
    %6504 = vmatprep.subr.mxu0 0.0
    %6505 = vmatpush1.msra.mxu0 0.0
    %6506 = vmatprep.subr.mxu0 0.0
    %6507 = vmatpush1.msra.mxu0 0.0
    %6508 = vmatprep.subr.mxu0 0.0
    %6509 = vmatpush1.msra.mxu0 0.0
    %6510 = vmatprep.subr.mxu0 0.0
    %6511 = vmatpush1.msra.mxu0 0.0
    %6512 = vmatprep.subr.mxu0 0.0
    %6513 = vmatpush1.msra.mxu0 0.0
    %6514 = vmatprep.subr.mxu0 0.0
    %6515 = vmatpush1.msra.mxu0 0.0
    %6516 = vmatprep.subr.mxu0 0.0
    %6517 = vmatpush1.msra.mxu0 0.0
    %6518 = vmatprep.subr.mxu0 0.0
    %6519 = vmatpush1.msra.mxu0 0.0
    %6520 = vmatprep.subr.mxu0 0.0
    %6521 = vmatpush1.msra.mxu0 0.0
    %6522 = vmatprep.subr.mxu0 0.0
    %6523 = vmatpush1.msra.mxu0 0.0
    %6524 = vmatprep.subr.mxu0 0.0
    %6525 = vmatpush1.msra.mxu0 0.0
    %6526 = vmatprep.subr.mxu0 0.0
    %6527 = vmatpush1.msra.mxu0 0.0
    %6528 = vmatprep.subr.mxu0 0.0
    %6529 = vmatpush1.msra.mxu0 0.0
    %6530 = vmatprep.subr.mxu0 0.0
    %6531 = vmatpush1.msra.mxu0 0.0
    %6532 = vmatprep.mubr.f32.mxu0 0.0
    %v6533 = vand.u32 %v5875, 4294901760
    %v6534 = vsub.f32 %v5875, %v6533
    %v6535 = vand.u32 %v6534, 4294901760
    %v6536 = vsub.f32 %v6534, %v6535
    %v6537 = vand.u32 %v6536, 4294901760
    %6538 = vmatmul.mubr.f32.gmra.mrb[0].mxu0 %v6537
    %v6539 = vpop.f32.mrb[0].mxu0
    %v6540 = vadd.f32 %v5872, %v6539
    %v6541 = vpop.f32.mrb[0].mxu0
    %v6542 = vadd.f32 %v5872, %v6541
    %6543 = vdwg.mxu0
    %v6544 = vand.u32 %v5852, 4294901760
    %v6545 = vsub.f32 %v5852, %v6544
    %v6546 = vand.u32 %v6545, 4294901760
    %v6547 = vsub.f32 %v6545, %v6546
    %v6548 = vand.u32 %v6547, 4294901760
    %6549 = vmatprep.subr.mxu0 %v6548
    %v6550 = vand.u32 %v5851, 4294901760
    %v6551 = vsub.f32 %v5851, %v6550
    %v6552 = vand.u32 %v6551, 4294901760
    %v6553 = vsub.f32 %v6551, %v6552
    %v6554 = vand.u32 %v6553, 4294901760
    %6555 = vmatpush1.msra.mxu0 %v6554
    %v6556 = vand.u32 %v5856, 4294901760
    %v6557 = vsub.f32 %v5856, %v6556
    %v6558 = vand.u32 %v6557, 4294901760
    %v6559 = vsub.f32 %v6557, %v6558
    %v6560 = vand.u32 %v6559, 4294901760
    %6561 = vmatprep.subr.mxu0 %v6560
    %v6562 = vand.u32 %v5855, 4294901760
    %v6563 = vsub.f32 %v5855, %v6562
    %v6564 = vand.u32 %v6563, 4294901760
    %v6565 = vsub.f32 %v6563, %v6564
    %v6566 = vand.u32 %v6565, 4294901760
    %6567 = vmatpush1.msra.mxu0 %v6566
    %v6568 = vand.u32 %v5860, 4294901760
    %v6569 = vsub.f32 %v5860, %v6568
    %v6570 = vand.u32 %v6569, 4294901760
    %v6571 = vsub.f32 %v6569, %v6570
    %v6572 = vand.u32 %v6571, 4294901760
    %6573 = vmatprep.subr.mxu0 %v6572
    %v6574 = vand.u32 %v5859, 4294901760
    %v6575 = vsub.f32 %v5859, %v6574
    %v6576 = vand.u32 %v6575, 4294901760
    %v6577 = vsub.f32 %v6575, %v6576
    %v6578 = vand.u32 %v6577, 4294901760
    %6579 = vmatpush1.msra.mxu0 %v6578
    %v6580 = vand.u32 %v5864, 4294901760
    %v6581 = vsub.f32 %v5864, %v6580
    %v6582 = vand.u32 %v6581, 4294901760
    %v6583 = vsub.f32 %v6581, %v6582
    %v6584 = vand.u32 %v6583, 4294901760
    %6585 = vmatprep.subr.mxu0 %v6584
    %v6586 = vand.u32 %v5863, 4294901760
    %v6587 = vsub.f32 %v5863, %v6586
    %v6588 = vand.u32 %v6587, 4294901760
    %v6589 = vsub.f32 %v6587, %v6588
    %v6590 = vand.u32 %v6589, 4294901760
    %6591 = vmatpush1.msra.mxu0 %v6590
    %v6592 = vand.u32 %v5887, 4294901760
    %v6593 = vsub.f32 %v5887, %v6592
    %v6594 = vand.u32 %v6593, 4294901760
    %v6595 = vsub.f32 %v6593, %v6594
    %v6596 = vand.u32 %v6595, 4294901760
    %6597 = vmatprep.subr.mxu0 %v6596
    %v6598 = vand.u32 %v5884, 4294901760
    %v6599 = vsub.f32 %v5884, %v6598
    %v6600 = vand.u32 %v6599, 4294901760
    %v6601 = vsub.f32 %v6599, %v6600
    %v6602 = vand.u32 %v6601, 4294901760
    %6603 = vmatpush1.msra.mxu0 %v6602
    %6604 = vmatprep.subr.mxu0 0.0
    %6605 = vmatpush1.msra.mxu0 0.0
    %6606 = vmatprep.subr.mxu0 0.0
    %6607 = vmatpush1.msra.mxu0 0.0
    %6608 = vmatprep.subr.mxu0 0.0
    %6609 = vmatpush1.msra.mxu0 0.0
    %6610 = vmatprep.subr.mxu0 0.0
    %6611 = vmatpush1.msra.mxu0 0.0
    %6612 = vmatprep.subr.mxu0 0.0
    %6613 = vmatpush1.msra.mxu0 0.0
    %6614 = vmatprep.subr.mxu0 0.0
    %6615 = vmatpush1.msra.mxu0 0.0
    %6616 = vmatprep.subr.mxu0 0.0
    %6617 = vmatpush1.msra.mxu0 0.0
    %6618 = vmatprep.subr.mxu0 0.0
    %6619 = vmatpush1.msra.mxu0 0.0
    %6620 = vmatprep.subr.mxu0 0.0
    %6621 = vmatpush1.msra.mxu0 0.0
    %6622 = vmatprep.subr.mxu0 0.0
    %6623 = vmatpush1.msra.mxu0 0.0
    %6624 = vmatprep.subr.mxu0 0.0
    %6625 = vmatpush1.msra.mxu0 0.0
    %6626 = vmatprep.subr.mxu0 0.0
    %6627 = vmatpush1.msra.mxu0 0.0
    %6628 = vmatprep.subr.mxu0 0.0
    %6629 = vmatpush1.msra.mxu0 0.0
    %6630 = vmatprep.subr.mxu0 0.0
    %6631 = vmatpush1.msra.mxu0 0.0
    %6632 = vmatprep.subr.mxu0 0.0
    %6633 = vmatpush1.msra.mxu0 0.0
    %6634 = vmatprep.subr.mxu0 0.0
    %6635 = vmatpush1.msra.mxu0 0.0
    %6636 = vmatprep.subr.mxu0 0.0
    %6637 = vmatpush1.msra.mxu0 0.0
    %6638 = vmatprep.subr.mxu0 0.0
    %6639 = vmatpush1.msra.mxu0 0.0
    %6640 = vmatprep.subr.mxu0 0.0
    %6641 = vmatpush1.msra.mxu0 0.0
    %6642 = vmatprep.subr.mxu0 0.0
    %6643 = vmatpush1.msra.mxu0 0.0
    %6644 = vmatprep.subr.mxu0 0.0
    %6645 = vmatpush1.msra.mxu0 0.0
    %6646 = vmatprep.subr.mxu0 0.0
    %6647 = vmatpush1.msra.mxu0 0.0
    %6648 = vmatprep.subr.mxu0 0.0
    %6649 = vmatpush1.msra.mxu0 0.0
    %6650 = vmatprep.subr.mxu0 0.0
    %6651 = vmatpush1.msra.mxu0 0.0
    %6652 = vmatprep.subr.mxu0 0.0
    %6653 = vmatpush1.msra.mxu0 0.0
    %6654 = vmatprep.subr.mxu0 0.0
    %6655 = vmatpush1.msra.mxu0 0.0
    %6656 = vmatprep.subr.mxu0 0.0
    %6657 = vmatpush1.msra.mxu0 0.0
    %6658 = vmatprep.mubr.f32.mxu0 0.0
    %v6659 = vand.u32 %v5875, 4294901760
    %6660 = vmatmul.mubr.f32.gmra.mrb[0].mxu0 %v6659
    %v6661 = vpop.f32.mrb[0].mxu0
    %v6662 = vadd.f32 %v6540, %v6661
    %v6663 = vpop.f32.mrb[0].mxu0
    %v6664 = vadd.f32 %v6542, %v6663
    %6665 = vdwg.mxu0
    %v6666 = vand.u32 %v5852, 4294901760
    %v6667 = vsub.f32 %v5852, %v6666
    %6668 = vmatprep.subr.mxu0 %v6667
    %v6669 = vand.u32 %v5851, 4294901760
    %v6670 = vsub.f32 %v5851, %v6669
    %6671 = vmatpush1.msra.mxu0 %v6670
    %v6672 = vand.u32 %v5856, 4294901760
    %v6673 = vsub.f32 %v5856, %v6672
    %6674 = vmatprep.subr.mxu0 %v6673
    %v6675 = vand.u32 %v5855, 4294901760
    %v6676 = vsub.f32 %v5855, %v6675
    %6677 = vmatpush1.msra.mxu0 %v6676
    %v6678 = vand.u32 %v5860, 4294901760
    %v6679 = vsub.f32 %v5860, %v6678
    %6680 = vmatprep.subr.mxu0 %v6679
    %v6681 = vand.u32 %v5859, 4294901760
    %v6682 = vsub.f32 %v5859, %v6681
    %6683 = vmatpush1.msra.mxu0 %v6682
    %v6684 = vand.u32 %v5864, 4294901760
    %v6685 = vsub.f32 %v5864, %v6684
    %6686 = vmatprep.subr.mxu0 %v6685
    %v6687 = vand.u32 %v5863, 4294901760
    %v6688 = vsub.f32 %v5863, %v6687
    %6689 = vmatpush1.msra.mxu0 %v6688
    %v6690 = vand.u32 %v5887, 4294901760
    %v6691 = vsub.f32 %v5887, %v6690
    %6692 = vmatprep.subr.mxu0 %v6691
    %v6693 = vand.u32 %v5884, 4294901760
    %v6694 = vsub.f32 %v5884, %v6693
    %6695 = vmatpush1.msra.mxu0 %v6694
    %6696 = vmatprep.subr.mxu0 0.0
    %6697 = vmatpush1.msra.mxu0 0.0
    %6698 = vmatprep.subr.mxu0 0.0
    %6699 = vmatpush1.msra.mxu0 0.0
    %6700 = vmatprep.subr.mxu0 0.0
    %6701 = vmatpush1.msra.mxu0 0.0
    %6702 = vmatprep.subr.mxu0 0.0
    %6703 = vmatpush1.msra.mxu0 0.0
    %6704 = vmatprep.subr.mxu0 0.0
    %6705 = vmatpush1.msra.mxu0 0.0
    %6706 = vmatprep.subr.mxu0 0.0
    %6707 = vmatpush1.msra.mxu0 0.0
    %6708 = vmatprep.subr.mxu0 0.0
    %6709 = vmatpush1.msra.mxu0 0.0
    %6710 = vmatprep.subr.mxu0 0.0
    %6711 = vmatpush1.msra.mxu0 0.0
    %6712 = vmatprep.subr.mxu0 0.0
    %6713 = vmatpush1.msra.mxu0 0.0
    %6714 = vmatprep.subr.mxu0 0.0
    %6715 = vmatpush1.msra.mxu0 0.0
    %6716 = vmatprep.subr.mxu0 0.0
    %6717 = vmatpush1.msra.mxu0 0.0
    %6718 = vmatprep.subr.mxu0 0.0
    %6719 = vmatpush1.msra.mxu0 0.0
    %6720 = vmatprep.subr.mxu0 0.0
    %6721 = vmatpush1.msra.mxu0 0.0
    %6722 = vmatprep.subr.mxu0 0.0
    %6723 = vmatpush1.msra.mxu0 0.0
    %6724 = vmatprep.subr.mxu0 0.0
    %6725 = vmatpush1.msra.mxu0 0.0
    %6726 = vmatprep.subr.mxu0 0.0
    %6727 = vmatpush1.msra.mxu0 0.0
    %6728 = vmatprep.subr.mxu0 0.0
    %6729 = vmatpush1.msra.mxu0 0.0
    %6730 = vmatprep.subr.mxu0 0.0
    %6731 = vmatpush1.msra.mxu0 0.0
    %6732 = vmatprep.subr.mxu0 0.0
    %6733 = vmatpush1.msra.mxu0 0.0
    %6734 = vmatprep.subr.mxu0 0.0
    %6735 = vmatpush1.msra.mxu0 0.0
    %6736 = vmatprep.subr.mxu0 0.0
    %6737 = vmatpush1.msra.mxu0 0.0
    %6738 = vmatprep.subr.mxu0 0.0
    %6739 = vmatpush1.msra.mxu0 0.0
    %6740 = vmatprep.subr.mxu0 0.0
    %6741 = vmatpush1.msra.mxu0 0.0
    %6742 = vmatprep.subr.mxu0 0.0
    %6743 = vmatpush1.msra.mxu0 0.0
    %6744 = vmatprep.subr.mxu0 0.0
    %6745 = vmatpush1.msra.mxu0 0.0
    %6746 = vmatprep.subr.mxu0 0.0
    %6747 = vmatpush1.msra.mxu0 0.0
    %6748 = vmatprep.subr.mxu0 0.0
    %6749 = vmatpush1.msra.mxu0 0.0
    %6750 = vmatprep.mubr.f32.mxu0 0.0
    %v6751 = vand.u32 %v5875, 4294901760
    %v6752 = vsub.f32 %v5875, %v6751
    %6753 = vmatmul.mubr.f32.gmra.mrb[0].mxu0 %v6752
    %v6754 = vpop.f32.mrb[0].mxu0
    %v6755 = vadd.f32 %v6662, %v6754
    %v6756 = vpop.f32.mrb[0].mxu0
    %v6757 = vadd.f32 %v6664, %v6756
    %6758 = vdwg.mxu0
    %v6759 = vand.u32 %v5852, 4294901760
    %6760 = vmatprep.subr.mxu0 %v6759
    %v6761 = vand.u32 %v5851, 4294901760
    %6762 = vmatpush1.msra.mxu0 %v6761
    %v6763 = vand.u32 %v5856, 4294901760
    %6764 = vmatprep.subr.mxu0 %v6763
    %v6765 = vand.u32 %v5855, 4294901760
    %6766 = vmatpush1.msra.mxu0 %v6765
    %v6767 = vand.u32 %v5860, 4294901760
    %6768 = vmatprep.subr.mxu0 %v6767
    %v6769 = vand.u32 %v5859, 4294901760
    %6770 = vmatpush1.msra.mxu0 %v6769
    %v6771 = vand.u32 %v5864, 4294901760
    %6772 = vmatprep.subr.mxu0 %v6771
    %v6773 = vand.u32 %v5863, 4294901760
    %6774 = vmatpush1.msra.mxu0 %v6773
    %v6775 = vand.u32 %v5887, 4294901760
    %6776 = vmatprep.subr.mxu0 %v6775
    %v6777 = vand.u32 %v5884, 4294901760
    %6778 = vmatpush1.msra.mxu0 %v6777
    %6779 = vmatprep.subr.mxu0 0.0
    %6780 = vmatpush1.msra.mxu0 0.0
    %6781 = vmatprep.subr.mxu0 0.0
    %6782 = vmatpush1.msra.mxu0 0.0
    %6783 = vmatprep.subr.mxu0 0.0
    %6784 = vmatpush1.msra.mxu0 0.0
    %6785 = vmatprep.subr.mxu0 0.0
    %6786 = vmatpush1.msra.mxu0 0.0
    %6787 = vmatprep.subr.mxu0 0.0
    %6788 = vmatpush1.msra.mxu0 0.0
    %6789 = vmatprep.subr.mxu0 0.0
    %6790 = vmatpush1.msra.mxu0 0.0
    %6791 = vmatprep.subr.mxu0 0.0
    %6792 = vmatpush1.msra.mxu0 0.0
    %6793 = vmatprep.subr.mxu0 0.0
    %6794 = vmatpush1.msra.mxu0 0.0
    %6795 = vmatprep.subr.mxu0 0.0
    %6796 = vmatpush1.msra.mxu0 0.0
    %6797 = vmatprep.subr.mxu0 0.0
    %6798 = vmatpush1.msra.mxu0 0.0
    %6799 = vmatprep.subr.mxu0 0.0
    %6800 = vmatpush1.msra.mxu0 0.0
    %6801 = vmatprep.subr.mxu0 0.0
    %6802 = vmatpush1.msra.mxu0 0.0
    %6803 = vmatprep.subr.mxu0 0.0
    %6804 = vmatpush1.msra.mxu0 0.0
    %6805 = vmatprep.subr.mxu0 0.0
    %6806 = vmatpush1.msra.mxu0 0.0
    %6807 = vmatprep.subr.mxu0 0.0
    %6808 = vmatpush1.msra.mxu0 0.0
    %6809 = vmatprep.subr.mxu0 0.0
    %6810 = vmatpush1.msra.mxu0 0.0
    %6811 = vmatprep.subr.mxu0 0.0
    %6812 = vmatpush1.msra.mxu0 0.0
    %6813 = vmatprep.subr.mxu0 0.0
    %6814 = vmatpush1.msra.mxu0 0.0
    %6815 = vmatprep.subr.mxu0 0.0
    %6816 = vmatpush1.msra.mxu0 0.0
    %6817 = vmatprep.subr.mxu0 0.0
    %6818 = vmatpush1.msra.mxu0 0.0
    %6819 = vmatprep.subr.mxu0 0.0
    %6820 = vmatpush1.msra.mxu0 0.0
    %6821 = vmatprep.subr.mxu0 0.0
    %6822 = vmatpush1.msra.mxu0 0.0
    %6823 = vmatprep.subr.mxu0 0.0
    %6824 = vmatpush1.msra.mxu0 0.0
    %6825 = vmatprep.subr.mxu0 0.0
    %6826 = vmatpush1.msra.mxu0 0.0
    %6827 = vmatprep.subr.mxu0 0.0
    %6828 = vmatpush1.msra.mxu0 0.0
    %6829 = vmatprep.subr.mxu0 0.0
    %6830 = vmatpush1.msra.mxu0 0.0
    %6831 = vmatprep.subr.mxu0 0.0
    %6832 = vmatpush1.msra.mxu0 0.0
    %6833 = vmatprep.mubr.f32.mxu0 0.0
    %v6834 = vand.u32 %v5875, 4294901760
    %v6835 = vsub.f32 %v5875, %v6834
    %v6836 = vand.u32 %v6835, 4294901760
    %6837 = vmatmul.mubr.f32.gmra.mrb[0].mxu0 %v6836
    %v6838 = vpop.f32.mrb[0].mxu0
    %v6839 = vadd.f32 %v6755, %v6838
    %v6840 = vpop.f32.mrb[0].mxu0
    %v6841 = vadd.f32 %v6757, %v6840
    %6842 = vdwg.mxu0
    %v6843 = vand.u32 %v5852, 4294901760
    %v6844 = vsub.f32 %v5852, %v6843
    %v6845 = vand.u32 %v6844, 4294901760
    %6846 = vmatprep.subr.mxu0 %v6845
    %v6847 = vand.u32 %v5851, 4294901760
    %v6848 = vsub.f32 %v5851, %v6847
    %v6849 = vand.u32 %v6848, 4294901760
    %6850 = vmatpush1.msra.mxu0 %v6849
    %v6851 = vand.u32 %v5856, 4294901760
    %v6852 = vsub.f32 %v5856, %v6851
    %v6853 = vand.u32 %v6852, 4294901760
    %6854 = vmatprep.subr.mxu0 %v6853
    %v6855 = vand.u32 %v5855, 4294901760
    %v6856 = vsub.f32 %v5855, %v6855
    %v6857 = vand.u32 %v6856, 4294901760
    %6858 = vmatpush1.msra.mxu0 %v6857
    %v6859 = vand.u32 %v5860, 4294901760
    %v6860 = vsub.f32 %v5860, %v6859
    %v6861 = vand.u32 %v6860, 4294901760
    %6862 = vmatprep.subr.mxu0 %v6861
    %v6863 = vand.u32 %v5859, 4294901760
    %v6864 = vsub.f32 %v5859, %v6863
    %v6865 = vand.u32 %v6864, 4294901760
    %6866 = vmatpush1.msra.mxu0 %v6865
    %v6867 = vand.u32 %v5864, 4294901760
    %v6868 = vsub.f32 %v5864, %v6867
    %v6869 = vand.u32 %v6868, 4294901760
    %6870 = vmatprep.subr.mxu0 %v6869
    %v6871 = vand.u32 %v5863, 4294901760
    %v6872 = vsub.f32 %v5863, %v6871
    %v6873 = vand.u32 %v6872, 4294901760
    %6874 = vmatpush1.msra.mxu0 %v6873
    %v6875 = vand.u32 %v5887, 4294901760
    %v6876 = vsub.f32 %v5887, %v6875
    %v6877 = vand.u32 %v6876, 4294901760
    %6878 = vmatprep.subr.mxu0 %v6877
    %v6879 = vand.u32 %v5884, 4294901760
    %v6880 = vsub.f32 %v5884, %v6879
    %v6881 = vand.u32 %v6880, 4294901760
    %6882 = vmatpush1.msra.mxu0 %v6881
    %6883 = vmatprep.subr.mxu0 0.0
    %6884 = vmatpush1.msra.mxu0 0.0
    %6885 = vmatprep.subr.mxu0 0.0
    %6886 = vmatpush1.msra.mxu0 0.0
    %6887 = vmatprep.subr.mxu0 0.0
    %6888 = vmatpush1.msra.mxu0 0.0
    %6889 = vmatprep.subr.mxu0 0.0
    %6890 = vmatpush1.msra.mxu0 0.0
    %6891 = vmatprep.subr.mxu0 0.0
    %6892 = vmatpush1.msra.mxu0 0.0
    %6893 = vmatprep.subr.mxu0 0.0
    %6894 = vmatpush1.msra.mxu0 0.0
    %6895 = vmatprep.subr.mxu0 0.0
    %6896 = vmatpush1.msra.mxu0 0.0
    %6897 = vmatprep.subr.mxu0 0.0
    %6898 = vmatpush1.msra.mxu0 0.0
    %6899 = vmatprep.subr.mxu0 0.0
    %6900 = vmatpush1.msra.mxu0 0.0
    %6901 = vmatprep.subr.mxu0 0.0
    %6902 = vmatpush1.msra.mxu0 0.0
    %6903 = vmatprep.subr.mxu0 0.0
    %6904 = vmatpush1.msra.mxu0 0.0
    %6905 = vmatprep.subr.mxu0 0.0
    %6906 = vmatpush1.msra.mxu0 0.0
    %6907 = vmatprep.subr.mxu0 0.0
    %6908 = vmatpush1.msra.mxu0 0.0
    %6909 = vmatprep.subr.mxu0 0.0
    %6910 = vmatpush1.msra.mxu0 0.0
    %6911 = vmatprep.subr.mxu0 0.0
    %6912 = vmatpush1.msra.mxu0 0.0
    %6913 = vmatprep.subr.mxu0 0.0
    %6914 = vmatpush1.msra.mxu0 0.0
    %6915 = vmatprep.subr.mxu0 0.0
    %6916 = vmatpush1.msra.mxu0 0.0
    %6917 = vmatprep.subr.mxu0 0.0
    %6918 = vmatpush1.msra.mxu0 0.0
    %6919 = vmatprep.subr.mxu0 0.0
    %6920 = vmatpush1.msra.mxu0 0.0
    %6921 = vmatprep.subr.mxu0 0.0
    %6922 = vmatpush1.msra.mxu0 0.0
    %6923 = vmatprep.subr.mxu0 0.0
    %6924 = vmatpush1.msra.mxu0 0.0
    %6925 = vmatprep.subr.mxu0 0.0
    %6926 = vmatpush1.msra.mxu0 0.0
    %6927 = vmatprep.subr.mxu0 0.0
    %6928 = vmatpush1.msra.mxu0 0.0
    %6929 = vmatprep.subr.mxu0 0.0
    %6930 = vmatpush1.msra.mxu0 0.0
    %6931 = vmatprep.subr.mxu0 0.0
    %6932 = vmatpush1.msra.mxu0 0.0
    %6933 = vmatprep.subr.mxu0 0.0
    %6934 = vmatpush1.msra.mxu0 0.0
    %6935 = vmatprep.subr.mxu0 0.0
    %6936 = vmatpush1.msra.mxu0 0.0
    %6937 = vmatprep.mubr.f32.mxu0 0.0
    %v6938 = vand.u32 %v5875, 4294901760
    %6939 = vmatmul.mubr.f32.gmra.mrb[0].mxu0 %v6938
    %v6940 = vpop.f32.mrb[0].mxu0
    %v6941 = vadd.f32 %v6839, %v6940
    %v6942 = vpop.f32.mrb[0].mxu0
    %v6943 = vadd.f32 %v6841, %v6942
    %6944 = vdwg.mxu0
    %v6945 = vand.u32 %v5852, 4294901760
    %6946 = vmatprep.subr.mxu0 %v6945
    %v6947 = vand.u32 %v5851, 4294901760
    %6948 = vmatpush1.msra.mxu0 %v6947
    %v6949 = vand.u32 %v5856, 4294901760
    %6950 = vmatprep.subr.mxu0 %v6949
    %v6951 = vand.u32 %v5855, 4294901760
    %6952 = vmatpush1.msra.mxu0 %v6951
    %v6953 = vand.u32 %v5860, 4294901760
    %6954 = vmatprep.subr.mxu0 %v6953
    %v6955 = vand.u32 %v5859, 4294901760
    %6956 = vmatpush1.msra.mxu0 %v6955
    %v6957 = vand.u32 %v5864, 4294901760
    %6958 = vmatprep.subr.mxu0 %v6957
    %v6959 = vand.u32 %v5863, 4294901760
    %6960 = vmatpush1.msra.mxu0 %v6959
    %v6961 = vand.u32 %v5887, 4294901760
    %6962 = vmatprep.subr.mxu0 %v6961
    %v6963 = vand.u32 %v5884, 4294901760
    %6964 = vmatpush1.msra.mxu0 %v6963
    %6965 = vmatprep.subr.mxu0 0.0
    %6966 = vmatpush1.msra.mxu0 0.0
    %6967 = vmatprep.subr.mxu0 0.0
    %6968 = vmatpush1.msra.mxu0 0.0
    %6969 = vmatprep.subr.mxu0 0.0
    %6970 = vmatpush1.msra.mxu0 0.0
    %6971 = vmatprep.subr.mxu0 0.0
    %6972 = vmatpush1.msra.mxu0 0.0
    %6973 = vmatprep.subr.mxu0 0.0
    %6974 = vmatpush1.msra.mxu0 0.0
    %6975 = vmatprep.subr.mxu0 0.0
    %6976 = vmatpush1.msra.mxu0 0.0
    %6977 = vmatprep.subr.mxu0 0.0
    %6978 = vmatpush1.msra.mxu0 0.0
    %6979 = vmatprep.subr.mxu0 0.0
    %6980 = vmatpush1.msra.mxu0 0.0
    %6981 = vmatprep.subr.mxu0 0.0
    %6982 = vmatpush1.msra.mxu0 0.0
    %6983 = vmatprep.subr.mxu0 0.0
    %6984 = vmatpush1.msra.mxu0 0.0
    %6985 = vmatprep.subr.mxu0 0.0
    %6986 = vmatpush1.msra.mxu0 0.0
    %6987 = vmatprep.subr.mxu0 0.0
    %6988 = vmatpush1.msra.mxu0 0.0
    %6989 = vmatprep.subr.mxu0 0.0
    %6990 = vmatpush1.msra.mxu0 0.0
    %6991 = vmatprep.subr.mxu0 0.0
    %6992 = vmatpush1.msra.mxu0 0.0
    %6993 = vmatprep.subr.mxu0 0.0
    %6994 = vmatpush1.msra.mxu0 0.0
    %6995 = vmatprep.subr.mxu0 0.0
    %6996 = vmatpush1.msra.mxu0 0.0
    %6997 = vmatprep.subr.mxu0 0.0
    %6998 = vmatpush1.msra.mxu0 0.0
    %6999 = vmatprep.subr.mxu0 0.0
    %7000 = vmatpush1.msra.mxu0 0.0
    %7001 = vmatprep.subr.mxu0 0.0
    %7002 = vmatpush1.msra.mxu0 0.0
    %7003 = vmatprep.subr.mxu0 0.0
    %7004 = vmatpush1.msra.mxu0 0.0
    %7005 = vmatprep.subr.mxu0 0.0
    %7006 = vmatpush1.msra.mxu0 0.0
    %7007 = vmatprep.subr.mxu0 0.0
    %7008 = vmatpush1.msra.mxu0 0.0
    %7009 = vmatprep.subr.mxu0 0.0
    %7010 = vmatpush1.msra.mxu0 0.0
    %7011 = vmatprep.subr.mxu0 0.0
    %7012 = vmatpush1.msra.mxu0 0.0
    %7013 = vmatprep.subr.mxu0 0.0
    %7014 = vmatpush1.msra.mxu0 0.0
    %7015 = vmatprep.subr.mxu0 0.0
    %7016 = vmatpush1.msra.mxu0 0.0
    %7017 = vmatprep.subr.mxu0 0.0
    %7018 = vmatpush1.msra.mxu0 0.0
    %7019 = vmatprep.mubr.f32.mxu0 0.0
    %v7020 = vand.u32 %v5875, 4294901760
    %7021 = vmatmul.mubr.f32.gmra.mrb[0].mxu0 %v7020
    %v7022 = vpop.f32.mrb[0].mxu0
    %v7023 = vadd.f32 %v6941, %v7022
    %v7024 = vpop.f32.mrb[0].mxu0
    %v7025 = vadd.f32 %v6943, %v7024
    %7026 = vdwg.mxu0
    %v7027 = vmax.f32 %v6454, 0.0
    %v7028 = vmax.f32 %v6456, 0.0
    %v7029 = vmax.f32 %v7023, 0.0
    %v7030 = vmax.f32 %v7025, 0.0
    %v7035 = vcombine.low %v7027, %v7028
    %v7036 = vcombine.low %v7029, %v7030
    %s7039 = scalar_lea.vmem [#allocation7], 64
    %7040 = vst [vmem:[%s7039] sm:$0xff] %v7035
    %7041 = vst [vmem:[%s7039 + $0x8] sm:$0xff] %v7036
    %7042 = vrot.lane.b32.xlu0 %v7027, 17
    %v7043 = vpop.permute.xlu0 %7042
    %7044 = vrot.lane.b32.xlu0 %v7028, 17
    %v7045 = vpop.permute.xlu0 %7044
    %7046 = vrot.lane.b32.xlu0 %v7029, 17
    %v7047 = vpop.permute.xlu0 %7046
    %7048 = vrot.lane.b32.xlu0 %v7030, 17
    %v7049 = vpop.permute.xlu0 %7048
    %v7050 = vsel %vm70, %v7047, %v7049
    %v7051 = vsel %vm70, %v7045, %v7047
    %v7052 = vsel %vm70, %v7043, %v7045
    %v7053 = vsel %vm70, %v7049, %v7043
    %v7054 = vmul.f32 %v7053, %v78
    %v7055 = vmul.f32 %v7052, %v82
    %v7056 = vmul.f32 %v7051, %v86
    %v7057 = vmul.f32 %v7050, %v90
    %7058 = vrot.lane.b32.xlu0 %v7027, 16
    %v7059 = vpop.permute.xlu0 %7058
    %7060 = vrot.lane.b32.xlu0 %v7028, 16
    %v7061 = vpop.permute.xlu0 %7060
    %7062 = vrot.lane.b32.xlu0 %v7029, 16
    %v7063 = vpop.permute.xlu0 %7062
    %7064 = vrot.lane.b32.xlu0 %v7030, 16
    %v7065 = vpop.permute.xlu0 %7064
    %v7066 = vsel %vm103, %v7063, %v7065
    %v7067 = vsel %vm103, %v7061, %v7063
    %v7068 = vsel %vm103, %v7059, %v7061
    %v7069 = vsel %vm103, %v7065, %v7059
    %v7070 = vmul.f32 %v7069, %v111
    %v7071 = vmul.f32 %v7068, %v115
    %v7072 = vmul.f32 %v7067, %v119
    %v7073 = vmul.f32 %v7066, %v123
    %7074 = vrot.lane.b32.xlu0 %v7027, 15
    %v7075 = vpop.permute.xlu0 %7074
    %7076 = vrot.lane.b32.xlu0 %v7028, 15
    %v7077 = vpop.permute.xlu0 %7076
    %7078 = vrot.lane.b32.xlu0 %v7029, 15
    %v7079 = vpop.permute.xlu0 %7078
    %7080 = vrot.lane.b32.xlu0 %v7030, 15
    %v7081 = vpop.permute.xlu0 %7080
    %v7082 = vsel %vm136, %v7079, %v7081
    %v7083 = vsel %vm136, %v7077, %v7079
    %v7084 = vsel %vm136, %v7075, %v7077
    %v7085 = vsel %vm136, %v7081, %v7075
    %v7086 = vmul.f32 %v7085, %v144
    %v7087 = vmul.f32 %v7084, %v148
    %v7088 = vmul.f32 %v7083, %v152
    %v7089 = vmul.f32 %v7082, %v156
    %7090 = vrot.lane.b32.xlu0 %v7027, 1
    %v7091 = vpop.permute.xlu0 %7090
    %7092 = vrot.lane.b32.xlu0 %v7028, 1
    %v7093 = vpop.permute.xlu0 %7092
    %7094 = vrot.lane.b32.xlu0 %v7029, 1
    %v7095 = vpop.permute.xlu0 %7094
    %7096 = vrot.lane.b32.xlu0 %v7030, 1
    %v7097 = vpop.permute.xlu0 %7096
    %v7098 = vsel %vm169, %v7095, %v7097
    %v7099 = vsel %vm169, %v7093, %v7095
    %v7100 = vsel %vm169, %v7091, %v7093
    %v7101 = vsel %vm169, %v7097, %v7091
    %v7102 = vmul.f32 %v7101, %v177
    %v7103 = vmul.f32 %v7100, %v181
    %v7104 = vmul.f32 %v7099, %v185
    %v7105 = vmul.f32 %v7098, %v189
    %7106 = vrot.lane.b32.xlu0 %v7027, 127
    %v7107 = vpop.permute.xlu0 %7106
    %7108 = vrot.lane.b32.xlu0 %v7028, 127
    %v7109 = vpop.permute.xlu0 %7108
    %7110 = vrot.lane.b32.xlu0 %v7029, 127
    %v7111 = vpop.permute.xlu0 %7110
    %7112 = vrot.lane.b32.xlu0 %v7030, 127
    %v7113 = vpop.permute.xlu0 %7112
    %v7114 = vsel %vm202, %v7111, %v7113
    %v7115 = vsel %vm202, %v7109, %v7111
    %v7116 = vsel %vm202, %v7107, %v7109
    %v7117 = vsel %vm202, %v7113, %v7107
    %v7118 = vmul.f32 %v7116, %v210
    %v7119 = vmul.f32 %v7115, %v214
    %v7120 = vmul.f32 %v7114, %v218
    %v7121 = vmul.f32 %v7117, %v222
    %7122 = vrot.lane.b32.xlu0 %v7027, 113
    %v7123 = vpop.permute.xlu0 %7122
    %7124 = vrot.lane.b32.xlu0 %v7028, 113
    %v7125 = vpop.permute.xlu0 %7124
    %7126 = vrot.lane.b32.xlu0 %v7029, 113
    %v7127 = vpop.permute.xlu0 %7126
    %7128 = vrot.lane.b32.xlu0 %v7030, 113
    %v7129 = vpop.permute.xlu0 %7128
    %v7130 = vsel %vm235, %v7127, %v7129
    %v7131 = vsel %vm235, %v7125, %v7127
    %v7132 = vsel %vm235, %v7123, %v7125
    %v7133 = vsel %vm235, %v7129, %v7123
    %v7134 = vmul.f32 %v7132, %v243
    %v7135 = vmul.f32 %v7131, %v247
    %v7136 = vmul.f32 %v7130, %v251
    %v7137 = vmul.f32 %v7133, %v255
    %7138 = vrot.lane.b32.xlu0 %v7027, 112
    %v7139 = vpop.permute.xlu0 %7138
    %7140 = vrot.lane.b32.xlu0 %v7028, 112
    %v7141 = vpop.permute.xlu0 %7140
    %7142 = vrot.lane.b32.xlu0 %v7029, 112
    %v7143 = vpop.permute.xlu0 %7142
    %7144 = vrot.lane.b32.xlu0 %v7030, 112
    %v7145 = vpop.permute.xlu0 %7144
    %v7146 = vsel %vm268, %v7143, %v7145
    %v7147 = vsel %vm268, %v7141, %v7143
    %v7148 = vsel %vm268, %v7139, %v7141
    %v7149 = vsel %vm268, %v7145, %v7139
    %v7150 = vmul.f32 %v7148, %v276
    %v7151 = vmul.f32 %v7147, %v280
    %v7152 = vmul.f32 %v7146, %v284
    %v7153 = vmul.f32 %v7149, %v288
    %7154 = vrot.lane.b32.xlu0 %v7027, 111
    %v7155 = vpop.permute.xlu0 %7154
    %7156 = vrot.lane.b32.xlu0 %v7028, 111
    %v7157 = vpop.permute.xlu0 %7156
    %7158 = vrot.lane.b32.xlu0 %v7029, 111
    %v7159 = vpop.permute.xlu0 %7158
    %7160 = vrot.lane.b32.xlu0 %v7030, 111
    %v7161 = vpop.permute.xlu0 %7160
    %v7162 = vsel %vm301, %v7159, %v7161
    %v7163 = vsel %vm301, %v7157, %v7159
    %v7164 = vsel %vm301, %v7155, %v7157
    %v7165 = vsel %vm301, %v7161, %v7155
    %v7166 = vmul.f32 %v7164, %v309
    %v7167 = vmul.f32 %v7163, %v313
    %v7168 = vmul.f32 %v7162, %v317
    %v7169 = vmul.f32 %v7165, %v321
    %v7174 = vrot.slane %v7070, 4
    %v7175 = vrot.slane %v7071, 4
    %v7176 = vrot.slane %v7072, 4
    %v7177 = vrot.slane %v7073, 4
    %v7186 = vrot.slane %v7102, 4
    %v7187 = vrot.slane %v7103, 4
    %v7188 = vrot.slane %v7104, 4
    %v7189 = vrot.slane %v7105, 4
    %v7198 = vrot.slane %v7118, 4
    %v7199 = vrot.slane %v7119, 4
    %v7200 = vrot.slane %v7120, 4
    %v7201 = vrot.slane %v7121, 4
    %v7210 = vrot.slane %v7150, 4
    %v7211 = vrot.slane %v7151, 4
    %v7212 = vrot.slane %v7152, 4
    %v7213 = vrot.slane %v7153, 4
    %v7218 = vsel %vm374, %v7054, %v7174
    %v7219 = vsel %vm374, %v7055, %v7175
    %v7220 = vsel %vm374, %v7056, %v7176
    %v7221 = vsel %vm374, %v7057, %v7177
    %v7222 = vsel %vm374, %v7086, %v7186
    %v7223 = vsel %vm374, %v7087, %v7187
    %v7224 = vsel %vm374, %v7088, %v7188
    %v7225 = vsel %vm374, %v7089, %v7189
    %v7226 = vsel %vm374, %v7027, %v7198
    %v7227 = vsel %vm374, %v7028, %v7199
    %v7228 = vsel %vm374, %v7029, %v7200
    %v7229 = vsel %vm374, %v7030, %v7201
    %v7230 = vsel %vm374, %v7134, %v7210
    %v7231 = vsel %vm374, %v7135, %v7211
    %v7232 = vsel %vm374, %v7136, %v7212
    %v7233 = vsel %vm374, %v7137, %v7213
    %s7234 = scalar_lea.vmem %s1, 20
    %v7235 = vld [vmem:[%s7234] sm:$0xf]
    %s7236 = scalar_lea.vmem %s2, 20
    %v7237 = vld [vmem:[%s7236] sm:$0xf]
    %7239 = vset.pattern.permute.xlu0 0
    %7240 = vperm.xlu0 %7239, %v7237
    %v7241 = vpop.permute.xlu0 %7240
    %v7244 = vsel %vm398, %v7235, 0
    %v7247 = vsel %vm374, %v7166, 0
    %v7250 = vsel %vm374, %v7167, 0
    %v7253 = vsel %vm374, %v7168, 0
    %v7256 = vsel %vm374, %v7169, 0
    %v7258 = vand.u32 %v7219, 4294901760
    %7259 = vmatprep.subr.mxu0 %v7258
    %v7260 = vand.u32 %v7218, 4294901760
    %7261 = vmatpush1.msra.mxu0 %v7260
    %v7262 = vand.u32 %v7223, 4294901760
    %7263 = vmatprep.subr.mxu0 %v7262
    %v7264 = vand.u32 %v7222, 4294901760
    %7265 = vmatpush1.msra.mxu0 %v7264
    %v7266 = vand.u32 %v7227, 4294901760
    %7267 = vmatprep.subr.mxu0 %v7266
    %v7268 = vand.u32 %v7226, 4294901760
    %7269 = vmatpush1.msra.mxu0 %v7268
    %v7270 = vand.u32 %v7231, 4294901760
    %7271 = vmatprep.subr.mxu0 %v7270
    %v7272 = vand.u32 %v7230, 4294901760
    %7273 = vmatpush1.msra.mxu0 %v7272
    %v7274 = vand.u32 %v7250, 4294901760
    %7275 = vmatprep.subr.mxu0 %v7274
    %v7276 = vand.u32 %v7247, 4294901760
    %7277 = vmatpush1.msra.mxu0 %v7276
    %7278 = vmatprep.subr.mxu0 0.0
    %7279 = vmatpush1.msra.mxu0 0.0
    %7280 = vmatprep.subr.mxu0 0.0
    %7281 = vmatpush1.msra.mxu0 0.0
    %7282 = vmatprep.subr.mxu0 0.0
    %7283 = vmatpush1.msra.mxu0 0.0
    %7284 = vmatprep.subr.mxu0 0.0
    %7285 = vmatpush1.msra.mxu0 0.0
    %7286 = vmatprep.subr.mxu0 0.0
    %7287 = vmatpush1.msra.mxu0 0.0
    %7288 = vmatprep.subr.mxu0 0.0
    %7289 = vmatpush1.msra.mxu0 0.0
    %7290 = vmatprep.subr.mxu0 0.0
    %7291 = vmatpush1.msra.mxu0 0.0
    %7292 = vmatprep.subr.mxu0 0.0
    %7293 = vmatpush1.msra.mxu0 0.0
    %7294 = vmatprep.subr.mxu0 0.0
    %7295 = vmatpush1.msra.mxu0 0.0
    %7296 = vmatprep.subr.mxu0 0.0
    %7297 = vmatpush1.msra.mxu0 0.0
    %7298 = vmatprep.subr.mxu0 0.0
    %7299 = vmatpush1.msra.mxu0 0.0
    %7300 = vmatprep.subr.mxu0 0.0
    %7301 = vmatpush1.msra.mxu0 0.0
    %7302 = vmatprep.subr.mxu0 0.0
    %7303 = vmatpush1.msra.mxu0 0.0
    %7304 = vmatprep.subr.mxu0 0.0
    %7305 = vmatpush1.msra.mxu0 0.0
    %7306 = vmatprep.subr.mxu0 0.0
    %7307 = vmatpush1.msra.mxu0 0.0
    %7308 = vmatprep.subr.mxu0 0.0
    %7309 = vmatpush1.msra.mxu0 0.0
    %7310 = vmatprep.subr.mxu0 0.0
    %7311 = vmatpush1.msra.mxu0 0.0
    %7312 = vmatprep.subr.mxu0 0.0
    %7313 = vmatpush1.msra.mxu0 0.0
    %7314 = vmatprep.subr.mxu0 0.0
    %7315 = vmatpush1.msra.mxu0 0.0
    %7316 = vmatprep.subr.mxu0 0.0
    %7317 = vmatpush1.msra.mxu0 0.0
    %7318 = vmatprep.subr.mxu0 0.0
    %7319 = vmatpush1.msra.mxu0 0.0
    %7320 = vmatprep.subr.mxu0 0.0
    %7321 = vmatpush1.msra.mxu0 0.0
    %7322 = vmatprep.subr.mxu0 0.0
    %7323 = vmatpush1.msra.mxu0 0.0
    %7324 = vmatprep.subr.mxu0 0.0
    %7325 = vmatpush1.msra.mxu0 0.0
    %7326 = vmatprep.subr.mxu0 0.0
    %7327 = vmatpush1.msra.mxu0 0.0
    %7328 = vmatprep.subr.mxu0 0.0
    %7329 = vmatpush1.msra.mxu0 0.0
    %7330 = vmatprep.subr.mxu0 0.0
    %7331 = vmatpush1.msra.mxu0 0.0
    %7332 = vmatprep.mubr.f32.mxu0 0.0
    %v7333 = vand.u32 %v7244, 4294901760
    %v7334 = vsub.f32 %v7244, %v7333
    %v7335 = vand.u32 %v7334, 4294901760
    %v7336 = vsub.f32 %v7334, %v7335
    %v7337 = vand.u32 %v7336, 4294901760
    %7338 = vmatmul.mubr.f32.gmra.mrb[0].mxu0 %v7337
    %v7339 = vpop.f32.mrb[0].mxu0
    %v7340 = vadd.f32 %v7241, %v7339
    %v7341 = vpop.f32.mrb[0].mxu0
    %v7342 = vadd.f32 %v7241, %v7341
    %7343 = vdwg.mxu0
    %v7344 = vand.u32 %v7219, 4294901760
    %v7345 = vsub.f32 %v7219, %v7344
    %v7346 = vand.u32 %v7345, 4294901760
    %v7347 = vsub.f32 %v7345, %v7346
    %v7348 = vand.u32 %v7347, 4294901760
    %7349 = vmatprep.subr.mxu0 %v7348
    %v7350 = vand.u32 %v7218, 4294901760
    %v7351 = vsub.f32 %v7218, %v7350
    %v7352 = vand.u32 %v7351, 4294901760
    %v7353 = vsub.f32 %v7351, %v7352
    %v7354 = vand.u32 %v7353, 4294901760
    %7355 = vmatpush1.msra.mxu0 %v7354
    %v7356 = vand.u32 %v7223, 4294901760
    %v7357 = vsub.f32 %v7223, %v7356
    %v7358 = vand.u32 %v7357, 4294901760
    %v7359 = vsub.f32 %v7357, %v7358
    %v7360 = vand.u32 %v7359, 4294901760
    %7361 = vmatprep.subr.mxu0 %v7360
    %v7362 = vand.u32 %v7222, 4294901760
    %v7363 = vsub.f32 %v7222, %v7362
    %v7364 = vand.u32 %v7363, 4294901760
    %v7365 = vsub.f32 %v7363, %v7364
    %v7366 = vand.u32 %v7365, 4294901760
    %7367 = vmatpush1.msra.mxu0 %v7366
    %v7368 = vand.u32 %v7227, 4294901760
    %v7369 = vsub.f32 %v7227, %v7368
    %v7370 = vand.u32 %v7369, 4294901760
    %v7371 = vsub.f32 %v7369, %v7370
    %v7372 = vand.u32 %v7371, 4294901760
    %7373 = vmatprep.subr.mxu0 %v7372
    %v7374 = vand.u32 %v7226, 4294901760
    %v7375 = vsub.f32 %v7226, %v7374
    %v7376 = vand.u32 %v7375, 4294901760
    %v7377 = vsub.f32 %v7375, %v7376
    %v7378 = vand.u32 %v7377, 4294901760
    %7379 = vmatpush1.msra.mxu0 %v7378
    %v7380 = vand.u32 %v7231, 4294901760
    %v7381 = vsub.f32 %v7231, %v7380
    %v7382 = vand.u32 %v7381, 4294901760
    %v7383 = vsub.f32 %v7381, %v7382
    %v7384 = vand.u32 %v7383, 4294901760
    %7385 = vmatprep.subr.mxu0 %v7384
    %v7386 = vand.u32 %v7230, 4294901760
    %v7387 = vsub.f32 %v7230, %v7386
    %v7388 = vand.u32 %v7387, 4294901760
    %v7389 = vsub.f32 %v7387, %v7388
    %v7390 = vand.u32 %v7389, 4294901760
    %7391 = vmatpush1.msra.mxu0 %v7390
    %v7392 = vand.u32 %v7250, 4294901760
    %v7393 = vsub.f32 %v7250, %v7392
    %v7394 = vand.u32 %v7393, 4294901760
    %v7395 = vsub.f32 %v7393, %v7394
    %v7396 = vand.u32 %v7395, 4294901760
    %7397 = vmatprep.subr.mxu0 %v7396
    %v7398 = vand.u32 %v7247, 4294901760
    %v7399 = vsub.f32 %v7247, %v7398
    %v7400 = vand.u32 %v7399, 4294901760
    %v7401 = vsub.f32 %v7399, %v7400
    %v7402 = vand.u32 %v7401, 4294901760
    %7403 = vmatpush1.msra.mxu0 %v7402
    %7404 = vmatprep.subr.mxu0 0.0
    %7405 = vmatpush1.msra.mxu0 0.0
    %7406 = vmatprep.subr.mxu0 0.0
    %7407 = vmatpush1.msra.mxu0 0.0
    %7408 = vmatprep.subr.mxu0 0.0
    %7409 = vmatpush1.msra.mxu0 0.0
    %7410 = vmatprep.subr.mxu0 0.0
    %7411 = vmatpush1.msra.mxu0 0.0
    %7412 = vmatprep.subr.mxu0 0.0
    %7413 = vmatpush1.msra.mxu0 0.0
    %7414 = vmatprep.subr.mxu0 0.0
    %7415 = vmatpush1.msra.mxu0 0.0
    %7416 = vmatprep.subr.mxu0 0.0
    %7417 = vmatpush1.msra.mxu0 0.0
    %7418 = vmatprep.subr.mxu0 0.0
    %7419 = vmatpush1.msra.mxu0 0.0
    %7420 = vmatprep.subr.mxu0 0.0
    %7421 = vmatpush1.msra.mxu0 0.0
    %7422 = vmatprep.subr.mxu0 0.0
    %7423 = vmatpush1.msra.mxu0 0.0
    %7424 = vmatprep.subr.mxu0 0.0
    %7425 = vmatpush1.msra.mxu0 0.0
    %7426 = vmatprep.subr.mxu0 0.0
    %7427 = vmatpush1.msra.mxu0 0.0
    %7428 = vmatprep.subr.mxu0 0.0
    %7429 = vmatpush1.msra.mxu0 0.0
    %7430 = vmatprep.subr.mxu0 0.0
    %7431 = vmatpush1.msra.mxu0 0.0
    %7432 = vmatprep.subr.mxu0 0.0
    %7433 = vmatpush1.msra.mxu0 0.0
    %7434 = vmatprep.subr.mxu0 0.0
    %7435 = vmatpush1.msra.mxu0 0.0
    %7436 = vmatprep.subr.mxu0 0.0
    %7437 = vmatpush1.msra.mxu0 0.0
    %7438 = vmatprep.subr.mxu0 0.0
    %7439 = vmatpush1.msra.mxu0 0.0
    %7440 = vmatprep.subr.mxu0 0.0
    %7441 = vmatpush1.msra.mxu0 0.0
    %7442 = vmatprep.subr.mxu0 0.0
    %7443 = vmatpush1.msra.mxu0 0.0
    %7444 = vmatprep.subr.mxu0 0.0
    %7445 = vmatpush1.msra.mxu0 0.0
    %7446 = vmatprep.subr.mxu0 0.0
    %7447 = vmatpush1.msra.mxu0 0.0
    %7448 = vmatprep.subr.mxu0 0.0
    %7449 = vmatpush1.msra.mxu0 0.0
    %7450 = vmatprep.subr.mxu0 0.0
    %7451 = vmatpush1.msra.mxu0 0.0
    %7452 = vmatprep.subr.mxu0 0.0
    %7453 = vmatpush1.msra.mxu0 0.0
    %7454 = vmatprep.subr.mxu0 0.0
    %7455 = vmatpush1.msra.mxu0 0.0
    %7456 = vmatprep.subr.mxu0 0.0
    %7457 = vmatpush1.msra.mxu0 0.0
    %7458 = vmatprep.mubr.f32.mxu0 0.0
    %v7459 = vand.u32 %v7244, 4294901760
    %7460 = vmatmul.mubr.f32.gmra.mrb[0].mxu0 %v7459
    %v7461 = vpop.f32.mrb[0].mxu0
    %v7462 = vadd.f32 %v7340, %v7461
    %v7463 = vpop.f32.mrb[0].mxu0
    %v7464 = vadd.f32 %v7342, %v7463
    %7465 = vdwg.mxu0
    %v7466 = vand.u32 %v7219, 4294901760
    %v7467 = vsub.f32 %v7219, %v7466
    %7468 = vmatprep.subr.mxu0 %v7467
    %v7469 = vand.u32 %v7218, 4294901760
    %v7470 = vsub.f32 %v7218, %v7469
    %7471 = vmatpush1.msra.mxu0 %v7470
    %v7472 = vand.u32 %v7223, 4294901760
    %v7473 = vsub.f32 %v7223, %v7472
    %7474 = vmatprep.subr.mxu0 %v7473
    %v7475 = vand.u32 %v7222, 4294901760
    %v7476 = vsub.f32 %v7222, %v7475
    %7477 = vmatpush1.msra.mxu0 %v7476
    %v7478 = vand.u32 %v7227, 4294901760
    %v7479 = vsub.f32 %v7227, %v7478
    %7480 = vmatprep.subr.mxu0 %v7479
    %v7481 = vand.u32 %v7226, 4294901760
    %v7482 = vsub.f32 %v7226, %v7481
    %7483 = vmatpush1.msra.mxu0 %v7482
    %v7484 = vand.u32 %v7231, 4294901760
    %v7485 = vsub.f32 %v7231, %v7484
    %7486 = vmatprep.subr.mxu0 %v7485
    %v7487 = vand.u32 %v7230, 4294901760
    %v7488 = vsub.f32 %v7230, %v7487
    %7489 = vmatpush1.msra.mxu0 %v7488
    %v7490 = vand.u32 %v7250, 4294901760
    %v7491 = vsub.f32 %v7250, %v7490
    %7492 = vmatprep.subr.mxu0 %v7491
    %v7493 = vand.u32 %v7247, 4294901760
    %v7494 = vsub.f32 %v7247, %v7493
    %7495 = vmatpush1.msra.mxu0 %v7494
    %7496 = vmatprep.subr.mxu0 0.0
    %7497 = vmatpush1.msra.mxu0 0.0
    %7498 = vmatprep.subr.mxu0 0.0
    %7499 = vmatpush1.msra.mxu0 0.0
    %7500 = vmatprep.subr.mxu0 0.0
    %7501 = vmatpush1.msra.mxu0 0.0
    %7502 = vmatprep.subr.mxu0 0.0
    %7503 = vmatpush1.msra.mxu0 0.0
    %7504 = vmatprep.subr.mxu0 0.0
    %7505 = vmatpush1.msra.mxu0 0.0
    %7506 = vmatprep.subr.mxu0 0.0
    %7507 = vmatpush1.msra.mxu0 0.0
    %7508 = vmatprep.subr.mxu0 0.0
    %7509 = vmatpush1.msra.mxu0 0.0
    %7510 = vmatprep.subr.mxu0 0.0
    %7511 = vmatpush1.msra.mxu0 0.0
    %7512 = vmatprep.subr.mxu0 0.0
    %7513 = vmatpush1.msra.mxu0 0.0
    %7514 = vmatprep.subr.mxu0 0.0
    %7515 = vmatpush1.msra.mxu0 0.0
    %7516 = vmatprep.subr.mxu0 0.0
    %7517 = vmatpush1.msra.mxu0 0.0
    %7518 = vmatprep.subr.mxu0 0.0
    %7519 = vmatpush1.msra.mxu0 0.0
    %7520 = vmatprep.subr.mxu0 0.0
    %7521 = vmatpush1.msra.mxu0 0.0
    %7522 = vmatprep.subr.mxu0 0.0
    %7523 = vmatpush1.msra.mxu0 0.0
    %7524 = vmatprep.subr.mxu0 0.0
    %7525 = vmatpush1.msra.mxu0 0.0
    %7526 = vmatprep.subr.mxu0 0.0
    %7527 = vmatpush1.msra.mxu0 0.0
    %7528 = vmatprep.subr.mxu0 0.0
    %7529 = vmatpush1.msra.mxu0 0.0
    %7530 = vmatprep.subr.mxu0 0.0
    %7531 = vmatpush1.msra.mxu0 0.0
    %7532 = vmatprep.subr.mxu0 0.0
    %7533 = vmatpush1.msra.mxu0 0.0
    %7534 = vmatprep.subr.mxu0 0.0
    %7535 = vmatpush1.msra.mxu0 0.0
    %7536 = vmatprep.subr.mxu0 0.0
    %7537 = vmatpush1.msra.mxu0 0.0
    %7538 = vmatprep.subr.mxu0 0.0
    %7539 = vmatpush1.msra.mxu0 0.0
    %7540 = vmatprep.subr.mxu0 0.0
    %7541 = vmatpush1.msra.mxu0 0.0
    %7542 = vmatprep.subr.mxu0 0.0
    %7543 = vmatpush1.msra.mxu0 0.0
    %7544 = vmatprep.subr.mxu0 0.0
    %7545 = vmatpush1.msra.mxu0 0.0
    %7546 = vmatprep.subr.mxu0 0.0
    %7547 = vmatpush1.msra.mxu0 0.0
    %7548 = vmatprep.subr.mxu0 0.0
    %7549 = vmatpush1.msra.mxu0 0.0
    %7550 = vmatprep.mubr.f32.mxu0 0.0
    %v7551 = vand.u32 %v7244, 4294901760
    %v7552 = vsub.f32 %v7244, %v7551
    %7553 = vmatmul.mubr.f32.gmra.mrb[0].mxu0 %v7552
    %v7554 = vpop.f32.mrb[0].mxu0
    %v7555 = vadd.f32 %v7462, %v7554
    %v7556 = vpop.f32.mrb[0].mxu0
    %v7557 = vadd.f32 %v7464, %v7556
    %7558 = vdwg.mxu0
    %v7559 = vand.u32 %v7219, 4294901760
    %7560 = vmatprep.subr.mxu0 %v7559
    %v7561 = vand.u32 %v7218, 4294901760
    %7562 = vmatpush1.msra.mxu0 %v7561
    %v7563 = vand.u32 %v7223, 4294901760
    %7564 = vmatprep.subr.mxu0 %v7563
    %v7565 = vand.u32 %v7222, 4294901760
    %7566 = vmatpush1.msra.mxu0 %v7565
    %v7567 = vand.u32 %v7227, 4294901760
    %7568 = vmatprep.subr.mxu0 %v7567
    %v7569 = vand.u32 %v7226, 4294901760
    %7570 = vmatpush1.msra.mxu0 %v7569
    %v7571 = vand.u32 %v7231, 4294901760
    %7572 = vmatprep.subr.mxu0 %v7571
    %v7573 = vand.u32 %v7230, 4294901760
    %7574 = vmatpush1.msra.mxu0 %v7573
    %v7575 = vand.u32 %v7250, 4294901760
    %7576 = vmatprep.subr.mxu0 %v7575
    %v7577 = vand.u32 %v7247, 4294901760
    %7578 = vmatpush1.msra.mxu0 %v7577
    %7579 = vmatprep.subr.mxu0 0.0
    %7580 = vmatpush1.msra.mxu0 0.0
    %7581 = vmatprep.subr.mxu0 0.0
    %7582 = vmatpush1.msra.mxu0 0.0
    %7583 = vmatprep.subr.mxu0 0.0
    %7584 = vmatpush1.msra.mxu0 0.0
    %7585 = vmatprep.subr.mxu0 0.0
    %7586 = vmatpush1.msra.mxu0 0.0
    %7587 = vmatprep.subr.mxu0 0.0
    %7588 = vmatpush1.msra.mxu0 0.0
    %7589 = vmatprep.subr.mxu0 0.0
    %7590 = vmatpush1.msra.mxu0 0.0
    %7591 = vmatprep.subr.mxu0 0.0
    %7592 = vmatpush1.msra.mxu0 0.0
    %7593 = vmatprep.subr.mxu0 0.0
    %7594 = vmatpush1.msra.mxu0 0.0
    %7595 = vmatprep.subr.mxu0 0.0
    %7596 = vmatpush1.msra.mxu0 0.0
    %7597 = vmatprep.subr.mxu0 0.0
    %7598 = vmatpush1.msra.mxu0 0.0
    %7599 = vmatprep.subr.mxu0 0.0
    %7600 = vmatpush1.msra.mxu0 0.0
    %7601 = vmatprep.subr.mxu0 0.0
    %7602 = vmatpush1.msra.mxu0 0.0
    %7603 = vmatprep.subr.mxu0 0.0
    %7604 = vmatpush1.msra.mxu0 0.0
    %7605 = vmatprep.subr.mxu0 0.0
    %7606 = vmatpush1.msra.mxu0 0.0
    %7607 = vmatprep.subr.mxu0 0.0
    %7608 = vmatpush1.msra.mxu0 0.0
    %7609 = vmatprep.subr.mxu0 0.0
    %7610 = vmatpush1.msra.mxu0 0.0
    %7611 = vmatprep.subr.mxu0 0.0
    %7612 = vmatpush1.msra.mxu0 0.0
    %7613 = vmatprep.subr.mxu0 0.0
    %7614 = vmatpush1.msra.mxu0 0.0
    %7615 = vmatprep.subr.mxu0 0.0
    %7616 = vmatpush1.msra.mxu0 0.0
    %7617 = vmatprep.subr.mxu0 0.0
    %7618 = vmatpush1.msra.mxu0 0.0
    %7619 = vmatprep.subr.mxu0 0.0
    %7620 = vmatpush1.msra.mxu0 0.0
    %7621 = vmatprep.subr.mxu0 0.0
    %7622 = vmatpush1.msra.mxu0 0.0
    %7623 = vmatprep.subr.mxu0 0.0
    %7624 = vmatpush1.msra.mxu0 0.0
    %7625 = vmatprep.subr.mxu0 0.0
    %7626 = vmatpush1.msra.mxu0 0.0
    %7627 = vmatprep.subr.mxu0 0.0
    %7628 = vmatpush1.msra.mxu0 0.0
    %7629 = vmatprep.subr.mxu0 0.0
    %7630 = vmatpush1.msra.mxu0 0.0
    %7631 = vmatprep.subr.mxu0 0.0
    %7632 = vmatpush1.msra.mxu0 0.0
    %7633 = vmatprep.mubr.f32.mxu0 0.0
    %v7634 = vand.u32 %v7244, 4294901760
    %v7635 = vsub.f32 %v7244, %v7634
    %v7636 = vand.u32 %v7635, 4294901760
    %7637 = vmatmul.mubr.f32.gmra.mrb[0].mxu0 %v7636
    %v7638 = vpop.f32.mrb[0].mxu0
    %v7639 = vadd.f32 %v7555, %v7638
    %v7640 = vpop.f32.mrb[0].mxu0
    %v7641 = vadd.f32 %v7557, %v7640
    %7642 = vdwg.mxu0
    %v7643 = vand.u32 %v7219, 4294901760
    %v7644 = vsub.f32 %v7219, %v7643
    %v7645 = vand.u32 %v7644, 4294901760
    %7646 = vmatprep.subr.mxu0 %v7645
    %v7647 = vand.u32 %v7218, 4294901760
    %v7648 = vsub.f32 %v7218, %v7647
    %v7649 = vand.u32 %v7648, 4294901760
    %7650 = vmatpush1.msra.mxu0 %v7649
    %v7651 = vand.u32 %v7223, 4294901760
    %v7652 = vsub.f32 %v7223, %v7651
    %v7653 = vand.u32 %v7652, 4294901760
    %7654 = vmatprep.subr.mxu0 %v7653
    %v7655 = vand.u32 %v7222, 4294901760
    %v7656 = vsub.f32 %v7222, %v7655
    %v7657 = vand.u32 %v7656, 4294901760
    %7658 = vmatpush1.msra.mxu0 %v7657
    %v7659 = vand.u32 %v7227, 4294901760
    %v7660 = vsub.f32 %v7227, %v7659
    %v7661 = vand.u32 %v7660, 4294901760
    %7662 = vmatprep.subr.mxu0 %v7661
    %v7663 = vand.u32 %v7226, 4294901760
    %v7664 = vsub.f32 %v7226, %v7663
    %v7665 = vand.u32 %v7664, 4294901760
    %7666 = vmatpush1.msra.mxu0 %v7665
    %v7667 = vand.u32 %v7231, 4294901760
    %v7668 = vsub.f32 %v7231, %v7667
    %v7669 = vand.u32 %v7668, 4294901760
    %7670 = vmatprep.subr.mxu0 %v7669
    %v7671 = vand.u32 %v7230, 4294901760
    %v7672 = vsub.f32 %v7230, %v7671
    %v7673 = vand.u32 %v7672, 4294901760
    %7674 = vmatpush1.msra.mxu0 %v7673
    %v7675 = vand.u32 %v7250, 4294901760
    %v7676 = vsub.f32 %v7250, %v7675
    %v7677 = vand.u32 %v7676, 4294901760
    %7678 = vmatprep.subr.mxu0 %v7677
    %v7679 = vand.u32 %v7247, 4294901760
    %v7680 = vsub.f32 %v7247, %v7679
    %v7681 = vand.u32 %v7680, 4294901760
    %7682 = vmatpush1.msra.mxu0 %v7681
    %7683 = vmatprep.subr.mxu0 0.0
    %7684 = vmatpush1.msra.mxu0 0.0
    %7685 = vmatprep.subr.mxu0 0.0
    %7686 = vmatpush1.msra.mxu0 0.0
    %7687 = vmatprep.subr.mxu0 0.0
    %7688 = vmatpush1.msra.mxu0 0.0
    %7689 = vmatprep.subr.mxu0 0.0
    %7690 = vmatpush1.msra.mxu0 0.0
    %7691 = vmatprep.subr.mxu0 0.0
    %7692 = vmatpush1.msra.mxu0 0.0
    %7693 = vmatprep.subr.mxu0 0.0
    %7694 = vmatpush1.msra.mxu0 0.0
    %7695 = vmatprep.subr.mxu0 0.0
    %7696 = vmatpush1.msra.mxu0 0.0
    %7697 = vmatprep.subr.mxu0 0.0
    %7698 = vmatpush1.msra.mxu0 0.0
    %7699 = vmatprep.subr.mxu0 0.0
    %7700 = vmatpush1.msra.mxu0 0.0
    %7701 = vmatprep.subr.mxu0 0.0
    %7702 = vmatpush1.msra.mxu0 0.0
    %7703 = vmatprep.subr.mxu0 0.0
    %7704 = vmatpush1.msra.mxu0 0.0
    %7705 = vmatprep.subr.mxu0 0.0
    %7706 = vmatpush1.msra.mxu0 0.0
    %7707 = vmatprep.subr.mxu0 0.0
    %7708 = vmatpush1.msra.mxu0 0.0
    %7709 = vmatprep.subr.mxu0 0.0
    %7710 = vmatpush1.msra.mxu0 0.0
    %7711 = vmatprep.subr.mxu0 0.0
    %7712 = vmatpush1.msra.mxu0 0.0
    %7713 = vmatprep.subr.mxu0 0.0
    %7714 = vmatpush1.msra.mxu0 0.0
    %7715 = vmatprep.subr.mxu0 0.0
    %7716 = vmatpush1.msra.mxu0 0.0
    %7717 = vmatprep.subr.mxu0 0.0
    %7718 = vmatpush1.msra.mxu0 0.0
    %7719 = vmatprep.subr.mxu0 0.0
    %7720 = vmatpush1.msra.mxu0 0.0
    %7721 = vmatprep.subr.mxu0 0.0
    %7722 = vmatpush1.msra.mxu0 0.0
    %7723 = vmatprep.subr.mxu0 0.0
    %7724 = vmatpush1.msra.mxu0 0.0
    %7725 = vmatprep.subr.mxu0 0.0
    %7726 = vmatpush1.msra.mxu0 0.0
    %7727 = vmatprep.subr.mxu0 0.0
    %7728 = vmatpush1.msra.mxu0 0.0
    %7729 = vmatprep.subr.mxu0 0.0
    %7730 = vmatpush1.msra.mxu0 0.0
    %7731 = vmatprep.subr.mxu0 0.0
    %7732 = vmatpush1.msra.mxu0 0.0
    %7733 = vmatprep.subr.mxu0 0.0
    %7734 = vmatpush1.msra.mxu0 0.0
    %7735 = vmatprep.subr.mxu0 0.0
    %7736 = vmatpush1.msra.mxu0 0.0
    %7737 = vmatprep.mubr.f32.mxu0 0.0
    %v7738 = vand.u32 %v7244, 4294901760
    %7739 = vmatmul.mubr.f32.gmra.mrb[0].mxu0 %v7738
    %v7740 = vpop.f32.mrb[0].mxu0
    %v7741 = vadd.f32 %v7639, %v7740
    %v7742 = vpop.f32.mrb[0].mxu0
    %v7743 = vadd.f32 %v7641, %v7742
    %7744 = vdwg.mxu0
    %v7745 = vand.u32 %v7219, 4294901760
    %7746 = vmatprep.subr.mxu0 %v7745
    %v7747 = vand.u32 %v7218, 4294901760
    %7748 = vmatpush1.msra.mxu0 %v7747
    %v7749 = vand.u32 %v7223, 4294901760
    %7750 = vmatprep.subr.mxu0 %v7749
    %v7751 = vand.u32 %v7222, 4294901760
    %7752 = vmatpush1.msra.mxu0 %v7751
    %v7753 = vand.u32 %v7227, 4294901760
    %7754 = vmatprep.subr.mxu0 %v7753
    %v7755 = vand.u32 %v7226, 4294901760
    %7756 = vmatpush1.msra.mxu0 %v7755
    %v7757 = vand.u32 %v7231, 4294901760
    %7758 = vmatprep.subr.mxu0 %v7757
    %v7759 = vand.u32 %v7230, 4294901760
    %7760 = vmatpush1.msra.mxu0 %v7759
    %v7761 = vand.u32 %v7250, 4294901760
    %7762 = vmatprep.subr.mxu0 %v7761
    %v7763 = vand.u32 %v7247, 4294901760
    %7764 = vmatpush1.msra.mxu0 %v7763
    %7765 = vmatprep.subr.mxu0 0.0
    %7766 = vmatpush1.msra.mxu0 0.0
    %7767 = vmatprep.subr.mxu0 0.0
    %7768 = vmatpush1.msra.mxu0 0.0
    %7769 = vmatprep.subr.mxu0 0.0
    %7770 = vmatpush1.msra.mxu0 0.0
    %7771 = vmatprep.subr.mxu0 0.0
    %7772 = vmatpush1.msra.mxu0 0.0
    %7773 = vmatprep.subr.mxu0 0.0
    %7774 = vmatpush1.msra.mxu0 0.0
    %7775 = vmatprep.subr.mxu0 0.0
    %7776 = vmatpush1.msra.mxu0 0.0
    %7777 = vmatprep.subr.mxu0 0.0
    %7778 = vmatpush1.msra.mxu0 0.0
    %7779 = vmatprep.subr.mxu0 0.0
    %7780 = vmatpush1.msra.mxu0 0.0
    %7781 = vmatprep.subr.mxu0 0.0
    %7782 = vmatpush1.msra.mxu0 0.0
    %7783 = vmatprep.subr.mxu0 0.0
    %7784 = vmatpush1.msra.mxu0 0.0
    %7785 = vmatprep.subr.mxu0 0.0
    %7786 = vmatpush1.msra.mxu0 0.0
    %7787 = vmatprep.subr.mxu0 0.0
    %7788 = vmatpush1.msra.mxu0 0.0
    %7789 = vmatprep.subr.mxu0 0.0
    %7790 = vmatpush1.msra.mxu0 0.0
    %7791 = vmatprep.subr.mxu0 0.0
    %7792 = vmatpush1.msra.mxu0 0.0
    %7793 = vmatprep.subr.mxu0 0.0
    %7794 = vmatpush1.msra.mxu0 0.0
    %7795 = vmatprep.subr.mxu0 0.0
    %7796 = vmatpush1.msra.mxu0 0.0
    %7797 = vmatprep.subr.mxu0 0.0
    %7798 = vmatpush1.msra.mxu0 0.0
    %7799 = vmatprep.subr.mxu0 0.0
    %7800 = vmatpush1.msra.mxu0 0.0
    %7801 = vmatprep.subr.mxu0 0.0
    %7802 = vmatpush1.msra.mxu0 0.0
    %7803 = vmatprep.subr.mxu0 0.0
    %7804 = vmatpush1.msra.mxu0 0.0
    %7805 = vmatprep.subr.mxu0 0.0
    %7806 = vmatpush1.msra.mxu0 0.0
    %7807 = vmatprep.subr.mxu0 0.0
    %7808 = vmatpush1.msra.mxu0 0.0
    %7809 = vmatprep.subr.mxu0 0.0
    %7810 = vmatpush1.msra.mxu0 0.0
    %7811 = vmatprep.subr.mxu0 0.0
    %7812 = vmatpush1.msra.mxu0 0.0
    %7813 = vmatprep.subr.mxu0 0.0
    %7814 = vmatpush1.msra.mxu0 0.0
    %7815 = vmatprep.subr.mxu0 0.0
    %7816 = vmatpush1.msra.mxu0 0.0
    %7817 = vmatprep.subr.mxu0 0.0
    %7818 = vmatpush1.msra.mxu0 0.0
    %7819 = vmatprep.mubr.f32.mxu0 0.0
    %v7820 = vand.u32 %v7244, 4294901760
    %7821 = vmatmul.mubr.f32.gmra.mrb[0].mxu0 %v7820
    %v7822 = vpop.f32.mrb[0].mxu0
    %v7823 = vadd.f32 %v7741, %v7822
    %v7824 = vpop.f32.mrb[0].mxu0
    %v7825 = vadd.f32 %v7743, %v7824
    %7826 = vdwg.mxu0
    %v7827 = vand.u32 %v7221, 4294901760
    %7828 = vmatprep.subr.mxu0 %v7827
    %v7829 = vand.u32 %v7220, 4294901760
    %7830 = vmatpush1.msra.mxu0 %v7829
    %v7831 = vand.u32 %v7225, 4294901760
    %7832 = vmatprep.subr.mxu0 %v7831
    %v7833 = vand.u32 %v7224, 4294901760
    %7834 = vmatpush1.msra.mxu0 %v7833
    %v7835 = vand.u32 %v7229, 4294901760
    %7836 = vmatprep.subr.mxu0 %v7835
    %v7837 = vand.u32 %v7228, 4294901760
    %7838 = vmatpush1.msra.mxu0 %v7837
    %v7839 = vand.u32 %v7233, 4294901760
    %7840 = vmatprep.subr.mxu0 %v7839
    %v7841 = vand.u32 %v7232, 4294901760
    %7842 = vmatpush1.msra.mxu0 %v7841
    %v7843 = vand.u32 %v7256, 4294901760
    %7844 = vmatprep.subr.mxu0 %v7843
    %v7845 = vand.u32 %v7253, 4294901760
    %7846 = vmatpush1.msra.mxu0 %v7845
    %7847 = vmatprep.subr.mxu0 0.0
    %7848 = vmatpush1.msra.mxu0 0.0
    %7849 = vmatprep.subr.mxu0 0.0
    %7850 = vmatpush1.msra.mxu0 0.0
    %7851 = vmatprep.subr.mxu0 0.0
    %7852 = vmatpush1.msra.mxu0 0.0
    %7853 = vmatprep.subr.mxu0 0.0
    %7854 = vmatpush1.msra.mxu0 0.0
    %7855 = vmatprep.subr.mxu0 0.0
    %7856 = vmatpush1.msra.mxu0 0.0
    %7857 = vmatprep.subr.mxu0 0.0
    %7858 = vmatpush1.msra.mxu0 0.0
    %7859 = vmatprep.subr.mxu0 0.0
    %7860 = vmatpush1.msra.mxu0 0.0
    %7861 = vmatprep.subr.mxu0 0.0
    %7862 = vmatpush1.msra.mxu0 0.0
    %7863 = vmatprep.subr.mxu0 0.0
    %7864 = vmatpush1.msra.mxu0 0.0
    %7865 = vmatprep.subr.mxu0 0.0
    %7866 = vmatpush1.msra.mxu0 0.0
    %7867 = vmatprep.subr.mxu0 0.0
    %7868 = vmatpush1.msra.mxu0 0.0
    %7869 = vmatprep.subr.mxu0 0.0
    %7870 = vmatpush1.msra.mxu0 0.0
    %7871 = vmatprep.subr.mxu0 0.0
    %7872 = vmatpush1.msra.mxu0 0.0
    %7873 = vmatprep.subr.mxu0 0.0
    %7874 = vmatpush1.msra.mxu0 0.0
    %7875 = vmatprep.subr.mxu0 0.0
    %7876 = vmatpush1.msra.mxu0 0.0
    %7877 = vmatprep.subr.mxu0 0.0
    %7878 = vmatpush1.msra.mxu0 0.0
    %7879 = vmatprep.subr.mxu0 0.0
    %7880 = vmatpush1.msra.mxu0 0.0
    %7881 = vmatprep.subr.mxu0 0.0
    %7882 = vmatpush1.msra.mxu0 0.0
    %7883 = vmatprep.subr.mxu0 0.0
    %7884 = vmatpush1.msra.mxu0 0.0
    %7885 = vmatprep.subr.mxu0 0.0
    %7886 = vmatpush1.msra.mxu0 0.0
    %7887 = vmatprep.subr.mxu0 0.0
    %7888 = vmatpush1.msra.mxu0 0.0
    %7889 = vmatprep.subr.mxu0 0.0
    %7890 = vmatpush1.msra.mxu0 0.0
    %7891 = vmatprep.subr.mxu0 0.0
    %7892 = vmatpush1.msra.mxu0 0.0
    %7893 = vmatprep.subr.mxu0 0.0
    %7894 = vmatpush1.msra.mxu0 0.0
    %7895 = vmatprep.subr.mxu0 0.0
    %7896 = vmatpush1.msra.mxu0 0.0
    %7897 = vmatprep.subr.mxu0 0.0
    %7898 = vmatpush1.msra.mxu0 0.0
    %7899 = vmatprep.subr.mxu0 0.0
    %7900 = vmatpush1.msra.mxu0 0.0
    %7901 = vmatprep.mubr.f32.mxu0 0.0
    %v7902 = vand.u32 %v7244, 4294901760
    %v7903 = vsub.f32 %v7244, %v7902
    %v7904 = vand.u32 %v7903, 4294901760
    %v7905 = vsub.f32 %v7903, %v7904
    %v7906 = vand.u32 %v7905, 4294901760
    %7907 = vmatmul.mubr.f32.gmra.mrb[0].mxu0 %v7906
    %v7908 = vpop.f32.mrb[0].mxu0
    %v7909 = vadd.f32 %v7241, %v7908
    %v7910 = vpop.f32.mrb[0].mxu0
    %v7911 = vadd.f32 %v7241, %v7910
    %7912 = vdwg.mxu0
    %v7913 = vand.u32 %v7221, 4294901760
    %v7914 = vsub.f32 %v7221, %v7913
    %v7915 = vand.u32 %v7914, 4294901760
    %v7916 = vsub.f32 %v7914, %v7915
    %v7917 = vand.u32 %v7916, 4294901760
    %7918 = vmatprep.subr.mxu0 %v7917
    %v7919 = vand.u32 %v7220, 4294901760
    %v7920 = vsub.f32 %v7220, %v7919
    %v7921 = vand.u32 %v7920, 4294901760
    %v7922 = vsub.f32 %v7920, %v7921
    %v7923 = vand.u32 %v7922, 4294901760
    %7924 = vmatpush1.msra.mxu0 %v7923
    %v7925 = vand.u32 %v7225, 4294901760
    %v7926 = vsub.f32 %v7225, %v7925
    %v7927 = vand.u32 %v7926, 4294901760
    %v7928 = vsub.f32 %v7926, %v7927
    %v7929 = vand.u32 %v7928, 4294901760
    %7930 = vmatprep.subr.mxu0 %v7929
    %v7931 = vand.u32 %v7224, 4294901760
    %v7932 = vsub.f32 %v7224, %v7931
    %v7933 = vand.u32 %v7932, 4294901760
    %v7934 = vsub.f32 %v7932, %v7933
    %v7935 = vand.u32 %v7934, 4294901760
    %7936 = vmatpush1.msra.mxu0 %v7935
    %v7937 = vand.u32 %v7229, 4294901760
    %v7938 = vsub.f32 %v7229, %v7937
    %v7939 = vand.u32 %v7938, 4294901760
    %v7940 = vsub.f32 %v7938, %v7939
    %v7941 = vand.u32 %v7940, 4294901760
    %7942 = vmatprep.subr.mxu0 %v7941
    %v7943 = vand.u32 %v7228, 4294901760
    %v7944 = vsub.f32 %v7228, %v7943
    %v7945 = vand.u32 %v7944, 4294901760
    %v7946 = vsub.f32 %v7944, %v7945
    %v7947 = vand.u32 %v7946, 4294901760
    %7948 = vmatpush1.msra.mxu0 %v7947
    %v7949 = vand.u32 %v7233, 4294901760
    %v7950 = vsub.f32 %v7233, %v7949
    %v7951 = vand.u32 %v7950, 4294901760
    %v7952 = vsub.f32 %v7950, %v7951
    %v7953 = vand.u32 %v7952, 4294901760
    %7954 = vmatprep.subr.mxu0 %v7953
    %v7955 = vand.u32 %v7232, 4294901760
    %v7956 = vsub.f32 %v7232, %v7955
    %v7957 = vand.u32 %v7956, 4294901760
    %v7958 = vsub.f32 %v7956, %v7957
    %v7959 = vand.u32 %v7958, 4294901760
    %7960 = vmatpush1.msra.mxu0 %v7959
    %v7961 = vand.u32 %v7256, 4294901760
    %v7962 = vsub.f32 %v7256, %v7961
    %v7963 = vand.u32 %v7962, 4294901760
    %v7964 = vsub.f32 %v7962, %v7963
    %v7965 = vand.u32 %v7964, 4294901760
    %7966 = vmatprep.subr.mxu0 %v7965
    %v7967 = vand.u32 %v7253, 4294901760
    %v7968 = vsub.f32 %v7253, %v7967
    %v7969 = vand.u32 %v7968, 4294901760
    %v7970 = vsub.f32 %v7968, %v7969
    %v7971 = vand.u32 %v7970, 4294901760
    %7972 = vmatpush1.msra.mxu0 %v7971
    %7973 = vmatprep.subr.mxu0 0.0
    %7974 = vmatpush1.msra.mxu0 0.0
    %7975 = vmatprep.subr.mxu0 0.0
    %7976 = vmatpush1.msra.mxu0 0.0
    %7977 = vmatprep.subr.mxu0 0.0
    %7978 = vmatpush1.msra.mxu0 0.0
    %7979 = vmatprep.subr.mxu0 0.0
    %7980 = vmatpush1.msra.mxu0 0.0
    %7981 = vmatprep.subr.mxu0 0.0
    %7982 = vmatpush1.msra.mxu0 0.0
    %7983 = vmatprep.subr.mxu0 0.0
    %7984 = vmatpush1.msra.mxu0 0.0
    %7985 = vmatprep.subr.mxu0 0.0
    %7986 = vmatpush1.msra.mxu0 0.0
    %7987 = vmatprep.subr.mxu0 0.0
    %7988 = vmatpush1.msra.mxu0 0.0
    %7989 = vmatprep.subr.mxu0 0.0
    %7990 = vmatpush1.msra.mxu0 0.0
    %7991 = vmatprep.subr.mxu0 0.0
    %7992 = vmatpush1.msra.mxu0 0.0
    %7993 = vmatprep.subr.mxu0 0.0
    %7994 = vmatpush1.msra.mxu0 0.0
    %7995 = vmatprep.subr.mxu0 0.0
    %7996 = vmatpush1.msra.mxu0 0.0
    %7997 = vmatprep.subr.mxu0 0.0
    %7998 = vmatpush1.msra.mxu0 0.0
    %7999 = vmatprep.subr.mxu0 0.0
    %8000 = vmatpush1.msra.mxu0 0.0
    %8001 = vmatprep.subr.mxu0 0.0
    %8002 = vmatpush1.msra.mxu0 0.0
    %8003 = vmatprep.subr.mxu0 0.0
    %8004 = vmatpush1.msra.mxu0 0.0
    %8005 = vmatprep.subr.mxu0 0.0
    %8006 = vmatpush1.msra.mxu0 0.0
    %8007 = vmatprep.subr.mxu0 0.0
    %8008 = vmatpush1.msra.mxu0 0.0
    %8009 = vmatprep.subr.mxu0 0.0
    %8010 = vmatpush1.msra.mxu0 0.0
    %8011 = vmatprep.subr.mxu0 0.0
    %8012 = vmatpush1.msra.mxu0 0.0
    %8013 = vmatprep.subr.mxu0 0.0
    %8014 = vmatpush1.msra.mxu0 0.0
    %8015 = vmatprep.subr.mxu0 0.0
    %8016 = vmatpush1.msra.mxu0 0.0
    %8017 = vmatprep.subr.mxu0 0.0
    %8018 = vmatpush1.msra.mxu0 0.0
    %8019 = vmatprep.subr.mxu0 0.0
    %8020 = vmatpush1.msra.mxu0 0.0
    %8021 = vmatprep.subr.mxu0 0.0
    %8022 = vmatpush1.msra.mxu0 0.0
    %8023 = vmatprep.subr.mxu0 0.0
    %8024 = vmatpush1.msra.mxu0 0.0
    %8025 = vmatprep.subr.mxu0 0.0
    %8026 = vmatpush1.msra.mxu0 0.0
    %8027 = vmatprep.mubr.f32.mxu0 0.0
    %v8028 = vand.u32 %v7244, 4294901760
    %8029 = vmatmul.mubr.f32.gmra.mrb[0].mxu0 %v8028
    %v8030 = vpop.f32.mrb[0].mxu0
    %v8031 = vadd.f32 %v7909, %v8030
    %v8032 = vpop.f32.mrb[0].mxu0
    %v8033 = vadd.f32 %v7911, %v8032
    %8034 = vdwg.mxu0
    %v8035 = vand.u32 %v7221, 4294901760
    %v8036 = vsub.f32 %v7221, %v8035
    %8037 = vmatprep.subr.mxu0 %v8036
    %v8038 = vand.u32 %v7220, 4294901760
    %v8039 = vsub.f32 %v7220, %v8038
    %8040 = vmatpush1.msra.mxu0 %v8039
    %v8041 = vand.u32 %v7225, 4294901760
    %v8042 = vsub.f32 %v7225, %v8041
    %8043 = vmatprep.subr.mxu0 %v8042
    %v8044 = vand.u32 %v7224, 4294901760
    %v8045 = vsub.f32 %v7224, %v8044
    %8046 = vmatpush1.msra.mxu0 %v8045
    %v8047 = vand.u32 %v7229, 4294901760
    %v8048 = vsub.f32 %v7229, %v8047
    %8049 = vmatprep.subr.mxu0 %v8048
    %v8050 = vand.u32 %v7228, 4294901760
    %v8051 = vsub.f32 %v7228, %v8050
    %8052 = vmatpush1.msra.mxu0 %v8051
    %v8053 = vand.u32 %v7233, 4294901760
    %v8054 = vsub.f32 %v7233, %v8053
    %8055 = vmatprep.subr.mxu0 %v8054
    %v8056 = vand.u32 %v7232, 4294901760
    %v8057 = vsub.f32 %v7232, %v8056
    %8058 = vmatpush1.msra.mxu0 %v8057
    %v8059 = vand.u32 %v7256, 4294901760
    %v8060 = vsub.f32 %v7256, %v8059
    %8061 = vmatprep.subr.mxu0 %v8060
    %v8062 = vand.u32 %v7253, 4294901760
    %v8063 = vsub.f32 %v7253, %v8062
    %8064 = vmatpush1.msra.mxu0 %v8063
    %8065 = vmatprep.subr.mxu0 0.0
    %8066 = vmatpush1.msra.mxu0 0.0
    %8067 = vmatprep.subr.mxu0 0.0
    %8068 = vmatpush1.msra.mxu0 0.0
    %8069 = vmatprep.subr.mxu0 0.0
    %8070 = vmatpush1.msra.mxu0 0.0
    %8071 = vmatprep.subr.mxu0 0.0
    %8072 = vmatpush1.msra.mxu0 0.0
    %8073 = vmatprep.subr.mxu0 0.0
    %8074 = vmatpush1.msra.mxu0 0.0
    %8075 = vmatprep.subr.mxu0 0.0
    %8076 = vmatpush1.msra.mxu0 0.0
    %8077 = vmatprep.subr.mxu0 0.0
    %8078 = vmatpush1.msra.mxu0 0.0
    %8079 = vmatprep.subr.mxu0 0.0
    %8080 = vmatpush1.msra.mxu0 0.0
    %8081 = vmatprep.subr.mxu0 0.0
    %8082 = vmatpush1.msra.mxu0 0.0
    %8083 = vmatprep.subr.mxu0 0.0
    %8084 = vmatpush1.msra.mxu0 0.0
    %8085 = vmatprep.subr.mxu0 0.0
    %8086 = vmatpush1.msra.mxu0 0.0
    %8087 = vmatprep.subr.mxu0 0.0
    %8088 = vmatpush1.msra.mxu0 0.0
    %8089 = vmatprep.subr.mxu0 0.0
    %8090 = vmatpush1.msra.mxu0 0.0
    %8091 = vmatprep.subr.mxu0 0.0
    %8092 = vmatpush1.msra.mxu0 0.0
    %8093 = vmatprep.subr.mxu0 0.0
    %8094 = vmatpush1.msra.mxu0 0.0
    %8095 = vmatprep.subr.mxu0 0.0
    %8096 = vmatpush1.msra.mxu0 0.0
    %8097 = vmatprep.subr.mxu0 0.0
    %8098 = vmatpush1.msra.mxu0 0.0
    %8099 = vmatprep.subr.mxu0 0.0
    %8100 = vmatpush1.msra.mxu0 0.0
    %8101 = vmatprep.subr.mxu0 0.0
    %8102 = vmatpush1.msra.mxu0 0.0
    %8103 = vmatprep.subr.mxu0 0.0
    %8104 = vmatpush1.msra.mxu0 0.0
    %8105 = vmatprep.subr.mxu0 0.0
    %8106 = vmatpush1.msra.mxu0 0.0
    %8107 = vmatprep.subr.mxu0 0.0
    %8108 = vmatpush1.msra.mxu0 0.0
    %8109 = vmatprep.subr.mxu0 0.0
    %8110 = vmatpush1.msra.mxu0 0.0
    %8111 = vmatprep.subr.mxu0 0.0
    %8112 = vmatpush1.msra.mxu0 0.0
    %8113 = vmatprep.subr.mxu0 0.0
    %8114 = vmatpush1.msra.mxu0 0.0
    %8115 = vmatprep.subr.mxu0 0.0
    %8116 = vmatpush1.msra.mxu0 0.0
    %8117 = vmatprep.subr.mxu0 0.0
    %8118 = vmatpush1.msra.mxu0 0.0
    %8119 = vmatprep.mubr.f32.mxu0 0.0
    %v8120 = vand.u32 %v7244, 4294901760
    %v8121 = vsub.f32 %v7244, %v8120
    %8122 = vmatmul.mubr.f32.gmra.mrb[0].mxu0 %v8121
    %v8123 = vpop.f32.mrb[0].mxu0
    %v8124 = vadd.f32 %v8031, %v8123
    %v8125 = vpop.f32.mrb[0].mxu0
    %v8126 = vadd.f32 %v8033, %v8125
    %8127 = vdwg.mxu0
    %v8128 = vand.u32 %v7221, 4294901760
    %8129 = vmatprep.subr.mxu0 %v8128
    %v8130 = vand.u32 %v7220, 4294901760
    %8131 = vmatpush1.msra.mxu0 %v8130
    %v8132 = vand.u32 %v7225, 4294901760
    %8133 = vmatprep.subr.mxu0 %v8132
    %v8134 = vand.u32 %v7224, 4294901760
    %8135 = vmatpush1.msra.mxu0 %v8134
    %v8136 = vand.u32 %v7229, 4294901760
    %8137 = vmatprep.subr.mxu0 %v8136
    %v8138 = vand.u32 %v7228, 4294901760
    %8139 = vmatpush1.msra.mxu0 %v8138
    %v8140 = vand.u32 %v7233, 4294901760
    %8141 = vmatprep.subr.mxu0 %v8140
    %v8142 = vand.u32 %v7232, 4294901760
    %8143 = vmatpush1.msra.mxu0 %v8142
    %v8144 = vand.u32 %v7256, 4294901760
    %8145 = vmatprep.subr.mxu0 %v8144
    %v8146 = vand.u32 %v7253, 4294901760
    %8147 = vmatpush1.msra.mxu0 %v8146
    %8148 = vmatprep.subr.mxu0 0.0
    %8149 = vmatpush1.msra.mxu0 0.0
    %8150 = vmatprep.subr.mxu0 0.0
    %8151 = vmatpush1.msra.mxu0 0.0
    %8152 = vmatprep.subr.mxu0 0.0
    %8153 = vmatpush1.msra.mxu0 0.0
    %8154 = vmatprep.subr.mxu0 0.0
    %8155 = vmatpush1.msra.mxu0 0.0
    %8156 = vmatprep.subr.mxu0 0.0
    %8157 = vmatpush1.msra.mxu0 0.0
    %8158 = vmatprep.subr.mxu0 0.0
    %8159 = vmatpush1.msra.mxu0 0.0
    %8160 = vmatprep.subr.mxu0 0.0
    %8161 = vmatpush1.msra.mxu0 0.0
    %8162 = vmatprep.subr.mxu0 0.0
    %8163 = vmatpush1.msra.mxu0 0.0
    %8164 = vmatprep.subr.mxu0 0.0
    %8165 = vmatpush1.msra.mxu0 0.0
    %8166 = vmatprep.subr.mxu0 0.0
    %8167 = vmatpush1.msra.mxu0 0.0
    %8168 = vmatprep.subr.mxu0 0.0
    %8169 = vmatpush1.msra.mxu0 0.0
    %8170 = vmatprep.subr.mxu0 0.0
    %8171 = vmatpush1.msra.mxu0 0.0
    %8172 = vmatprep.subr.mxu0 0.0
    %8173 = vmatpush1.msra.mxu0 0.0
    %8174 = vmatprep.subr.mxu0 0.0
    %8175 = vmatpush1.msra.mxu0 0.0
    %8176 = vmatprep.subr.mxu0 0.0
    %8177 = vmatpush1.msra.mxu0 0.0
    %8178 = vmatprep.subr.mxu0 0.0
    %8179 = vmatpush1.msra.mxu0 0.0
    %8180 = vmatprep.subr.mxu0 0.0
    %8181 = vmatpush1.msra.mxu0 0.0
    %8182 = vmatprep.subr.mxu0 0.0
    %8183 = vmatpush1.msra.mxu0 0.0
    %8184 = vmatprep.subr.mxu0 0.0
    %8185 = vmatpush1.msra.mxu0 0.0
    %8186 = vmatprep.subr.mxu0 0.0
    %8187 = vmatpush1.msra.mxu0 0.0
    %8188 = vmatprep.subr.mxu0 0.0
    %8189 = vmatpush1.msra.mxu0 0.0
    %8190 = vmatprep.subr.mxu0 0.0
    %8191 = vmatpush1.msra.mxu0 0.0
    %8192 = vmatprep.subr.mxu0 0.0
    %8193 = vmatpush1.msra.mxu0 0.0
    %8194 = vmatprep.subr.mxu0 0.0
    %8195 = vmatpush1.msra.mxu0 0.0
    %8196 = vmatprep.subr.mxu0 0.0
    %8197 = vmatpush1.msra.mxu0 0.0
    %8198 = vmatprep.subr.mxu0 0.0
    %8199 = vmatpush1.msra.mxu0 0.0
    %8200 = vmatprep.subr.mxu0 0.0
    %8201 = vmatpush1.msra.mxu0 0.0
    %8202 = vmatprep.mubr.f32.mxu0 0.0
    %v8203 = vand.u32 %v7244, 4294901760
    %v8204 = vsub.f32 %v7244, %v8203
    %v8205 = vand.u32 %v8204, 4294901760
    %8206 = vmatmul.mubr.f32.gmra.mrb[0].mxu0 %v8205
    %v8207 = vpop.f32.mrb[0].mxu0
    %v8208 = vadd.f32 %v8124, %v8207
    %v8209 = vpop.f32.mrb[0].mxu0
    %v8210 = vadd.f32 %v8126, %v8209
    %8211 = vdwg.mxu0
    %v8212 = vand.u32 %v7221, 4294901760
    %v8213 = vsub.f32 %v7221, %v8212
    %v8214 = vand.u32 %v8213, 4294901760
    %8215 = vmatprep.subr.mxu0 %v8214
    %v8216 = vand.u32 %v7220, 4294901760
    %v8217 = vsub.f32 %v7220, %v8216
    %v8218 = vand.u32 %v8217, 4294901760
    %8219 = vmatpush1.msra.mxu0 %v8218
    %v8220 = vand.u32 %v7225, 4294901760
    %v8221 = vsub.f32 %v7225, %v8220
    %v8222 = vand.u32 %v8221, 4294901760
    %8223 = vmatprep.subr.mxu0 %v8222
    %v8224 = vand.u32 %v7224, 4294901760
    %v8225 = vsub.f32 %v7224, %v8224
    %v8226 = vand.u32 %v8225, 4294901760
    %8227 = vmatpush1.msra.mxu0 %v8226
    %v8228 = vand.u32 %v7229, 4294901760
    %v8229 = vsub.f32 %v7229, %v8228
    %v8230 = vand.u32 %v8229, 4294901760
    %8231 = vmatprep.subr.mxu0 %v8230
    %v8232 = vand.u32 %v7228, 4294901760
    %v8233 = vsub.f32 %v7228, %v8232
    %v8234 = vand.u32 %v8233, 4294901760
    %8235 = vmatpush1.msra.mxu0 %v8234
    %v8236 = vand.u32 %v7233, 4294901760
    %v8237 = vsub.f32 %v7233, %v8236
    %v8238 = vand.u32 %v8237, 4294901760
    %8239 = vmatprep.subr.mxu0 %v8238
    %v8240 = vand.u32 %v7232, 4294901760
    %v8241 = vsub.f32 %v7232, %v8240
    %v8242 = vand.u32 %v8241, 4294901760
    %8243 = vmatpush1.msra.mxu0 %v8242
    %v8244 = vand.u32 %v7256, 4294901760
    %v8245 = vsub.f32 %v7256, %v8244
    %v8246 = vand.u32 %v8245, 4294901760
    %8247 = vmatprep.subr.mxu0 %v8246
    %v8248 = vand.u32 %v7253, 4294901760
    %v8249 = vsub.f32 %v7253, %v8248
    %v8250 = vand.u32 %v8249, 4294901760
    %8251 = vmatpush1.msra.mxu0 %v8250
    %8252 = vmatprep.subr.mxu0 0.0
    %8253 = vmatpush1.msra.mxu0 0.0
    %8254 = vmatprep.subr.mxu0 0.0
    %8255 = vmatpush1.msra.mxu0 0.0
    %8256 = vmatprep.subr.mxu0 0.0
    %8257 = vmatpush1.msra.mxu0 0.0
    %8258 = vmatprep.subr.mxu0 0.0
    %8259 = vmatpush1.msra.mxu0 0.0
    %8260 = vmatprep.subr.mxu0 0.0
    %8261 = vmatpush1.msra.mxu0 0.0
    %8262 = vmatprep.subr.mxu0 0.0
    %8263 = vmatpush1.msra.mxu0 0.0
    %8264 = vmatprep.subr.mxu0 0.0
    %8265 = vmatpush1.msra.mxu0 0.0
    %8266 = vmatprep.subr.mxu0 0.0
    %8267 = vmatpush1.msra.mxu0 0.0
    %8268 = vmatprep.subr.mxu0 0.0
    %8269 = vmatpush1.msra.mxu0 0.0
    %8270 = vmatprep.subr.mxu0 0.0
    %8271 = vmatpush1.msra.mxu0 0.0
    %8272 = vmatprep.subr.mxu0 0.0
    %8273 = vmatpush1.msra.mxu0 0.0
    %8274 = vmatprep.subr.mxu0 0.0
    %8275 = vmatpush1.msra.mxu0 0.0
    %8276 = vmatprep.subr.mxu0 0.0
    %8277 = vmatpush1.msra.mxu0 0.0
    %8278 = vmatprep.subr.mxu0 0.0
    %8279 = vmatpush1.msra.mxu0 0.0
    %8280 = vmatprep.subr.mxu0 0.0
    %8281 = vmatpush1.msra.mxu0 0.0
    %8282 = vmatprep.subr.mxu0 0.0
    %8283 = vmatpush1.msra.mxu0 0.0
    %8284 = vmatprep.subr.mxu0 0.0
    %8285 = vmatpush1.msra.mxu0 0.0
    %8286 = vmatprep.subr.mxu0 0.0
    %8287 = vmatpush1.msra.mxu0 0.0
    %8288 = vmatprep.subr.mxu0 0.0
    %8289 = vmatpush1.msra.mxu0 0.0
    %8290 = vmatprep.subr.mxu0 0.0
    %8291 = vmatpush1.msra.mxu0 0.0
    %8292 = vmatprep.subr.mxu0 0.0
    %8293 = vmatpush1.msra.mxu0 0.0
    %8294 = vmatprep.subr.mxu0 0.0
    %8295 = vmatpush1.msra.mxu0 0.0
    %8296 = vmatprep.subr.mxu0 0.0
    %8297 = vmatpush1.msra.mxu0 0.0
    %8298 = vmatprep.subr.mxu0 0.0
    %8299 = vmatpush1.msra.mxu0 0.0
    %8300 = vmatprep.subr.mxu0 0.0
    %8301 = vmatpush1.msra.mxu0 0.0
    %8302 = vmatprep.subr.mxu0 0.0
    %8303 = vmatpush1.msra.mxu0 0.0
    %8304 = vmatprep.subr.mxu0 0.0
    %8305 = vmatpush1.msra.mxu0 0.0
    %8306 = vmatprep.mubr.f32.mxu0 0.0
    %v8307 = vand.u32 %v7244, 4294901760
    %8308 = vmatmul.mubr.f32.gmra.mrb[0].mxu0 %v8307
    %v8309 = vpop.f32.mrb[0].mxu0
    %v8310 = vadd.f32 %v8208, %v8309
    %v8311 = vpop.f32.mrb[0].mxu0
    %v8312 = vadd.f32 %v8210, %v8311
    %8313 = vdwg.mxu0
    %v8314 = vand.u32 %v7221, 4294901760
    %8315 = vmatprep.subr.mxu0 %v8314
    %v8316 = vand.u32 %v7220, 4294901760
    %8317 = vmatpush1.msra.mxu0 %v8316
    %v8318 = vand.u32 %v7225, 4294901760
    %8319 = vmatprep.subr.mxu0 %v8318
    %v8320 = vand.u32 %v7224, 4294901760
    %8321 = vmatpush1.msra.mxu0 %v8320
    %v8322 = vand.u32 %v7229, 4294901760
    %8323 = vmatprep.subr.mxu0 %v8322
    %v8324 = vand.u32 %v7228, 4294901760
    %8325 = vmatpush1.msra.mxu0 %v8324
    %v8326 = vand.u32 %v7233, 4294901760
    %8327 = vmatprep.subr.mxu0 %v8326
    %v8328 = vand.u32 %v7232, 4294901760
    %8329 = vmatpush1.msra.mxu0 %v8328
    %v8330 = vand.u32 %v7256, 4294901760
    %8331 = vmatprep.subr.mxu0 %v8330
    %v8332 = vand.u32 %v7253, 4294901760
    %8333 = vmatpush1.msra.mxu0 %v8332
    %8334 = vmatprep.subr.mxu0 0.0
    %8335 = vmatpush1.msra.mxu0 0.0
    %8336 = vmatprep.subr.mxu0 0.0
    %8337 = vmatpush1.msra.mxu0 0.0
    %8338 = vmatprep.subr.mxu0 0.0
    %8339 = vmatpush1.msra.mxu0 0.0
    %8340 = vmatprep.subr.mxu0 0.0
    %8341 = vmatpush1.msra.mxu0 0.0
    %8342 = vmatprep.subr.mxu0 0.0
    %8343 = vmatpush1.msra.mxu0 0.0
    %8344 = vmatprep.subr.mxu0 0.0
    %8345 = vmatpush1.msra.mxu0 0.0
    %8346 = vmatprep.subr.mxu0 0.0
    %8347 = vmatpush1.msra.mxu0 0.0
    %8348 = vmatprep.subr.mxu0 0.0
    %8349 = vmatpush1.msra.mxu0 0.0
    %8350 = vmatprep.subr.mxu0 0.0
    %8351 = vmatpush1.msra.mxu0 0.0
    %8352 = vmatprep.subr.mxu0 0.0
    %8353 = vmatpush1.msra.mxu0 0.0
    %8354 = vmatprep.subr.mxu0 0.0
    %8355 = vmatpush1.msra.mxu0 0.0
    %8356 = vmatprep.subr.mxu0 0.0
    %8357 = vmatpush1.msra.mxu0 0.0
    %8358 = vmatprep.subr.mxu0 0.0
    %8359 = vmatpush1.msra.mxu0 0.0
    %8360 = vmatprep.subr.mxu0 0.0
    %8361 = vmatpush1.msra.mxu0 0.0
    %8362 = vmatprep.subr.mxu0 0.0
    %8363 = vmatpush1.msra.mxu0 0.0
    %8364 = vmatprep.subr.mxu0 0.0
    %8365 = vmatpush1.msra.mxu0 0.0
    %8366 = vmatprep.subr.mxu0 0.0
    %8367 = vmatpush1.msra.mxu0 0.0
    %8368 = vmatprep.subr.mxu0 0.0
    %8369 = vmatpush1.msra.mxu0 0.0
    %8370 = vmatprep.subr.mxu0 0.0
    %8371 = vmatpush1.msra.mxu0 0.0
    %8372 = vmatprep.subr.mxu0 0.0
    %8373 = vmatpush1.msra.mxu0 0.0
    %8374 = vmatprep.subr.mxu0 0.0
    %8375 = vmatpush1.msra.mxu0 0.0
    %8376 = vmatprep.subr.mxu0 0.0
    %8377 = vmatpush1.msra.mxu0 0.0
    %8378 = vmatprep.subr.mxu0 0.0
    %8379 = vmatpush1.msra.mxu0 0.0
    %8380 = vmatprep.subr.mxu0 0.0
    %8381 = vmatpush1.msra.mxu0 0.0
    %8382 = vmatprep.subr.mxu0 0.0
    %8383 = vmatpush1.msra.mxu0 0.0
    %8384 = vmatprep.subr.mxu0 0.0
    %8385 = vmatpush1.msra.mxu0 0.0
    %8386 = vmatprep.subr.mxu0 0.0
    %8387 = vmatpush1.msra.mxu0 0.0
    %8388 = vmatprep.mubr.f32.mxu0 0.0
    %v8389 = vand.u32 %v7244, 4294901760
    %8390 = vmatmul.mubr.f32.gmra.mrb[0].mxu0 %v8389
    %v8391 = vpop.f32.mrb[0].mxu0
    %v8392 = vadd.f32 %v8310, %v8391
    %v8393 = vpop.f32.mrb[0].mxu0
    %v8394 = vadd.f32 %v8312, %v8393
    %8395 = vdwg.mxu0
    %v8396 = vmax.f32 %v7823, 0.0
    %v8397 = vmax.f32 %v7825, 0.0
    %v8398 = vmax.f32 %v8392, 0.0
    %v8399 = vmax.f32 %v8394, 0.0
    %v8404 = vcombine.low %v8396, %v8397
    %v8405 = vcombine.low %v8398, %v8399
    %s8408 = scalar_lea.vmem [#allocation7], 80
    %8409 = vst [vmem:[%s8408] sm:$0xff] %v8404
    %8410 = vst [vmem:[%s8408 + $0x8] sm:$0xff] %v8405
    // Predicated region
    $region26: #{tpu_custom_call.1} parent=1 // pred_check
      _
    $region27: #{tpu_custom_call.1} parent=1 // pred_check_branch
      %8412 = sbr.rel (0) target = $region29
    $region28: #{tpu_custom_call.1} parent=1 // pred_region
      %s8414 = ssub.s32 1536, 1536
      %8415 = vsyncadd [#allocation4], %s8414
      %s8416 = sshll.u32 [#allocation7], 4
      %s8417 = int_to_ptr.vmem [resolvable:$true] %s8416
      %8422 = dma.vmem_to_hbm [thread:$0]  %s8417, 1536, %s4, [#allocation4], 256, 256, 16
    $region29: #{tpu_custom_call.1} parent=1 // pred_fallthru
      _
    // Predicated region
    $region30: #{tpu_custom_call.1} parent=1 // pred_check
      _
    $region31: #{tpu_custom_call.1} parent=1 // pred_check_branch
      %8424 = sbr.rel (0) target = $region33
    $region32: #{tpu_custom_call.1} parent=1 // pred_region
      %8425 = dma.done [#allocation4], 1536
    $region33: #{tpu_custom_call.1} parent=1 // pred_fallthru
      _
    %8426 = vsyncpa [#allocation3], 1
    %8427 = vsyncpa [#allocation6], 1
    %8428 = vsyncpa [#allocation4], 1

</llo_original>
